<compile_context>
chip_gen: v7x
topology: tpu7x:2x2x1
jax: 0.10.0
libtpu: 0.0.40
codegen_flags: <defaults>
</compile_context>

<pallas_src>
import jax
import jax.numpy as jnp
from jax import lax
from jax.experimental import pallas as pl
from jax.experimental.pallas import tpu as pltpu


def _round_up(x, m):
    return (x + m - 1) // m * m


# ---------------------------------------------------------------------------
# Kernel 1: conv1(1->32,k3) + 2x2 maxpool + bias + relu, TB samples per step
# ---------------------------------------------------------------------------
def _conv1_pool_kernel(x_ref, w_ref, b_ref, o_ref):
    # x_ref: [TB*13, 112] bf16  row=(b, ph), lane = u*28 + col (4 raw image rows)
    # w_ref: [112, 2048]  bf16  col = phase*512 + pw*32 + c  (lanes 416..511 of
    #                           each 512-lane phase block are zero padding)
    # b_ref: [1, 416] f32       lane = pw*32 + c
    # o_ref: [TB*13, 416] bf16  pooled+relu conv1 activation, lane = pw*32 + c
    p = jnp.dot(x_ref[...], w_ref[...], preferred_element_type=jnp.float32)
    # max over the 4 pooling phases: contiguous 512-lane (vreg-aligned) slices
    m = jnp.maximum(jnp.maximum(p[:, 0:512], p[:, 512:1024]),
                    jnp.maximum(p[:, 1024:1536], p[:, 1536:2048]))
    # bias after the phase-max is valid because bias is constant per channel
    a1 = jnp.maximum(m[:, 0:416] + b_ref[...], 0.0)
    o_ref[...] = a1.astype(o_ref.dtype)


def conv1_stage(xin, w1big, b1big, Bp, TB):
    nblk = Bp // TB
    return pl.pallas_call(
        _conv1_pool_kernel,
        out_shape=jax.ShapeDtypeStruct((Bp * 13, 416), jnp.bfloat16),
        grid=(nblk,),
        in_specs=[
            pl.BlockSpec((TB * 13, 112), lambda i: (i, 0)),
            pl.BlockSpec((112, 2048), lambda i: (0, 0)),
            pl.BlockSpec((1, 416), lambda i: (0, 0)),
        ],
        out_specs=pl.BlockSpec((TB * 13, 416), lambda i: (i, 0)),
        compiler_params=pltpu.CompilerParams(dimension_semantics=("parallel",)),
        cost_estimate=pl.CostEstimate(
            flops=2 * Bp * 13 * 112 * 2048,
            transcendentals=0,
            bytes_accessed=Bp * 13 * (112 + 416) * 2 + 112 * 2048 * 2 + 416 * 4,
        ),
    )(xin, w1big, b1big)


# ---------------------------------------------------------------------------
# Kernel 2: conv2(32->64,k3) + 2x2 maxpool + bias + relu + fc1 + relu + fc2 +
#           log_softmax, fully fused, TB samples per step.
# ---------------------------------------------------------------------------
def _conv2_head_kernel(g_ref, w2_ref, b2_ref, wf1_ref, bf1_ref, wf2_ref,
                       bf2_ref, o_ref):
    # g_ref : [25*TB, 512] bf16  row = q*TB + b (q = pooled pos), lane=(u,v,cin)
    # w2_ref: [512, 512]   bf16  col = phase*128 + cout (cout 64..127 zero-pad)
    # b2_ref: [1, 128] f32       lanes 64..127 zero
    # wf1   : [25, 128, 128] bf16 (rows 64..127 zero), wf2: [128,10] bf16
    # o_ref : [TB, 10] f32  log-probs
    tb = o_ref.shape[0]
    p2 = jnp.dot(g_ref[...], w2_ref[...],
                 preferred_element_type=jnp.float32)          # [25*TB, 512]
    # max over 4 pooling phases: contiguous 128-lane (vreg-aligned) slices
    m = jnp.maximum(jnp.maximum(p2[:, 0:128], p2[:, 128:256]),
                    jnp.maximum(p2[:, 256:384], p2[:, 384:512]))
    a2 = jnp.maximum(m + b2_ref[...], 0.0).astype(jnp.bfloat16)   # [25*TB, 128]

    # fc1 as 25 aligned (TB,128)x(128,128) dots accumulated in f32 — this is the
    # flatten: q lives on 8-aligned sublane slabs, channels on lanes, so no
    # relayout is ever needed.  (Padded lanes hit zero weight rows.)
    h = jnp.zeros((tb, 128), jnp.float32)
    for q in range(25):
        h = h + jnp.dot(a2[q * tb:(q + 1) * tb, :], wf1_ref[q],
                        preferred_element_type=jnp.float32)
    h = jnp.maximum(h + bf1_ref[...], 0.0)                        # [TB, 128]

    logits = jnp.dot(h.astype(jnp.bfloat16), wf2_ref[...],
                     preferred_element_type=jnp.float32) + bf2_ref[...]
    mx = jnp.max(logits, axis=-1, keepdims=True)
    s = logits - mx
    lse = jnp.log(jnp.sum(jnp.exp(s), axis=-1, keepdims=True))
    o_ref[...] = (s - lse).astype(o_ref.dtype)


def conv2_head_stage(g, w2big, b2big, wf1b, bf1, wf2, bf2, Bp, TB):
    nblk = Bp // TB
    return pl.pallas_call(
        _conv2_head_kernel,
        out_shape=jax.ShapeDtypeStruct((Bp, 10), jnp.float32),
        grid=(nblk,),
        in_specs=[
            pl.BlockSpec((None, 25 * TB, 512), lambda i: (i, 0, 0)),
            pl.BlockSpec((512, 512), lambda i: (0, 0)),
            pl.BlockSpec((1, 128), lambda i: (0, 0)),
            pl.BlockSpec((25, 128, 128), lambda i: (0, 0, 0)),
            pl.BlockSpec((1, 128), lambda i: (0, 0)),
            pl.BlockSpec((128, 10), lambda i: (0, 0)),
            pl.BlockSpec((1, 10), lambda i: (0, 0)),
        ],
        out_specs=pl.BlockSpec((TB, 10), lambda i: (i, 0)),
        compiler_params=pltpu.CompilerParams(dimension_semantics=("parallel",)),
        cost_estimate=pl.CostEstimate(
            flops=Bp * (2 * 25 * 512 * 512 + 2 * 25 * 128 * 128 + 2 * 128 * 10),
            transcendentals=Bp * 11,
            bytes_accessed=(25 * Bp * 512 * 2 + 512 * 512 * 2
                            + 25 * 128 * 128 * 2 + Bp * 10 * 4),
        ),
    )(g, w2big, b2big, wf1b, bf1, wf2, bf2)


# ---------------------------------------------------------------------------
# Weight re-layouts (exact relabelings of the PyTorch parameters, tiny, XLA)
# ---------------------------------------------------------------------------
def _build_w1big(w1):
    """conv1 weight [32,1,3,3] -> [112, 2048] phase/column-folded matrix.

    row  = u*28 + col                       (u in 0..3: image row offset)
    col' = phase*512 + pw*32 + c            (lanes 416..511 of each phase = 0)
    value = w1[c,0,u-dr,col-2pw-dc] when the tap is in range, else 0.
    """
    col_idx = jnp.arange(28)[:, None]
    pw_idx = jnp.arange(13)[None, :]
    W = jnp.zeros((4, 28, 4, 13, 32), jnp.float32)     # [u, col, p, pw, c]
    for dr in range(2):
        for dc in range(2):
            p = dr * 2 + dc
            for kh in range(3):
                for kw in range(3):
                    sel = (col_idx == 2 * pw_idx + dc + kw).astype(jnp.float32)
                    contrib = sel[:, :, None] * w1[:, 0, kh, kw][None, None, :]
                    W = W.at[dr + kh, :, p, :, :].add(contrib)
    W = W.reshape(112, 4, 416)
    W = jnp.pad(W, ((0, 0), (0, 0), (0, 96)))
    return W.reshape(112, 2048).astype(jnp.bfloat16)


def _build_w2big(w2):
    """conv2 weight [64,32,3,3] -> [512, 512] phase-folded block matrix.

    row = (u*4+v)*32 + c_in ; col = phase*128 + c_out (c_out 64..127 zero-pad).
    """
    W = jnp.zeros((4, 4, 32, 4, 64), jnp.float32)      # [u, v, cin, p, cout]
    for dr in range(2):
        for dc in range(2):
            p = dr * 2 + dc
            for kh in range(3):
                for kw in range(3):
                    W = W.at[dr + kh, dc + kw, :, p, :].set(w2[:, :, kh, kw].T)
    W = W.reshape(512, 4, 64)
    W = jnp.pad(W, ((0, 0), (0, 0), (0, 64)))
    return W.reshape(512, 512).astype(jnp.bfloat16)


def _build_wf1(fc1_w):
    """fc1 weight [128,1600] (PyTorch flat index = c*25 + q) -> [25,128,128]."""
    W = fc1_w.reshape(128, 64, 25)          # [j, c, q]
    W = jnp.transpose(W, (2, 1, 0))         # [q, c, j]
    W = jnp.pad(W, ((0, 0), (0, 64), (0, 0)))
    return W.astype(jnp.bfloat16)


# ---------------------------------------------------------------------------
# Forward pass
# ---------------------------------------------------------------------------
def network_forward(params, x):
    B = x.shape[0]
    TB = 8 if B <= 16 else 32               # samples per grid step
    Bp = _round_up(B, TB)

    # ---- parameter re-layouts ----
    w1big = _build_w1big(params["conv1_w"])
    b1big = jnp.tile(params["conv1_b"], 13).reshape(1, 416).astype(jnp.float32)
    w2big = _build_w2big(params["conv2_w"])
    b2big = jnp.concatenate(
        [params["conv2_b"], jnp.zeros((64,), jnp.float32)]).reshape(1, 128)
    wf1b = _build_wf1(params["fc1_w"])
    bf1 = params["fc1_b"].reshape(1, 128)
    wf2 = params["fc2_w"].T.astype(jnp.bfloat16)
    bf2 = params["fc2_b"].reshape(1, 10)

    # ---- batch pad ----
    xp = x[:, 0]                                             # [B, 28, 28]
    if Bp != B:
        xp = jnp.pad(xp, ((0, Bp - B), (0, 0), (0, 0)))

    # ---- K1 input: 4 raw image rows per pooled-row position ----
    xin = jnp.concatenate(
        [xp[:, 2 * ph:2 * ph + 4, :].reshape(Bp, 1, 112) for ph in range(13)],
        axis=1)                                              # [Bp, 13, 112]
    xin = xin.reshape(Bp * 13, 112).astype(jnp.bfloat16)

    a1 = conv1_stage(xin, w1big, b1big, Bp, TB)              # [Bp*13, 416] bf16

    # ---- conv2 phase-compact im2col (XLA-side): lane = (u*4+v)*32 + c_in ----
    # TODO(synk): could be folded into a single fully-fused kernel, but the
    # in-kernel strided gather costs more XLU relayout than this HBM round trip.
    a1n = a1.reshape(Bp, 13, 13, 32)
    patches = [a1n[:, u:u + 9:2, v:v + 9:2, :]               # [Bp,5,5,32] each
               for u in range(4) for v in range(4)]
    g = jnp.stack(patches, axis=3).reshape(Bp, 25, 512)      # [Bp, 25, 512]
    nblk = Bp // TB
    g = g.reshape(nblk, TB, 25, 512).transpose(0, 2, 1, 3)   # rows = (q, b)
    g = g.reshape(nblk, 25 * TB, 512)

    out = conv2_head_stage(g, w2big, b2big, wf1b, bf1, wf2, bf2, Bp, TB)
    return out[:B]


# ---------------------------------------------------------------------------
# Pure-JAX reference (mirrors the PyTorch module, f32) for a sanity check
# ---------------------------------------------------------------------------
def reference_forward(params, x):
    B = x.shape[0]
    dn = ("NCHW", "OIHW", "NCHW")
    y = lax.conv_general_dilated(x, params["conv1_w"], (1, 1), "VALID",
                                 dimension_numbers=dn)
    y = y + params["conv1_b"][None, :, None, None]
    y = y.reshape(B, 32, 13, 2, 13, 2).max(axis=(3, 5))
    y = jnp.maximum(y, 0.0)
    y = lax.conv_general_dilated(y, params["conv2_w"], (1, 1), "VALID",
                                 dimension_numbers=dn)
    y = y + params["conv2_b"][None, :, None, None]
    y = y[:, :, :10, :10].reshape(B, 64, 5, 2, 5, 2).max(axis=(3, 5))
    y = jnp.maximum(y, 0.0)
    f = y.reshape(B, 1600)
    h = jnp.maximum(f @ params["fc1_w"].T + params["fc1_b"], 0.0)
    logits = h @ params["fc2_w"].T + params["fc2_b"]
    return jax.nn.log_softmax(logits, axis=-1)


# ---------------------------------------------------------------------------
# Parameters (deterministic, PyTorch-default-like uniform(-1/sqrt(fan_in), .))
# ---------------------------------------------------------------------------
def init_params(key):
    def uni(k, shape, fan_in):
        bound = 1.0 / jnp.sqrt(float(fan_in))
        return jax.random.uniform(k, shape, jnp.float32, -bound, bound)

    ks = jax.random.split(key, 8)
    return {
        "conv1_w": uni(ks[0], (32, 1, 3, 3), 9),
        "conv1_b": uni(ks[1], (32,), 9),
        "conv2_w": uni(ks[2], (64, 32, 3, 3), 288),
        "conv2_b": uni(ks[3], (64,), 288),
        "fc1_w": uni(ks[4], (128, 1600), 1600),   # PyTorch Linear: [out, in]
        "fc1_b": uni(ks[5], (128,), 1600),
        "fc2_w": uni(ks[6], (10, 128), 128),
        "fc2_b": uni(ks[7], (10,), 128),
    }


if __name__ == "__main__":
    key = jax.random.PRNGKey(0)
    pkey, xkey = jax.random.split(key)
    params = init_params(pkey)

    # 28x28 input is required by the module (flatten size 1600); small batch.
    x = jax.random.normal(xkey, (2, 1, 28, 28), dtype=jnp.float32)

    out = jax.jit(network_forward)(params, x)
    out = jax.block_until_ready(out)

    assert out.shape == (2, 10)
    # log_softmax rows must exponentiate-sum to 1
    assert jnp.allclose(jnp.sum(jnp.exp(out), axis=-1), 1.0, atol=1e-3)
    # match the f32 reference within bf16-matmul tolerance
    ref = jax.jit(reference_forward)(params, x)
    assert float(jnp.max(jnp.abs(out - ref))) < 0.1
    print("KERNEL_OK")
</pallas_src>

<mosaic_0001>
module attributes {stable_mosaic.version = 11 : i64} {
  func.func @_conv1_pool_kernel(%arg0: i32, %arg1: memref<104x112xbf16, #tpu.memory_space<vmem>>, %arg2: memref<112x2048xbf16, #tpu.memory_space<vmem>>, %arg3: memref<1x416xf32, #tpu.memory_space<vmem>>, %arg4: memref<104x416xbf16, #tpu.memory_space<vmem>>) attributes {dimension_semantics = [#tpu.dimension_semantics<parallel>], iteration_bounds = array<i64: 1>, scalar_prefetch = 0 : i64, scratch_operands = 0 : i64, tpu.core_type = #tpu.core_type<tc>, window_params = [{transform_indices = @transform_0, window_bounds = array<i64: 104, 112>}, {pipeline_mode = #tpu.pipeline_mode<synchronous>, transform_indices = @transform_1, window_bounds = array<i64: 112, 2048>}, {pipeline_mode = #tpu.pipeline_mode<synchronous>, transform_indices = @transform_2, window_bounds = array<i64: 1, 416>}, {transform_indices = @transform_3, window_bounds = array<i64: 104, 416>}]} {
    %c0 = arith.constant 0 : index
    %c0_0 = arith.constant 0 : index
    %0 = vector.load %arg1[%c0, %c0_0] : memref<104x112xbf16, #tpu.memory_space<vmem>>, vector<104x112xbf16>
    %c0_1 = arith.constant 0 : index
    %c0_2 = arith.constant 0 : index
    %1 = vector.load %arg2[%c0_1, %c0_2] : memref<112x2048xbf16, #tpu.memory_space<vmem>>, vector<112x2048xbf16>
    %cst = arith.constant dense<0.000000e+00> : vector<104x2048xf32>
    %2 = tpu.matmul %0, %1, %cst {dimension_numbers = #tpu.dot_dimension_numbers<[1], [0], [0], [1], [0, 0, 1, 1], [], []>} : vector<104x112xbf16>, vector<112x2048xbf16>, vector<104x2048xf32> -> vector<104x2048xf32>
    %3 = vector.extract_strided_slice %2 {offsets = [0, 0], sizes = [104, 512], strides = [1, 1]} : vector<104x2048xf32> to vector<104x512xf32>
    %4 = vector.extract_strided_slice %2 {offsets = [0, 512], sizes = [104, 512], strides = [1, 1]} : vector<104x2048xf32> to vector<104x512xf32>
    %5 = arith.maximumf %3, %4 : vector<104x512xf32>
    %6 = vector.extract_strided_slice %2 {offsets = [0, 1024], sizes = [104, 512], strides = [1, 1]} : vector<104x2048xf32> to vector<104x512xf32>
    %7 = vector.extract_strided_slice %2 {offsets = [0, 1536], sizes = [104, 512], strides = [1, 1]} : vector<104x2048xf32> to vector<104x512xf32>
    %8 = arith.maximumf %6, %7 : vector<104x512xf32>
    %9 = arith.maximumf %5, %8 : vector<104x512xf32>
    %10 = vector.extract_strided_slice %9 {offsets = [0, 0], sizes = [104, 416], strides = [1, 1]} : vector<104x512xf32> to vector<104x416xf32>
    %c0_3 = arith.constant 0 : index
    %c0_4 = arith.constant 0 : index
    %11 = vector.load %arg3[%c0_3, %c0_4] : memref<1x416xf32, #tpu.memory_space<vmem>>, vector<1x416xf32>
    %12 = vector.broadcast %11 : vector<1x416xf32> to vector<104x416xf32>
    %13 = arith.addf %10, %12 : vector<104x416xf32>
    %cst_5 = arith.constant 0.000000e+00 : f32
    %14 = vector.broadcast %cst_5 : f32 to vector<104x416xf32>
    %15 = arith.maximumf %13, %14 : vector<104x416xf32>
    %16 = arith.truncf %15 : vector<104x416xf32> to vector<104x416xbf16>
    %c0_6 = arith.constant 0 : index
    %c0_7 = arith.constant 0 : index
    %17 = vector.load %arg4[%c0_6, %c0_7] : memref<104x416xbf16, #tpu.memory_space<vmem>>, vector<104x416xbf16>
    tpu.vector_store %arg4[%c0_6, %c0_7], %16 {strides = array<i32>} : memref<104x416xbf16, #tpu.memory_space<vmem>>, vector<104x416xbf16>,
    return
  }
  func.func @transform_0(%arg0: i32) -> (i32, i32) {
    %c0_i32 = arith.constant 0 : i32
    %c0_i32_0 = arith.constant 0 : i32
    return %arg0, %c0_i32 : i32, i32
  }
  func.func @transform_1(%arg0: i32) -> (i32, i32) {
    %c0_i32 = arith.constant 0 : i32
    %c0_i32_0 = arith.constant 0 : i32
    %c0_i32_1 = arith.constant 0 : i32
    return %c0_i32, %c0_i32_0 : i32, i32
  }
  func.func @transform_2(%arg0: i32) -> (i32, i32) {
    %c0_i32 = arith.constant 0 : i32
    %c0_i32_0 = arith.constant 0 : i32
    %c0_i32_1 = arith.constant 0 : i32
    return %c0_i32, %c0_i32_0 : i32, i32
  }
  func.func @transform_3(%arg0: i32) -> (i32, i32) {
    %c0_i32 = arith.constant 0 : i32
    %c0_i32_0 = arith.constant 0 : i32
    return %arg0, %c0_i32 : i32, i32
  }
}

module attributes {stable_mosaic.version = 11 : i64} {
  func.func @_conv2_head_kernel(%arg0: i32, %arg1: memref<1x200x512xbf16, #tpu.memory_space<vmem>>, %arg2: memref<512x512xbf16, #tpu.memory_space<vmem>>, %arg3: memref<1x128xf32, #tpu.memory_space<vmem>>, %arg4: memref<25x128x128xbf16, #tpu.memory_space<vmem>>, %arg5: memref<1x128xf32, #tpu.memory_space<vmem>>, %arg6: memref<128x10xbf16, #tpu.memory_space<vmem>>, %arg7: memref<1x10xf32, #tpu.memory_space<vmem>>, %arg8: memref<8x10xf32, #tpu.memory_space<vmem>>) attributes {dimension_semantics = [#tpu.dimension_semantics<parallel>], iteration_bounds = array<i64: 1>, scalar_prefetch = 0 : i64, scratch_operands = 0 : i64, tpu.core_type = #tpu.core_type<tc>, window_params = [{transform_indices = @transform_0, window_bounds = array<i64: 1, 200, 512>}, {pipeline_mode = #tpu.pipeline_mode<synchronous>, transform_indices = @transform_1, window_bounds = array<i64: 512, 512>}, {pipeline_mode = #tpu.pipeline_mode<synchronous>, transform_indices = @transform_2, window_bounds = array<i64: 1, 128>}, {pipeline_mode = #tpu.pipeline_mode<synchronous>, transform_indices = @transform_3, window_bounds = array<i64: 25, 128, 128>}, {pipeline_mode = #tpu.pipeline_mode<synchronous>, transform_indices = @transform_4, window_bounds = array<i64: 1, 128>}, {pipeline_mode = #tpu.pipeline_mode<synchronous>, transform_indices = @transform_5, window_bounds = array<i64: 128, 10>}, {pipeline_mode = #tpu.pipeline_mode<synchronous>, transform_indices = @transform_6, window_bounds = array<i64: 1, 10>}, {transform_indices = @transform_7, window_bounds = array<i64: 8, 10>}]} {
    %c0 = arith.constant 0 : index
    %c0_0 = arith.constant 0 : index
    %c0_1 = arith.constant 0 : index
    %0 = vector.load %arg1[%c0, %c0_0, %c0_1] : memref<1x200x512xbf16, #tpu.memory_space<vmem>>, vector<1x200x512xbf16>
    %1 = vector.shape_cast %0 : vector<1x200x512xbf16> to vector<200x512xbf16>
    %c0_2 = arith.constant 0 : index
    %c0_3 = arith.constant 0 : index
    %2 = vector.load %arg2[%c0_2, %c0_3] : memref<512x512xbf16, #tpu.memory_space<vmem>>, vector<512x512xbf16>
    %cst = arith.constant dense<0.000000e+00> : vector<200x512xf32>
    %3 = tpu.matmul %1, %2, %cst {dimension_numbers = #tpu.dot_dimension_numbers<[1], [0], [0], [1], [0, 0, 1, 1], [], []>} : vector<200x512xbf16>, vector<512x512xbf16>, vector<200x512xf32> -> vector<200x512xf32>
    %4 = vector.extract_strided_slice %3 {offsets = [0, 0], sizes = [200, 128], strides = [1, 1]} : vector<200x512xf32> to vector<200x128xf32>
    %5 = vector.extract_strided_slice %3 {offsets = [0, 128], sizes = [200, 128], strides = [1, 1]} : vector<200x512xf32> to vector<200x128xf32>
    %6 = arith.maximumf %4, %5 : vector<200x128xf32>
    %7 = vector.extract_strided_slice %3 {offsets = [0, 256], sizes = [200, 128], strides = [1, 1]} : vector<200x512xf32> to vector<200x128xf32>
    %8 = vector.extract_strided_slice %3 {offsets = [0, 384], sizes = [200, 128], strides = [1, 1]} : vector<200x512xf32> to vector<200x128xf32>
    %9 = arith.maximumf %7, %8 : vector<200x128xf32>
    %10 = arith.maximumf %6, %9 : vector<200x128xf32>
    %c0_4 = arith.constant 0 : index
    %c0_5 = arith.constant 0 : index
    %11 = vector.load %arg3[%c0_4, %c0_5] : memref<1x128xf32, #tpu.memory_space<vmem>>, vector<1x128xf32>
    %12 = vector.broadcast %11 : vector<1x128xf32> to vector<200x128xf32>
    %13 = arith.addf %10, %12 : vector<200x128xf32>
    %cst_6 = arith.constant 0.000000e+00 : f32
    %14 = vector.broadcast %cst_6 : f32 to vector<200x128xf32>
    %15 = arith.maximumf %13, %14 : vector<200x128xf32>
    %16 = arith.truncf %15 : vector<200x128xf32> to vector<200x128xbf16>
    %cst_7 = arith.constant 0.000000e+00 : f32
    %17 = vector.broadcast %cst_7 : f32 to vector<8x128xf32>
    %18 = vector.extract_strided_slice %16 {offsets = [0, 0], sizes = [8, 128], strides = [1, 1]} : vector<200x128xbf16> to vector<8x128xbf16>
    %c0_8 = arith.constant 0 : index
    %c0_9 = arith.constant 0 : index
    %c0_10 = arith.constant 0 : index
    %19 = vector.load %arg4[%c0_8, %c0_9, %c0_10] : memref<25x128x128xbf16, #tpu.memory_space<vmem>>, vector<1x128x128xbf16>
    %20 = vector.shape_cast %19 : vector<1x128x128xbf16> to vector<128x128xbf16>
    %cst_11 = arith.constant dense<0.000000e+00> : vector<8x128xf32>
    %21 = tpu.matmul %18, %20, %cst_11 {dimension_numbers = #tpu.dot_dimension_numbers<[1], [0], [0], [1], [0, 0, 1, 1], [], []>} : vector<8x128xbf16>, vector<128x128xbf16>, vector<8x128xf32> -> vector<8x128xf32>
    %22 = arith.addf %17, %21 : vector<8x128xf32>
    %23 = vector.extract_strided_slice %16 {offsets = [8, 0], sizes = [8, 128], strides = [1, 1]} : vector<200x128xbf16> to vector<8x128xbf16>
    %c1 = arith.constant 1 : index
    %c0_12 = arith.constant 0 : index
    %c0_13 = arith.constant 0 : index
    %24 = vector.load %arg4[%c1, %c0_12, %c0_13] : memref<25x128x128xbf16, #tpu.memory_space<vmem>>, vector<1x128x128xbf16>
    %25 = vector.shape_cast %24 : vector<1x128x128xbf16> to vector<128x128xbf16>
    %cst_14 = arith.constant dense<0.000000e+00> : vector<8x128xf32>
    %26 = tpu.matmul %23, %25, %cst_14 {dimension_numbers = #tpu.dot_dimension_numbers<[1], [0], [0], [1], [0, 0, 1, 1], [], []>} : vector<8x128xbf16>, vector<128x128xbf16>, vector<8x128xf32> -> vector<8x128xf32>
    %27 = arith.addf %22, %26 : vector<8x128xf32>
    %28 = vector.extract_strided_slice %16 {offsets = [16, 0], sizes = [8, 128], strides = [1, 1]} : vector<200x128xbf16> to vector<8x128xbf16>
    %c2 = arith.constant 2 : index
    %c0_15 = arith.constant 0 : index
    %c0_16 = arith.constant 0 : index
    %29 = vector.load %arg4[%c2, %c0_15, %c0_16] : memref<25x128x128xbf16, #tpu.memory_space<vmem>>, vector<1x128x128xbf16>
    %30 = vector.shape_cast %29 : vector<1x128x128xbf16> to vector<128x128xbf16>
    %cst_17 = arith.constant dense<0.000000e+00> : vector<8x128xf32>
    %31 = tpu.matmul %28, %30, %cst_17 {dimension_numbers = #tpu.dot_dimension_numbers<[1], [0], [0], [1], [0, 0, 1, 1], [], []>} : vector<8x128xbf16>, vector<128x128xbf16>, vector<8x128xf32> -> vector<8x128xf32>
    %32 = arith.addf %27, %31 : vector<8x128xf32>
    %33 = vector.extract_strided_slice %16 {offsets = [24, 0], sizes = [8, 128], strides = [1, 1]} : vector<200x128xbf16> to vector<8x128xbf16>
    %c3 = arith.constant 3 : index
    %c0_18 = arith.constant 0 : index
    %c0_19 = arith.constant 0 : index
    %34 = vector.load %arg4[%c3, %c0_18, %c0_19] : memref<25x128x128xbf16, #tpu.memory_space<vmem>>, vector<1x128x128xbf16>
    %35 = vector.shape_cast %34 : vector<1x128x128xbf16> to vector<128x128xbf16>
    %cst_20 = arith.constant dense<0.000000e+00> : vector<8x128xf32>
    %36 = tpu.matmul %33, %35, %cst_20 {dimension_numbers = #tpu.dot_dimension_numbers<[1], [0], [0], [1], [0, 0, 1, 1], [], []>} : vector<8x128xbf16>, vector<128x128xbf16>, vector<8x128xf32> -> vector<8x128xf32>
    %37 = arith.addf %32, %36 : vector<8x128xf32>
    %38 = vector.extract_strided_slice %16 {offsets = [32, 0], sizes = [8, 128], strides = [1, 1]} : vector<200x128xbf16> to vector<8x128xbf16>
    %c4 = arith.constant 4 : index
    %c0_21 = arith.constant 0 : index
    %c0_22 = arith.constant 0 : index
    %39 = vector.load %arg4[%c4, %c0_21, %c0_22] : memref<25x128x128xbf16, #tpu.memory_space<vmem>>, vector<1x128x128xbf16>
    %40 = vector.shape_cast %39 : vector<1x128x128xbf16> to vector<128x128xbf16>
    %cst_23 = arith.constant dense<0.000000e+00> : vector<8x128xf32>
    %41 = tpu.matmul %38, %40, %cst_23 {dimension_numbers = #tpu.dot_dimension_numbers<[1], [0], [0], [1], [0, 0, 1, 1], [], []>} : vector<8x128xbf16>, vector<128x128xbf16>, vector<8x128xf32> -> vector<8x128xf32>
    %42 = arith.addf %37, %41 : vector<8x128xf32>
    %43 = vector.extract_strided_slice %16 {offsets = [40, 0], sizes = [8, 128], strides = [1, 1]} : vector<200x128xbf16> to vector<8x128xbf16>
    %c5 = arith.constant 5 : index
    %c0_24 = arith.constant 0 : index
    %c0_25 = arith.constant 0 : index
    %44 = vector.load %arg4[%c5, %c0_24, %c0_25] : memref<25x128x128xbf16, #tpu.memory_space<vmem>>, vector<1x128x128xbf16>
    %45 = vector.shape_cast %44 : vector<1x128x128xbf16> to vector<128x128xbf16>
    %cst_26 = arith.constant dense<0.000000e+00> : vector<8x128xf32>
    %46 = tpu.matmul %43, %45, %cst_26 {dimension_numbers = #tpu.dot_dimension_numbers<[1], [0], [0], [1], [0, 0, 1, 1], [], []>} : vector<8x128xbf16>, vector<128x128xbf16>, vector<8x128xf32> -> vector<8x128xf32>
    %47 = arith.addf %42, %46 : vector<8x128xf32>
    %48 = vector.extract_strided_slice %16 {offsets = [48, 0], sizes = [8, 128], strides = [1, 1]} : vector<200x128xbf16> to vector<8x128xbf16>
    %c6 = arith.constant 6 : index
    %c0_27 = arith.constant 0 : index
    %c0_28 = arith.constant 0 : index
    %49 = vector.load %arg4[%c6, %c0_27, %c0_28] : memref<25x128x128xbf16, #tpu.memory_space<vmem>>, vector<1x128x128xbf16>
    %50 = vector.shape_cast %49 : vector<1x128x128xbf16> to vector<128x128xbf16>
    %cst_29 = arith.constant dense<0.000000e+00> : vector<8x128xf32>
    %51 = tpu.matmul %48, %50, %cst_29 {dimension_numbers = #tpu.dot_dimension_numbers<[1], [0], [0], [1], [0, 0, 1, 1], [], []>} : vector<8x128xbf16>, vector<128x128xbf16>, vector<8x128xf32> -> vector<8x128xf32>
    %52 = arith.addf %47, %51 : vector<8x128xf32>
    %53 = vector.extract_strided_slice %16 {offsets = [56, 0], sizes = [8, 128], strides = [1, 1]} : vector<200x128xbf16> to vector<8x128xbf16>
    %c7 = arith.constant 7 : index
    %c0_30 = arith.constant 0 : index
    %c0_31 = arith.constant 0 : index
    %54 = vector.load %arg4[%c7, %c0_30, %c0_31] : memref<25x128x128xbf16, #tpu.memory_space<vmem>>, vector<1x128x128xbf16>
    %55 = vector.shape_cast %54 : vector<1x128x128xbf16> to vector<128x128xbf16>
    %cst_32 = arith.constant dense<0.000000e+00> : vector<8x128xf32>
    %56 = tpu.matmul %53, %55, %cst_32 {dimension_numbers = #tpu.dot_dimension_numbers<[1], [0], [0], [1], [0, 0, 1, 1], [], []>} : vector<8x128xbf16>, vector<128x128xbf16>, vector<8x128xf32> -> vector<8x128xf32>
    %57 = arith.addf %52, %56 : vector<8x128xf32>
    %58 = vector.extract_strided_slice %16 {offsets = [64, 0], sizes = [8, 128], strides = [1, 1]} : vector<200x128xbf16> to vector<8x128xbf16>
    %c8 = arith.constant 8 : index
    %c0_33 = arith.constant 0 : index
    %c0_34 = arith.constant 0 : index
    %59 = vector.load %arg4[%c8, %c0_33, %c0_34] : memref<25x128x128xbf16, #tpu.memory_space<vmem>>, vector<1x128x128xbf16>
    %60 = vector.shape_cast %59 : vector<1x128x128xbf16> to vector<128x128xbf16>
    %cst_35 = arith.constant dense<0.000000e+00> : vector<8x128xf32>
    %61 = tpu.matmul %58, %60, %cst_35 {dimension_numbers = #tpu.dot_dimension_numbers<[1], [0], [0], [1], [0, 0, 1, 1], [], []>} : vector<8x128xbf16>, vector<128x128xbf16>, vector<8x128xf32> -> vector<8x128xf32>
    %62 = arith.addf %57, %61 : vector<8x128xf32>
    %63 = vector.extract_strided_slice %16 {offsets = [72, 0], sizes = [8, 128], strides = [1, 1]} : vector<200x128xbf16> to vector<8x128xbf16>
    %c9 = arith.constant 9 : index
    %c0_36 = arith.constant 0 : index
    %c0_37 = arith.constant 0 : index
    %64 = vector.load %arg4[%c9, %c0_36, %c0_37] : memref<25x128x128xbf16, #tpu.memory_space<vmem>>, vector<1x128x128xbf16>
    %65 = vector.shape_cast %64 : vector<1x128x128xbf16> to vector<128x128xbf16>
    %cst_38 = arith.constant dense<0.000000e+00> : vector<8x128xf32>
    %66 = tpu.matmul %63, %65, %cst_38 {dimension_numbers = #tpu.dot_dimension_numbers<[1], [0], [0], [1], [0, 0, 1, 1], [], []>} : vector<8x128xbf16>, vector<128x128xbf16>, vector<8x128xf32> -> vector<8x128xf32>
    %67 = arith.addf %62, %66 : vector<8x128xf32>
    %68 = vector.extract_strided_slice %16 {offsets = [80, 0], sizes = [8, 128], strides = [1, 1]} : vector<200x128xbf16> to vector<8x128xbf16>
    %c10 = arith.constant 10 : index
    %c0_39 = arith.constant 0 : index
    %c0_40 = arith.constant 0 : index
    %69 = vector.load %arg4[%c10, %c0_39, %c0_40] : memref<25x128x128xbf16, #tpu.memory_space<vmem>>, vector<1x128x128xbf16>
    %70 = vector.shape_cast %69 : vector<1x128x128xbf16> to vector<128x128xbf16>
    %cst_41 = arith.constant dense<0.000000e+00> : vector<8x128xf32>
    %71 = tpu.matmul %68, %70, %cst_41 {dimension_numbers = #tpu.dot_dimension_numbers<[1], [0], [0], [1], [0, 0, 1, 1], [], []>} : vector<8x128xbf16>, vector<128x128xbf16>, vector<8x128xf32> -> vector<8x128xf32>
    %72 = arith.addf %67, %71 : vector<8x128xf32>
    %73 = vector.extract_strided_slice %16 {offsets = [88, 0], sizes = [8, 128], strides = [1, 1]} : vector<200x128xbf16> to vector<8x128xbf16>
    %c11 = arith.constant 11 : index
    %c0_42 = arith.constant 0 : index
    %c0_43 = arith.constant 0 : index
    %74 = vector.load %arg4[%c11, %c0_42, %c0_43] : memref<25x128x128xbf16, #tpu.memory_space<vmem>>, vector<1x128x128xbf16>
    %75 = vector.shape_cast %74 : vector<1x128x128xbf16> to vector<128x128xbf16>
    %cst_44 = arith.constant dense<0.000000e+00> : vector<8x128xf32>
    %76 = tpu.matmul %73, %75, %cst_44 {dimension_numbers = #tpu.dot_dimension_numbers<[1], [0], [0], [1], [0, 0, 1, 1], [], []>} : vector<8x128xbf16>, vector<128x128xbf16>, vector<8x128xf32> -> vector<8x128xf32>
    %77 = arith.addf %72, %76 : vector<8x128xf32>
    %78 = vector.extract_strided_slice %16 {offsets = [96, 0], sizes = [8, 128], strides = [1, 1]} : vector<200x128xbf16> to vector<8x128xbf16>
    %c12 = arith.constant 12 : index
    %c0_45 = arith.constant 0 : index
    %c0_46 = arith.constant 0 : index
    %79 = vector.load %arg4[%c12, %c0_45, %c0_46] : memref<25x128x128xbf16, #tpu.memory_space<vmem>>, vector<1x128x128xbf16>
    %80 = vector.shape_cast %79 : vector<1x128x128xbf16> to vector<128x128xbf16>
    %cst_47 = arith.constant dense<0.000000e+00> : vector<8x128xf32>
    %81 = tpu.matmul %78, %80, %cst_47 {dimension_numbers = #tpu.dot_dimension_numbers<[1], [0], [0], [1], [0, 0, 1, 1], [], []>} : vector<8x128xbf16>, vector<128x128xbf16>, vector<8x128xf32> -> vector<8x128xf32>
    %82 = arith.addf %77, %81 : vector<8x128xf32>
    %83 = vector.extract_strided_slice %16 {offsets = [104, 0], sizes = [8, 128], strides = [1, 1]} : vector<200x128xbf16> to vector<8x128xbf16>
    %c13 = arith.constant 13 : index
    %c0_48 = arith.constant 0 : index
    %c0_49 = arith.constant 0 : index
    %84 = vector.load %arg4[%c13, %c0_48, %c0_49] : memref<25x128x128xbf16, #tpu.memory_space<vmem>>, vector<1x128x128xbf16>
    %85 = vector.shape_cast %84 : vector<1x128x128xbf16> to vector<128x128xbf16>
    %cst_50 = arith.constant dense<0.000000e+00> : vector<8x128xf32>
    %86 = tpu.matmul %83, %85, %cst_50 {dimension_numbers = #tpu.dot_dimension_numbers<[1], [0], [0], [1], [0, 0, 1, 1], [], []>} : vector<8x128xbf16>, vector<128x128xbf16>, vector<8x128xf32> -> vector<8x128xf32>
    %87 = arith.addf %82, %86 : vector<8x128xf32>
    %88 = vector.extract_strided_slice %16 {offsets = [112, 0], sizes = [8, 128], strides = [1, 1]} : vector<200x128xbf16> to vector<8x128xbf16>
    %c14 = arith.constant 14 : index
    %c0_51 = arith.constant 0 : index
    %c0_52 = arith.constant 0 : index
    %89 = vector.load %arg4[%c14, %c0_51, %c0_52] : memref<25x128x128xbf16, #tpu.memory_space<vmem>>, vector<1x128x128xbf16>
    %90 = vector.shape_cast %89 : vector<1x128x128xbf16> to vector<128x128xbf16>
    %cst_53 = arith.constant dense<0.000000e+00> : vector<8x128xf32>
    %91 = tpu.matmul %88, %90, %cst_53 {dimension_numbers = #tpu.dot_dimension_numbers<[1], [0], [0], [1], [0, 0, 1, 1], [], []>} : vector<8x128xbf16>, vector<128x128xbf16>, vector<8x128xf32> -> vector<8x128xf32>
    %92 = arith.addf %87, %91 : vector<8x128xf32>
    %93 = vector.extract_strided_slice %16 {offsets = [120, 0], sizes = [8, 128], strides = [1, 1]} : vector<200x128xbf16> to vector<8x128xbf16>
    %c15 = arith.constant 15 : index
    %c0_54 = arith.constant 0 : index
    %c0_55 = arith.constant 0 : index
    %94 = vector.load %arg4[%c15, %c0_54, %c0_55] : memref<25x128x128xbf16, #tpu.memory_space<vmem>>, vector<1x128x128xbf16>
    %95 = vector.shape_cast %94 : vector<1x128x128xbf16> to vector<128x128xbf16>
    %cst_56 = arith.constant dense<0.000000e+00> : vector<8x128xf32>
    %96 = tpu.matmul %93, %95, %cst_56 {dimension_numbers = #tpu.dot_dimension_numbers<[1], [0], [0], [1], [0, 0, 1, 1], [], []>} : vector<8x128xbf16>, vector<128x128xbf16>, vector<8x128xf32> -> vector<8x128xf32>
    %97 = arith.addf %92, %96 : vector<8x128xf32>
    %98 = vector.extract_strided_slice %16 {offsets = [128, 0], sizes = [8, 128], strides = [1, 1]} : vector<200x128xbf16> to vector<8x128xbf16>
    %c16 = arith.constant 16 : index
    %c0_57 = arith.constant 0 : index
    %c0_58 = arith.constant 0 : index
    %99 = vector.load %arg4[%c16, %c0_57, %c0_58] : memref<25x128x128xbf16, #tpu.memory_space<vmem>>, vector<1x128x128xbf16>
    %100 = vector.shape_cast %99 : vector<1x128x128xbf16> to vector<128x128xbf16>
    %cst_59 = arith.constant dense<0.000000e+00> : vector<8x128xf32>
    %101 = tpu.matmul %98, %100, %cst_59 {dimension_numbers = #tpu.dot_dimension_numbers<[1], [0], [0], [1], [0, 0, 1, 1], [], []>} : vector<8x128xbf16>, vector<128x128xbf16>, vector<8x128xf32> -> vector<8x128xf32>
    %102 = arith.addf %97, %101 : vector<8x128xf32>
    %103 = vector.extract_strided_slice %16 {offsets = [136, 0], sizes = [8, 128], strides = [1, 1]} : vector<200x128xbf16> to vector<8x128xbf16>
    %c17 = arith.constant 17 : index
    %c0_60 = arith.constant 0 : index
    %c0_61 = arith.constant 0 : index
    %104 = vector.load %arg4[%c17, %c0_60, %c0_61] : memref<25x128x128xbf16, #tpu.memory_space<vmem>>, vector<1x128x128xbf16>
    %105 = vector.shape_cast %104 : vector<1x128x128xbf16> to vector<128x128xbf16>
    %cst_62 = arith.constant dense<0.000000e+00> : vector<8x128xf32>
    %106 = tpu.matmul %103, %105, %cst_62 {dimension_numbers = #tpu.dot_dimension_numbers<[1], [0], [0], [1], [0, 0, 1, 1], [], []>} : vector<8x128xbf16>, vector<128x128xbf16>, vector<8x128xf32> -> vector<8x128xf32>
    %107 = arith.addf %102, %106 : vector<8x128xf32>
    %108 = vector.extract_strided_slice %16 {offsets = [144, 0], sizes = [8, 128], strides = [1, 1]} : vector<200x128xbf16> to vector<8x128xbf16>
    %c18 = arith.constant 18 : index
    %c0_63 = arith.constant 0 : index
    %c0_64 = arith.constant 0 : index
    %109 = vector.load %arg4[%c18, %c0_63, %c0_64] : memref<25x128x128xbf16, #tpu.memory_space<vmem>>, vector<1x128x128xbf16>
    %110 = vector.shape_cast %109 : vector<1x128x128xbf16> to vector<128x128xbf16>
    %cst_65 = arith.constant dense<0.000000e+00> : vector<8x128xf32>
    %111 = tpu.matmul %108, %110, %cst_65 {dimension_numbers = #tpu.dot_dimension_numbers<[1], [0], [0], [1], [0, 0, 1, 1], [], []>} : vector<8x128xbf16>, vector<128x128xbf16>, vector<8x128xf32> -> vector<8x128xf32>
    %112 = arith.addf %107, %111 : vector<8x128xf32>
    %113 = vector.extract_strided_slice %16 {offsets = [152, 0], sizes = [8, 128], strides = [1, 1]} : vector<200x128xbf16> to vector<8x128xbf16>
    %c19 = arith.constant 19 : index
    %c0_66 = arith.constant 0 : index
    %c0_67 = arith.constant 0 : index
    %114 = vector.load %arg4[%c19, %c0_66, %c0_67] : memref<25x128x128xbf16, #tpu.memory_space<vmem>>, vector<1x128x128xbf16>
    %115 = vector.shape_cast %114 : vector<1x128x128xbf16> to vector<128x128xbf16>
    %cst_68 = arith.constant dense<0.000000e+00> : vector<8x128xf32>
    %116 = tpu.matmul %113, %115, %cst_68 {dimension_numbers = #tpu.dot_dimension_numbers<[1], [0], [0], [1], [0, 0, 1, 1], [], []>} : vector<8x128xbf16>, vector<128x128xbf16>, vector<8x128xf32> -> vector<8x128xf32>
    %117 = arith.addf %112, %116 : vector<8x128xf32>
    %118 = vector.extract_strided_slice %16 {offsets = [160, 0], sizes = [8, 128], strides = [1, 1]} : vector<200x128xbf16> to vector<8x128xbf16>
    %c20 = arith.constant 20 : index
    %c0_69 = arith.constant 0 : index
    %c0_70 = arith.constant 0 : index
    %119 = vector.load %arg4[%c20, %c0_69, %c0_70] : memref<25x128x128xbf16, #tpu.memory_space<vmem>>, vector<1x128x128xbf16>
    %120 = vector.shape_cast %119 : vector<1x128x128xbf16> to vector<128x128xbf16>
    %cst_71 = arith.constant dense<0.000000e+00> : vector<8x128xf32>
    %121 = tpu.matmul %118, %120, %cst_71 {dimension_numbers = #tpu.dot_dimension_numbers<[1], [0], [0], [1], [0, 0, 1, 1], [], []>} : vector<8x128xbf16>, vector<128x128xbf16>, vector<8x128xf32> -> vector<8x128xf32>
    %122 = arith.addf %117, %121 : vector<8x128xf32>
    %123 = vector.extract_strided_slice %16 {offsets = [168, 0], sizes = [8, 128], strides = [1, 1]} : vector<200x128xbf16> to vector<8x128xbf16>
    %c21 = arith.constant 21 : index
    %c0_72 = arith.constant 0 : index
    %c0_73 = arith.constant 0 : index
    %124 = vector.load %arg4[%c21, %c0_72, %c0_73] : memref<25x128x128xbf16, #tpu.memory_space<vmem>>, vector<1x128x128xbf16>
    %125 = vector.shape_cast %124 : vector<1x128x128xbf16> to vector<128x128xbf16>
    %cst_74 = arith.constant dense<0.000000e+00> : vector<8x128xf32>
    %126 = tpu.matmul %123, %125, %cst_74 {dimension_numbers = #tpu.dot_dimension_numbers<[1], [0], [0], [1], [0, 0, 1, 1], [], []>} : vector<8x128xbf16>, vector<128x128xbf16>, vector<8x128xf32> -> vector<8x128xf32>
    %127 = arith.addf %122, %126 : vector<8x128xf32>
    %128 = vector.extract_strided_slice %16 {offsets = [176, 0], sizes = [8, 128], strides = [1, 1]} : vector<200x128xbf16> to vector<8x128xbf16>
    %c22 = arith.constant 22 : index
    %c0_75 = arith.constant 0 : index
    %c0_76 = arith.constant 0 : index
    %129 = vector.load %arg4[%c22, %c0_75, %c0_76] : memref<25x128x128xbf16, #tpu.memory_space<vmem>>, vector<1x128x128xbf16>
    %130 = vector.shape_cast %129 : vector<1x128x128xbf16> to vector<128x128xbf16>
    %cst_77 = arith.constant dense<0.000000e+00> : vector<8x128xf32>
    %131 = tpu.matmul %128, %130, %cst_77 {dimension_numbers = #tpu.dot_dimension_numbers<[1], [0], [0], [1], [0, 0, 1, 1], [], []>} : vector<8x128xbf16>, vector<128x128xbf16>, vector<8x128xf32> -> vector<8x128xf32>
    %132 = arith.addf %127, %131 : vector<8x128xf32>
    %133 = vector.extract_strided_slice %16 {offsets = [184, 0], sizes = [8, 128], strides = [1, 1]} : vector<200x128xbf16> to vector<8x128xbf16>
    %c23 = arith.constant 23 : index
    %c0_78 = arith.constant 0 : index
    %c0_79 = arith.constant 0 : index
    %134 = vector.load %arg4[%c23, %c0_78, %c0_79] : memref<25x128x128xbf16, #tpu.memory_space<vmem>>, vector<1x128x128xbf16>
    %135 = vector.shape_cast %134 : vector<1x128x128xbf16> to vector<128x128xbf16>
    %cst_80 = arith.constant dense<0.000000e+00> : vector<8x128xf32>
    %136 = tpu.matmul %133, %135, %cst_80 {dimension_numbers = #tpu.dot_dimension_numbers<[1], [0], [0], [1], [0, 0, 1, 1], [], []>} : vector<8x128xbf16>, vector<128x128xbf16>, vector<8x128xf32> -> vector<8x128xf32>
    %137 = arith.addf %132, %136 : vector<8x128xf32>
    %138 = vector.extract_strided_slice %16 {offsets = [192, 0], sizes = [8, 128], strides = [1, 1]} : vector<200x128xbf16> to vector<8x128xbf16>
    %c24 = arith.constant 24 : index
    %c0_81 = arith.constant 0 : index
    %c0_82 = arith.constant 0 : index
    %139 = vector.load %arg4[%c24, %c0_81, %c0_82] : memref<25x128x128xbf16, #tpu.memory_space<vmem>>, vector<1x128x128xbf16>
    %140 = vector.shape_cast %139 : vector<1x128x128xbf16> to vector<128x128xbf16>
    %cst_83 = arith.constant dense<0.000000e+00> : vector<8x128xf32>
    %141 = tpu.matmul %138, %140, %cst_83 {dimension_numbers = #tpu.dot_dimension_numbers<[1], [0], [0], [1], [0, 0, 1, 1], [], []>} : vector<8x128xbf16>, vector<128x128xbf16>, vector<8x128xf32> -> vector<8x128xf32>
    %142 = arith.addf %137, %141 : vector<8x128xf32>
    %c0_84 = arith.constant 0 : index
    %c0_85 = arith.constant 0 : index
    %143 = vector.load %arg5[%c0_84, %c0_85] : memref<1x128xf32, #tpu.memory_space<vmem>>, vector<1x128xf32>
    %144 = vector.broadcast %143 : vector<1x128xf32> to vector<8x128xf32>
    %145 = arith.addf %142, %144 : vector<8x128xf32>
    %cst_86 = arith.constant 0.000000e+00 : f32
    %146 = vector.broadcast %cst_86 : f32 to vector<8x128xf32>
    %147 = arith.maximumf %145, %146 : vector<8x128xf32>
    %148 = arith.truncf %147 : vector<8x128xf32> to vector<8x128xbf16>
    %c0_87 = arith.constant 0 : index
    %c0_88 = arith.constant 0 : index
    %149 = vector.load %arg6[%c0_87, %c0_88] : memref<128x10xbf16, #tpu.memory_space<vmem>>, vector<128x10xbf16>
    %cst_89 = arith.constant dense<0.000000e+00> : vector<8x10xf32>
    %150 = tpu.matmul %148, %149, %cst_89 {dimension_numbers = #tpu.dot_dimension_numbers<[1], [0], [0], [1], [0, 0, 1, 1], [], []>} : vector<8x128xbf16>, vector<128x10xbf16>, vector<8x10xf32> -> vector<8x10xf32>
    %c0_90 = arith.constant 0 : index
    %c0_91 = arith.constant 0 : index
    %151 = vector.load %arg7[%c0_90, %c0_91] : memref<1x10xf32, #tpu.memory_space<vmem>>, vector<1x10xf32>
    %152 = vector.broadcast %151 : vector<1x10xf32> to vector<8x10xf32>
    %153 = arith.addf %150, %152 : vector<8x10xf32>
    %cst_92 = arith.constant dense<0xFF800000> : vector<8xf32>
    %154 = vector.multi_reduction <maximumf>, %153, %cst_92 [1] : vector<8x10xf32> to vector<8xf32>
    %155 = vector.shape_cast %154 : vector<8xf32> to vector<8x1xf32>
    %156 = vector.broadcast %155 : vector<8x1xf32> to vector<8x10xf32>
    %157 = arith.subf %153, %156 : vector<8x10xf32>
    %158 = math.exp %157 : vector<8x10xf32>
    %cst_93 = arith.constant dense<0.000000e+00> : vector<8xf32>
    %159 = vector.multi_reduction <add>, %158, %cst_93 [1] : vector<8x10xf32> to vector<8xf32>
    %160 = vector.shape_cast %159 : vector<8xf32> to vector<8x1xf32>
    %161 = math.log %160 : vector<8x1xf32>
    %162 = vector.broadcast %161 : vector<8x1xf32> to vector<8x10xf32>
    %163 = arith.subf %157, %162 : vector<8x10xf32>
    %c0_94 = arith.constant 0 : index
    %c0_95 = arith.constant 0 : index
    %164 = vector.load %arg8[%c0_94, %c0_95] : memref<8x10xf32, #tpu.memory_space<vmem>>, vector<8x10xf32>
    tpu.vector_store %arg8[%c0_94, %c0_95], %163 {strides = array<i32>} : memref<8x10xf32, #tpu.memory_space<vmem>>, vector<8x10xf32>,
    return
  }
  func.func @transform_0(%arg0: i32) -> (i32, i32, i32) {
    %c0_i32 = arith.constant 0 : i32
    %c0_i32_0 = arith.constant 0 : i32
    %c0_i32_1 = arith.constant 0 : i32
    return %arg0, %c0_i32, %c0_i32_0 : i32, i32, i32
  }
  func.func @transform_1(%arg0: i32) -> (i32, i32) {
    %c0_i32 = arith.constant 0 : i32
    %c0_i32_0 = arith.constant 0 : i32
    %c0_i32_1 = arith.constant 0 : i32
    return %c0_i32, %c0_i32_0 : i32, i32
  }
  func.func @transform_2(%arg0: i32) -> (i32, i32) {
    %c0_i32 = arith.constant 0 : i32
    %c0_i32_0 = arith.constant 0 : i32
    %c0_i32_1 = arith.constant 0 : i32
    return %c0_i32, %c0_i32_0 : i32, i32
  }
  func.func @transform_3(%arg0: i32) -> (i32, i32, i32) {
    %c0_i32 = arith.constant 0 : i32
    %c0_i32_0 = arith.constant 0 : i32
    %c0_i32_1 = arith.constant 0 : i32
    %c0_i32_2 = arith.constant 0 : i32
    return %c0_i32, %c0_i32_0, %c0_i32_1 : i32, i32, i32
  }
  func.func @transform_4(%arg0: i32) -> (i32, i32) {
    %c0_i32 = arith.constant 0 : i32
    %c0_i32_0 = arith.constant 0 : i32
    %c0_i32_1 = arith.constant 0 : i32
    return %c0_i32, %c0_i32_0 : i32, i32
  }
  func.func @transform_5(%arg0: i32) -> (i32, i32) {
    %c0_i32 = arith.constant 0 : i32
    %c0_i32_0 = arith.constant 0 : i32
    %c0_i32_1 = arith.constant 0 : i32
    return %c0_i32, %c0_i32_0 : i32, i32
  }
  func.func @transform_6(%arg0: i32) -> (i32, i32) {
    %c0_i32 = arith.constant 0 : i32
    %c0_i32_0 = arith.constant 0 : i32
    %c0_i32_1 = arith.constant 0 : i32
    return %c0_i32, %c0_i32_0 : i32, i32
  }
  func.func @transform_7(%arg0: i32) -> (i32, i32) {
    %c0_i32 = arith.constant 0 : i32
    %c0_i32_0 = arith.constant 0 : i32
    return %arg0, %c0_i32 : i32, i32
  }
}

</mosaic_0001>

<llo_original>
// kernel: tile.9
$region0: #{tile.9}
  %s0 = inlined_call_operand.vmem [shape: f32[13,32], index: 0, kind: input, shape index: {}]
  %s1 = inlined_call_operand.vmem [shape: f32[1,416], index: 1, kind: output, shape index: {}]
  $region1: #{tile.9} parent=0
    #allocation0 [shape = 'u8[16384]{0}', space=vmem, size = 0x4000, scoped, tag = 'scoped mem for output reshape']
    %v2 = vld [vmem:[%s0] ss:$4 sm:$0xf]
    %vm3 = vcmask 261120
    %4 = vst.msk [vmem:[#allocation0] ss:$8 sm:$0xf] %vm3, %v2
    %s5 = scalar_lea.vmem %s0, 3
    %v6 = vld [vmem:[%s5] ss:$4 sm:$0x7]
    %7 = vrot.lane.b32.xlu0 %v6, 96
    %v8 = vpop.permute.xlu0 %7
    %vm9 = vcmask 1048320
    %10 = vst.msk [vmem:[#allocation0] ss:$8 sm:$0x7] %vm9, %v8
    %s11 = scalar_lea.vmem %s0, 2
    %v12 = vld [vmem:[%s11] ss:$4 sm:$0x7]
    %13 = vrot.lane.b32.xlu0 %v12, 64
    %v14 = vpop.permute.xlu0 %13
    %vm15 = vcmask 785920
    %16 = vst.msk [vmem:[#allocation0] ss:$8 sm:$0x7] %vm15, %v14
    %s17 = scalar_lea.vmem %s0, 1
    %v18 = vld [vmem:[%s17] ss:$4 sm:$0x7]
    %19 = vrot.lane.b32.xlu0 %v18, 32
    %v20 = vpop.permute.xlu0 %19
    %vm21 = vcmask 523520
    %22 = vst.msk [vmem:[#allocation0] ss:$8 sm:$0x7] %vm21, %v20
    %s24 = sshllo.u32 0, 1
    %v26 = vld [vmem:[#allocation0] sm:%s24]
    %s27 = sshllo.u32 0, 1
    %28 = vst [vmem:[%s1] sm:%s27] %v26
    %s29 = scalar_lea.vmem [#allocation0], 8
    %v30 = vld [vmem:[%s29] sm:%s24]
    %s31 = sshllo.u32 0, 1
    %s32 = scalar_lea.vmem %s1, 1
    %33 = vst [vmem:[%s32] sm:%s31] %v30
    %s34 = scalar_lea.vmem [#allocation0], 16
    %v35 = vld [vmem:[%s34] sm:%s24]
    %s36 = sshllo.u32 0, 1
    %s37 = smul.addr 1, 2
    %s38 = scalar_lea.vmem %s1, %s37
    %39 = vst [vmem:[%s38] sm:%s36] %v35
    %s40 = scalar_lea.vmem [#allocation0], 24
    %v41 = vld [vmem:[%s40] sm:%s24]
    %s42 = sshllo.u32 0, 1
    %s43 = smul.addr 1, 3
    %s44 = scalar_lea.vmem %s1, %s43
    %45 = vst [vmem:[%s44] sm:%s42] %v41

// kernel: tile.8
$region0: #{tile.8}
  #allocation0 [shape = 's32[1]{0}', space=sflag, size = 0x4, scoped, tag = 'scoped memory for tile.8']
  %s0 = inlined_call_operand.vmem [shape: f32[32], index: 0, kind: input, shape index: {}]
  %s1 = inlined_call_operand.vmem [shape: f32[13,32], index: 1, kind: output, shape index: {}]
  // Predicated region
  $region2: #{tile.8} parent=0 // pred_check
    _
  $region3: #{tile.8} parent=0 // pred_check_branch
    %3 = sbr.rel (0) target = $region5
  $region4: #{tile.8} parent=0 // pred_region
    _
  $region5: #{tile.8} parent=0 // pred_fallthru
    _
  %v4 = vld [vmem:[%s0] ss:$0 sm:$0xff]
  %5 = vst [vmem:[%s1] sm:$0xff] %v4
  %s6 = scalar_lea.vmem %s1, 8
  %7 = vst [vmem:[%s6] sm:$0xff] %v4

// kernel: network_forward.2
$region0: #{network_forward.2}
  #allocation0 [shape = 'u32[]', space=smem, size = 0x4, offset = 0x4, fixed_abs, tag = 'smem constant byte address 0x4 - core index']
  #allocation1 [shape = 'u32[144,128]{1,0:T(1,128)}', space=vmem, size = 0x12000, scoped, tag = 'internal scratch']
  %s0 = inlined_call_operand.vmem [shape: bf16[104,112], index: 0, kind: input, shape index: {}]
  %s1 = inlined_call_operand.vmem [shape: bf16[112,2048], index: 1, kind: input, shape index: {}]
  %s2 = inlined_call_operand.vmem [shape: f32[1,416], index: 2, kind: input, shape index: {}]
  %s3 = inlined_call_operand.vmem [shape: bf16[104,416], index: 3, kind: output, shape index: {}]
  %s4 = sld [smem:[#allocation0]]
  $region22: #{network_forward.2} parent=0
    _
  %s6 = ssub.s32 1, %s4
  %s7 = scalar_select 0, %s6, %s4
  // Predicated region
  $region2: #{network_forward.2} parent=0 // pred_check
    _
  $region3: #{network_forward.2} parent=0 // pred_check_branch
    %9 = sbr.rel (0) target = $region5
  $region4: #{network_forward.2} parent=0 // pred_region
    _
  $region5: #{network_forward.2} parent=0 // pred_fallthru
    _
  // Predicated region
  $region6: #{network_forward.2} parent=0 // pred_check
    _
  $region7: #{network_forward.2} parent=0 // pred_check_branch
    %11 = sbr.rel (0) target = $region9
  $region8: #{network_forward.2} parent=0 // pred_region
    _
  $region9: #{network_forward.2} parent=0 // pred_fallthru
    _
  // Predicated region
  $region10: #{network_forward.2} parent=0 // pred_check
    _
  $region11: #{network_forward.2} parent=0 // pred_check_branch
    %13 = sbr.rel (0) target = $region13
  $region12: #{network_forward.2} parent=0 // pred_region
    _
  $region13: #{network_forward.2} parent=0 // pred_fallthru
    _
  %v15 = vld [vmem:[%s0] sm:$0xf]
  %v16 = vld [vmem:[%s0 + $0x4] sm:$0xf]
  %v17 = vld [vmem:[%s0 + $0x8] sm:$0xf]
  %v18 = vld [vmem:[%s0 + $0xc] sm:$0xf]
  %v19 = vld [vmem:[%s0 + $0x10] sm:$0xf]
  %v20 = vld [vmem:[%s0 + $0x14] sm:$0xf]
  %v21 = vld [vmem:[%s0 + $0x18] sm:$0xf]
  %v22 = vld [vmem:[%s0 + $0x1c] sm:$0xf]
  %v23 = vld [vmem:[%s0 + $0x20] sm:$0xf]
  %v24 = vld [vmem:[%s0 + $0x24] sm:$0xf]
  %v25 = vld [vmem:[%s0 + $0x28] sm:$0xf]
  %v26 = vld [vmem:[%s0 + $0x2c] sm:$0xf]
  %v27 = vld [vmem:[%s0 + $0x30] sm:$0xf]
  %v28 = vld [vmem:[%s1] sm:$0xff]
  %v29 = vld [vmem:[%s1 + $0x8] sm:$0xff]
  %v30 = vld [vmem:[%s1 + $0x10] sm:$0xff]
  %v31 = vld [vmem:[%s1 + $0x18] sm:$0xff]
  %v32 = vld [vmem:[%s1 + $0x20] sm:$0xff]
  %v33 = vld [vmem:[%s1 + $0x28] sm:$0xff]
  %v34 = vld [vmem:[%s1 + $0x30] sm:$0xff]
  %v35 = vld [vmem:[%s1 + $0x38] sm:$0xff]
  %v36 = vld [vmem:[%s1 + $0x40] sm:$0xff]
  %v37 = vld [vmem:[%s1 + $0x48] sm:$0xff]
  %v38 = vld [vmem:[%s1 + $0x50] sm:$0xff]
  %v39 = vld [vmem:[%s1 + $0x58] sm:$0xff]
  %v40 = vld [vmem:[%s1 + $0x60] sm:$0xff]
  %v41 = vld [vmem:[%s1 + $0x68] sm:$0xff]
  %v42 = vld [vmem:[%s1 + $0x70] sm:$0xff]
  %v43 = vld [vmem:[%s1 + $0x78] sm:$0xff]
  %v44 = vld [vmem:[%s1 + $0x80] sm:$0xff]
  %v45 = vld [vmem:[%s1 + $0x88] sm:$0xff]
  %v46 = vld [vmem:[%s1 + $0x90] sm:$0xff]
  %v47 = vld [vmem:[%s1 + $0x98] sm:$0xff]
  %v48 = vld [vmem:[%s1 + $0xa0] sm:$0xff]
  %v49 = vld [vmem:[%s1 + $0xa8] sm:$0xff]
  %v50 = vld [vmem:[%s1 + $0xb0] sm:$0xff]
  %v51 = vld [vmem:[%s1 + $0xb8] sm:$0xff]
  %v52 = vld [vmem:[%s1 + $0xc0] sm:$0xff]
  %v53 = vld [vmem:[%s1 + $0xc8] sm:$0xff]
  %v54 = vld [vmem:[%s1 + $0xd0] sm:$0xff]
  %v55 = vld [vmem:[%s1 + $0xd8] sm:$0xff]
  %v56 = vld [vmem:[%s1 + $0xe0] sm:$0xff]
  %v57 = vld [vmem:[%s1 + $0xe8] sm:$0xff]
  %v58 = vld [vmem:[%s1 + $0xf0] sm:$0xff]
  %v59 = vld [vmem:[%s1 + $0xf8] sm:$0xff]
  %v60 = vld [vmem:[%s1 + $0x100] sm:$0xff]
  %v61 = vld [vmem:[%s1 + $0x108] sm:$0xff]
  %v62 = vld [vmem:[%s1 + $0x110] sm:$0xff]
  %v63 = vld [vmem:[%s1 + $0x118] sm:$0xff]
  %v64 = vld [vmem:[%s1 + $0x120] sm:$0xff]
  %v65 = vld [vmem:[%s1 + $0x128] sm:$0xff]
  %v66 = vld [vmem:[%s1 + $0x130] sm:$0xff]
  %v67 = vld [vmem:[%s1 + $0x138] sm:$0xff]
  %v68 = vld [vmem:[%s1 + $0x140] sm:$0xff]
  %v69 = vld [vmem:[%s1 + $0x148] sm:$0xff]
  %v70 = vld [vmem:[%s1 + $0x150] sm:$0xff]
  %v71 = vld [vmem:[%s1 + $0x158] sm:$0xff]
  %v72 = vld [vmem:[%s1 + $0x160] sm:$0xff]
  %v73 = vld [vmem:[%s1 + $0x168] sm:$0xff]
  %v74 = vld [vmem:[%s1 + $0x170] sm:$0xff]
  %v75 = vld [vmem:[%s1 + $0x178] sm:$0xff]
  %v76 = vld [vmem:[%s1 + $0x180] sm:$0xff]
  %v77 = vld [vmem:[%s1 + $0x188] sm:$0xff]
  %v78 = vld [vmem:[%s1 + $0x190] sm:$0xff]
  %v79 = vld [vmem:[%s1 + $0x198] sm:$0xff]
  %v80 = vld [vmem:[%s1 + $0x1a0] sm:$0xff]
  %v81 = vld [vmem:[%s1 + $0x1a8] sm:$0xff]
  %v82 = vld [vmem:[%s1 + $0x1b0] sm:$0xff]
  %v83 = vld [vmem:[%s1 + $0x1b8] sm:$0xff]
  %v84 = vld [vmem:[%s1 + $0x1c0] sm:$0xff]
  %v85 = vld [vmem:[%s1 + $0x1c8] sm:$0xff]
  %v86 = vld [vmem:[%s1 + $0x1d0] sm:$0xff]
  %v87 = vld [vmem:[%s1 + $0x1d8] sm:$0xff]
  %v88 = vld [vmem:[%s1 + $0x1e0] sm:$0xff]
  %v89 = vld [vmem:[%s1 + $0x1e8] sm:$0xff]
  %v90 = vld [vmem:[%s1 + $0x1f0] sm:$0xff]
  %v91 = vld [vmem:[%s1 + $0x1f8] sm:$0xff]
  %v92 = vld [vmem:[%s1 + $0x200] sm:$0xff]
  %v93 = vld [vmem:[%s1 + $0x208] sm:$0xff]
  %v94 = vld [vmem:[%s1 + $0x210] sm:$0xff]
  %v95 = vld [vmem:[%s1 + $0x218] sm:$0xff]
  %v96 = vld [vmem:[%s1 + $0x220] sm:$0xff]
  %v97 = vld [vmem:[%s1 + $0x228] sm:$0xff]
  %v98 = vld [vmem:[%s1 + $0x230] sm:$0xff]
  %v99 = vld [vmem:[%s1 + $0x238] sm:$0xff]
  %v100 = vld [vmem:[%s1 + $0x240] sm:$0xff]
  %v101 = vld [vmem:[%s1 + $0x248] sm:$0xff]
  %v102 = vld [vmem:[%s1 + $0x250] sm:$0xff]
  %v103 = vld [vmem:[%s1 + $0x258] sm:$0xff]
  %v104 = vld [vmem:[%s1 + $0x260] sm:$0xff]
  %v105 = vld [vmem:[%s1 + $0x268] sm:$0xff]
  %v106 = vld [vmem:[%s1 + $0x270] sm:$0xff]
  %v107 = vld [vmem:[%s1 + $0x278] sm:$0xff]
  %v108 = vld [vmem:[%s1 + $0x280] sm:$0xff]
  %v109 = vld [vmem:[%s1 + $0x288] sm:$0xff]
  %v110 = vld [vmem:[%s1 + $0x290] sm:$0xff]
  %v111 = vld [vmem:[%s1 + $0x298] sm:$0xff]
  %v112 = vld [vmem:[%s1 + $0x2a0] sm:$0xff]
  %v113 = vld [vmem:[%s1 + $0x2a8] sm:$0xff]
  %v114 = vld [vmem:[%s1 + $0x2b0] sm:$0xff]
  %v115 = vld [vmem:[%s1 + $0x2b8] sm:$0xff]
  %v116 = vld [vmem:[%s1 + $0x2c0] sm:$0xff]
  %v117 = vld [vmem:[%s1 + $0x2c8] sm:$0xff]
  %v118 = vld [vmem:[%s1 + $0x2d0] sm:$0xff]
  %v119 = vld [vmem:[%s1 + $0x2d8] sm:$0xff]
  %v120 = vld [vmem:[%s1 + $0x2e0] sm:$0xff]
  %v121 = vld [vmem:[%s1 + $0x2e8] sm:$0xff]
  %v122 = vld [vmem:[%s1 + $0x2f0] sm:$0xff]
  %v123 = vld [vmem:[%s1 + $0x2f8] sm:$0xff]
  %v124 = vld [vmem:[%s1 + $0x300] sm:$0xff]
  %v125 = vld [vmem:[%s1 + $0x308] sm:$0xff]
  %v126 = vld [vmem:[%s1 + $0x310] sm:$0xff]
  %v127 = vld [vmem:[%s1 + $0x318] sm:$0xff]
  %v128 = vld [vmem:[%s1 + $0x320] sm:$0xff]
  %v129 = vld [vmem:[%s1 + $0x328] sm:$0xff]
  %v130 = vld [vmem:[%s1 + $0x330] sm:$0xff]
  %v131 = vld [vmem:[%s1 + $0x338] sm:$0xff]
  %v132 = vld [vmem:[%s1 + $0x340] sm:$0xff]
  %v133 = vld [vmem:[%s1 + $0x348] sm:$0xff]
  %v134 = vld [vmem:[%s1 + $0x350] sm:$0xff]
  %v135 = vld [vmem:[%s1 + $0x358] sm:$0xff]
  %v136 = vld [vmem:[%s1 + $0x360] sm:$0xff]
  %v137 = vld [vmem:[%s1 + $0x368] sm:$0xff]
  %v138 = vld [vmem:[%s1 + $0x370] sm:$0xff]
  %v139 = vld [vmem:[%s1 + $0x378] sm:$0xff]
  %v153 = vunpack.c.l.b16 %v15
  %v154 = vunpack.c.l.b16 %v16
  %v155 = vunpack.c.l.b16 %v17
  %v156 = vunpack.c.l.b16 %v18
  %v157 = vunpack.c.l.b16 %v19
  %v158 = vunpack.c.l.b16 %v20
  %v159 = vunpack.c.l.b16 %v21
  %v160 = vunpack.c.l.b16 %v22
  %v161 = vunpack.c.l.b16 %v23
  %v162 = vunpack.c.l.b16 %v24
  %v163 = vunpack.c.l.b16 %v25
  %v164 = vunpack.c.l.b16 %v26
  %v165 = vunpack.c.l.b16 %v27
  %v166 = vpack.c.b16 %v154, %v153
  %v167 = vpack.c.b16 %v156, %v155
  %v168 = vpack.c.b16 %v158, %v157
  %v169 = vpack.c.b16 %v160, %v159
  %v170 = vpack.c.b16 %v162, %v161
  %v171 = vpack.c.b16 %v164, %v163
  %v172 = vpack.c.b16 %v165, %v165
  %v285 = vunpack.c.l.b16 %v28
  %v286 = vunpack.c.h.b16 %v28
  %v287 = vunpack.c.l.b16 %v29
  %v288 = vunpack.c.h.b16 %v29
  %v289 = vunpack.c.l.b16 %v30
  %v290 = vunpack.c.h.b16 %v30
  %v291 = vunpack.c.l.b16 %v31
  %v292 = vunpack.c.h.b16 %v31
  %v293 = vunpack.c.l.b16 %v32
  %v294 = vunpack.c.h.b16 %v32
  %v295 = vunpack.c.l.b16 %v33
  %v296 = vunpack.c.h.b16 %v33
  %v297 = vunpack.c.l.b16 %v34
  %v298 = vunpack.c.h.b16 %v34
  %v299 = vunpack.c.l.b16 %v35
  %v300 = vunpack.c.h.b16 %v35
  %v301 = vunpack.c.l.b16 %v36
  %v302 = vunpack.c.h.b16 %v36
  %v303 = vunpack.c.l.b16 %v37
  %v304 = vunpack.c.h.b16 %v37
  %v305 = vunpack.c.l.b16 %v38
  %v306 = vunpack.c.h.b16 %v38
  %v307 = vunpack.c.l.b16 %v39
  %v308 = vunpack.c.h.b16 %v39
  %v309 = vunpack.c.l.b16 %v40
  %v310 = vunpack.c.h.b16 %v40
  %v311 = vunpack.c.l.b16 %v41
  %v312 = vunpack.c.h.b16 %v41
  %v313 = vunpack.c.l.b16 %v42
  %v314 = vunpack.c.h.b16 %v42
  %v315 = vunpack.c.l.b16 %v43
  %v316 = vunpack.c.h.b16 %v43
  %v317 = vunpack.c.l.b16 %v44
  %v318 = vunpack.c.h.b16 %v44
  %v319 = vunpack.c.l.b16 %v45
  %v320 = vunpack.c.h.b16 %v45
  %v321 = vunpack.c.l.b16 %v46
  %v322 = vunpack.c.h.b16 %v46
  %v323 = vunpack.c.l.b16 %v47
  %v324 = vunpack.c.h.b16 %v47
  %v325 = vunpack.c.l.b16 %v48
  %v326 = vunpack.c.h.b16 %v48
  %v327 = vunpack.c.l.b16 %v49
  %v328 = vunpack.c.h.b16 %v49
  %v329 = vunpack.c.l.b16 %v50
  %v330 = vunpack.c.h.b16 %v50
  %v331 = vunpack.c.l.b16 %v51
  %v332 = vunpack.c.h.b16 %v51
  %v333 = vunpack.c.l.b16 %v52
  %v334 = vunpack.c.h.b16 %v52
  %v335 = vunpack.c.l.b16 %v53
  %v336 = vunpack.c.h.b16 %v53
  %v337 = vunpack.c.l.b16 %v54
  %v338 = vunpack.c.h.b16 %v54
  %v339 = vunpack.c.l.b16 %v55
  %v340 = vunpack.c.h.b16 %v55
  %v341 = vunpack.c.l.b16 %v56
  %v342 = vunpack.c.h.b16 %v56
  %v343 = vunpack.c.l.b16 %v57
  %v344 = vunpack.c.h.b16 %v57
  %v345 = vunpack.c.l.b16 %v58
  %v346 = vunpack.c.h.b16 %v58
  %v347 = vunpack.c.l.b16 %v59
  %v348 = vunpack.c.h.b16 %v59
  %v349 = vunpack.c.l.b16 %v60
  %v350 = vunpack.c.h.b16 %v60
  %v351 = vunpack.c.l.b16 %v61
  %v352 = vunpack.c.h.b16 %v61
  %v353 = vunpack.c.l.b16 %v62
  %v354 = vunpack.c.h.b16 %v62
  %v355 = vunpack.c.l.b16 %v63
  %v356 = vunpack.c.h.b16 %v63
  %v357 = vunpack.c.l.b16 %v64
  %v358 = vunpack.c.h.b16 %v64
  %v359 = vunpack.c.l.b16 %v65
  %v360 = vunpack.c.h.b16 %v65
  %v361 = vunpack.c.l.b16 %v66
  %v362 = vunpack.c.h.b16 %v66
  %v363 = vunpack.c.l.b16 %v67
  %v364 = vunpack.c.h.b16 %v67
  %v365 = vunpack.c.l.b16 %v68
  %v366 = vunpack.c.h.b16 %v68
  %v367 = vunpack.c.l.b16 %v69
  %v368 = vunpack.c.h.b16 %v69
  %v369 = vunpack.c.l.b16 %v70
  %v370 = vunpack.c.h.b16 %v70
  %v371 = vunpack.c.l.b16 %v71
  %v372 = vunpack.c.h.b16 %v71
  %v373 = vunpack.c.l.b16 %v72
  %v374 = vunpack.c.h.b16 %v72
  %v375 = vunpack.c.l.b16 %v73
  %v376 = vunpack.c.h.b16 %v73
  %v377 = vunpack.c.l.b16 %v74
  %v378 = vunpack.c.h.b16 %v74
  %v379 = vunpack.c.l.b16 %v75
  %v380 = vunpack.c.h.b16 %v75
  %v381 = vunpack.c.l.b16 %v76
  %v382 = vunpack.c.h.b16 %v76
  %v383 = vunpack.c.l.b16 %v77
  %v384 = vunpack.c.h.b16 %v77
  %v385 = vunpack.c.l.b16 %v78
  %v386 = vunpack.c.h.b16 %v78
  %v387 = vunpack.c.l.b16 %v79
  %v388 = vunpack.c.h.b16 %v79
  %v389 = vunpack.c.l.b16 %v80
  %v390 = vunpack.c.h.b16 %v80
  %v391 = vunpack.c.l.b16 %v81
  %v392 = vunpack.c.h.b16 %v81
  %v393 = vunpack.c.l.b16 %v82
  %v394 = vunpack.c.h.b16 %v82
  %v395 = vunpack.c.l.b16 %v83
  %v396 = vunpack.c.h.b16 %v83
  %v397 = vunpack.c.l.b16 %v84
  %v398 = vunpack.c.h.b16 %v84
  %v399 = vunpack.c.l.b16 %v85
  %v400 = vunpack.c.h.b16 %v85
  %v401 = vunpack.c.l.b16 %v86
  %v402 = vunpack.c.h.b16 %v86
  %v403 = vunpack.c.l.b16 %v87
  %v404 = vunpack.c.h.b16 %v87
  %v405 = vunpack.c.l.b16 %v88
  %v406 = vunpack.c.h.b16 %v88
  %v407 = vunpack.c.l.b16 %v89
  %v408 = vunpack.c.h.b16 %v89
  %v409 = vunpack.c.l.b16 %v90
  %v410 = vunpack.c.h.b16 %v90
  %v411 = vunpack.c.l.b16 %v91
  %v412 = vunpack.c.h.b16 %v91
  %v413 = vunpack.c.l.b16 %v92
  %v414 = vunpack.c.h.b16 %v92
  %v415 = vunpack.c.l.b16 %v93
  %v416 = vunpack.c.h.b16 %v93
  %v417 = vunpack.c.l.b16 %v94
  %v418 = vunpack.c.h.b16 %v94
  %v419 = vunpack.c.l.b16 %v95
  %v420 = vunpack.c.h.b16 %v95
  %v421 = vunpack.c.l.b16 %v96
  %v422 = vunpack.c.h.b16 %v96
  %v423 = vunpack.c.l.b16 %v97
  %v424 = vunpack.c.h.b16 %v97
  %v425 = vunpack.c.l.b16 %v98
  %v426 = vunpack.c.h.b16 %v98
  %v427 = vunpack.c.l.b16 %v99
  %v428 = vunpack.c.h.b16 %v99
  %v429 = vunpack.c.l.b16 %v100
  %v430 = vunpack.c.h.b16 %v100
  %v431 = vunpack.c.l.b16 %v101
  %v432 = vunpack.c.h.b16 %v101
  %v433 = vunpack.c.l.b16 %v102
  %v434 = vunpack.c.h.b16 %v102
  %v435 = vunpack.c.l.b16 %v103
  %v436 = vunpack.c.h.b16 %v103
  %v437 = vunpack.c.l.b16 %v104
  %v438 = vunpack.c.h.b16 %v104
  %v439 = vunpack.c.l.b16 %v105
  %v440 = vunpack.c.h.b16 %v105
  %v441 = vunpack.c.l.b16 %v106
  %v442 = vunpack.c.h.b16 %v106
  %v443 = vunpack.c.l.b16 %v107
  %v444 = vunpack.c.h.b16 %v107
  %v445 = vunpack.c.l.b16 %v108
  %v446 = vunpack.c.h.b16 %v108
  %v447 = vunpack.c.l.b16 %v109
  %v448 = vunpack.c.h.b16 %v109
  %v449 = vunpack.c.l.b16 %v110
  %v450 = vunpack.c.h.b16 %v110
  %v451 = vunpack.c.l.b16 %v111
  %v452 = vunpack.c.h.b16 %v111
  %v453 = vunpack.c.l.b16 %v112
  %v454 = vunpack.c.h.b16 %v112
  %v455 = vunpack.c.l.b16 %v113
  %v456 = vunpack.c.h.b16 %v113
  %v457 = vunpack.c.l.b16 %v114
  %v458 = vunpack.c.h.b16 %v114
  %v459 = vunpack.c.l.b16 %v115
  %v460 = vunpack.c.h.b16 %v115
  %v461 = vunpack.c.l.b16 %v116
  %v462 = vunpack.c.h.b16 %v116
  %v463 = vunpack.c.l.b16 %v117
  %v464 = vunpack.c.h.b16 %v117
  %v465 = vunpack.c.l.b16 %v118
  %v466 = vunpack.c.h.b16 %v118
  %v467 = vunpack.c.l.b16 %v119
  %v468 = vunpack.c.h.b16 %v119
  %v469 = vunpack.c.l.b16 %v120
  %v470 = vunpack.c.h.b16 %v120
  %v471 = vunpack.c.l.b16 %v121
  %v472 = vunpack.c.h.b16 %v121
  %v473 = vunpack.c.l.b16 %v122
  %v474 = vunpack.c.h.b16 %v122
  %v475 = vunpack.c.l.b16 %v123
  %v476 = vunpack.c.h.b16 %v123
  %v477 = vunpack.c.l.b16 %v124
  %v478 = vunpack.c.h.b16 %v124
  %v479 = vunpack.c.l.b16 %v125
  %v480 = vunpack.c.h.b16 %v125
  %v481 = vunpack.c.l.b16 %v126
  %v482 = vunpack.c.h.b16 %v126
  %v483 = vunpack.c.l.b16 %v127
  %v484 = vunpack.c.h.b16 %v127
  %v485 = vunpack.c.l.b16 %v128
  %v486 = vunpack.c.h.b16 %v128
  %v487 = vunpack.c.l.b16 %v129
  %v488 = vunpack.c.h.b16 %v129
  %v489 = vunpack.c.l.b16 %v130
  %v490 = vunpack.c.h.b16 %v130
  %v491 = vunpack.c.l.b16 %v131
  %v492 = vunpack.c.h.b16 %v131
  %v493 = vunpack.c.l.b16 %v132
  %v494 = vunpack.c.h.b16 %v132
  %v495 = vunpack.c.l.b16 %v133
  %v496 = vunpack.c.h.b16 %v133
  %v497 = vunpack.c.l.b16 %v134
  %v498 = vunpack.c.h.b16 %v134
  %v499 = vunpack.c.l.b16 %v135
  %v500 = vunpack.c.h.b16 %v135
  %v501 = vunpack.c.l.b16 %v136
  %v502 = vunpack.c.h.b16 %v136
  %v503 = vunpack.c.l.b16 %v137
  %v504 = vunpack.c.h.b16 %v137
  %v505 = vunpack.c.l.b16 %v138
  %v506 = vunpack.c.h.b16 %v138
  %v507 = vunpack.c.l.b16 %v139
  %v508 = vunpack.c.h.b16 %v139
  %v509 = vpack.c.b16 %v301, %v285
  %v510 = vpack.c.b16 %v302, %v286
  %v511 = vpack.c.b16 %v303, %v287
  %v512 = vpack.c.b16 %v304, %v288
  %v513 = vpack.c.b16 %v305, %v289
  %v514 = vpack.c.b16 %v306, %v290
  %v515 = vpack.c.b16 %v307, %v291
  %v516 = vpack.c.b16 %v308, %v292
  %v517 = vpack.c.b16 %v309, %v293
  %v518 = vpack.c.b16 %v310, %v294
  %v519 = vpack.c.b16 %v311, %v295
  %v520 = vpack.c.b16 %v312, %v296
  %v521 = vpack.c.b16 %v313, %v297
  %v522 = vpack.c.b16 %v314, %v298
  %v523 = vpack.c.b16 %v315, %v299
  %v524 = vpack.c.b16 %v316, %v300
  %v525 = vpack.c.b16 %v333, %v317
  %v526 = vpack.c.b16 %v334, %v318
  %v527 = vpack.c.b16 %v335, %v319
  %v528 = vpack.c.b16 %v336, %v320
  %v529 = vpack.c.b16 %v337, %v321
  %v530 = vpack.c.b16 %v338, %v322
  %v531 = vpack.c.b16 %v339, %v323
  %v532 = vpack.c.b16 %v340, %v324
  %v533 = vpack.c.b16 %v341, %v325
  %v534 = vpack.c.b16 %v342, %v326
  %v535 = vpack.c.b16 %v343, %v327
  %v536 = vpack.c.b16 %v344, %v328
  %v537 = vpack.c.b16 %v345, %v329
  %v538 = vpack.c.b16 %v346, %v330
  %v539 = vpack.c.b16 %v347, %v331
  %v540 = vpack.c.b16 %v348, %v332
  %v541 = vpack.c.b16 %v365, %v349
  %v542 = vpack.c.b16 %v366, %v350
  %v543 = vpack.c.b16 %v367, %v351
  %v544 = vpack.c.b16 %v368, %v352
  %v545 = vpack.c.b16 %v369, %v353
  %v546 = vpack.c.b16 %v370, %v354
  %v547 = vpack.c.b16 %v371, %v355
  %v548 = vpack.c.b16 %v372, %v356
  %v549 = vpack.c.b16 %v373, %v357
  %v550 = vpack.c.b16 %v374, %v358
  %v551 = vpack.c.b16 %v375, %v359
  %v552 = vpack.c.b16 %v376, %v360
  %v553 = vpack.c.b16 %v377, %v361
  %v554 = vpack.c.b16 %v378, %v362
  %v555 = vpack.c.b16 %v379, %v363
  %v556 = vpack.c.b16 %v380, %v364
  %v557 = vpack.c.b16 %v397, %v381
  %v558 = vpack.c.b16 %v398, %v382
  %v559 = vpack.c.b16 %v399, %v383
  %v560 = vpack.c.b16 %v400, %v384
  %v561 = vpack.c.b16 %v401, %v385
  %v562 = vpack.c.b16 %v402, %v386
  %v563 = vpack.c.b16 %v403, %v387
  %v564 = vpack.c.b16 %v404, %v388
  %v565 = vpack.c.b16 %v405, %v389
  %v566 = vpack.c.b16 %v406, %v390
  %v567 = vpack.c.b16 %v407, %v391
  %v568 = vpack.c.b16 %v408, %v392
  %v569 = vpack.c.b16 %v409, %v393
  %v570 = vpack.c.b16 %v410, %v394
  %v571 = vpack.c.b16 %v411, %v395
  %v572 = vpack.c.b16 %v412, %v396
  %v573 = vpack.c.b16 %v429, %v413
  %v574 = vpack.c.b16 %v430, %v414
  %v575 = vpack.c.b16 %v431, %v415
  %v576 = vpack.c.b16 %v432, %v416
  %v577 = vpack.c.b16 %v433, %v417
  %v578 = vpack.c.b16 %v434, %v418
  %v579 = vpack.c.b16 %v435, %v419
  %v580 = vpack.c.b16 %v436, %v420
  %v581 = vpack.c.b16 %v437, %v421
  %v582 = vpack.c.b16 %v438, %v422
  %v583 = vpack.c.b16 %v439, %v423
  %v584 = vpack.c.b16 %v440, %v424
  %v585 = vpack.c.b16 %v441, %v425
  %v586 = vpack.c.b16 %v442, %v426
  %v587 = vpack.c.b16 %v443, %v427
  %v588 = vpack.c.b16 %v444, %v428
  %v589 = vpack.c.b16 %v461, %v445
  %v590 = vpack.c.b16 %v462, %v446
  %v591 = vpack.c.b16 %v463, %v447
  %v592 = vpack.c.b16 %v464, %v448
  %v593 = vpack.c.b16 %v465, %v449
  %v594 = vpack.c.b16 %v466, %v450
  %v595 = vpack.c.b16 %v467, %v451
  %v596 = vpack.c.b16 %v468, %v452
  %v597 = vpack.c.b16 %v469, %v453
  %v598 = vpack.c.b16 %v470, %v454
  %v599 = vpack.c.b16 %v471, %v455
  %v600 = vpack.c.b16 %v472, %v456
  %v601 = vpack.c.b16 %v473, %v457
  %v602 = vpack.c.b16 %v474, %v458
  %v603 = vpack.c.b16 %v475, %v459
  %v604 = vpack.c.b16 %v476, %v460
  %v605 = vpack.c.b16 %v493, %v477
  %v606 = vpack.c.b16 %v494, %v478
  %v607 = vpack.c.b16 %v495, %v479
  %v608 = vpack.c.b16 %v496, %v480
  %v609 = vpack.c.b16 %v497, %v481
  %v610 = vpack.c.b16 %v498, %v482
  %v611 = vpack.c.b16 %v499, %v483
  %v612 = vpack.c.b16 %v500, %v484
  %v613 = vpack.c.b16 %v501, %v485
  %v614 = vpack.c.b16 %v502, %v486
  %v615 = vpack.c.b16 %v503, %v487
  %v616 = vpack.c.b16 %v504, %v488
  %v617 = vpack.c.b16 %v505, %v489
  %v618 = vpack.c.b16 %v506, %v490
  %v619 = vpack.c.b16 %v507, %v491
  %v620 = vpack.c.b16 %v508, %v492
  %vm733 = vcmask 916480
  %v735 = vsel %vm733, %v166, 0
  %v738 = vsel %vm733, %v167, 0
  %v741 = vsel %vm733, %v168, 0
  %v744 = vsel %vm733, %v169, 0
  %v747 = vsel %vm733, %v170, 0
  %v750 = vsel %vm733, %v171, 0
  %v753 = vsel %vm733, %v172, 0
  %755 = vmatprep.subr.bf16.mxu0 %v510
  %756 = vmatpush1.bf16.msra.mxu0 %v509
  %757 = vmatprep.subr.bf16.mxu0 %v526
  %758 = vmatpush1.bf16.msra.mxu0 %v525
  %759 = vmatprep.subr.bf16.mxu0 %v542
  %760 = vmatpush1.bf16.msra.mxu0 %v541
  %761 = vmatprep.subr.bf16.mxu0 %v558
  %762 = vmatpush1.bf16.msra.mxu0 %v557
  %763 = vmatprep.subr.bf16.mxu0 %v574
  %764 = vmatpush1.bf16.msra.mxu0 %v573
  %765 = vmatprep.subr.bf16.mxu0 %v590
  %766 = vmatpush1.bf16.msra.mxu0 %v589
  %767 = vmatprep.subr.bf16.mxu0 %v606
  %768 = vmatpush1.bf16.msra.mxu0 %v605
  %769 = vmatprep.subr.bf16.mxu0 0
  %770 = vmatpush1.bf16.msra.mxu0 0
  %771 = vmatprep.subr.bf16.mxu0 0
  %772 = vmatpush1.bf16.msra.mxu0 0
  %773 = vmatprep.subr.bf16.mxu0 0
  %774 = vmatpush1.bf16.msra.mxu0 0
  %775 = vmatprep.subr.bf16.mxu0 0
  %776 = vmatpush1.bf16.msra.mxu0 0
  %777 = vmatprep.subr.bf16.mxu0 0
  %778 = vmatpush1.bf16.msra.mxu0 0
  %779 = vmatprep.subr.bf16.mxu0 0
  %780 = vmatpush1.bf16.msra.mxu0 0
  %781 = vmatprep.subr.bf16.mxu0 0
  %782 = vmatpush1.bf16.msra.mxu0 0
  %783 = vmatprep.subr.bf16.mxu0 0
  %784 = vmatpush1.bf16.msra.mxu0 0
  %785 = vmatprep.subr.bf16.mxu0 0
  %786 = vmatpush1.bf16.msra.mxu0 0
  %787 = vmatprep.mubr.bf16.mxu0 0
  %788 = vmatmul.mubr.bf16.gmra.mrb[0].mxu0 %v735
  %v789 = vpop.f32.mrb[0].mxu0
  %v790 = vadd.f32 0.0, %v789
  %v791 = vpop.f32.mrb[0].mxu0
  %v792 = vadd.f32 0.0, %v791
  %v793 = vpop.f32.mrb[0].mxu0
  %v794 = vadd.f32 0.0, %v793
  %v795 = vpop.f32.mrb[0].mxu0
  %v796 = vadd.f32 0.0, %v795
  %797 = vmatprep.mubr.bf16.mxu0 0
  %798 = vmatmul.mubr.bf16.gmra.mrb[0].mxu0 %v738
  %v799 = vpop.f32.mrb[0].mxu0
  %v800 = vadd.f32 0.0, %v799
  %v801 = vpop.f32.mrb[0].mxu0
  %v802 = vadd.f32 0.0, %v801
  %v803 = vpop.f32.mrb[0].mxu0
  %v804 = vadd.f32 0.0, %v803
  %v805 = vpop.f32.mrb[0].mxu0
  %v806 = vadd.f32 0.0, %v805
  %807 = vmatprep.mubr.bf16.mxu0 0
  %808 = vmatmul.mubr.bf16.gmra.mrb[0].mxu0 %v741
  %v809 = vpop.f32.mrb[0].mxu0
  %v810 = vadd.f32 0.0, %v809
  %v811 = vpop.f32.mrb[0].mxu0
  %v812 = vadd.f32 0.0, %v811
  %v813 = vpop.f32.mrb[0].mxu0
  %v814 = vadd.f32 0.0, %v813
  %v815 = vpop.f32.mrb[0].mxu0
  %v816 = vadd.f32 0.0, %v815
  %817 = vmatprep.mubr.bf16.mxu0 0
  %818 = vmatmul.mubr.bf16.gmra.mrb[0].mxu0 %v744
  %v819 = vpop.f32.mrb[0].mxu0
  %v820 = vadd.f32 0.0, %v819
  %v821 = vpop.f32.mrb[0].mxu0
  %v822 = vadd.f32 0.0, %v821
  %v823 = vpop.f32.mrb[0].mxu0
  %v824 = vadd.f32 0.0, %v823
  %v825 = vpop.f32.mrb[0].mxu0
  %v826 = vadd.f32 0.0, %v825
  %827 = vmatprep.mubr.bf16.mxu0 0
  %828 = vmatmul.mubr.bf16.gmra.mrb[0].mxu0 %v747
  %v829 = vpop.f32.mrb[0].mxu0
  %v830 = vadd.f32 0.0, %v829
  %v831 = vpop.f32.mrb[0].mxu0
  %v832 = vadd.f32 0.0, %v831
  %v833 = vpop.f32.mrb[0].mxu0
  %v834 = vadd.f32 0.0, %v833
  %v835 = vpop.f32.mrb[0].mxu0
  %v836 = vadd.f32 0.0, %v835
  %837 = vmatprep.mubr.bf16.mxu0 0
  %838 = vmatmul.mubr.bf16.gmra.mrb[0].mxu0 %v750
  %v839 = vpop.f32.mrb[0].mxu0
  %v840 = vadd.f32 0.0, %v839
  %v841 = vpop.f32.mrb[0].mxu0
  %v842 = vadd.f32 0.0, %v841
  %v843 = vpop.f32.mrb[0].mxu0
  %v844 = vadd.f32 0.0, %v843
  %v845 = vpop.f32.mrb[0].mxu0
  %v846 = vadd.f32 0.0, %v845
  %847 = vmatprep.mubr.bf16.mxu0 0
  %848 = vmatmul.mubr.bf16.gmra.mrb[0].mxu0 %v753
  %v849 = vpop.f32.mrb[0].mxu0
  %v850 = vadd.f32 0.0, %v849
  %v851 = vpop.f32.mrb[0].mxu0
  %v852 = vadd.f32 0.0, %v851
  %v853 = vpop.f32.mrb[0].mxu0
  %v854 = vpop.f32.mrb[0].mxu0
  %855 = vdwg.mxu0
  %856 = vmatprep.subr.bf16.mxu0 %v512
  %857 = vmatpush1.bf16.msra.mxu0 %v511
  %858 = vmatprep.subr.bf16.mxu0 %v528
  %859 = vmatpush1.bf16.msra.mxu0 %v527
  %860 = vmatprep.subr.bf16.mxu0 %v544
  %861 = vmatpush1.bf16.msra.mxu0 %v543
  %862 = vmatprep.subr.bf16.mxu0 %v560
  %863 = vmatpush1.bf16.msra.mxu0 %v559
  %864 = vmatprep.subr.bf16.mxu0 %v576
  %865 = vmatpush1.bf16.msra.mxu0 %v575
  %866 = vmatprep.subr.bf16.mxu0 %v592
  %867 = vmatpush1.bf16.msra.mxu0 %v591
  %868 = vmatprep.subr.bf16.mxu0 %v608
  %869 = vmatpush1.bf16.msra.mxu0 %v607
  %870 = vmatprep.subr.bf16.mxu0 0
  %871 = vmatpush1.bf16.msra.mxu0 0
  %872 = vmatprep.subr.bf16.mxu0 0
  %873 = vmatpush1.bf16.msra.mxu0 0
  %874 = vmatprep.subr.bf16.mxu0 0
  %875 = vmatpush1.bf16.msra.mxu0 0
  %876 = vmatprep.subr.bf16.mxu0 0
  %877 = vmatpush1.bf16.msra.mxu0 0
  %878 = vmatprep.subr.bf16.mxu0 0
  %879 = vmatpush1.bf16.msra.mxu0 0
  %880 = vmatprep.subr.bf16.mxu0 0
  %881 = vmatpush1.bf16.msra.mxu0 0
  %882 = vmatprep.subr.bf16.mxu0 0
  %883 = vmatpush1.bf16.msra.mxu0 0
  %884 = vmatprep.subr.bf16.mxu0 0
  %885 = vmatpush1.bf16.msra.mxu0 0
  %886 = vmatprep.subr.bf16.mxu0 0
  %887 = vmatpush1.bf16.msra.mxu0 0
  %888 = vmatprep.mubr.bf16.mxu0 0
  %889 = vmatmul.mubr.bf16.gmra.mrb[0].mxu0 %v735
  %v890 = vpop.f32.mrb[0].mxu0
  %v891 = vadd.f32 0.0, %v890
  %v892 = vpop.f32.mrb[0].mxu0
  %v893 = vadd.f32 0.0, %v892
  %v894 = vpop.f32.mrb[0].mxu0
  %v895 = vadd.f32 0.0, %v894
  %v896 = vpop.f32.mrb[0].mxu0
  %v897 = vadd.f32 0.0, %v896
  %898 = vmatprep.mubr.bf16.mxu0 0
  %899 = vmatmul.mubr.bf16.gmra.mrb[0].mxu0 %v738
  %v900 = vpop.f32.mrb[0].mxu0
  %v901 = vadd.f32 0.0, %v900
  %v902 = vpop.f32.mrb[0].mxu0
  %v903 = vadd.f32 0.0, %v902
  %v904 = vpop.f32.mrb[0].mxu0
  %v905 = vadd.f32 0.0, %v904
  %v906 = vpop.f32.mrb[0].mxu0
  %v907 = vadd.f32 0.0, %v906
  %908 = vmatprep.mubr.bf16.mxu0 0
  %909 = vmatmul.mubr.bf16.gmra.mrb[0].mxu0 %v741
  %v910 = vpop.f32.mrb[0].mxu0
  %v911 = vadd.f32 0.0, %v910
  %v912 = vpop.f32.mrb[0].mxu0
  %v913 = vadd.f32 0.0, %v912
  %v914 = vpop.f32.mrb[0].mxu0
  %v915 = vadd.f32 0.0, %v914
  %v916 = vpop.f32.mrb[0].mxu0
  %v917 = vadd.f32 0.0, %v916
  %918 = vmatprep.mubr.bf16.mxu0 0
  %919 = vmatmul.mubr.bf16.gmra.mrb[0].mxu0 %v744
  %v920 = vpop.f32.mrb[0].mxu0
  %v921 = vadd.f32 0.0, %v920
  %v922 = vpop.f32.mrb[0].mxu0
  %v923 = vadd.f32 0.0, %v922
  %v924 = vpop.f32.mrb[0].mxu0
  %v925 = vadd.f32 0.0, %v924
  %v926 = vpop.f32.mrb[0].mxu0
  %v927 = vadd.f32 0.0, %v926
  %928 = vmatprep.mubr.bf16.mxu0 0
  %929 = vmatmul.mubr.bf16.gmra.mrb[0].mxu0 %v747
  %v930 = vpop.f32.mrb[0].mxu0
  %v931 = vadd.f32 0.0, %v930
  %v932 = vpop.f32.mrb[0].mxu0
  %v933 = vadd.f32 0.0, %v932
  %v934 = vpop.f32.mrb[0].mxu0
  %v935 = vadd.f32 0.0, %v934
  %v936 = vpop.f32.mrb[0].mxu0
  %v937 = vadd.f32 0.0, %v936
  %938 = vmatprep.mubr.bf16.mxu0 0
  %939 = vmatmul.mubr.bf16.gmra.mrb[0].mxu0 %v750
  %v940 = vpop.f32.mrb[0].mxu0
  %v941 = vadd.f32 0.0, %v940
  %v942 = vpop.f32.mrb[0].mxu0
  %v943 = vadd.f32 0.0, %v942
  %v944 = vpop.f32.mrb[0].mxu0
  %v945 = vadd.f32 0.0, %v944
  %v946 = vpop.f32.mrb[0].mxu0
  %v947 = vadd.f32 0.0, %v946
  %948 = vmatprep.mubr.bf16.mxu0 0
  %949 = vmatmul.mubr.bf16.gmra.mrb[0].mxu0 %v753
  %v950 = vpop.f32.mrb[0].mxu0
  %v951 = vadd.f32 0.0, %v950
  %v952 = vpop.f32.mrb[0].mxu0
  %v953 = vadd.f32 0.0, %v952
  %v954 = vpop.f32.mrb[0].mxu0
  %v955 = vpop.f32.mrb[0].mxu0
  %956 = vdwg.mxu0
  %957 = vmatprep.subr.bf16.mxu0 %v514
  %958 = vmatpush1.bf16.msra.mxu0 %v513
  %959 = vmatprep.subr.bf16.mxu0 %v530
  %960 = vmatpush1.bf16.msra.mxu0 %v529
  %961 = vmatprep.subr.bf16.mxu0 %v546
  %962 = vmatpush1.bf16.msra.mxu0 %v545
  %963 = vmatprep.subr.bf16.mxu0 %v562
  %964 = vmatpush1.bf16.msra.mxu0 %v561
  %965 = vmatprep.subr.bf16.mxu0 %v578
  %966 = vmatpush1.bf16.msra.mxu0 %v577
  %967 = vmatprep.subr.bf16.mxu0 %v594
  %968 = vmatpush1.bf16.msra.mxu0 %v593
  %969 = vmatprep.subr.bf16.mxu0 %v610
  %970 = vmatpush1.bf16.msra.mxu0 %v609
  %971 = vmatprep.subr.bf16.mxu0 0
  %972 = vmatpush1.bf16.msra.mxu0 0
  %973 = vmatprep.subr.bf16.mxu0 0
  %974 = vmatpush1.bf16.msra.mxu0 0
  %975 = vmatprep.subr.bf16.mxu0 0
  %976 = vmatpush1.bf16.msra.mxu0 0
  %977 = vmatprep.subr.bf16.mxu0 0
  %978 = vmatpush1.bf16.msra.mxu0 0
  %979 = vmatprep.subr.bf16.mxu0 0
  %980 = vmatpush1.bf16.msra.mxu0 0
  %981 = vmatprep.subr.bf16.mxu0 0
  %982 = vmatpush1.bf16.msra.mxu0 0
  %983 = vmatprep.subr.bf16.mxu0 0
  %984 = vmatpush1.bf16.msra.mxu0 0
  %985 = vmatprep.subr.bf16.mxu0 0
  %986 = vmatpush1.bf16.msra.mxu0 0
  %987 = vmatprep.subr.bf16.mxu0 0
  %988 = vmatpush1.bf16.msra.mxu0 0
  %989 = vmatprep.mubr.bf16.mxu0 0
  %990 = vmatmul.mubr.bf16.gmra.mrb[0].mxu0 %v735
  %v991 = vpop.f32.mrb[0].mxu0
  %v992 = vadd.f32 0.0, %v991
  %v993 = vpop.f32.mrb[0].mxu0
  %v994 = vadd.f32 0.0, %v993
  %v995 = vpop.f32.mrb[0].mxu0
  %v996 = vadd.f32 0.0, %v995
  %v997 = vpop.f32.mrb[0].mxu0
  %v998 = vadd.f32 0.0, %v997
  %999 = vmatprep.mubr.bf16.mxu0 0
  %1000 = vmatmul.mubr.bf16.gmra.mrb[0].mxu0 %v738
  %v1001 = vpop.f32.mrb[0].mxu0
  %v1002 = vadd.f32 0.0, %v1001
  %v1003 = vpop.f32.mrb[0].mxu0
  %v1004 = vadd.f32 0.0, %v1003
  %v1005 = vpop.f32.mrb[0].mxu0
  %v1006 = vadd.f32 0.0, %v1005
  %v1007 = vpop.f32.mrb[0].mxu0
  %v1008 = vadd.f32 0.0, %v1007
  %1009 = vmatprep.mubr.bf16.mxu0 0
  %1010 = vmatmul.mubr.bf16.gmra.mrb[0].mxu0 %v741
  %v1011 = vpop.f32.mrb[0].mxu0
  %v1012 = vadd.f32 0.0, %v1011
  %v1013 = vpop.f32.mrb[0].mxu0
  %v1014 = vadd.f32 0.0, %v1013
  %v1015 = vpop.f32.mrb[0].mxu0
  %v1016 = vadd.f32 0.0, %v1015
  %v1017 = vpop.f32.mrb[0].mxu0
  %v1018 = vadd.f32 0.0, %v1017
  %1019 = vmatprep.mubr.bf16.mxu0 0
  %1020 = vmatmul.mubr.bf16.gmra.mrb[0].mxu0 %v744
  %v1021 = vpop.f32.mrb[0].mxu0
  %v1022 = vadd.f32 0.0, %v1021
  %v1023 = vpop.f32.mrb[0].mxu0
  %v1024 = vadd.f32 0.0, %v1023
  %v1025 = vpop.f32.mrb[0].mxu0
  %v1026 = vadd.f32 0.0, %v1025
  %v1027 = vpop.f32.mrb[0].mxu0
  %v1028 = vadd.f32 0.0, %v1027
  %1029 = vmatprep.mubr.bf16.mxu0 0
  %1030 = vmatmul.mubr.bf16.gmra.mrb[0].mxu0 %v747
  %v1031 = vpop.f32.mrb[0].mxu0
  %v1032 = vadd.f32 0.0, %v1031
  %v1033 = vpop.f32.mrb[0].mxu0
  %v1034 = vadd.f32 0.0, %v1033
  %v1035 = vpop.f32.mrb[0].mxu0
  %v1036 = vadd.f32 0.0, %v1035
  %v1037 = vpop.f32.mrb[0].mxu0
  %v1038 = vadd.f32 0.0, %v1037
  %1039 = vmatprep.mubr.bf16.mxu0 0
  %1040 = vmatmul.mubr.bf16.gmra.mrb[0].mxu0 %v750
  %v1041 = vpop.f32.mrb[0].mxu0
  %v1042 = vadd.f32 0.0, %v1041
  %v1043 = vpop.f32.mrb[0].mxu0
  %v1044 = vadd.f32 0.0, %v1043
  %v1045 = vpop.f32.mrb[0].mxu0
  %v1046 = vadd.f32 0.0, %v1045
  %v1047 = vpop.f32.mrb[0].mxu0
  %v1048 = vadd.f32 0.0, %v1047
  %1049 = vmatprep.mubr.bf16.mxu0 0
  %1050 = vmatmul.mubr.bf16.gmra.mrb[0].mxu0 %v753
  %v1051 = vpop.f32.mrb[0].mxu0
  %v1052 = vadd.f32 0.0, %v1051
  %v1053 = vpop.f32.mrb[0].mxu0
  %v1054 = vadd.f32 0.0, %v1053
  %v1055 = vpop.f32.mrb[0].mxu0
  %v1056 = vpop.f32.mrb[0].mxu0
  %1057 = vdwg.mxu0
  %1058 = vmatprep.subr.bf16.mxu0 %v516
  %1059 = vmatpush1.bf16.msra.mxu0 %v515
  %1060 = vmatprep.subr.bf16.mxu0 %v532
  %1061 = vmatpush1.bf16.msra.mxu0 %v531
  %1062 = vmatprep.subr.bf16.mxu0 %v548
  %1063 = vmatpush1.bf16.msra.mxu0 %v547
  %1064 = vmatprep.subr.bf16.mxu0 %v564
  %1065 = vmatpush1.bf16.msra.mxu0 %v563
  %1066 = vmatprep.subr.bf16.mxu0 %v580
  %1067 = vmatpush1.bf16.msra.mxu0 %v579
  %1068 = vmatprep.subr.bf16.mxu0 %v596
  %1069 = vmatpush1.bf16.msra.mxu0 %v595
  %1070 = vmatprep.subr.bf16.mxu0 %v612
  %1071 = vmatpush1.bf16.msra.mxu0 %v611
  %1072 = vmatprep.subr.bf16.mxu0 0
  %1073 = vmatpush1.bf16.msra.mxu0 0
  %1074 = vmatprep.subr.bf16.mxu0 0
  %1075 = vmatpush1.bf16.msra.mxu0 0
  %1076 = vmatprep.subr.bf16.mxu0 0
  %1077 = vmatpush1.bf16.msra.mxu0 0
  %1078 = vmatprep.subr.bf16.mxu0 0
  %1079 = vmatpush1.bf16.msra.mxu0 0
  %1080 = vmatprep.subr.bf16.mxu0 0
  %1081 = vmatpush1.bf16.msra.mxu0 0
  %1082 = vmatprep.subr.bf16.mxu0 0
  %1083 = vmatpush1.bf16.msra.mxu0 0
  %1084 = vmatprep.subr.bf16.mxu0 0
  %1085 = vmatpush1.bf16.msra.mxu0 0
  %1086 = vmatprep.subr.bf16.mxu0 0
  %1087 = vmatpush1.bf16.msra.mxu0 0
  %1088 = vmatprep.subr.bf16.mxu0 0
  %1089 = vmatpush1.bf16.msra.mxu0 0
  %1090 = vmatprep.mubr.bf16.mxu0 0
  %1091 = vmatmul.mubr.bf16.gmra.mrb[0].mxu0 %v735
  %v1092 = vpop.f32.mrb[0].mxu0
  %v1093 = vadd.f32 0.0, %v1092
  %v1094 = vpop.f32.mrb[0].mxu0
  %v1095 = vadd.f32 0.0, %v1094
  %v1096 = vpop.f32.mrb[0].mxu0
  %v1097 = vadd.f32 0.0, %v1096
  %v1098 = vpop.f32.mrb[0].mxu0
  %v1099 = vadd.f32 0.0, %v1098
  %1100 = vmatprep.mubr.bf16.mxu0 0
  %1101 = vmatmul.mubr.bf16.gmra.mrb[0].mxu0 %v738
  %v1102 = vpop.f32.mrb[0].mxu0
  %v1103 = vadd.f32 0.0, %v1102
  %v1104 = vpop.f32.mrb[0].mxu0
  %v1105 = vadd.f32 0.0, %v1104
  %v1106 = vpop.f32.mrb[0].mxu0
  %v1107 = vadd.f32 0.0, %v1106
  %v1108 = vpop.f32.mrb[0].mxu0
  %v1109 = vadd.f32 0.0, %v1108
  %1110 = vmatprep.mubr.bf16.mxu0 0
  %1111 = vmatmul.mubr.bf16.gmra.mrb[0].mxu0 %v741
  %v1112 = vpop.f32.mrb[0].mxu0
  %v1113 = vadd.f32 0.0, %v1112
  %v1114 = vpop.f32.mrb[0].mxu0
  %v1115 = vadd.f32 0.0, %v1114
  %v1116 = vpop.f32.mrb[0].mxu0
  %v1117 = vadd.f32 0.0, %v1116
  %v1118 = vpop.f32.mrb[0].mxu0
  %v1119 = vadd.f32 0.0, %v1118
  %1120 = vmatprep.mubr.bf16.mxu0 0
  %1121 = vmatmul.mubr.bf16.gmra.mrb[0].mxu0 %v744
  %v1122 = vpop.f32.mrb[0].mxu0
  %v1123 = vadd.f32 0.0, %v1122
  %v1124 = vpop.f32.mrb[0].mxu0
  %v1125 = vadd.f32 0.0, %v1124
  %v1126 = vpop.f32.mrb[0].mxu0
  %v1127 = vadd.f32 0.0, %v1126
  %v1128 = vpop.f32.mrb[0].mxu0
  %v1129 = vadd.f32 0.0, %v1128
  %1130 = vmatprep.mubr.bf16.mxu0 0
  %1131 = vmatmul.mubr.bf16.gmra.mrb[0].mxu0 %v747
  %v1132 = vpop.f32.mrb[0].mxu0
  %v1133 = vadd.f32 0.0, %v1132
  %v1134 = vpop.f32.mrb[0].mxu0
  %v1135 = vadd.f32 0.0, %v1134
  %v1136 = vpop.f32.mrb[0].mxu0
  %v1137 = vadd.f32 0.0, %v1136
  %v1138 = vpop.f32.mrb[0].mxu0
  %v1139 = vadd.f32 0.0, %v1138
  %1140 = vmatprep.mubr.bf16.mxu0 0
  %1141 = vmatmul.mubr.bf16.gmra.mrb[0].mxu0 %v750
  %v1142 = vpop.f32.mrb[0].mxu0
  %v1143 = vadd.f32 0.0, %v1142
  %v1144 = vpop.f32.mrb[0].mxu0
  %v1145 = vadd.f32 0.0, %v1144
  %v1146 = vpop.f32.mrb[0].mxu0
  %v1147 = vadd.f32 0.0, %v1146
  %v1148 = vpop.f32.mrb[0].mxu0
  %v1149 = vadd.f32 0.0, %v1148
  %1150 = vmatprep.mubr.bf16.mxu0 0
  %1151 = vmatmul.mubr.bf16.gmra.mrb[0].mxu0 %v753
  %v1152 = vpop.f32.mrb[0].mxu0
  %v1153 = vadd.f32 0.0, %v1152
  %v1154 = vpop.f32.mrb[0].mxu0
  %v1155 = vadd.f32 0.0, %v1154
  %v1156 = vpop.f32.mrb[0].mxu0
  %v1157 = vpop.f32.mrb[0].mxu0
  %1158 = vdwg.mxu0
  %1159 = vmatprep.subr.bf16.mxu0 %v518
  %1160 = vmatpush1.bf16.msra.mxu0 %v517
  %1161 = vmatprep.subr.bf16.mxu0 %v534
  %1162 = vmatpush1.bf16.msra.mxu0 %v533
  %1163 = vmatprep.subr.bf16.mxu0 %v550
  %1164 = vmatpush1.bf16.msra.mxu0 %v549
  %1165 = vmatprep.subr.bf16.mxu0 %v566
  %1166 = vmatpush1.bf16.msra.mxu0 %v565
  %1167 = vmatprep.subr.bf16.mxu0 %v582
  %1168 = vmatpush1.bf16.msra.mxu0 %v581
  %1169 = vmatprep.subr.bf16.mxu0 %v598
  %1170 = vmatpush1.bf16.msra.mxu0 %v597
  %1171 = vmatprep.subr.bf16.mxu0 %v614
  %1172 = vmatpush1.bf16.msra.mxu0 %v613
  %1173 = vmatprep.subr.bf16.mxu0 0
  %1174 = vmatpush1.bf16.msra.mxu0 0
  %1175 = vmatprep.subr.bf16.mxu0 0
  %1176 = vmatpush1.bf16.msra.mxu0 0
  %1177 = vmatprep.subr.bf16.mxu0 0
  %1178 = vmatpush1.bf16.msra.mxu0 0
  %1179 = vmatprep.subr.bf16.mxu0 0
  %1180 = vmatpush1.bf16.msra.mxu0 0
  %1181 = vmatprep.subr.bf16.mxu0 0
  %1182 = vmatpush1.bf16.msra.mxu0 0
  %1183 = vmatprep.subr.bf16.mxu0 0
  %1184 = vmatpush1.bf16.msra.mxu0 0
  %1185 = vmatprep.subr.bf16.mxu0 0
  %1186 = vmatpush1.bf16.msra.mxu0 0
  %1187 = vmatprep.subr.bf16.mxu0 0
  %1188 = vmatpush1.bf16.msra.mxu0 0
  %1189 = vmatprep.subr.bf16.mxu0 0
  %1190 = vmatpush1.bf16.msra.mxu0 0
  %1191 = vmatprep.mubr.bf16.mxu0 0
  %1192 = vmatmul.mubr.bf16.gmra.mrb[0].mxu0 %v735
  %v1193 = vpop.f32.mrb[0].mxu0
  %v1194 = vadd.f32 0.0, %v1193
  %v1195 = vpop.f32.mrb[0].mxu0
  %v1196 = vadd.f32 0.0, %v1195
  %v1197 = vpop.f32.mrb[0].mxu0
  %v1198 = vadd.f32 0.0, %v1197
  %v1199 = vpop.f32.mrb[0].mxu0
  %v1200 = vadd.f32 0.0, %v1199
  %1201 = vmatprep.mubr.bf16.mxu0 0
  %1202 = vmatmul.mubr.bf16.gmra.mrb[0].mxu0 %v738
  %v1203 = vpop.f32.mrb[0].mxu0
  %v1204 = vadd.f32 0.0, %v1203
  %v1205 = vpop.f32.mrb[0].mxu0
  %v1206 = vadd.f32 0.0, %v1205
  %v1207 = vpop.f32.mrb[0].mxu0
  %v1208 = vadd.f32 0.0, %v1207
  %v1209 = vpop.f32.mrb[0].mxu0
  %v1210 = vadd.f32 0.0, %v1209
  %1211 = vmatprep.mubr.bf16.mxu0 0
  %1212 = vmatmul.mubr.bf16.gmra.mrb[0].mxu0 %v741
  %v1213 = vpop.f32.mrb[0].mxu0
  %v1214 = vadd.f32 0.0, %v1213
  %v1215 = vpop.f32.mrb[0].mxu0
  %v1216 = vadd.f32 0.0, %v1215
  %v1217 = vpop.f32.mrb[0].mxu0
  %v1218 = vadd.f32 0.0, %v1217
  %v1219 = vpop.f32.mrb[0].mxu0
  %v1220 = vadd.f32 0.0, %v1219
  %1221 = vmatprep.mubr.bf16.mxu0 0
  %1222 = vmatmul.mubr.bf16.gmra.mrb[0].mxu0 %v744
  %v1223 = vpop.f32.mrb[0].mxu0
  %v1224 = vadd.f32 0.0, %v1223
  %v1225 = vpop.f32.mrb[0].mxu0
  %v1226 = vadd.f32 0.0, %v1225
  %v1227 = vpop.f32.mrb[0].mxu0
  %v1228 = vadd.f32 0.0, %v1227
  %v1229 = vpop.f32.mrb[0].mxu0
  %v1230 = vadd.f32 0.0, %v1229
  %1231 = vmatprep.mubr.bf16.mxu0 0
  %1232 = vmatmul.mubr.bf16.gmra.mrb[0].mxu0 %v747
  %v1233 = vpop.f32.mrb[0].mxu0
  %v1234 = vadd.f32 0.0, %v1233
  %v1235 = vpop.f32.mrb[0].mxu0
  %v1236 = vadd.f32 0.0, %v1235
  %v1237 = vpop.f32.mrb[0].mxu0
  %v1238 = vadd.f32 0.0, %v1237
  %v1239 = vpop.f32.mrb[0].mxu0
  %v1240 = vadd.f32 0.0, %v1239
  %1241 = vmatprep.mubr.bf16.mxu0 0
  %1242 = vmatmul.mubr.bf16.gmra.mrb[0].mxu0 %v750
  %v1243 = vpop.f32.mrb[0].mxu0
  %v1244 = vadd.f32 0.0, %v1243
  %v1245 = vpop.f32.mrb[0].mxu0
  %v1246 = vadd.f32 0.0, %v1245
  %v1247 = vpop.f32.mrb[0].mxu0
  %v1248 = vadd.f32 0.0, %v1247
  %v1249 = vpop.f32.mrb[0].mxu0
  %v1250 = vadd.f32 0.0, %v1249
  %1251 = vmatprep.mubr.bf16.mxu0 0
  %1252 = vmatmul.mubr.bf16.gmra.mrb[0].mxu0 %v753
  %v1253 = vpop.f32.mrb[0].mxu0
  %v1254 = vadd.f32 0.0, %v1253
  %v1255 = vpop.f32.mrb[0].mxu0
  %v1256 = vadd.f32 0.0, %v1255
  %v1257 = vpop.f32.mrb[0].mxu0
  %v1258 = vpop.f32.mrb[0].mxu0
  %1259 = vdwg.mxu0
  %1260 = vmatprep.subr.bf16.mxu0 %v520
  %1261 = vmatpush1.bf16.msra.mxu0 %v519
  %1262 = vmatprep.subr.bf16.mxu0 %v536
  %1263 = vmatpush1.bf16.msra.mxu0 %v535
  %1264 = vmatprep.subr.bf16.mxu0 %v552
  %1265 = vmatpush1.bf16.msra.mxu0 %v551
  %1266 = vmatprep.subr.bf16.mxu0 %v568
  %1267 = vmatpush1.bf16.msra.mxu0 %v567
  %1268 = vmatprep.subr.bf16.mxu0 %v584
  %1269 = vmatpush1.bf16.msra.mxu0 %v583
  %1270 = vmatprep.subr.bf16.mxu0 %v600
  %1271 = vmatpush1.bf16.msra.mxu0 %v599
  %1272 = vmatprep.subr.bf16.mxu0 %v616
  %1273 = vmatpush1.bf16.msra.mxu0 %v615
  %1274 = vmatprep.subr.bf16.mxu0 0
  %1275 = vmatpush1.bf16.msra.mxu0 0
  %1276 = vmatprep.subr.bf16.mxu0 0
  %1277 = vmatpush1.bf16.msra.mxu0 0
  %1278 = vmatprep.subr.bf16.mxu0 0
  %1279 = vmatpush1.bf16.msra.mxu0 0
  %1280 = vmatprep.subr.bf16.mxu0 0
  %1281 = vmatpush1.bf16.msra.mxu0 0
  %1282 = vmatprep.subr.bf16.mxu0 0
  %1283 = vmatpush1.bf16.msra.mxu0 0
  %1284 = vmatprep.subr.bf16.mxu0 0
  %1285 = vmatpush1.bf16.msra.mxu0 0
  %1286 = vmatprep.subr.bf16.mxu0 0
  %1287 = vmatpush1.bf16.msra.mxu0 0
  %1288 = vmatprep.subr.bf16.mxu0 0
  %1289 = vmatpush1.bf16.msra.mxu0 0
  %1290 = vmatprep.subr.bf16.mxu0 0
  %1291 = vmatpush1.bf16.msra.mxu0 0
  %1292 = vmatprep.mubr.bf16.mxu0 0
  %1293 = vmatmul.mubr.bf16.gmra.mrb[0].mxu0 %v735
  %v1294 = vpop.f32.mrb[0].mxu0
  %v1295 = vadd.f32 0.0, %v1294
  %v1296 = vpop.f32.mrb[0].mxu0
  %v1297 = vadd.f32 0.0, %v1296
  %v1298 = vpop.f32.mrb[0].mxu0
  %v1299 = vadd.f32 0.0, %v1298
  %v1300 = vpop.f32.mrb[0].mxu0
  %v1301 = vadd.f32 0.0, %v1300
  %1302 = vmatprep.mubr.bf16.mxu0 0
  %1303 = vmatmul.mubr.bf16.gmra.mrb[0].mxu0 %v738
  %v1304 = vpop.f32.mrb[0].mxu0
  %v1305 = vadd.f32 0.0, %v1304
  %v1306 = vpop.f32.mrb[0].mxu0
  %v1307 = vadd.f32 0.0, %v1306
  %v1308 = vpop.f32.mrb[0].mxu0
  %v1309 = vadd.f32 0.0, %v1308
  %v1310 = vpop.f32.mrb[0].mxu0
  %v1311 = vadd.f32 0.0, %v1310
  %1312 = vmatprep.mubr.bf16.mxu0 0
  %1313 = vmatmul.mubr.bf16.gmra.mrb[0].mxu0 %v741
  %v1314 = vpop.f32.mrb[0].mxu0
  %v1315 = vadd.f32 0.0, %v1314
  %v1316 = vpop.f32.mrb[0].mxu0
  %v1317 = vadd.f32 0.0, %v1316
  %v1318 = vpop.f32.mrb[0].mxu0
  %v1319 = vadd.f32 0.0, %v1318
  %v1320 = vpop.f32.mrb[0].mxu0
  %v1321 = vadd.f32 0.0, %v1320
  %1322 = vmatprep.mubr.bf16.mxu0 0
  %1323 = vmatmul.mubr.bf16.gmra.mrb[0].mxu0 %v744
  %v1324 = vpop.f32.mrb[0].mxu0
  %v1325 = vadd.f32 0.0, %v1324
  %v1326 = vpop.f32.mrb[0].mxu0
  %v1327 = vadd.f32 0.0, %v1326
  %v1328 = vpop.f32.mrb[0].mxu0
  %v1329 = vadd.f32 0.0, %v1328
  %v1330 = vpop.f32.mrb[0].mxu0
  %v1331 = vadd.f32 0.0, %v1330
  %1332 = vmatprep.mubr.bf16.mxu0 0
  %1333 = vmatmul.mubr.bf16.gmra.mrb[0].mxu0 %v747
  %v1334 = vpop.f32.mrb[0].mxu0
  %v1335 = vadd.f32 0.0, %v1334
  %v1336 = vpop.f32.mrb[0].mxu0
  %v1337 = vadd.f32 0.0, %v1336
  %v1338 = vpop.f32.mrb[0].mxu0
  %v1339 = vadd.f32 0.0, %v1338
  %v1340 = vpop.f32.mrb[0].mxu0
  %v1341 = vadd.f32 0.0, %v1340
  %1342 = vmatprep.mubr.bf16.mxu0 0
  %1343 = vmatmul.mubr.bf16.gmra.mrb[0].mxu0 %v750
  %v1344 = vpop.f32.mrb[0].mxu0
  %v1345 = vadd.f32 0.0, %v1344
  %v1346 = vpop.f32.mrb[0].mxu0
  %v1347 = vadd.f32 0.0, %v1346
  %v1348 = vpop.f32.mrb[0].mxu0
  %v1349 = vadd.f32 0.0, %v1348
  %v1350 = vpop.f32.mrb[0].mxu0
  %v1351 = vadd.f32 0.0, %v1350
  %1352 = vmatprep.mubr.bf16.mxu0 0
  %1353 = vmatmul.mubr.bf16.gmra.mrb[0].mxu0 %v753
  %v1354 = vpop.f32.mrb[0].mxu0
  %v1355 = vadd.f32 0.0, %v1354
  %v1356 = vpop.f32.mrb[0].mxu0
  %v1357 = vadd.f32 0.0, %v1356
  %v1358 = vpop.f32.mrb[0].mxu0
  %v1359 = vpop.f32.mrb[0].mxu0
  %1360 = vdwg.mxu0
  %1361 = vmatprep.subr.bf16.mxu0 %v522
  %1362 = vmatpush1.bf16.msra.mxu0 %v521
  %1363 = vmatprep.subr.bf16.mxu0 %v538
  %1364 = vmatpush1.bf16.msra.mxu0 %v537
  %1365 = vmatprep.subr.bf16.mxu0 %v554
  %1366 = vmatpush1.bf16.msra.mxu0 %v553
  %1367 = vmatprep.subr.bf16.mxu0 %v570
  %1368 = vmatpush1.bf16.msra.mxu0 %v569
  %1369 = vmatprep.subr.bf16.mxu0 %v586
  %1370 = vmatpush1.bf16.msra.mxu0 %v585
  %1371 = vmatprep.subr.bf16.mxu0 %v602
  %1372 = vmatpush1.bf16.msra.mxu0 %v601
  %1373 = vmatprep.subr.bf16.mxu0 %v618
  %1374 = vmatpush1.bf16.msra.mxu0 %v617
  %1375 = vmatprep.subr.bf16.mxu0 0
  %1376 = vmatpush1.bf16.msra.mxu0 0
  %1377 = vmatprep.subr.bf16.mxu0 0
  %1378 = vmatpush1.bf16.msra.mxu0 0
  %1379 = vmatprep.subr.bf16.mxu0 0
  %1380 = vmatpush1.bf16.msra.mxu0 0
  %1381 = vmatprep.subr.bf16.mxu0 0
  %1382 = vmatpush1.bf16.msra.mxu0 0
  %1383 = vmatprep.subr.bf16.mxu0 0
  %1384 = vmatpush1.bf16.msra.mxu0 0
  %1385 = vmatprep.subr.bf16.mxu0 0
  %1386 = vmatpush1.bf16.msra.mxu0 0
  %1387 = vmatprep.subr.bf16.mxu0 0
  %1388 = vmatpush1.bf16.msra.mxu0 0
  %1389 = vmatprep.subr.bf16.mxu0 0
  %1390 = vmatpush1.bf16.msra.mxu0 0
  %1391 = vmatprep.subr.bf16.mxu0 0
  %1392 = vmatpush1.bf16.msra.mxu0 0
  %1393 = vmatprep.mubr.bf16.mxu0 0
  %1394 = vmatmul.mubr.bf16.gmra.mrb[0].mxu0 %v735
  %v1395 = vpop.f32.mrb[0].mxu0
  %v1396 = vadd.f32 0.0, %v1395
  %v1397 = vpop.f32.mrb[0].mxu0
  %v1398 = vadd.f32 0.0, %v1397
  %v1399 = vpop.f32.mrb[0].mxu0
  %v1400 = vadd.f32 0.0, %v1399
  %v1401 = vpop.f32.mrb[0].mxu0
  %v1402 = vadd.f32 0.0, %v1401
  %1403 = vmatprep.mubr.bf16.mxu0 0
  %1404 = vmatmul.mubr.bf16.gmra.mrb[0].mxu0 %v738
  %v1405 = vpop.f32.mrb[0].mxu0
  %v1406 = vadd.f32 0.0, %v1405
  %v1407 = vpop.f32.mrb[0].mxu0
  %v1408 = vadd.f32 0.0, %v1407
  %v1409 = vpop.f32.mrb[0].mxu0
  %v1410 = vadd.f32 0.0, %v1409
  %v1411 = vpop.f32.mrb[0].mxu0
  %v1412 = vadd.f32 0.0, %v1411
  %1413 = vmatprep.mubr.bf16.mxu0 0
  %1414 = vmatmul.mubr.bf16.gmra.mrb[0].mxu0 %v741
  %v1415 = vpop.f32.mrb[0].mxu0
  %v1416 = vadd.f32 0.0, %v1415
  %v1417 = vpop.f32.mrb[0].mxu0
  %v1418 = vadd.f32 0.0, %v1417
  %v1419 = vpop.f32.mrb[0].mxu0
  %v1420 = vadd.f32 0.0, %v1419
  %v1421 = vpop.f32.mrb[0].mxu0
  %v1422 = vadd.f32 0.0, %v1421
  %1423 = vmatprep.mubr.bf16.mxu0 0
  %1424 = vmatmul.mubr.bf16.gmra.mrb[0].mxu0 %v744
  %v1425 = vpop.f32.mrb[0].mxu0
  %v1426 = vadd.f32 0.0, %v1425
  %v1427 = vpop.f32.mrb[0].mxu0
  %v1428 = vadd.f32 0.0, %v1427
  %v1429 = vpop.f32.mrb[0].mxu0
  %v1430 = vadd.f32 0.0, %v1429
  %v1431 = vpop.f32.mrb[0].mxu0
  %v1432 = vadd.f32 0.0, %v1431
  %1433 = vmatprep.mubr.bf16.mxu0 0
  %1434 = vmatmul.mubr.bf16.gmra.mrb[0].mxu0 %v747
  %v1435 = vpop.f32.mrb[0].mxu0
  %v1436 = vadd.f32 0.0, %v1435
  %v1437 = vpop.f32.mrb[0].mxu0
  %v1438 = vadd.f32 0.0, %v1437
  %v1439 = vpop.f32.mrb[0].mxu0
  %v1440 = vadd.f32 0.0, %v1439
  %v1441 = vpop.f32.mrb[0].mxu0
  %v1442 = vadd.f32 0.0, %v1441
  %1443 = vmatprep.mubr.bf16.mxu0 0
  %1444 = vmatmul.mubr.bf16.gmra.mrb[0].mxu0 %v750
  %v1445 = vpop.f32.mrb[0].mxu0
  %v1446 = vadd.f32 0.0, %v1445
  %v1447 = vpop.f32.mrb[0].mxu0
  %v1448 = vadd.f32 0.0, %v1447
  %v1449 = vpop.f32.mrb[0].mxu0
  %v1450 = vadd.f32 0.0, %v1449
  %v1451 = vpop.f32.mrb[0].mxu0
  %v1452 = vadd.f32 0.0, %v1451
  %1453 = vmatprep.mubr.bf16.mxu0 0
  %1454 = vmatmul.mubr.bf16.gmra.mrb[0].mxu0 %v753
  %v1455 = vpop.f32.mrb[0].mxu0
  %v1456 = vadd.f32 0.0, %v1455
  %v1457 = vpop.f32.mrb[0].mxu0
  %v1458 = vadd.f32 0.0, %v1457
  %v1459 = vpop.f32.mrb[0].mxu0
  %v1460 = vpop.f32.mrb[0].mxu0
  %1461 = vdwg.mxu0
  %1462 = vmatprep.subr.bf16.mxu0 %v524
  %1463 = vmatpush1.bf16.msra.mxu0 %v523
  %1464 = vmatprep.subr.bf16.mxu0 %v540
  %1465 = vmatpush1.bf16.msra.mxu0 %v539
  %1466 = vmatprep.subr.bf16.mxu0 %v556
  %1467 = vmatpush1.bf16.msra.mxu0 %v555
  %1468 = vmatprep.subr.bf16.mxu0 %v572
  %1469 = vmatpush1.bf16.msra.mxu0 %v571
  %1470 = vmatprep.subr.bf16.mxu0 %v588
  %1471 = vmatpush1.bf16.msra.mxu0 %v587
  %1472 = vmatprep.subr.bf16.mxu0 %v604
  %1473 = vmatpush1.bf16.msra.mxu0 %v603
  %1474 = vmatprep.subr.bf16.mxu0 %v620
  %1475 = vmatpush1.bf16.msra.mxu0 %v619
  %1476 = vmatprep.subr.bf16.mxu0 0
  %1477 = vmatpush1.bf16.msra.mxu0 0
  %1478 = vmatprep.subr.bf16.mxu0 0
  %1479 = vmatpush1.bf16.msra.mxu0 0
  %1480 = vmatprep.subr.bf16.mxu0 0
  %1481 = vmatpush1.bf16.msra.mxu0 0
  %1482 = vmatprep.subr.bf16.mxu0 0
  %1483 = vmatpush1.bf16.msra.mxu0 0
  %1484 = vmatprep.subr.bf16.mxu0 0
  %1485 = vmatpush1.bf16.msra.mxu0 0
  %1486 = vmatprep.subr.bf16.mxu0 0
  %1487 = vmatpush1.bf16.msra.mxu0 0
  %1488 = vmatprep.subr.bf16.mxu0 0
  %1489 = vmatpush1.bf16.msra.mxu0 0
  %1490 = vmatprep.subr.bf16.mxu0 0
  %1491 = vmatpush1.bf16.msra.mxu0 0
  %1492 = vmatprep.subr.bf16.mxu0 0
  %1493 = vmatpush1.bf16.msra.mxu0 0
  %1494 = vmatprep.mubr.bf16.mxu0 0
  %1495 = vmatmul.mubr.bf16.gmra.mrb[0].mxu0 %v735
  %v1496 = vpop.f32.mrb[0].mxu0
  %v1497 = vadd.f32 0.0, %v1496
  %v1498 = vpop.f32.mrb[0].mxu0
  %v1499 = vadd.f32 0.0, %v1498
  %v1500 = vpop.f32.mrb[0].mxu0
  %v1501 = vadd.f32 0.0, %v1500
  %v1502 = vpop.f32.mrb[0].mxu0
  %v1503 = vadd.f32 0.0, %v1502
  %1504 = vmatprep.mubr.bf16.mxu0 0
  %1505 = vmatmul.mubr.bf16.gmra.mrb[0].mxu0 %v738
  %v1506 = vpop.f32.mrb[0].mxu0
  %v1507 = vadd.f32 0.0, %v1506
  %v1508 = vpop.f32.mrb[0].mxu0
  %v1509 = vadd.f32 0.0, %v1508
  %v1510 = vpop.f32.mrb[0].mxu0
  %v1511 = vadd.f32 0.0, %v1510
  %v1512 = vpop.f32.mrb[0].mxu0
  %v1513 = vadd.f32 0.0, %v1512
  %1514 = vmatprep.mubr.bf16.mxu0 0
  %1515 = vmatmul.mubr.bf16.gmra.mrb[0].mxu0 %v741
  %v1516 = vpop.f32.mrb[0].mxu0
  %v1517 = vadd.f32 0.0, %v1516
  %v1518 = vpop.f32.mrb[0].mxu0
  %v1519 = vadd.f32 0.0, %v1518
  %v1520 = vpop.f32.mrb[0].mxu0
  %v1521 = vadd.f32 0.0, %v1520
  %v1522 = vpop.f32.mrb[0].mxu0
  %v1523 = vadd.f32 0.0, %v1522
  %1524 = vmatprep.mubr.bf16.mxu0 0
  %1525 = vmatmul.mubr.bf16.gmra.mrb[0].mxu0 %v744
  %v1526 = vpop.f32.mrb[0].mxu0
  %v1527 = vadd.f32 0.0, %v1526
  %v1528 = vpop.f32.mrb[0].mxu0
  %v1529 = vadd.f32 0.0, %v1528
  %v1530 = vpop.f32.mrb[0].mxu0
  %v1531 = vadd.f32 0.0, %v1530
  %v1532 = vpop.f32.mrb[0].mxu0
  %v1533 = vadd.f32 0.0, %v1532
  %1534 = vmatprep.mubr.bf16.mxu0 0
  %1535 = vmatmul.mubr.bf16.gmra.mrb[0].mxu0 %v747
  %v1536 = vpop.f32.mrb[0].mxu0
  %v1537 = vadd.f32 0.0, %v1536
  %v1538 = vpop.f32.mrb[0].mxu0
  %v1539 = vadd.f32 0.0, %v1538
  %v1540 = vpop.f32.mrb[0].mxu0
  %v1541 = vadd.f32 0.0, %v1540
  %v1542 = vpop.f32.mrb[0].mxu0
  %v1543 = vadd.f32 0.0, %v1542
  %1544 = vmatprep.mubr.bf16.mxu0 0
  %1545 = vmatmul.mubr.bf16.gmra.mrb[0].mxu0 %v750
  %v1546 = vpop.f32.mrb[0].mxu0
  %v1547 = vadd.f32 0.0, %v1546
  %v1548 = vpop.f32.mrb[0].mxu0
  %v1549 = vadd.f32 0.0, %v1548
  %v1550 = vpop.f32.mrb[0].mxu0
  %v1551 = vadd.f32 0.0, %v1550
  %v1552 = vpop.f32.mrb[0].mxu0
  %v1553 = vadd.f32 0.0, %v1552
  %1554 = vmatprep.mubr.bf16.mxu0 0
  %1555 = vmatmul.mubr.bf16.gmra.mrb[0].mxu0 %v753
  %v1556 = vpop.f32.mrb[0].mxu0
  %v1557 = vadd.f32 0.0, %v1556
  %v1558 = vpop.f32.mrb[0].mxu0
  %v1559 = vadd.f32 0.0, %v1558
  %v1560 = vpop.f32.mrb[0].mxu0
  %v1561 = vpop.f32.mrb[0].mxu0
  %1562 = vdwg.mxu0
  %v1563 = vmax.f32 %v790, %v992
  %v1564 = vmax.f32 %v792, %v994
  %v1565 = vmax.f32 %v891, %v1093
  %v1566 = vmax.f32 %v893, %v1095
  %v1567 = vmax.f32 %v794, %v996
  %v1568 = vmax.f32 %v796, %v998
  %v1569 = vmax.f32 %v895, %v1097
  %v1570 = vmax.f32 %v897, %v1099
  %v1571 = vmax.f32 %v800, %v1002
  %v1572 = vmax.f32 %v802, %v1004
  %v1573 = vmax.f32 %v901, %v1103
  %v1574 = vmax.f32 %v903, %v1105
  %v1575 = vmax.f32 %v804, %v1006
  %v1576 = vmax.f32 %v806, %v1008
  %v1577 = vmax.f32 %v905, %v1107
  %v1578 = vmax.f32 %v907, %v1109
  %v1579 = vmax.f32 %v810, %v1012
  %v1580 = vmax.f32 %v812, %v1014
  %v1581 = vmax.f32 %v911, %v1113
  %v1582 = vmax.f32 %v913, %v1115
  %v1583 = vmax.f32 %v814, %v1016
  %v1584 = vmax.f32 %v816, %v1018
  %v1585 = vmax.f32 %v915, %v1117
  %v1586 = vmax.f32 %v917, %v1119
  %v1587 = vmax.f32 %v820, %v1022
  %v1588 = vmax.f32 %v822, %v1024
  %v1589 = vmax.f32 %v921, %v1123
  %v1590 = vmax.f32 %v923, %v1125
  %v1591 = vmax.f32 %v824, %v1026
  %v1592 = vmax.f32 %v826, %v1028
  %v1593 = vmax.f32 %v925, %v1127
  %v1594 = vmax.f32 %v927, %v1129
  %v1595 = vmax.f32 %v830, %v1032
  %v1596 = vmax.f32 %v832, %v1034
  %v1597 = vmax.f32 %v931, %v1133
  %v1598 = vmax.f32 %v933, %v1135
  %v1599 = vmax.f32 %v834, %v1036
  %v1600 = vmax.f32 %v836, %v1038
  %v1601 = vmax.f32 %v935, %v1137
  %v1602 = vmax.f32 %v937, %v1139
  %v1603 = vmax.f32 %v840, %v1042
  %v1604 = vmax.f32 %v842, %v1044
  %v1605 = vmax.f32 %v941, %v1143
  %v1606 = vmax.f32 %v943, %v1145
  %v1607 = vmax.f32 %v844, %v1046
  %v1608 = vmax.f32 %v846, %v1048
  %v1609 = vmax.f32 %v945, %v1147
  %v1610 = vmax.f32 %v947, %v1149
  %v1611 = vmax.f32 %v850, %v1052
  %v1612 = vmax.f32 %v852, %v1054
  %v1613 = vmax.f32 %v951, %v1153
  %v1614 = vmax.f32 %v953, %v1155
  %v1615 = vmax.f32 %v1194, %v1396
  %v1616 = vmax.f32 %v1196, %v1398
  %v1617 = vmax.f32 %v1295, %v1497
  %v1618 = vmax.f32 %v1297, %v1499
  %v1619 = vmax.f32 %v1198, %v1400
  %v1620 = vmax.f32 %v1200, %v1402
  %v1621 = vmax.f32 %v1299, %v1501
  %v1622 = vmax.f32 %v1301, %v1503
  %v1623 = vmax.f32 %v1204, %v1406
  %v1624 = vmax.f32 %v1206, %v1408
  %v1625 = vmax.f32 %v1305, %v1507
  %v1626 = vmax.f32 %v1307, %v1509
  %v1627 = vmax.f32 %v1208, %v1410
  %v1628 = vmax.f32 %v1210, %v1412
  %v1629 = vmax.f32 %v1309, %v1511
  %v1630 = vmax.f32 %v1311, %v1513
  %v1631 = vmax.f32 %v1214, %v1416
  %v1632 = vmax.f32 %v1216, %v1418
  %v1633 = vmax.f32 %v1315, %v1517
  %v1634 = vmax.f32 %v1317, %v1519
  %v1635 = vmax.f32 %v1218, %v1420
  %v1636 = vmax.f32 %v1220, %v1422
  %v1637 = vmax.f32 %v1319, %v1521
  %v1638 = vmax.f32 %v1321, %v1523
  %v1639 = vmax.f32 %v1224, %v1426
  %v1640 = vmax.f32 %v1226, %v1428
  %v1641 = vmax.f32 %v1325, %v1527
  %v1642 = vmax.f32 %v1327, %v1529
  %v1643 = vmax.f32 %v1228, %v1430
  %v1644 = vmax.f32 %v1230, %v1432
  %v1645 = vmax.f32 %v1329, %v1531
  %v1646 = vmax.f32 %v1331, %v1533
  %v1647 = vmax.f32 %v1234, %v1436
  %v1648 = vmax.f32 %v1236, %v1438
  %v1649 = vmax.f32 %v1335, %v1537
  %v1650 = vmax.f32 %v1337, %v1539
  %v1651 = vmax.f32 %v1238, %v1440
  %v1652 = vmax.f32 %v1240, %v1442
  %v1653 = vmax.f32 %v1339, %v1541
  %v1654 = vmax.f32 %v1341, %v1543
  %v1655 = vmax.f32 %v1244, %v1446
  %v1656 = vmax.f32 %v1246, %v1448
  %v1657 = vmax.f32 %v1345, %v1547
  %v1658 = vmax.f32 %v1347, %v1549
  %v1659 = vmax.f32 %v1248, %v1450
  %v1660 = vmax.f32 %v1250, %v1452
  %v1661 = vmax.f32 %v1349, %v1551
  %v1662 = vmax.f32 %v1351, %v1553
  %v1663 = vmax.f32 %v1254, %v1456
  %v1664 = vmax.f32 %v1256, %v1458
  %v1665 = vmax.f32 %v1355, %v1557
  %v1666 = vmax.f32 %v1357, %v1559
  %v1667 = vmax.f32 %v1563, %v1615
  %v1668 = vmax.f32 %v1564, %v1616
  %v1669 = vmax.f32 %v1565, %v1617
  %v1670 = vmax.f32 %v1566, %v1618
  %v1671 = vmax.f32 %v1567, %v1619
  %v1672 = vmax.f32 %v1568, %v1620
  %v1673 = vmax.f32 %v1569, %v1621
  %v1674 = vmax.f32 %v1570, %v1622
  %v1675 = vmax.f32 %v1571, %v1623
  %v1676 = vmax.f32 %v1572, %v1624
  %v1677 = vmax.f32 %v1573, %v1625
  %v1678 = vmax.f32 %v1574, %v1626
  %v1679 = vmax.f32 %v1575, %v1627
  %v1680 = vmax.f32 %v1576, %v1628
  %v1681 = vmax.f32 %v1577, %v1629
  %v1682 = vmax.f32 %v1578, %v1630
  %v1683 = vmax.f32 %v1579, %v1631
  %v1684 = vmax.f32 %v1580, %v1632
  %v1685 = vmax.f32 %v1581, %v1633
  %v1686 = vmax.f32 %v1582, %v1634
  %v1687 = vmax.f32 %v1583, %v1635
  %v1688 = vmax.f32 %v1584, %v1636
  %v1689 = vmax.f32 %v1585, %v1637
  %v1690 = vmax.f32 %v1586, %v1638
  %v1691 = vmax.f32 %v1587, %v1639
  %v1692 = vmax.f32 %v1588, %v1640
  %v1693 = vmax.f32 %v1589, %v1641
  %v1694 = vmax.f32 %v1590, %v1642
  %v1695 = vmax.f32 %v1591, %v1643
  %v1696 = vmax.f32 %v1592, %v1644
  %v1697 = vmax.f32 %v1593, %v1645
  %v1698 = vmax.f32 %v1594, %v1646
  %v1699 = vmax.f32 %v1595, %v1647
  %v1700 = vmax.f32 %v1596, %v1648
  %v1701 = vmax.f32 %v1597, %v1649
  %v1702 = vmax.f32 %v1598, %v1650
  %v1703 = vmax.f32 %v1599, %v1651
  %v1704 = vmax.f32 %v1600, %v1652
  %v1705 = vmax.f32 %v1601, %v1653
  %v1706 = vmax.f32 %v1602, %v1654
  %v1707 = vmax.f32 %v1603, %v1655
  %v1708 = vmax.f32 %v1604, %v1656
  %v1709 = vmax.f32 %v1605, %v1657
  %v1710 = vmax.f32 %v1606, %v1658
  %v1711 = vmax.f32 %v1607, %v1659
  %v1712 = vmax.f32 %v1608, %v1660
  %v1713 = vmax.f32 %v1609, %v1661
  %v1714 = vmax.f32 %v1610, %v1662
  %v1715 = vmax.f32 %v1611, %v1663
  %v1716 = vmax.f32 %v1612, %v1664
  %v1717 = vmax.f32 %v1613, %v1665
  %v1718 = vmax.f32 %v1614, %v1666
  %v1719 = vld [vmem:[%s2] sm:$0xf]
  %v1721 = vlaneseq
  %v1722 = vshrl.u32 %v1721, 7
  %v1723 = vsub.s32 0, %v1722
  %v1724 = vrot.slane %v1719, %v1723
  %v1725 = vlaneseq
  %v1726 = vshrl.u32 %v1725, 7
  %v1727 = vsub.s32 1, %v1726
  %v1728 = vrot.slane %v1719, %v1727
  %v1729 = vlaneseq
  %v1730 = vshrl.u32 %v1729, 7
  %v1731 = vsub.s32 2, %v1730
  %v1732 = vrot.slane %v1719, %v1731
  %v1733 = vlaneseq
  %v1734 = vshrl.u32 %v1733, 7
  %v1735 = vsub.s32 3, %v1734
  %v1736 = vrot.slane %v1719, %v1735
  %v1741 = vadd.f32 %v1667, %v1724
  %v1742 = vadd.f32 %v1668, %v1728
  %v1743 = vadd.f32 %v1669, %v1732
  %v1744 = vadd.f32 %v1670, %v1736
  %v1745 = vadd.f32 %v1671, %v1724
  %v1746 = vadd.f32 %v1672, %v1728
  %v1747 = vadd.f32 %v1673, %v1732
  %v1748 = vadd.f32 %v1674, %v1736
  %v1749 = vadd.f32 %v1675, %v1724
  %v1750 = vadd.f32 %v1676, %v1728
  %v1751 = vadd.f32 %v1677, %v1732
  %v1752 = vadd.f32 %v1678, %v1736
  %v1753 = vadd.f32 %v1679, %v1724
  %v1754 = vadd.f32 %v1680, %v1728
  %v1755 = vadd.f32 %v1681, %v1732
  %v1756 = vadd.f32 %v1682, %v1736
  %v1757 = vadd.f32 %v1683, %v1724
  %v1758 = vadd.f32 %v1684, %v1728
  %v1759 = vadd.f32 %v1685, %v1732
  %v1760 = vadd.f32 %v1686, %v1736
  %v1761 = vadd.f32 %v1687, %v1724
  %v1762 = vadd.f32 %v1688, %v1728
  %v1763 = vadd.f32 %v1689, %v1732
  %v1764 = vadd.f32 %v1690, %v1736
  %v1765 = vadd.f32 %v1691, %v1724
  %v1766 = vadd.f32 %v1692, %v1728
  %v1767 = vadd.f32 %v1693, %v1732
  %v1768 = vadd.f32 %v1694, %v1736
  %v1769 = vadd.f32 %v1695, %v1724
  %v1770 = vadd.f32 %v1696, %v1728
  %v1771 = vadd.f32 %v1697, %v1732
  %v1772 = vadd.f32 %v1698, %v1736
  %v1773 = vadd.f32 %v1699, %v1724
  %v1774 = vadd.f32 %v1700, %v1728
  %v1775 = vadd.f32 %v1701, %v1732
  %v1776 = vadd.f32 %v1702, %v1736
  %v1777 = vadd.f32 %v1703, %v1724
  %v1778 = vadd.f32 %v1704, %v1728
  %v1779 = vadd.f32 %v1705, %v1732
  %v1780 = vadd.f32 %v1706, %v1736
  %v1781 = vadd.f32 %v1707, %v1724
  %v1782 = vadd.f32 %v1708, %v1728
  %v1783 = vadd.f32 %v1709, %v1732
  %v1784 = vadd.f32 %v1710, %v1736
  %v1785 = vadd.f32 %v1711, %v1724
  %v1786 = vadd.f32 %v1712, %v1728
  %v1787 = vadd.f32 %v1713, %v1732
  %v1788 = vadd.f32 %v1714, %v1736
  %v1789 = vadd.f32 %v1715, %v1724
  %v1790 = vadd.f32 %v1716, %v1728
  %v1791 = vadd.f32 %v1717, %v1732
  %v1792 = vadd.f32 %v1718, %v1736
  %v1793 = vmax.f32 %v1741, 0.0
  %v1794 = vmax.f32 %v1742, 0.0
  %v1795 = vmax.f32 %v1743, 0.0
  %v1796 = vmax.f32 %v1744, 0.0
  %v1797 = vmax.f32 %v1745, 0.0
  %v1798 = vmax.f32 %v1746, 0.0
  %v1799 = vmax.f32 %v1747, 0.0
  %v1800 = vmax.f32 %v1748, 0.0
  %v1801 = vmax.f32 %v1749, 0.0
  %v1802 = vmax.f32 %v1750, 0.0
  %v1803 = vmax.f32 %v1751, 0.0
  %v1804 = vmax.f32 %v1752, 0.0
  %v1805 = vmax.f32 %v1753, 0.0
  %v1806 = vmax.f32 %v1754, 0.0
  %v1807 = vmax.f32 %v1755, 0.0
  %v1808 = vmax.f32 %v1756, 0.0
  %v1809 = vmax.f32 %v1757, 0.0
  %v1810 = vmax.f32 %v1758, 0.0
  %v1811 = vmax.f32 %v1759, 0.0
  %v1812 = vmax.f32 %v1760, 0.0
  %v1813 = vmax.f32 %v1761, 0.0
  %v1814 = vmax.f32 %v1762, 0.0
  %v1815 = vmax.f32 %v1763, 0.0
  %v1816 = vmax.f32 %v1764, 0.0
  %v1817 = vmax.f32 %v1765, 0.0
  %v1818 = vmax.f32 %v1766, 0.0
  %v1819 = vmax.f32 %v1767, 0.0
  %v1820 = vmax.f32 %v1768, 0.0
  %v1821 = vmax.f32 %v1769, 0.0
  %v1822 = vmax.f32 %v1770, 0.0
  %v1823 = vmax.f32 %v1771, 0.0
  %v1824 = vmax.f32 %v1772, 0.0
  %v1825 = vmax.f32 %v1773, 0.0
  %v1826 = vmax.f32 %v1774, 0.0
  %v1827 = vmax.f32 %v1775, 0.0
  %v1828 = vmax.f32 %v1776, 0.0
  %v1829 = vmax.f32 %v1777, 0.0
  %v1830 = vmax.f32 %v1778, 0.0
  %v1831 = vmax.f32 %v1779, 0.0
  %v1832 = vmax.f32 %v1780, 0.0
  %v1833 = vmax.f32 %v1781, 0.0
  %v1834 = vmax.f32 %v1782, 0.0
  %v1835 = vmax.f32 %v1783, 0.0
  %v1836 = vmax.f32 %v1784, 0.0
  %v1837 = vmax.f32 %v1785, 0.0
  %v1838 = vmax.f32 %v1786, 0.0
  %v1839 = vmax.f32 %v1787, 0.0
  %v1840 = vmax.f32 %v1788, 0.0
  %v1841 = vmax.f32 %v1789, 0.0
  %v1842 = vmax.f32 %v1790, 0.0
  %v1843 = vmax.f32 %v1791, 0.0
  %v1844 = vmax.f32 %v1792, 0.0
  %v1845 = vpack.c.bf16 %v1797, %v1793
  %v1846 = vpack.c.bf16 %v1798, %v1794
  %v1847 = vpack.c.bf16 %v1799, %v1795
  %v1848 = vpack.c.bf16 %v1800, %v1796
  %v1849 = vpack.c.bf16 %v1805, %v1801
  %v1850 = vpack.c.bf16 %v1806, %v1802
  %v1851 = vpack.c.bf16 %v1807, %v1803
  %v1852 = vpack.c.bf16 %v1808, %v1804
  %v1853 = vpack.c.bf16 %v1813, %v1809
  %v1854 = vpack.c.bf16 %v1814, %v1810
  %v1855 = vpack.c.bf16 %v1815, %v1811
  %v1856 = vpack.c.bf16 %v1816, %v1812
  %v1857 = vpack.c.bf16 %v1821, %v1817
  %v1858 = vpack.c.bf16 %v1822, %v1818
  %v1859 = vpack.c.bf16 %v1823, %v1819
  %v1860 = vpack.c.bf16 %v1824, %v1820
  %v1861 = vpack.c.bf16 %v1829, %v1825
  %v1862 = vpack.c.bf16 %v1830, %v1826
  %v1863 = vpack.c.bf16 %v1831, %v1827
  %v1864 = vpack.c.bf16 %v1832, %v1828
  %v1865 = vpack.c.bf16 %v1837, %v1833
  %v1866 = vpack.c.bf16 %v1838, %v1834
  %v1867 = vpack.c.bf16 %v1839, %v1835
  %v1868 = vpack.c.bf16 %v1840, %v1836
  %v1869 = vpack.c.bf16 %v1841, %v1841
  %v1870 = vpack.c.bf16 %v1842, %v1842
  %v1871 = vpack.c.bf16 %v1843, %v1843
  %v1872 = vpack.c.bf16 %v1844, %v1844
  %v1901 = vunpack.c.l.b16 %v1845
  %v1902 = vunpack.c.l.b16 %v1846
  %v1903 = vunpack.c.l.b16 %v1847
  %v1904 = vunpack.c.l.b16 %v1848
  %v1905 = vunpack.c.h.b16 %v1845
  %v1906 = vunpack.c.h.b16 %v1846
  %v1907 = vunpack.c.h.b16 %v1847
  %v1908 = vunpack.c.h.b16 %v1848
  %v1909 = vunpack.c.l.b16 %v1849
  %v1910 = vunpack.c.l.b16 %v1850
  %v1911 = vunpack.c.l.b16 %v1851
  %v1912 = vunpack.c.l.b16 %v1852
  %v1913 = vunpack.c.h.b16 %v1849
  %v1914 = vunpack.c.h.b16 %v1850
  %v1915 = vunpack.c.h.b16 %v1851
  %v1916 = vunpack.c.h.b16 %v1852
  %v1917 = vunpack.c.l.b16 %v1853
  %v1918 = vunpack.c.l.b16 %v1854
  %v1919 = vunpack.c.l.b16 %v1855
  %v1920 = vunpack.c.l.b16 %v1856
  %v1921 = vunpack.c.h.b16 %v1853
  %v1922 = vunpack.c.h.b16 %v1854
  %v1923 = vunpack.c.h.b16 %v1855
  %v1924 = vunpack.c.h.b16 %v1856
  %v1925 = vunpack.c.l.b16 %v1857
  %v1926 = vunpack.c.l.b16 %v1858
  %v1927 = vunpack.c.l.b16 %v1859
  %v1928 = vunpack.c.l.b16 %v1860
  %v1929 = vunpack.c.h.b16 %v1857
  %v1930 = vunpack.c.h.b16 %v1858
  %v1931 = vunpack.c.h.b16 %v1859
  %v1932 = vunpack.c.h.b16 %v1860
  %v1933 = vunpack.c.l.b16 %v1861
  %v1934 = vunpack.c.l.b16 %v1862
  %v1935 = vunpack.c.l.b16 %v1863
  %v1936 = vunpack.c.l.b16 %v1864
  %v1937 = vunpack.c.h.b16 %v1861
  %v1938 = vunpack.c.h.b16 %v1862
  %v1939 = vunpack.c.h.b16 %v1863
  %v1940 = vunpack.c.h.b16 %v1864
  %v1941 = vunpack.c.l.b16 %v1865
  %v1942 = vunpack.c.l.b16 %v1866
  %v1943 = vunpack.c.l.b16 %v1867
  %v1944 = vunpack.c.l.b16 %v1868
  %v1945 = vunpack.c.h.b16 %v1865
  %v1946 = vunpack.c.h.b16 %v1866
  %v1947 = vunpack.c.h.b16 %v1867
  %v1948 = vunpack.c.h.b16 %v1868
  %v1949 = vunpack.c.l.b16 %v1869
  %v1950 = vunpack.c.l.b16 %v1870
  %v1951 = vunpack.c.l.b16 %v1871
  %v1952 = vunpack.c.l.b16 %v1872
  %v1953 = vpack.c.b16 %v1902, %v1901
  %v1954 = vpack.c.b16 %v1904, %v1903
  %v1955 = vpack.c.b16 %v1906, %v1905
  %v1956 = vpack.c.b16 %v1908, %v1907
  %v1957 = vpack.c.b16 %v1910, %v1909
  %v1958 = vpack.c.b16 %v1912, %v1911
  %v1959 = vpack.c.b16 %v1914, %v1913
  %v1960 = vpack.c.b16 %v1916, %v1915
  %v1961 = vpack.c.b16 %v1918, %v1917
  %v1962 = vpack.c.b16 %v1920, %v1919
  %v1963 = vpack.c.b16 %v1922, %v1921
  %v1964 = vpack.c.b16 %v1924, %v1923
  %v1965 = vpack.c.b16 %v1926, %v1925
  %v1966 = vpack.c.b16 %v1928, %v1927
  %v1967 = vpack.c.b16 %v1930, %v1929
  %v1968 = vpack.c.b16 %v1932, %v1931
  %v1969 = vpack.c.b16 %v1934, %v1933
  %v1970 = vpack.c.b16 %v1936, %v1935
  %v1971 = vpack.c.b16 %v1938, %v1937
  %v1972 = vpack.c.b16 %v1940, %v1939
  %v1973 = vpack.c.b16 %v1942, %v1941
  %v1974 = vpack.c.b16 %v1944, %v1943
  %v1975 = vpack.c.b16 %v1946, %v1945
  %v1976 = vpack.c.b16 %v1948, %v1947
  %v1977 = vpack.c.b16 %v1950, %v1949
  %v1978 = vpack.c.b16 %v1952, %v1951
  %2005 = vst [vmem:[%s3] sm:$0xff] %v1953
  %vm2006 = vcmask 1043456
  %vm2007 = vcmask 261124
  %vm2008 = vmor %vm2007, %vm2006
  %2009 = vst.msk [vmem:[%s3 + $0x8] sm:$0xff] %vm2008, %v1954
  %2010 = vst [vmem:[%s3 + $0x10] sm:$0xff] %v1955
  %2011 = vst.msk [vmem:[%s3 + $0x18] sm:$0xff] %vm2008, %v1956
  %2012 = vst [vmem:[%s3 + $0x20] sm:$0xff] %v1957
  %2013 = vst.msk [vmem:[%s3 + $0x28] sm:$0xff] %vm2008, %v1958
  %2014 = vst [vmem:[%s3 + $0x30] sm:$0xff] %v1959
  %2015 = vst.msk [vmem:[%s3 + $0x38] sm:$0xff] %vm2008, %v1960
  %2016 = vst [vmem:[%s3 + $0x40] sm:$0xff] %v1961
  %2017 = vst.msk [vmem:[%s3 + $0x48] sm:$0xff] %vm2008, %v1962
  %2018 = vst [vmem:[%s3 + $0x50] sm:$0xff] %v1963
  %2019 = vst.msk [vmem:[%s3 + $0x58] sm:$0xff] %vm2008, %v1964
  %2020 = vst [vmem:[%s3 + $0x60] sm:$0xff] %v1965
  %2021 = vst.msk [vmem:[%s3 + $0x68] sm:$0xff] %vm2008, %v1966
  %2022 = vst [vmem:[%s3 + $0x70] sm:$0xff] %v1967
  %2023 = vst.msk [vmem:[%s3 + $0x78] sm:$0xff] %vm2008, %v1968
  %2024 = vst [vmem:[%s3 + $0x80] sm:$0xff] %v1969
  %2025 = vst.msk [vmem:[%s3 + $0x88] sm:$0xff] %vm2008, %v1970
  %2026 = vst [vmem:[%s3 + $0x90] sm:$0xff] %v1971
  %2027 = vst.msk [vmem:[%s3 + $0x98] sm:$0xff] %vm2008, %v1972
  %2028 = vst [vmem:[%s3 + $0xa0] sm:$0xff] %v1973
  %2029 = vst.msk [vmem:[%s3 + $0xa8] sm:$0xff] %vm2008, %v1974
  %2030 = vst [vmem:[%s3 + $0xb0] sm:$0xff] %v1975
  %2031 = vst.msk [vmem:[%s3 + $0xb8] sm:$0xff] %vm2008, %v1976
  %2032 = vst [vmem:[%s3 + $0xc0] sm:$0xff] %v1977
  %2033 = vst.msk [vmem:[%s3 + $0xc8] sm:$0xff] %vm2008, %v1978
  // Predicated region
  $region14: #{network_forward.2} parent=0 // pred_check
    _
  $region15: #{network_forward.2} parent=0 // pred_check_branch
    %2035 = sbr.rel (0) target = $region17
  $region16: #{network_forward.2} parent=0 // pred_region
    _
  $region17: #{network_forward.2} parent=0 // pred_fallthru
    _
  // Predicated region
  $region18: #{network_forward.2} parent=0 // pred_check
    _
  $region19: #{network_forward.2} parent=0 // pred_check_branch
    %2037 = sbr.rel (0) target = $region21
  $region20: #{network_forward.2} parent=0 // pred_region
    _
  $region21: #{network_forward.2} parent=0 // pred_fallthru
    _

// kernel: network_forward.3
$region0: #{network_forward.3}
  #allocation0 [shape = 'u32[]', space=smem, size = 0x4, offset = 0x4, fixed_abs, tag = 'smem constant byte address 0x4 - core index']
  #allocation1 [shape = 'u32[144,128]{1,0:T(1,128)}', space=vmem, size = 0x12000, scoped, tag = 'internal scratch']
  %s0 = inlined_call_operand.vmem [shape: bf16[1,200,512], index: 0, kind: input, shape index: {}]
  %s1 = inlined_call_operand.vmem [shape: bf16[512,512], index: 1, kind: input, shape index: {}]
  %s2 = inlined_call_operand.vmem [shape: f32[1,128], index: 2, kind: input, shape index: {}]
  %s3 = inlined_call_operand.vmem [shape: bf16[25,128,128], index: 3, kind: input, shape index: {}]
  %s4 = inlined_call_operand.vmem [shape: f32[1,128], index: 4, kind: input, shape index: {}]
  %s5 = inlined_call_operand.vmem [shape: bf16[128,10], index: 5, kind: input, shape index: {}]
  %s6 = inlined_call_operand.vmem [shape: f32[1,10], index: 6, kind: input, shape index: {}]
  %s7 = inlined_call_operand.vmem [shape: f32[8,10], index: 7, kind: output, shape index: {}]
  %s8 = sld [smem:[#allocation0]]
  $region38: #{network_forward.3} parent=0
    _
  %s10 = ssub.s32 1, %s8
  %s11 = scalar_select 0, %s10, %s8
  // Predicated region
  $region2: #{network_forward.3} parent=0 // pred_check
    _
  $region3: #{network_forward.3} parent=0 // pred_check_branch
    %13 = sbr.rel (0) target = $region5
  $region4: #{network_forward.3} parent=0 // pred_region
    _
  $region5: #{network_forward.3} parent=0 // pred_fallthru
    _
  // Predicated region
  $region6: #{network_forward.3} parent=0 // pred_check
    _
  $region7: #{network_forward.3} parent=0 // pred_check_branch
    %15 = sbr.rel (0) target = $region9
  $region8: #{network_forward.3} parent=0 // pred_region
    _
  $region9: #{network_forward.3} parent=0 // pred_fallthru
    _
  // Predicated region
  $region10: #{network_forward.3} parent=0 // pred_check
    _
  $region11: #{network_forward.3} parent=0 // pred_check_branch
    %17 = sbr.rel (0) target = $region13
  $region12: #{network_forward.3} parent=0 // pred_region
    _
  $region13: #{network_forward.3} parent=0 // pred_fallthru
    _
  // Predicated region
  $region14: #{network_forward.3} parent=0 // pred_check
    _
  $region15: #{network_forward.3} parent=0 // pred_check_branch
    %19 = sbr.rel (0) target = $region17
  $region16: #{network_forward.3} parent=0 // pred_region
    _
  $region17: #{network_forward.3} parent=0 // pred_fallthru
    _
  // Predicated region
  $region18: #{network_forward.3} parent=0 // pred_check
    _
  $region19: #{network_forward.3} parent=0 // pred_check_branch
    %21 = sbr.rel (0) target = $region21
  $region20: #{network_forward.3} parent=0 // pred_region
    _
  $region21: #{network_forward.3} parent=0 // pred_fallthru
    _
  // Predicated region
  $region22: #{network_forward.3} parent=0 // pred_check
    _
  $region23: #{network_forward.3} parent=0 // pred_check_branch
    %23 = sbr.rel (0) target = $region25
  $region24: #{network_forward.3} parent=0 // pred_region
    _
  $region25: #{network_forward.3} parent=0 // pred_fallthru
    _
  // Predicated region
  $region26: #{network_forward.3} parent=0 // pred_check
    _
  $region27: #{network_forward.3} parent=0 // pred_check_branch
    %25 = sbr.rel (0) target = $region29
  $region28: #{network_forward.3} parent=0 // pred_region
    _
  $region29: #{network_forward.3} parent=0 // pred_fallthru
    _
  %v27 = vld [vmem:[%s0] sm:$0xff]
  %v28 = vld [vmem:[%s0 + $0x8] sm:$0xff]
  %v29 = vld [vmem:[%s0 + $0x10] sm:$0xff]
  %v30 = vld [vmem:[%s0 + $0x18] sm:$0xff]
  %v31 = vld [vmem:[%s0 + $0x20] sm:$0xff]
  %v32 = vld [vmem:[%s0 + $0x28] sm:$0xff]
  %v33 = vld [vmem:[%s0 + $0x30] sm:$0xff]
  %v34 = vld [vmem:[%s0 + $0x38] sm:$0xff]
  %v35 = vld [vmem:[%s0 + $0x40] sm:$0xff]
  %v36 = vld [vmem:[%s0 + $0x48] sm:$0xff]
  %v37 = vld [vmem:[%s0 + $0x50] sm:$0xff]
  %v38 = vld [vmem:[%s0 + $0x58] sm:$0xff]
  %v39 = vld [vmem:[%s0 + $0x60] sm:$0xff]
  %v40 = vld [vmem:[%s0 + $0x68] sm:$0xff]
  %v41 = vld [vmem:[%s0 + $0x70] sm:$0xff]
  %v42 = vld [vmem:[%s0 + $0x78] sm:$0xff]
  %v43 = vld [vmem:[%s0 + $0x80] sm:$0xff]
  %v44 = vld [vmem:[%s0 + $0x88] sm:$0xff]
  %v45 = vld [vmem:[%s0 + $0x90] sm:$0xff]
  %v46 = vld [vmem:[%s0 + $0x98] sm:$0xff]
  %v47 = vld [vmem:[%s0 + $0xa0] sm:$0xff]
  %v48 = vld [vmem:[%s0 + $0xa8] sm:$0xff]
  %v49 = vld [vmem:[%s0 + $0xb0] sm:$0xff]
  %v50 = vld [vmem:[%s0 + $0xb8] sm:$0xff]
  %v51 = vld [vmem:[%s0 + $0xc0] sm:$0xff]
  %v52 = vld [vmem:[%s0 + $0xc8] sm:$0xff]
  %v53 = vld [vmem:[%s0 + $0xd0] sm:$0xff]
  %v54 = vld [vmem:[%s0 + $0xd8] sm:$0xff]
  %v55 = vld [vmem:[%s0 + $0xe0] sm:$0xff]
  %v56 = vld [vmem:[%s0 + $0xe8] sm:$0xff]
  %v57 = vld [vmem:[%s0 + $0xf0] sm:$0xff]
  %v58 = vld [vmem:[%s0 + $0xf8] sm:$0xff]
  %v59 = vld [vmem:[%s0 + $0x100] sm:$0xff]
  %v60 = vld [vmem:[%s0 + $0x108] sm:$0xff]
  %v61 = vld [vmem:[%s0 + $0x110] sm:$0xff]
  %v62 = vld [vmem:[%s0 + $0x118] sm:$0xff]
  %v63 = vld [vmem:[%s0 + $0x120] sm:$0xff]
  %v64 = vld [vmem:[%s0 + $0x128] sm:$0xff]
  %v65 = vld [vmem:[%s0 + $0x130] sm:$0xff]
  %v66 = vld [vmem:[%s0 + $0x138] sm:$0xff]
  %v67 = vld [vmem:[%s0 + $0x140] sm:$0xff]
  %v68 = vld [vmem:[%s0 + $0x148] sm:$0xff]
  %v69 = vld [vmem:[%s0 + $0x150] sm:$0xff]
  %v70 = vld [vmem:[%s0 + $0x158] sm:$0xff]
  %v71 = vld [vmem:[%s0 + $0x160] sm:$0xff]
  %v72 = vld [vmem:[%s0 + $0x168] sm:$0xff]
  %v73 = vld [vmem:[%s0 + $0x170] sm:$0xff]
  %v74 = vld [vmem:[%s0 + $0x178] sm:$0xff]
  %v75 = vld [vmem:[%s0 + $0x180] sm:$0xff]
  %v76 = vld [vmem:[%s0 + $0x188] sm:$0xff]
  %v77 = vld [vmem:[%s1] sm:$0xff]
  %v78 = vld [vmem:[%s1 + $0x8] sm:$0xff]
  %v79 = vld [vmem:[%s1 + $0x10] sm:$0xff]
  %v80 = vld [vmem:[%s1 + $0x18] sm:$0xff]
  %v81 = vld [vmem:[%s1 + $0x20] sm:$0xff]
  %v82 = vld [vmem:[%s1 + $0x28] sm:$0xff]
  %v83 = vld [vmem:[%s1 + $0x30] sm:$0xff]
  %v84 = vld [vmem:[%s1 + $0x38] sm:$0xff]
  %v85 = vld [vmem:[%s1 + $0x40] sm:$0xff]
  %v86 = vld [vmem:[%s1 + $0x48] sm:$0xff]
  %v87 = vld [vmem:[%s1 + $0x50] sm:$0xff]
  %v88 = vld [vmem:[%s1 + $0x58] sm:$0xff]
  %v89 = vld [vmem:[%s1 + $0x60] sm:$0xff]
  %v90 = vld [vmem:[%s1 + $0x68] sm:$0xff]
  %v91 = vld [vmem:[%s1 + $0x70] sm:$0xff]
  %v92 = vld [vmem:[%s1 + $0x78] sm:$0xff]
  %v93 = vld [vmem:[%s1 + $0x80] sm:$0xff]
  %v94 = vld [vmem:[%s1 + $0x88] sm:$0xff]
  %v95 = vld [vmem:[%s1 + $0x90] sm:$0xff]
  %v96 = vld [vmem:[%s1 + $0x98] sm:$0xff]
  %v97 = vld [vmem:[%s1 + $0xa0] sm:$0xff]
  %v98 = vld [vmem:[%s1 + $0xa8] sm:$0xff]
  %v99 = vld [vmem:[%s1 + $0xb0] sm:$0xff]
  %v100 = vld [vmem:[%s1 + $0xb8] sm:$0xff]
  %v101 = vld [vmem:[%s1 + $0xc0] sm:$0xff]
  %v102 = vld [vmem:[%s1 + $0xc8] sm:$0xff]
  %v103 = vld [vmem:[%s1 + $0xd0] sm:$0xff]
  %v104 = vld [vmem:[%s1 + $0xd8] sm:$0xff]
  %v105 = vld [vmem:[%s1 + $0xe0] sm:$0xff]
  %v106 = vld [vmem:[%s1 + $0xe8] sm:$0xff]
  %v107 = vld [vmem:[%s1 + $0xf0] sm:$0xff]
  %v108 = vld [vmem:[%s1 + $0xf8] sm:$0xff]
  %v109 = vld [vmem:[%s1 + $0x100] sm:$0xff]
  %v110 = vld [vmem:[%s1 + $0x108] sm:$0xff]
  %v111 = vld [vmem:[%s1 + $0x110] sm:$0xff]
  %v112 = vld [vmem:[%s1 + $0x118] sm:$0xff]
  %v113 = vld [vmem:[%s1 + $0x120] sm:$0xff]
  %v114 = vld [vmem:[%s1 + $0x128] sm:$0xff]
  %v115 = vld [vmem:[%s1 + $0x130] sm:$0xff]
  %v116 = vld [vmem:[%s1 + $0x138] sm:$0xff]
  %v117 = vld [vmem:[%s1 + $0x140] sm:$0xff]
  %v118 = vld [vmem:[%s1 + $0x148] sm:$0xff]
  %v119 = vld [vmem:[%s1 + $0x150] sm:$0xff]
  %v120 = vld [vmem:[%s1 + $0x158] sm:$0xff]
  %v121 = vld [vmem:[%s1 + $0x160] sm:$0xff]
  %v122 = vld [vmem:[%s1 + $0x168] sm:$0xff]
  %v123 = vld [vmem:[%s1 + $0x170] sm:$0xff]
  %v124 = vld [vmem:[%s1 + $0x178] sm:$0xff]
  %v125 = vld [vmem:[%s1 + $0x180] sm:$0xff]
  %v126 = vld [vmem:[%s1 + $0x188] sm:$0xff]
  %v127 = vld [vmem:[%s1 + $0x190] sm:$0xff]
  %v128 = vld [vmem:[%s1 + $0x198] sm:$0xff]
  %v129 = vld [vmem:[%s1 + $0x1a0] sm:$0xff]
  %v130 = vld [vmem:[%s1 + $0x1a8] sm:$0xff]
  %v131 = vld [vmem:[%s1 + $0x1b0] sm:$0xff]
  %v132 = vld [vmem:[%s1 + $0x1b8] sm:$0xff]
  %v133 = vld [vmem:[%s1 + $0x1c0] sm:$0xff]
  %v134 = vld [vmem:[%s1 + $0x1c8] sm:$0xff]
  %v135 = vld [vmem:[%s1 + $0x1d0] sm:$0xff]
  %v136 = vld [vmem:[%s1 + $0x1d8] sm:$0xff]
  %v137 = vld [vmem:[%s1 + $0x1e0] sm:$0xff]
  %v138 = vld [vmem:[%s1 + $0x1e8] sm:$0xff]
  %v139 = vld [vmem:[%s1 + $0x1f0] sm:$0xff]
  %v140 = vld [vmem:[%s1 + $0x1f8] sm:$0xff]
  %v141 = vld [vmem:[%s1 + $0x200] sm:$0xff]
  %v142 = vld [vmem:[%s1 + $0x208] sm:$0xff]
  %v143 = vld [vmem:[%s1 + $0x210] sm:$0xff]
  %v144 = vld [vmem:[%s1 + $0x218] sm:$0xff]
  %v145 = vld [vmem:[%s1 + $0x220] sm:$0xff]
  %v146 = vld [vmem:[%s1 + $0x228] sm:$0xff]
  %v147 = vld [vmem:[%s1 + $0x230] sm:$0xff]
  %v148 = vld [vmem:[%s1 + $0x238] sm:$0xff]
  %v149 = vld [vmem:[%s1 + $0x240] sm:$0xff]
  %v150 = vld [vmem:[%s1 + $0x248] sm:$0xff]
  %v151 = vld [vmem:[%s1 + $0x250] sm:$0xff]
  %v152 = vld [vmem:[%s1 + $0x258] sm:$0xff]
  %v153 = vld [vmem:[%s1 + $0x260] sm:$0xff]
  %v154 = vld [vmem:[%s1 + $0x268] sm:$0xff]
  %v155 = vld [vmem:[%s1 + $0x270] sm:$0xff]
  %v156 = vld [vmem:[%s1 + $0x278] sm:$0xff]
  %v157 = vld [vmem:[%s1 + $0x280] sm:$0xff]
  %v158 = vld [vmem:[%s1 + $0x288] sm:$0xff]
  %v159 = vld [vmem:[%s1 + $0x290] sm:$0xff]
  %v160 = vld [vmem:[%s1 + $0x298] sm:$0xff]
  %v161 = vld [vmem:[%s1 + $0x2a0] sm:$0xff]
  %v162 = vld [vmem:[%s1 + $0x2a8] sm:$0xff]
  %v163 = vld [vmem:[%s1 + $0x2b0] sm:$0xff]
  %v164 = vld [vmem:[%s1 + $0x2b8] sm:$0xff]
  %v165 = vld [vmem:[%s1 + $0x2c0] sm:$0xff]
  %v166 = vld [vmem:[%s1 + $0x2c8] sm:$0xff]
  %v167 = vld [vmem:[%s1 + $0x2d0] sm:$0xff]
  %v168 = vld [vmem:[%s1 + $0x2d8] sm:$0xff]
  %v169 = vld [vmem:[%s1 + $0x2e0] sm:$0xff]
  %v170 = vld [vmem:[%s1 + $0x2e8] sm:$0xff]
  %v171 = vld [vmem:[%s1 + $0x2f0] sm:$0xff]
  %v172 = vld [vmem:[%s1 + $0x2f8] sm:$0xff]
  %v173 = vld [vmem:[%s1 + $0x300] sm:$0xff]
  %v174 = vld [vmem:[%s1 + $0x308] sm:$0xff]
  %v175 = vld [vmem:[%s1 + $0x310] sm:$0xff]
  %v176 = vld [vmem:[%s1 + $0x318] sm:$0xff]
  %v177 = vld [vmem:[%s1 + $0x320] sm:$0xff]
  %v178 = vld [vmem:[%s1 + $0x328] sm:$0xff]
  %v179 = vld [vmem:[%s1 + $0x330] sm:$0xff]
  %v180 = vld [vmem:[%s1 + $0x338] sm:$0xff]
  %v181 = vld [vmem:[%s1 + $0x340] sm:$0xff]
  %v182 = vld [vmem:[%s1 + $0x348] sm:$0xff]
  %v183 = vld [vmem:[%s1 + $0x350] sm:$0xff]
  %v184 = vld [vmem:[%s1 + $0x358] sm:$0xff]
  %v185 = vld [vmem:[%s1 + $0x360] sm:$0xff]
  %v186 = vld [vmem:[%s1 + $0x368] sm:$0xff]
  %v187 = vld [vmem:[%s1 + $0x370] sm:$0xff]
  %v188 = vld [vmem:[%s1 + $0x378] sm:$0xff]
  %v189 = vld [vmem:[%s1 + $0x380] sm:$0xff]
  %v190 = vld [vmem:[%s1 + $0x388] sm:$0xff]
  %v191 = vld [vmem:[%s1 + $0x390] sm:$0xff]
  %v192 = vld [vmem:[%s1 + $0x398] sm:$0xff]
  %v193 = vld [vmem:[%s1 + $0x3a0] sm:$0xff]
  %v194 = vld [vmem:[%s1 + $0x3a8] sm:$0xff]
  %v195 = vld [vmem:[%s1 + $0x3b0] sm:$0xff]
  %v196 = vld [vmem:[%s1 + $0x3b8] sm:$0xff]
  %v197 = vld [vmem:[%s1 + $0x3c0] sm:$0xff]
  %v198 = vld [vmem:[%s1 + $0x3c8] sm:$0xff]
  %v199 = vld [vmem:[%s1 + $0x3d0] sm:$0xff]
  %v200 = vld [vmem:[%s1 + $0x3d8] sm:$0xff]
  %v201 = vld [vmem:[%s1 + $0x3e0] sm:$0xff]
  %v202 = vld [vmem:[%s1 + $0x3e8] sm:$0xff]
  %v203 = vld [vmem:[%s1 + $0x3f0] sm:$0xff]
  %v204 = vld [vmem:[%s1 + $0x3f8] sm:$0xff]
  %v255 = vunpack.c.l.b16 %v27
  %v256 = vunpack.c.h.b16 %v27
  %v257 = vunpack.c.l.b16 %v28
  %v258 = vunpack.c.h.b16 %v28
  %v259 = vunpack.c.l.b16 %v29
  %v260 = vunpack.c.h.b16 %v29
  %v261 = vunpack.c.l.b16 %v30
  %v262 = vunpack.c.h.b16 %v30
  %v263 = vunpack.c.l.b16 %v31
  %v264 = vunpack.c.h.b16 %v31
  %v265 = vunpack.c.l.b16 %v32
  %v266 = vunpack.c.h.b16 %v32
  %v267 = vunpack.c.l.b16 %v33
  %v268 = vunpack.c.h.b16 %v33
  %v269 = vunpack.c.l.b16 %v34
  %v270 = vunpack.c.h.b16 %v34
  %v271 = vunpack.c.l.b16 %v35
  %v272 = vunpack.c.h.b16 %v35
  %v273 = vunpack.c.l.b16 %v36
  %v274 = vunpack.c.h.b16 %v36
  %v275 = vunpack.c.l.b16 %v37
  %v276 = vunpack.c.h.b16 %v37
  %v277 = vunpack.c.l.b16 %v38
  %v278 = vunpack.c.h.b16 %v38
  %v279 = vunpack.c.l.b16 %v39
  %v280 = vunpack.c.h.b16 %v39
  %v281 = vunpack.c.l.b16 %v40
  %v282 = vunpack.c.h.b16 %v40
  %v283 = vunpack.c.l.b16 %v41
  %v284 = vunpack.c.h.b16 %v41
  %v285 = vunpack.c.l.b16 %v42
  %v286 = vunpack.c.h.b16 %v42
  %v287 = vunpack.c.l.b16 %v43
  %v288 = vunpack.c.h.b16 %v43
  %v289 = vunpack.c.l.b16 %v44
  %v290 = vunpack.c.h.b16 %v44
  %v291 = vunpack.c.l.b16 %v45
  %v292 = vunpack.c.h.b16 %v45
  %v293 = vunpack.c.l.b16 %v46
  %v294 = vunpack.c.h.b16 %v46
  %v295 = vunpack.c.l.b16 %v47
  %v296 = vunpack.c.h.b16 %v47
  %v297 = vunpack.c.l.b16 %v48
  %v298 = vunpack.c.h.b16 %v48
  %v299 = vunpack.c.l.b16 %v49
  %v300 = vunpack.c.h.b16 %v49
  %v301 = vunpack.c.l.b16 %v50
  %v302 = vunpack.c.h.b16 %v50
  %v303 = vunpack.c.l.b16 %v51
  %v304 = vunpack.c.h.b16 %v51
  %v305 = vunpack.c.l.b16 %v52
  %v306 = vunpack.c.h.b16 %v52
  %v307 = vunpack.c.l.b16 %v53
  %v308 = vunpack.c.h.b16 %v53
  %v309 = vunpack.c.l.b16 %v54
  %v310 = vunpack.c.h.b16 %v54
  %v311 = vunpack.c.l.b16 %v55
  %v312 = vunpack.c.h.b16 %v55
  %v313 = vunpack.c.l.b16 %v56
  %v314 = vunpack.c.h.b16 %v56
  %v315 = vunpack.c.l.b16 %v57
  %v316 = vunpack.c.h.b16 %v57
  %v317 = vunpack.c.l.b16 %v58
  %v318 = vunpack.c.h.b16 %v58
  %v319 = vunpack.c.l.b16 %v59
  %v320 = vunpack.c.h.b16 %v59
  %v321 = vunpack.c.l.b16 %v60
  %v322 = vunpack.c.h.b16 %v60
  %v323 = vunpack.c.l.b16 %v61
  %v324 = vunpack.c.h.b16 %v61
  %v325 = vunpack.c.l.b16 %v62
  %v326 = vunpack.c.h.b16 %v62
  %v327 = vunpack.c.l.b16 %v63
  %v328 = vunpack.c.h.b16 %v63
  %v329 = vunpack.c.l.b16 %v64
  %v330 = vunpack.c.h.b16 %v64
  %v331 = vunpack.c.l.b16 %v65
  %v332 = vunpack.c.h.b16 %v65
  %v333 = vunpack.c.l.b16 %v66
  %v334 = vunpack.c.h.b16 %v66
  %v335 = vunpack.c.l.b16 %v67
  %v336 = vunpack.c.h.b16 %v67
  %v337 = vunpack.c.l.b16 %v68
  %v338 = vunpack.c.h.b16 %v68
  %v339 = vunpack.c.l.b16 %v69
  %v340 = vunpack.c.h.b16 %v69
  %v341 = vunpack.c.l.b16 %v70
  %v342 = vunpack.c.h.b16 %v70
  %v343 = vunpack.c.l.b16 %v71
  %v344 = vunpack.c.h.b16 %v71
  %v345 = vunpack.c.l.b16 %v72
  %v346 = vunpack.c.h.b16 %v72
  %v347 = vunpack.c.l.b16 %v73
  %v348 = vunpack.c.h.b16 %v73
  %v349 = vunpack.c.l.b16 %v74
  %v350 = vunpack.c.h.b16 %v74
  %v351 = vunpack.c.l.b16 %v75
  %v352 = vunpack.c.h.b16 %v75
  %v353 = vunpack.c.l.b16 %v76
  %v354 = vunpack.c.h.b16 %v76
  %v355 = vpack.c.b16 %v259, %v255
  %v356 = vpack.c.b16 %v260, %v256
  %v357 = vpack.c.b16 %v261, %v257
  %v358 = vpack.c.b16 %v262, %v258
  %v359 = vpack.c.b16 %v267, %v263
  %v360 = vpack.c.b16 %v268, %v264
  %v361 = vpack.c.b16 %v269, %v265
  %v362 = vpack.c.b16 %v270, %v266
  %v363 = vpack.c.b16 %v275, %v271
  %v364 = vpack.c.b16 %v276, %v272
  %v365 = vpack.c.b16 %v277, %v273
  %v366 = vpack.c.b16 %v278, %v274
  %v367 = vpack.c.b16 %v283, %v279
  %v368 = vpack.c.b16 %v284, %v280
  %v369 = vpack.c.b16 %v285, %v281
  %v370 = vpack.c.b16 %v286, %v282
  %v371 = vpack.c.b16 %v291, %v287
  %v372 = vpack.c.b16 %v292, %v288
  %v373 = vpack.c.b16 %v293, %v289
  %v374 = vpack.c.b16 %v294, %v290
  %v375 = vpack.c.b16 %v299, %v295
  %v376 = vpack.c.b16 %v300, %v296
  %v377 = vpack.c.b16 %v301, %v297
  %v378 = vpack.c.b16 %v302, %v298
  %v379 = vpack.c.b16 %v307, %v303
  %v380 = vpack.c.b16 %v308, %v304
  %v381 = vpack.c.b16 %v309, %v305
  %v382 = vpack.c.b16 %v310, %v306
  %v383 = vpack.c.b16 %v315, %v311
  %v384 = vpack.c.b16 %v316, %v312
  %v385 = vpack.c.b16 %v317, %v313
  %v386 = vpack.c.b16 %v318, %v314
  %v387 = vpack.c.b16 %v323, %v319
  %v388 = vpack.c.b16 %v324, %v320
  %v389 = vpack.c.b16 %v325, %v321
  %v390 = vpack.c.b16 %v326, %v322
  %v391 = vpack.c.b16 %v331, %v327
  %v392 = vpack.c.b16 %v332, %v328
  %v393 = vpack.c.b16 %v333, %v329
  %v394 = vpack.c.b16 %v334, %v330
  %v395 = vpack.c.b16 %v339, %v335
  %v396 = vpack.c.b16 %v340, %v336
  %v397 = vpack.c.b16 %v341, %v337
  %v398 = vpack.c.b16 %v342, %v338
  %v399 = vpack.c.b16 %v347, %v343
  %v400 = vpack.c.b16 %v348, %v344
  %v401 = vpack.c.b16 %v349, %v345
  %v402 = vpack.c.b16 %v350, %v346
  %v403 = vpack.c.b16 %v351, %v351
  %v404 = vpack.c.b16 %v352, %v352
  %v405 = vpack.c.b16 %v353, %v353
  %v406 = vpack.c.b16 %v354, %v354
  %v587 = vunpack.c.l.b16 %v77
  %v588 = vunpack.c.h.b16 %v77
  %v589 = vunpack.c.l.b16 %v78
  %v590 = vunpack.c.h.b16 %v78
  %v591 = vunpack.c.l.b16 %v79
  %v592 = vunpack.c.h.b16 %v79
  %v593 = vunpack.c.l.b16 %v80
  %v594 = vunpack.c.h.b16 %v80
  %v595 = vunpack.c.l.b16 %v81
  %v596 = vunpack.c.h.b16 %v81
  %v597 = vunpack.c.l.b16 %v82
  %v598 = vunpack.c.h.b16 %v82
  %v599 = vunpack.c.l.b16 %v83
  %v600 = vunpack.c.h.b16 %v83
  %v601 = vunpack.c.l.b16 %v84
  %v602 = vunpack.c.h.b16 %v84
  %v603 = vunpack.c.l.b16 %v85
  %v604 = vunpack.c.h.b16 %v85
  %v605 = vunpack.c.l.b16 %v86
  %v606 = vunpack.c.h.b16 %v86
  %v607 = vunpack.c.l.b16 %v87
  %v608 = vunpack.c.h.b16 %v87
  %v609 = vunpack.c.l.b16 %v88
  %v610 = vunpack.c.h.b16 %v88
  %v611 = vunpack.c.l.b16 %v89
  %v612 = vunpack.c.h.b16 %v89
  %v613 = vunpack.c.l.b16 %v90
  %v614 = vunpack.c.h.b16 %v90
  %v615 = vunpack.c.l.b16 %v91
  %v616 = vunpack.c.h.b16 %v91
  %v617 = vunpack.c.l.b16 %v92
  %v618 = vunpack.c.h.b16 %v92
  %v619 = vunpack.c.l.b16 %v93
  %v620 = vunpack.c.h.b16 %v93
  %v621 = vunpack.c.l.b16 %v94
  %v622 = vunpack.c.h.b16 %v94
  %v623 = vunpack.c.l.b16 %v95
  %v624 = vunpack.c.h.b16 %v95
  %v625 = vunpack.c.l.b16 %v96
  %v626 = vunpack.c.h.b16 %v96
  %v627 = vunpack.c.l.b16 %v97
  %v628 = vunpack.c.h.b16 %v97
  %v629 = vunpack.c.l.b16 %v98
  %v630 = vunpack.c.h.b16 %v98
  %v631 = vunpack.c.l.b16 %v99
  %v632 = vunpack.c.h.b16 %v99
  %v633 = vunpack.c.l.b16 %v100
  %v634 = vunpack.c.h.b16 %v100
  %v635 = vunpack.c.l.b16 %v101
  %v636 = vunpack.c.h.b16 %v101
  %v637 = vunpack.c.l.b16 %v102
  %v638 = vunpack.c.h.b16 %v102
  %v639 = vunpack.c.l.b16 %v103
  %v640 = vunpack.c.h.b16 %v103
  %v641 = vunpack.c.l.b16 %v104
  %v642 = vunpack.c.h.b16 %v104
  %v643 = vunpack.c.l.b16 %v105
  %v644 = vunpack.c.h.b16 %v105
  %v645 = vunpack.c.l.b16 %v106
  %v646 = vunpack.c.h.b16 %v106
  %v647 = vunpack.c.l.b16 %v107
  %v648 = vunpack.c.h.b16 %v107
  %v649 = vunpack.c.l.b16 %v108
  %v650 = vunpack.c.h.b16 %v108
  %v651 = vunpack.c.l.b16 %v109
  %v652 = vunpack.c.h.b16 %v109
  %v653 = vunpack.c.l.b16 %v110
  %v654 = vunpack.c.h.b16 %v110
  %v655 = vunpack.c.l.b16 %v111
  %v656 = vunpack.c.h.b16 %v111
  %v657 = vunpack.c.l.b16 %v112
  %v658 = vunpack.c.h.b16 %v112
  %v659 = vunpack.c.l.b16 %v113
  %v660 = vunpack.c.h.b16 %v113
  %v661 = vunpack.c.l.b16 %v114
  %v662 = vunpack.c.h.b16 %v114
  %v663 = vunpack.c.l.b16 %v115
  %v664 = vunpack.c.h.b16 %v115
  %v665 = vunpack.c.l.b16 %v116
  %v666 = vunpack.c.h.b16 %v116
  %v667 = vunpack.c.l.b16 %v117
  %v668 = vunpack.c.h.b16 %v117
  %v669 = vunpack.c.l.b16 %v118
  %v670 = vunpack.c.h.b16 %v118
  %v671 = vunpack.c.l.b16 %v119
  %v672 = vunpack.c.h.b16 %v119
  %v673 = vunpack.c.l.b16 %v120
  %v674 = vunpack.c.h.b16 %v120
  %v675 = vunpack.c.l.b16 %v121
  %v676 = vunpack.c.h.b16 %v121
  %v677 = vunpack.c.l.b16 %v122
  %v678 = vunpack.c.h.b16 %v122
  %v679 = vunpack.c.l.b16 %v123
  %v680 = vunpack.c.h.b16 %v123
  %v681 = vunpack.c.l.b16 %v124
  %v682 = vunpack.c.h.b16 %v124
  %v683 = vunpack.c.l.b16 %v125
  %v684 = vunpack.c.h.b16 %v125
  %v685 = vunpack.c.l.b16 %v126
  %v686 = vunpack.c.h.b16 %v126
  %v687 = vunpack.c.l.b16 %v127
  %v688 = vunpack.c.h.b16 %v127
  %v689 = vunpack.c.l.b16 %v128
  %v690 = vunpack.c.h.b16 %v128
  %v691 = vunpack.c.l.b16 %v129
  %v692 = vunpack.c.h.b16 %v129
  %v693 = vunpack.c.l.b16 %v130
  %v694 = vunpack.c.h.b16 %v130
  %v695 = vunpack.c.l.b16 %v131
  %v696 = vunpack.c.h.b16 %v131
  %v697 = vunpack.c.l.b16 %v132
  %v698 = vunpack.c.h.b16 %v132
  %v699 = vunpack.c.l.b16 %v133
  %v700 = vunpack.c.h.b16 %v133
  %v701 = vunpack.c.l.b16 %v134
  %v702 = vunpack.c.h.b16 %v134
  %v703 = vunpack.c.l.b16 %v135
  %v704 = vunpack.c.h.b16 %v135
  %v705 = vunpack.c.l.b16 %v136
  %v706 = vunpack.c.h.b16 %v136
  %v707 = vunpack.c.l.b16 %v137
  %v708 = vunpack.c.h.b16 %v137
  %v709 = vunpack.c.l.b16 %v138
  %v710 = vunpack.c.h.b16 %v138
  %v711 = vunpack.c.l.b16 %v139
  %v712 = vunpack.c.h.b16 %v139
  %v713 = vunpack.c.l.b16 %v140
  %v714 = vunpack.c.h.b16 %v140
  %v715 = vunpack.c.l.b16 %v141
  %v716 = vunpack.c.h.b16 %v141
  %v717 = vunpack.c.l.b16 %v142
  %v718 = vunpack.c.h.b16 %v142
  %v719 = vunpack.c.l.b16 %v143
  %v720 = vunpack.c.h.b16 %v143
  %v721 = vunpack.c.l.b16 %v144
  %v722 = vunpack.c.h.b16 %v144
  %v723 = vunpack.c.l.b16 %v145
  %v724 = vunpack.c.h.b16 %v145
  %v725 = vunpack.c.l.b16 %v146
  %v726 = vunpack.c.h.b16 %v146
  %v727 = vunpack.c.l.b16 %v147
  %v728 = vunpack.c.h.b16 %v147
  %v729 = vunpack.c.l.b16 %v148
  %v730 = vunpack.c.h.b16 %v148
  %v731 = vunpack.c.l.b16 %v149
  %v732 = vunpack.c.h.b16 %v149
  %v733 = vunpack.c.l.b16 %v150
  %v734 = vunpack.c.h.b16 %v150
  %v735 = vunpack.c.l.b16 %v151
  %v736 = vunpack.c.h.b16 %v151
  %v737 = vunpack.c.l.b16 %v152
  %v738 = vunpack.c.h.b16 %v152
  %v739 = vunpack.c.l.b16 %v153
  %v740 = vunpack.c.h.b16 %v153
  %v741 = vunpack.c.l.b16 %v154
  %v742 = vunpack.c.h.b16 %v154
  %v743 = vunpack.c.l.b16 %v155
  %v744 = vunpack.c.h.b16 %v155
  %v745 = vunpack.c.l.b16 %v156
  %v746 = vunpack.c.h.b16 %v156
  %v747 = vunpack.c.l.b16 %v157
  %v748 = vunpack.c.h.b16 %v157
  %v749 = vunpack.c.l.b16 %v158
  %v750 = vunpack.c.h.b16 %v158
  %v751 = vunpack.c.l.b16 %v159
  %v752 = vunpack.c.h.b16 %v159
  %v753 = vunpack.c.l.b16 %v160
  %v754 = vunpack.c.h.b16 %v160
  %v755 = vunpack.c.l.b16 %v161
  %v756 = vunpack.c.h.b16 %v161
  %v757 = vunpack.c.l.b16 %v162
  %v758 = vunpack.c.h.b16 %v162
  %v759 = vunpack.c.l.b16 %v163
  %v760 = vunpack.c.h.b16 %v163
  %v761 = vunpack.c.l.b16 %v164
  %v762 = vunpack.c.h.b16 %v164
  %v763 = vunpack.c.l.b16 %v165
  %v764 = vunpack.c.h.b16 %v165
  %v765 = vunpack.c.l.b16 %v166
  %v766 = vunpack.c.h.b16 %v166
  %v767 = vunpack.c.l.b16 %v167
  %v768 = vunpack.c.h.b16 %v167
  %v769 = vunpack.c.l.b16 %v168
  %v770 = vunpack.c.h.b16 %v168
  %v771 = vunpack.c.l.b16 %v169
  %v772 = vunpack.c.h.b16 %v169
  %v773 = vunpack.c.l.b16 %v170
  %v774 = vunpack.c.h.b16 %v170
  %v775 = vunpack.c.l.b16 %v171
  %v776 = vunpack.c.h.b16 %v171
  %v777 = vunpack.c.l.b16 %v172
  %v778 = vunpack.c.h.b16 %v172
  %v779 = vunpack.c.l.b16 %v173
  %v780 = vunpack.c.h.b16 %v173
  %v781 = vunpack.c.l.b16 %v174
  %v782 = vunpack.c.h.b16 %v174
  %v783 = vunpack.c.l.b16 %v175
  %v784 = vunpack.c.h.b16 %v175
  %v785 = vunpack.c.l.b16 %v176
  %v786 = vunpack.c.h.b16 %v176
  %v787 = vunpack.c.l.b16 %v177
  %v788 = vunpack.c.h.b16 %v177
  %v789 = vunpack.c.l.b16 %v178
  %v790 = vunpack.c.h.b16 %v178
  %v791 = vunpack.c.l.b16 %v179
  %v792 = vunpack.c.h.b16 %v179
  %v793 = vunpack.c.l.b16 %v180
  %v794 = vunpack.c.h.b16 %v180
  %v795 = vunpack.c.l.b16 %v181
  %v796 = vunpack.c.h.b16 %v181
  %v797 = vunpack.c.l.b16 %v182
  %v798 = vunpack.c.h.b16 %v182
  %v799 = vunpack.c.l.b16 %v183
  %v800 = vunpack.c.h.b16 %v183
  %v801 = vunpack.c.l.b16 %v184
  %v802 = vunpack.c.h.b16 %v184
  %v803 = vunpack.c.l.b16 %v185
  %v804 = vunpack.c.h.b16 %v185
  %v805 = vunpack.c.l.b16 %v186
  %v806 = vunpack.c.h.b16 %v186
  %v807 = vunpack.c.l.b16 %v187
  %v808 = vunpack.c.h.b16 %v187
  %v809 = vunpack.c.l.b16 %v188
  %v810 = vunpack.c.h.b16 %v188
  %v811 = vunpack.c.l.b16 %v189
  %v812 = vunpack.c.h.b16 %v189
  %v813 = vunpack.c.l.b16 %v190
  %v814 = vunpack.c.h.b16 %v190
  %v815 = vunpack.c.l.b16 %v191
  %v816 = vunpack.c.h.b16 %v191
  %v817 = vunpack.c.l.b16 %v192
  %v818 = vunpack.c.h.b16 %v192
  %v819 = vunpack.c.l.b16 %v193
  %v820 = vunpack.c.h.b16 %v193
  %v821 = vunpack.c.l.b16 %v194
  %v822 = vunpack.c.h.b16 %v194
  %v823 = vunpack.c.l.b16 %v195
  %v824 = vunpack.c.h.b16 %v195
  %v825 = vunpack.c.l.b16 %v196
  %v826 = vunpack.c.h.b16 %v196
  %v827 = vunpack.c.l.b16 %v197
  %v828 = vunpack.c.h.b16 %v197
  %v829 = vunpack.c.l.b16 %v198
  %v830 = vunpack.c.h.b16 %v198
  %v831 = vunpack.c.l.b16 %v199
  %v832 = vunpack.c.h.b16 %v199
  %v833 = vunpack.c.l.b16 %v200
  %v834 = vunpack.c.h.b16 %v200
  %v835 = vunpack.c.l.b16 %v201
  %v836 = vunpack.c.h.b16 %v201
  %v837 = vunpack.c.l.b16 %v202
  %v838 = vunpack.c.h.b16 %v202
  %v839 = vunpack.c.l.b16 %v203
  %v840 = vunpack.c.h.b16 %v203
  %v841 = vunpack.c.l.b16 %v204
  %v842 = vunpack.c.h.b16 %v204
  %v843 = vpack.c.b16 %v591, %v587
  %v844 = vpack.c.b16 %v592, %v588
  %v845 = vpack.c.b16 %v593, %v589
  %v846 = vpack.c.b16 %v594, %v590
  %v847 = vpack.c.b16 %v599, %v595
  %v848 = vpack.c.b16 %v600, %v596
  %v849 = vpack.c.b16 %v601, %v597
  %v850 = vpack.c.b16 %v602, %v598
  %v851 = vpack.c.b16 %v607, %v603
  %v852 = vpack.c.b16 %v608, %v604
  %v853 = vpack.c.b16 %v609, %v605
  %v854 = vpack.c.b16 %v610, %v606
  %v855 = vpack.c.b16 %v615, %v611
  %v856 = vpack.c.b16 %v616, %v612
  %v857 = vpack.c.b16 %v617, %v613
  %v858 = vpack.c.b16 %v618, %v614
  %v859 = vpack.c.b16 %v623, %v619
  %v860 = vpack.c.b16 %v624, %v620
  %v861 = vpack.c.b16 %v625, %v621
  %v862 = vpack.c.b16 %v626, %v622
  %v863 = vpack.c.b16 %v631, %v627
  %v864 = vpack.c.b16 %v632, %v628
  %v865 = vpack.c.b16 %v633, %v629
  %v866 = vpack.c.b16 %v634, %v630
  %v867 = vpack.c.b16 %v639, %v635
  %v868 = vpack.c.b16 %v640, %v636
  %v869 = vpack.c.b16 %v641, %v637
  %v870 = vpack.c.b16 %v642, %v638
  %v871 = vpack.c.b16 %v647, %v643
  %v872 = vpack.c.b16 %v648, %v644
  %v873 = vpack.c.b16 %v649, %v645
  %v874 = vpack.c.b16 %v650, %v646
  %v875 = vpack.c.b16 %v655, %v651
  %v876 = vpack.c.b16 %v656, %v652
  %v877 = vpack.c.b16 %v657, %v653
  %v878 = vpack.c.b16 %v658, %v654
  %v879 = vpack.c.b16 %v663, %v659
  %v880 = vpack.c.b16 %v664, %v660
  %v881 = vpack.c.b16 %v665, %v661
  %v882 = vpack.c.b16 %v666, %v662
  %v883 = vpack.c.b16 %v671, %v667
  %v884 = vpack.c.b16 %v672, %v668
  %v885 = vpack.c.b16 %v673, %v669
  %v886 = vpack.c.b16 %v674, %v670
  %v887 = vpack.c.b16 %v679, %v675
  %v888 = vpack.c.b16 %v680, %v676
  %v889 = vpack.c.b16 %v681, %v677
  %v890 = vpack.c.b16 %v682, %v678
  %v891 = vpack.c.b16 %v687, %v683
  %v892 = vpack.c.b16 %v688, %v684
  %v893 = vpack.c.b16 %v689, %v685
  %v894 = vpack.c.b16 %v690, %v686
  %v895 = vpack.c.b16 %v695, %v691
  %v896 = vpack.c.b16 %v696, %v692
  %v897 = vpack.c.b16 %v697, %v693
  %v898 = vpack.c.b16 %v698, %v694
  %v899 = vpack.c.b16 %v703, %v699
  %v900 = vpack.c.b16 %v704, %v700
  %v901 = vpack.c.b16 %v705, %v701
  %v902 = vpack.c.b16 %v706, %v702
  %v903 = vpack.c.b16 %v711, %v707
  %v904 = vpack.c.b16 %v712, %v708
  %v905 = vpack.c.b16 %v713, %v709
  %v906 = vpack.c.b16 %v714, %v710
  %v907 = vpack.c.b16 %v719, %v715
  %v908 = vpack.c.b16 %v720, %v716
  %v909 = vpack.c.b16 %v721, %v717
  %v910 = vpack.c.b16 %v722, %v718
  %v911 = vpack.c.b16 %v727, %v723
  %v912 = vpack.c.b16 %v728, %v724
  %v913 = vpack.c.b16 %v729, %v725
  %v914 = vpack.c.b16 %v730, %v726
  %v915 = vpack.c.b16 %v735, %v731
  %v916 = vpack.c.b16 %v736, %v732
  %v917 = vpack.c.b16 %v737, %v733
  %v918 = vpack.c.b16 %v738, %v734
  %v919 = vpack.c.b16 %v743, %v739
  %v920 = vpack.c.b16 %v744, %v740
  %v921 = vpack.c.b16 %v745, %v741
  %v922 = vpack.c.b16 %v746, %v742
  %v923 = vpack.c.b16 %v751, %v747
  %v924 = vpack.c.b16 %v752, %v748
  %v925 = vpack.c.b16 %v753, %v749
  %v926 = vpack.c.b16 %v754, %v750
  %v927 = vpack.c.b16 %v759, %v755
  %v928 = vpack.c.b16 %v760, %v756
  %v929 = vpack.c.b16 %v761, %v757
  %v930 = vpack.c.b16 %v762, %v758
  %v931 = vpack.c.b16 %v767, %v763
  %v932 = vpack.c.b16 %v768, %v764
  %v933 = vpack.c.b16 %v769, %v765
  %v934 = vpack.c.b16 %v770, %v766
  %v935 = vpack.c.b16 %v775, %v771
  %v936 = vpack.c.b16 %v776, %v772
  %v937 = vpack.c.b16 %v777, %v773
  %v938 = vpack.c.b16 %v778, %v774
  %v939 = vpack.c.b16 %v783, %v779
  %v940 = vpack.c.b16 %v784, %v780
  %v941 = vpack.c.b16 %v785, %v781
  %v942 = vpack.c.b16 %v786, %v782
  %v943 = vpack.c.b16 %v791, %v787
  %v944 = vpack.c.b16 %v792, %v788
  %v945 = vpack.c.b16 %v793, %v789
  %v946 = vpack.c.b16 %v794, %v790
  %v947 = vpack.c.b16 %v799, %v795
  %v948 = vpack.c.b16 %v800, %v796
  %v949 = vpack.c.b16 %v801, %v797
  %v950 = vpack.c.b16 %v802, %v798
  %v951 = vpack.c.b16 %v807, %v803
  %v952 = vpack.c.b16 %v808, %v804
  %v953 = vpack.c.b16 %v809, %v805
  %v954 = vpack.c.b16 %v810, %v806
  %v955 = vpack.c.b16 %v815, %v811
  %v956 = vpack.c.b16 %v816, %v812
  %v957 = vpack.c.b16 %v817, %v813
  %v958 = vpack.c.b16 %v818, %v814
  %v959 = vpack.c.b16 %v823, %v819
  %v960 = vpack.c.b16 %v824, %v820
  %v961 = vpack.c.b16 %v825, %v821
  %v962 = vpack.c.b16 %v826, %v822
  %v963 = vpack.c.b16 %v831, %v827
  %v964 = vpack.c.b16 %v832, %v828
  %v965 = vpack.c.b16 %v833, %v829
  %v966 = vpack.c.b16 %v834, %v830
  %v967 = vpack.c.b16 %v839, %v835
  %v968 = vpack.c.b16 %v840, %v836
  %v969 = vpack.c.b16 %v841, %v837
  %v970 = vpack.c.b16 %v842, %v838
  %1099 = vmatprep.subr.bf16.mxu0 %v844
  %1100 = vmatpush1.bf16.msra.mxu0 %v843
  %1101 = vmatprep.subr.bf16.mxu0 %v848
  %1102 = vmatpush1.bf16.msra.mxu0 %v847
  %1103 = vmatprep.subr.bf16.mxu0 %v852
  %1104 = vmatpush1.bf16.msra.mxu0 %v851
  %1105 = vmatprep.subr.bf16.mxu0 %v856
  %1106 = vmatpush1.bf16.msra.mxu0 %v855
  %1107 = vmatprep.subr.bf16.mxu0 %v860
  %1108 = vmatpush1.bf16.msra.mxu0 %v859
  %1109 = vmatprep.subr.bf16.mxu0 %v864
  %1110 = vmatpush1.bf16.msra.mxu0 %v863
  %1111 = vmatprep.subr.bf16.mxu0 %v868
  %1112 = vmatpush1.bf16.msra.mxu0 %v867
  %1113 = vmatprep.subr.bf16.mxu0 %v872
  %1114 = vmatpush1.bf16.msra.mxu0 %v871
  %1115 = vmatprep.subr.bf16.mxu0 %v876
  %1116 = vmatpush1.bf16.msra.mxu0 %v875
  %1117 = vmatprep.subr.bf16.mxu0 %v880
  %1118 = vmatpush1.bf16.msra.mxu0 %v879
  %1119 = vmatprep.subr.bf16.mxu0 %v884
  %1120 = vmatpush1.bf16.msra.mxu0 %v883
  %1121 = vmatprep.subr.bf16.mxu0 %v888
  %1122 = vmatpush1.bf16.msra.mxu0 %v887
  %1123 = vmatprep.subr.bf16.mxu0 %v892
  %1124 = vmatpush1.bf16.msra.mxu0 %v891
  %1125 = vmatprep.subr.bf16.mxu0 %v896
  %1126 = vmatpush1.bf16.msra.mxu0 %v895
  %1127 = vmatprep.subr.bf16.mxu0 %v900
  %1128 = vmatpush1.bf16.msra.mxu0 %v899
  %1129 = vmatprep.subr.bf16.mxu0 %v904
  %1130 = vmatpush1.bf16.msra.mxu0 %v903
  %1131 = vmatprep.mubr.bf16.mxu0 %v356
  %1132 = vmatmul.mubr.bf16.gmra.mrb[0].mxu0 %v355
  %v1133 = vpop.f32.mrb[0].mxu0
  %v1134 = vadd.f32 0.0, %v1133
  %v1135 = vpop.f32.mrb[0].mxu0
  %v1136 = vadd.f32 0.0, %v1135
  %v1137 = vpop.f32.mrb[0].mxu0
  %v1138 = vadd.f32 0.0, %v1137
  %v1139 = vpop.f32.mrb[0].mxu0
  %v1140 = vadd.f32 0.0, %v1139
  %1141 = vmatprep.mubr.bf16.mxu0 %v360
  %1142 = vmatmul.mubr.bf16.gmra.mrb[0].mxu0 %v359
  %v1143 = vpop.f32.mrb[0].mxu0
  %v1144 = vadd.f32 0.0, %v1143
  %v1145 = vpop.f32.mrb[0].mxu0
  %v1146 = vadd.f32 0.0, %v1145
  %v1147 = vpop.f32.mrb[0].mxu0
  %v1148 = vadd.f32 0.0, %v1147
  %v1149 = vpop.f32.mrb[0].mxu0
  %v1150 = vadd.f32 0.0, %v1149
  %1151 = vmatprep.mubr.bf16.mxu0 %v364
  %1152 = vmatmul.mubr.bf16.gmra.mrb[0].mxu0 %v363
  %v1153 = vpop.f32.mrb[0].mxu0
  %v1154 = vadd.f32 0.0, %v1153
  %v1155 = vpop.f32.mrb[0].mxu0
  %v1156 = vadd.f32 0.0, %v1155
  %v1157 = vpop.f32.mrb[0].mxu0
  %v1158 = vadd.f32 0.0, %v1157
  %v1159 = vpop.f32.mrb[0].mxu0
  %v1160 = vadd.f32 0.0, %v1159
  %1161 = vmatprep.mubr.bf16.mxu0 %v368
  %1162 = vmatmul.mubr.bf16.gmra.mrb[0].mxu0 %v367
  %v1163 = vpop.f32.mrb[0].mxu0
  %v1164 = vadd.f32 0.0, %v1163
  %v1165 = vpop.f32.mrb[0].mxu0
  %v1166 = vadd.f32 0.0, %v1165
  %v1167 = vpop.f32.mrb[0].mxu0
  %v1168 = vadd.f32 0.0, %v1167
  %v1169 = vpop.f32.mrb[0].mxu0
  %v1170 = vadd.f32 0.0, %v1169
  %1171 = vmatprep.mubr.bf16.mxu0 %v372
  %1172 = vmatmul.mubr.bf16.gmra.mrb[0].mxu0 %v371
  %v1173 = vpop.f32.mrb[0].mxu0
  %v1174 = vadd.f32 0.0, %v1173
  %v1175 = vpop.f32.mrb[0].mxu0
  %v1176 = vadd.f32 0.0, %v1175
  %v1177 = vpop.f32.mrb[0].mxu0
  %v1178 = vadd.f32 0.0, %v1177
  %v1179 = vpop.f32.mrb[0].mxu0
  %v1180 = vadd.f32 0.0, %v1179
  %1181 = vmatprep.mubr.bf16.mxu0 %v376
  %1182 = vmatmul.mubr.bf16.gmra.mrb[0].mxu0 %v375
  %v1183 = vpop.f32.mrb[0].mxu0
  %v1184 = vadd.f32 0.0, %v1183
  %v1185 = vpop.f32.mrb[0].mxu0
  %v1186 = vadd.f32 0.0, %v1185
  %v1187 = vpop.f32.mrb[0].mxu0
  %v1188 = vadd.f32 0.0, %v1187
  %v1189 = vpop.f32.mrb[0].mxu0
  %v1190 = vadd.f32 0.0, %v1189
  %1191 = vmatprep.mubr.bf16.mxu0 %v380
  %1192 = vmatmul.mubr.bf16.gmra.mrb[0].mxu0 %v379
  %v1193 = vpop.f32.mrb[0].mxu0
  %v1194 = vadd.f32 0.0, %v1193
  %v1195 = vpop.f32.mrb[0].mxu0
  %v1196 = vadd.f32 0.0, %v1195
  %v1197 = vpop.f32.mrb[0].mxu0
  %v1198 = vadd.f32 0.0, %v1197
  %v1199 = vpop.f32.mrb[0].mxu0
  %v1200 = vadd.f32 0.0, %v1199
  %1201 = vmatprep.mubr.bf16.mxu0 %v384
  %1202 = vmatmul.mubr.bf16.gmra.mrb[0].mxu0 %v383
  %v1203 = vpop.f32.mrb[0].mxu0
  %v1204 = vadd.f32 0.0, %v1203
  %v1205 = vpop.f32.mrb[0].mxu0
  %v1206 = vadd.f32 0.0, %v1205
  %v1207 = vpop.f32.mrb[0].mxu0
  %v1208 = vadd.f32 0.0, %v1207
  %v1209 = vpop.f32.mrb[0].mxu0
  %v1210 = vadd.f32 0.0, %v1209
  %1211 = vmatprep.mubr.bf16.mxu0 %v388
  %1212 = vmatmul.mubr.bf16.gmra.mrb[0].mxu0 %v387
  %v1213 = vpop.f32.mrb[0].mxu0
  %v1214 = vadd.f32 0.0, %v1213
  %v1215 = vpop.f32.mrb[0].mxu0
  %v1216 = vadd.f32 0.0, %v1215
  %v1217 = vpop.f32.mrb[0].mxu0
  %v1218 = vadd.f32 0.0, %v1217
  %v1219 = vpop.f32.mrb[0].mxu0
  %v1220 = vadd.f32 0.0, %v1219
  %1221 = vmatprep.mubr.bf16.mxu0 %v392
  %1222 = vmatmul.mubr.bf16.gmra.mrb[0].mxu0 %v391
  %v1223 = vpop.f32.mrb[0].mxu0
  %v1224 = vadd.f32 0.0, %v1223
  %v1225 = vpop.f32.mrb[0].mxu0
  %v1226 = vadd.f32 0.0, %v1225
  %v1227 = vpop.f32.mrb[0].mxu0
  %v1228 = vadd.f32 0.0, %v1227
  %v1229 = vpop.f32.mrb[0].mxu0
  %v1230 = vadd.f32 0.0, %v1229
  %1231 = vmatprep.mubr.bf16.mxu0 %v396
  %1232 = vmatmul.mubr.bf16.gmra.mrb[0].mxu0 %v395
  %v1233 = vpop.f32.mrb[0].mxu0
  %v1234 = vadd.f32 0.0, %v1233
  %v1235 = vpop.f32.mrb[0].mxu0
  %v1236 = vadd.f32 0.0, %v1235
  %v1237 = vpop.f32.mrb[0].mxu0
  %v1238 = vadd.f32 0.0, %v1237
  %v1239 = vpop.f32.mrb[0].mxu0
  %v1240 = vadd.f32 0.0, %v1239
  %1241 = vmatprep.mubr.bf16.mxu0 %v400
  %1242 = vmatmul.mubr.bf16.gmra.mrb[0].mxu0 %v399
  %v1243 = vpop.f32.mrb[0].mxu0
  %v1244 = vadd.f32 0.0, %v1243
  %v1245 = vpop.f32.mrb[0].mxu0
  %v1246 = vadd.f32 0.0, %v1245
  %v1247 = vpop.f32.mrb[0].mxu0
  %v1248 = vadd.f32 0.0, %v1247
  %v1249 = vpop.f32.mrb[0].mxu0
  %v1250 = vadd.f32 0.0, %v1249
  %1251 = vmatprep.mubr.bf16.mxu0 %v404
  %1252 = vmatmul.mubr.bf16.gmra.mrb[0].mxu0 %v403
  %v1253 = vpop.f32.mrb[0].mxu0
  %v1254 = vadd.f32 0.0, %v1253
  %v1255 = vpop.f32.mrb[0].mxu0
  %v1256 = vadd.f32 0.0, %v1255
  %v1257 = vpop.f32.mrb[0].mxu0
  %v1258 = vpop.f32.mrb[0].mxu0
  %1259 = vdwg.mxu0
  %1260 = vmatprep.subr.bf16.mxu0 %v908
  %1261 = vmatpush1.bf16.msra.mxu0 %v907
  %1262 = vmatprep.subr.bf16.mxu0 %v912
  %1263 = vmatpush1.bf16.msra.mxu0 %v911
  %1264 = vmatprep.subr.bf16.mxu0 %v916
  %1265 = vmatpush1.bf16.msra.mxu0 %v915
  %1266 = vmatprep.subr.bf16.mxu0 %v920
  %1267 = vmatpush1.bf16.msra.mxu0 %v919
  %1268 = vmatprep.subr.bf16.mxu0 %v924
  %1269 = vmatpush1.bf16.msra.mxu0 %v923
  %1270 = vmatprep.subr.bf16.mxu0 %v928
  %1271 = vmatpush1.bf16.msra.mxu0 %v927
  %1272 = vmatprep.subr.bf16.mxu0 %v932
  %1273 = vmatpush1.bf16.msra.mxu0 %v931
  %1274 = vmatprep.subr.bf16.mxu0 %v936
  %1275 = vmatpush1.bf16.msra.mxu0 %v935
  %1276 = vmatprep.subr.bf16.mxu0 %v940
  %1277 = vmatpush1.bf16.msra.mxu0 %v939
  %1278 = vmatprep.subr.bf16.mxu0 %v944
  %1279 = vmatpush1.bf16.msra.mxu0 %v943
  %1280 = vmatprep.subr.bf16.mxu0 %v948
  %1281 = vmatpush1.bf16.msra.mxu0 %v947
  %1282 = vmatprep.subr.bf16.mxu0 %v952
  %1283 = vmatpush1.bf16.msra.mxu0 %v951
  %1284 = vmatprep.subr.bf16.mxu0 %v956
  %1285 = vmatpush1.bf16.msra.mxu0 %v955
  %1286 = vmatprep.subr.bf16.mxu0 %v960
  %1287 = vmatpush1.bf16.msra.mxu0 %v959
  %1288 = vmatprep.subr.bf16.mxu0 %v964
  %1289 = vmatpush1.bf16.msra.mxu0 %v963
  %1290 = vmatprep.subr.bf16.mxu0 %v968
  %1291 = vmatpush1.bf16.msra.mxu0 %v967
  %1292 = vmatprep.mubr.bf16.mxu0 %v358
  %1293 = vmatmul.mubr.bf16.gmra.mrb[0].mxu0 %v357
  %v1294 = vpop.f32.mrb[0].mxu0
  %v1295 = vadd.f32 %v1134, %v1294
  %v1296 = vpop.f32.mrb[0].mxu0
  %v1297 = vadd.f32 %v1136, %v1296
  %v1298 = vpop.f32.mrb[0].mxu0
  %v1299 = vadd.f32 %v1138, %v1298
  %v1300 = vpop.f32.mrb[0].mxu0
  %v1301 = vadd.f32 %v1140, %v1300
  %1302 = vmatprep.mubr.bf16.mxu0 %v362
  %1303 = vmatmul.mubr.bf16.gmra.mrb[0].mxu0 %v361
  %v1304 = vpop.f32.mrb[0].mxu0
  %v1305 = vadd.f32 %v1144, %v1304
  %v1306 = vpop.f32.mrb[0].mxu0
  %v1307 = vadd.f32 %v1146, %v1306
  %v1308 = vpop.f32.mrb[0].mxu0
  %v1309 = vadd.f32 %v1148, %v1308
  %v1310 = vpop.f32.mrb[0].mxu0
  %v1311 = vadd.f32 %v1150, %v1310
  %1312 = vmatprep.mubr.bf16.mxu0 %v366
  %1313 = vmatmul.mubr.bf16.gmra.mrb[0].mxu0 %v365
  %v1314 = vpop.f32.mrb[0].mxu0
  %v1315 = vadd.f32 %v1154, %v1314
  %v1316 = vpop.f32.mrb[0].mxu0
  %v1317 = vadd.f32 %v1156, %v1316
  %v1318 = vpop.f32.mrb[0].mxu0
  %v1319 = vadd.f32 %v1158, %v1318
  %v1320 = vpop.f32.mrb[0].mxu0
  %v1321 = vadd.f32 %v1160, %v1320
  %1322 = vmatprep.mubr.bf16.mxu0 %v370
  %1323 = vmatmul.mubr.bf16.gmra.mrb[0].mxu0 %v369
  %v1324 = vpop.f32.mrb[0].mxu0
  %v1325 = vadd.f32 %v1164, %v1324
  %v1326 = vpop.f32.mrb[0].mxu0
  %v1327 = vadd.f32 %v1166, %v1326
  %v1328 = vpop.f32.mrb[0].mxu0
  %v1329 = vadd.f32 %v1168, %v1328
  %v1330 = vpop.f32.mrb[0].mxu0
  %v1331 = vadd.f32 %v1170, %v1330
  %1332 = vmatprep.mubr.bf16.mxu0 %v374
  %1333 = vmatmul.mubr.bf16.gmra.mrb[0].mxu0 %v373
  %v1334 = vpop.f32.mrb[0].mxu0
  %v1335 = vadd.f32 %v1174, %v1334
  %v1336 = vpop.f32.mrb[0].mxu0
  %v1337 = vadd.f32 %v1176, %v1336
  %v1338 = vpop.f32.mrb[0].mxu0
  %v1339 = vadd.f32 %v1178, %v1338
  %v1340 = vpop.f32.mrb[0].mxu0
  %v1341 = vadd.f32 %v1180, %v1340
  %1342 = vmatprep.mubr.bf16.mxu0 %v378
  %1343 = vmatmul.mubr.bf16.gmra.mrb[0].mxu0 %v377
  %v1344 = vpop.f32.mrb[0].mxu0
  %v1345 = vadd.f32 %v1184, %v1344
  %v1346 = vpop.f32.mrb[0].mxu0
  %v1347 = vadd.f32 %v1186, %v1346
  %v1348 = vpop.f32.mrb[0].mxu0
  %v1349 = vadd.f32 %v1188, %v1348
  %v1350 = vpop.f32.mrb[0].mxu0
  %v1351 = vadd.f32 %v1190, %v1350
  %1352 = vmatprep.mubr.bf16.mxu0 %v382
  %1353 = vmatmul.mubr.bf16.gmra.mrb[0].mxu0 %v381
  %v1354 = vpop.f32.mrb[0].mxu0
  %v1355 = vadd.f32 %v1194, %v1354
  %v1356 = vpop.f32.mrb[0].mxu0
  %v1357 = vadd.f32 %v1196, %v1356
  %v1358 = vpop.f32.mrb[0].mxu0
  %v1359 = vadd.f32 %v1198, %v1358
  %v1360 = vpop.f32.mrb[0].mxu0
  %v1361 = vadd.f32 %v1200, %v1360
  %1362 = vmatprep.mubr.bf16.mxu0 %v386
  %1363 = vmatmul.mubr.bf16.gmra.mrb[0].mxu0 %v385
  %v1364 = vpop.f32.mrb[0].mxu0
  %v1365 = vadd.f32 %v1204, %v1364
  %v1366 = vpop.f32.mrb[0].mxu0
  %v1367 = vadd.f32 %v1206, %v1366
  %v1368 = vpop.f32.mrb[0].mxu0
  %v1369 = vadd.f32 %v1208, %v1368
  %v1370 = vpop.f32.mrb[0].mxu0
  %v1371 = vadd.f32 %v1210, %v1370
  %1372 = vmatprep.mubr.bf16.mxu0 %v390
  %1373 = vmatmul.mubr.bf16.gmra.mrb[0].mxu0 %v389
  %v1374 = vpop.f32.mrb[0].mxu0
  %v1375 = vadd.f32 %v1214, %v1374
  %v1376 = vpop.f32.mrb[0].mxu0
  %v1377 = vadd.f32 %v1216, %v1376
  %v1378 = vpop.f32.mrb[0].mxu0
  %v1379 = vadd.f32 %v1218, %v1378
  %v1380 = vpop.f32.mrb[0].mxu0
  %v1381 = vadd.f32 %v1220, %v1380
  %1382 = vmatprep.mubr.bf16.mxu0 %v394
  %1383 = vmatmul.mubr.bf16.gmra.mrb[0].mxu0 %v393
  %v1384 = vpop.f32.mrb[0].mxu0
  %v1385 = vadd.f32 %v1224, %v1384
  %v1386 = vpop.f32.mrb[0].mxu0
  %v1387 = vadd.f32 %v1226, %v1386
  %v1388 = vpop.f32.mrb[0].mxu0
  %v1389 = vadd.f32 %v1228, %v1388
  %v1390 = vpop.f32.mrb[0].mxu0
  %v1391 = vadd.f32 %v1230, %v1390
  %1392 = vmatprep.mubr.bf16.mxu0 %v398
  %1393 = vmatmul.mubr.bf16.gmra.mrb[0].mxu0 %v397
  %v1394 = vpop.f32.mrb[0].mxu0
  %v1395 = vadd.f32 %v1234, %v1394
  %v1396 = vpop.f32.mrb[0].mxu0
  %v1397 = vadd.f32 %v1236, %v1396
  %v1398 = vpop.f32.mrb[0].mxu0
  %v1399 = vadd.f32 %v1238, %v1398
  %v1400 = vpop.f32.mrb[0].mxu0
  %v1401 = vadd.f32 %v1240, %v1400
  %1402 = vmatprep.mubr.bf16.mxu0 %v402
  %1403 = vmatmul.mubr.bf16.gmra.mrb[0].mxu0 %v401
  %v1404 = vpop.f32.mrb[0].mxu0
  %v1405 = vadd.f32 %v1244, %v1404
  %v1406 = vpop.f32.mrb[0].mxu0
  %v1407 = vadd.f32 %v1246, %v1406
  %v1408 = vpop.f32.mrb[0].mxu0
  %v1409 = vadd.f32 %v1248, %v1408
  %v1410 = vpop.f32.mrb[0].mxu0
  %v1411 = vadd.f32 %v1250, %v1410
  %1412 = vmatprep.mubr.bf16.mxu0 %v406
  %1413 = vmatmul.mubr.bf16.gmra.mrb[0].mxu0 %v405
  %v1414 = vpop.f32.mrb[0].mxu0
  %v1415 = vadd.f32 %v1254, %v1414
  %v1416 = vpop.f32.mrb[0].mxu0
  %v1417 = vadd.f32 %v1256, %v1416
  %v1418 = vpop.f32.mrb[0].mxu0
  %v1419 = vpop.f32.mrb[0].mxu0
  %1420 = vdwg.mxu0
  %1421 = vmatprep.subr.bf16.mxu0 %v846
  %1422 = vmatpush1.bf16.msra.mxu0 %v845
  %1423 = vmatprep.subr.bf16.mxu0 %v850
  %1424 = vmatpush1.bf16.msra.mxu0 %v849
  %1425 = vmatprep.subr.bf16.mxu0 %v854
  %1426 = vmatpush1.bf16.msra.mxu0 %v853
  %1427 = vmatprep.subr.bf16.mxu0 %v858
  %1428 = vmatpush1.bf16.msra.mxu0 %v857
  %1429 = vmatprep.subr.bf16.mxu0 %v862
  %1430 = vmatpush1.bf16.msra.mxu0 %v861
  %1431 = vmatprep.subr.bf16.mxu0 %v866
  %1432 = vmatpush1.bf16.msra.mxu0 %v865
  %1433 = vmatprep.subr.bf16.mxu0 %v870
  %1434 = vmatpush1.bf16.msra.mxu0 %v869
  %1435 = vmatprep.subr.bf16.mxu0 %v874
  %1436 = vmatpush1.bf16.msra.mxu0 %v873
  %1437 = vmatprep.subr.bf16.mxu0 %v878
  %1438 = vmatpush1.bf16.msra.mxu0 %v877
  %1439 = vmatprep.subr.bf16.mxu0 %v882
  %1440 = vmatpush1.bf16.msra.mxu0 %v881
  %1441 = vmatprep.subr.bf16.mxu0 %v886
  %1442 = vmatpush1.bf16.msra.mxu0 %v885
  %1443 = vmatprep.subr.bf16.mxu0 %v890
  %1444 = vmatpush1.bf16.msra.mxu0 %v889
  %1445 = vmatprep.subr.bf16.mxu0 %v894
  %1446 = vmatpush1.bf16.msra.mxu0 %v893
  %1447 = vmatprep.subr.bf16.mxu0 %v898
  %1448 = vmatpush1.bf16.msra.mxu0 %v897
  %1449 = vmatprep.subr.bf16.mxu0 %v902
  %1450 = vmatpush1.bf16.msra.mxu0 %v901
  %1451 = vmatprep.subr.bf16.mxu0 %v906
  %1452 = vmatpush1.bf16.msra.mxu0 %v905
  %1453 = vmatprep.mubr.bf16.mxu0 %v356
  %1454 = vmatmul.mubr.bf16.gmra.mrb[0].mxu0 %v355
  %v1455 = vpop.f32.mrb[0].mxu0
  %v1456 = vadd.f32 0.0, %v1455
  %v1457 = vpop.f32.mrb[0].mxu0
  %v1458 = vadd.f32 0.0, %v1457
  %v1459 = vpop.f32.mrb[0].mxu0
  %v1460 = vadd.f32 0.0, %v1459
  %v1461 = vpop.f32.mrb[0].mxu0
  %v1462 = vadd.f32 0.0, %v1461
  %1463 = vmatprep.mubr.bf16.mxu0 %v360
  %1464 = vmatmul.mubr.bf16.gmra.mrb[0].mxu0 %v359
  %v1465 = vpop.f32.mrb[0].mxu0
  %v1466 = vadd.f32 0.0, %v1465
  %v1467 = vpop.f32.mrb[0].mxu0
  %v1468 = vadd.f32 0.0, %v1467
  %v1469 = vpop.f32.mrb[0].mxu0
  %v1470 = vadd.f32 0.0, %v1469
  %v1471 = vpop.f32.mrb[0].mxu0
  %v1472 = vadd.f32 0.0, %v1471
  %1473 = vmatprep.mubr.bf16.mxu0 %v364
  %1474 = vmatmul.mubr.bf16.gmra.mrb[0].mxu0 %v363
  %v1475 = vpop.f32.mrb[0].mxu0
  %v1476 = vadd.f32 0.0, %v1475
  %v1477 = vpop.f32.mrb[0].mxu0
  %v1478 = vadd.f32 0.0, %v1477
  %v1479 = vpop.f32.mrb[0].mxu0
  %v1480 = vadd.f32 0.0, %v1479
  %v1481 = vpop.f32.mrb[0].mxu0
  %v1482 = vadd.f32 0.0, %v1481
  %1483 = vmatprep.mubr.bf16.mxu0 %v368
  %1484 = vmatmul.mubr.bf16.gmra.mrb[0].mxu0 %v367
  %v1485 = vpop.f32.mrb[0].mxu0
  %v1486 = vadd.f32 0.0, %v1485
  %v1487 = vpop.f32.mrb[0].mxu0
  %v1488 = vadd.f32 0.0, %v1487
  %v1489 = vpop.f32.mrb[0].mxu0
  %v1490 = vadd.f32 0.0, %v1489
  %v1491 = vpop.f32.mrb[0].mxu0
  %v1492 = vadd.f32 0.0, %v1491
  %1493 = vmatprep.mubr.bf16.mxu0 %v372
  %1494 = vmatmul.mubr.bf16.gmra.mrb[0].mxu0 %v371
  %v1495 = vpop.f32.mrb[0].mxu0
  %v1496 = vadd.f32 0.0, %v1495
  %v1497 = vpop.f32.mrb[0].mxu0
  %v1498 = vadd.f32 0.0, %v1497
  %v1499 = vpop.f32.mrb[0].mxu0
  %v1500 = vadd.f32 0.0, %v1499
  %v1501 = vpop.f32.mrb[0].mxu0
  %v1502 = vadd.f32 0.0, %v1501
  %1503 = vmatprep.mubr.bf16.mxu0 %v376
  %1504 = vmatmul.mubr.bf16.gmra.mrb[0].mxu0 %v375
  %v1505 = vpop.f32.mrb[0].mxu0
  %v1506 = vadd.f32 0.0, %v1505
  %v1507 = vpop.f32.mrb[0].mxu0
  %v1508 = vadd.f32 0.0, %v1507
  %v1509 = vpop.f32.mrb[0].mxu0
  %v1510 = vadd.f32 0.0, %v1509
  %v1511 = vpop.f32.mrb[0].mxu0
  %v1512 = vadd.f32 0.0, %v1511
  %1513 = vmatprep.mubr.bf16.mxu0 %v380
  %1514 = vmatmul.mubr.bf16.gmra.mrb[0].mxu0 %v379
  %v1515 = vpop.f32.mrb[0].mxu0
  %v1516 = vadd.f32 0.0, %v1515
  %v1517 = vpop.f32.mrb[0].mxu0
  %v1518 = vadd.f32 0.0, %v1517
  %v1519 = vpop.f32.mrb[0].mxu0
  %v1520 = vadd.f32 0.0, %v1519
  %v1521 = vpop.f32.mrb[0].mxu0
  %v1522 = vadd.f32 0.0, %v1521
  %1523 = vmatprep.mubr.bf16.mxu0 %v384
  %1524 = vmatmul.mubr.bf16.gmra.mrb[0].mxu0 %v383
  %v1525 = vpop.f32.mrb[0].mxu0
  %v1526 = vadd.f32 0.0, %v1525
  %v1527 = vpop.f32.mrb[0].mxu0
  %v1528 = vadd.f32 0.0, %v1527
  %v1529 = vpop.f32.mrb[0].mxu0
  %v1530 = vadd.f32 0.0, %v1529
  %v1531 = vpop.f32.mrb[0].mxu0
  %v1532 = vadd.f32 0.0, %v1531
  %1533 = vmatprep.mubr.bf16.mxu0 %v388
  %1534 = vmatmul.mubr.bf16.gmra.mrb[0].mxu0 %v387
  %v1535 = vpop.f32.mrb[0].mxu0
  %v1536 = vadd.f32 0.0, %v1535
  %v1537 = vpop.f32.mrb[0].mxu0
  %v1538 = vadd.f32 0.0, %v1537
  %v1539 = vpop.f32.mrb[0].mxu0
  %v1540 = vadd.f32 0.0, %v1539
  %v1541 = vpop.f32.mrb[0].mxu0
  %v1542 = vadd.f32 0.0, %v1541
  %1543 = vmatprep.mubr.bf16.mxu0 %v392
  %1544 = vmatmul.mubr.bf16.gmra.mrb[0].mxu0 %v391
  %v1545 = vpop.f32.mrb[0].mxu0
  %v1546 = vadd.f32 0.0, %v1545
  %v1547 = vpop.f32.mrb[0].mxu0
  %v1548 = vadd.f32 0.0, %v1547
  %v1549 = vpop.f32.mrb[0].mxu0
  %v1550 = vadd.f32 0.0, %v1549
  %v1551 = vpop.f32.mrb[0].mxu0
  %v1552 = vadd.f32 0.0, %v1551
  %1553 = vmatprep.mubr.bf16.mxu0 %v396
  %1554 = vmatmul.mubr.bf16.gmra.mrb[0].mxu0 %v395
  %v1555 = vpop.f32.mrb[0].mxu0
  %v1556 = vadd.f32 0.0, %v1555
  %v1557 = vpop.f32.mrb[0].mxu0
  %v1558 = vadd.f32 0.0, %v1557
  %v1559 = vpop.f32.mrb[0].mxu0
  %v1560 = vadd.f32 0.0, %v1559
  %v1561 = vpop.f32.mrb[0].mxu0
  %v1562 = vadd.f32 0.0, %v1561
  %1563 = vmatprep.mubr.bf16.mxu0 %v400
  %1564 = vmatmul.mubr.bf16.gmra.mrb[0].mxu0 %v399
  %v1565 = vpop.f32.mrb[0].mxu0
  %v1566 = vadd.f32 0.0, %v1565
  %v1567 = vpop.f32.mrb[0].mxu0
  %v1568 = vadd.f32 0.0, %v1567
  %v1569 = vpop.f32.mrb[0].mxu0
  %v1570 = vadd.f32 0.0, %v1569
  %v1571 = vpop.f32.mrb[0].mxu0
  %v1572 = vadd.f32 0.0, %v1571
  %1573 = vmatprep.mubr.bf16.mxu0 %v404
  %1574 = vmatmul.mubr.bf16.gmra.mrb[0].mxu0 %v403
  %v1575 = vpop.f32.mrb[0].mxu0
  %v1576 = vadd.f32 0.0, %v1575
  %v1577 = vpop.f32.mrb[0].mxu0
  %v1578 = vadd.f32 0.0, %v1577
  %v1579 = vpop.f32.mrb[0].mxu0
  %v1580 = vpop.f32.mrb[0].mxu0
  %1581 = vdwg.mxu0
  %1582 = vmatprep.subr.bf16.mxu0 %v910
  %1583 = vmatpush1.bf16.msra.mxu0 %v909
  %1584 = vmatprep.subr.bf16.mxu0 %v914
  %1585 = vmatpush1.bf16.msra.mxu0 %v913
  %1586 = vmatprep.subr.bf16.mxu0 %v918
  %1587 = vmatpush1.bf16.msra.mxu0 %v917
  %1588 = vmatprep.subr.bf16.mxu0 %v922
  %1589 = vmatpush1.bf16.msra.mxu0 %v921
  %1590 = vmatprep.subr.bf16.mxu0 %v926
  %1591 = vmatpush1.bf16.msra.mxu0 %v925
  %1592 = vmatprep.subr.bf16.mxu0 %v930
  %1593 = vmatpush1.bf16.msra.mxu0 %v929
  %1594 = vmatprep.subr.bf16.mxu0 %v934
  %1595 = vmatpush1.bf16.msra.mxu0 %v933
  %1596 = vmatprep.subr.bf16.mxu0 %v938
  %1597 = vmatpush1.bf16.msra.mxu0 %v937
  %1598 = vmatprep.subr.bf16.mxu0 %v942
  %1599 = vmatpush1.bf16.msra.mxu0 %v941
  %1600 = vmatprep.subr.bf16.mxu0 %v946
  %1601 = vmatpush1.bf16.msra.mxu0 %v945
  %1602 = vmatprep.subr.bf16.mxu0 %v950
  %1603 = vmatpush1.bf16.msra.mxu0 %v949
  %1604 = vmatprep.subr.bf16.mxu0 %v954
  %1605 = vmatpush1.bf16.msra.mxu0 %v953
  %1606 = vmatprep.subr.bf16.mxu0 %v958
  %1607 = vmatpush1.bf16.msra.mxu0 %v957
  %1608 = vmatprep.subr.bf16.mxu0 %v962
  %1609 = vmatpush1.bf16.msra.mxu0 %v961
  %1610 = vmatprep.subr.bf16.mxu0 %v966
  %1611 = vmatpush1.bf16.msra.mxu0 %v965
  %1612 = vmatprep.subr.bf16.mxu0 %v970
  %1613 = vmatpush1.bf16.msra.mxu0 %v969
  %1614 = vmatprep.mubr.bf16.mxu0 %v358
  %1615 = vmatmul.mubr.bf16.gmra.mrb[0].mxu0 %v357
  %v1616 = vpop.f32.mrb[0].mxu0
  %v1617 = vadd.f32 %v1456, %v1616
  %v1618 = vpop.f32.mrb[0].mxu0
  %v1619 = vadd.f32 %v1458, %v1618
  %v1620 = vpop.f32.mrb[0].mxu0
  %v1621 = vadd.f32 %v1460, %v1620
  %v1622 = vpop.f32.mrb[0].mxu0
  %v1623 = vadd.f32 %v1462, %v1622
  %1624 = vmatprep.mubr.bf16.mxu0 %v362
  %1625 = vmatmul.mubr.bf16.gmra.mrb[0].mxu0 %v361
  %v1626 = vpop.f32.mrb[0].mxu0
  %v1627 = vadd.f32 %v1466, %v1626
  %v1628 = vpop.f32.mrb[0].mxu0
  %v1629 = vadd.f32 %v1468, %v1628
  %v1630 = vpop.f32.mrb[0].mxu0
  %v1631 = vadd.f32 %v1470, %v1630
  %v1632 = vpop.f32.mrb[0].mxu0
  %v1633 = vadd.f32 %v1472, %v1632
  %1634 = vmatprep.mubr.bf16.mxu0 %v366
  %1635 = vmatmul.mubr.bf16.gmra.mrb[0].mxu0 %v365
  %v1636 = vpop.f32.mrb[0].mxu0
  %v1637 = vadd.f32 %v1476, %v1636
  %v1638 = vpop.f32.mrb[0].mxu0
  %v1639 = vadd.f32 %v1478, %v1638
  %v1640 = vpop.f32.mrb[0].mxu0
  %v1641 = vadd.f32 %v1480, %v1640
  %v1642 = vpop.f32.mrb[0].mxu0
  %v1643 = vadd.f32 %v1482, %v1642
  %1644 = vmatprep.mubr.bf16.mxu0 %v370
  %1645 = vmatmul.mubr.bf16.gmra.mrb[0].mxu0 %v369
  %v1646 = vpop.f32.mrb[0].mxu0
  %v1647 = vadd.f32 %v1486, %v1646
  %v1648 = vpop.f32.mrb[0].mxu0
  %v1649 = vadd.f32 %v1488, %v1648
  %v1650 = vpop.f32.mrb[0].mxu0
  %v1651 = vadd.f32 %v1490, %v1650
  %v1652 = vpop.f32.mrb[0].mxu0
  %v1653 = vadd.f32 %v1492, %v1652
  %1654 = vmatprep.mubr.bf16.mxu0 %v374
  %1655 = vmatmul.mubr.bf16.gmra.mrb[0].mxu0 %v373
  %v1656 = vpop.f32.mrb[0].mxu0
  %v1657 = vadd.f32 %v1496, %v1656
  %v1658 = vpop.f32.mrb[0].mxu0
  %v1659 = vadd.f32 %v1498, %v1658
  %v1660 = vpop.f32.mrb[0].mxu0
  %v1661 = vadd.f32 %v1500, %v1660
  %v1662 = vpop.f32.mrb[0].mxu0
  %v1663 = vadd.f32 %v1502, %v1662
  %1664 = vmatprep.mubr.bf16.mxu0 %v378
  %1665 = vmatmul.mubr.bf16.gmra.mrb[0].mxu0 %v377
  %v1666 = vpop.f32.mrb[0].mxu0
  %v1667 = vadd.f32 %v1506, %v1666
  %v1668 = vpop.f32.mrb[0].mxu0
  %v1669 = vadd.f32 %v1508, %v1668
  %v1670 = vpop.f32.mrb[0].mxu0
  %v1671 = vadd.f32 %v1510, %v1670
  %v1672 = vpop.f32.mrb[0].mxu0
  %v1673 = vadd.f32 %v1512, %v1672
  %1674 = vmatprep.mubr.bf16.mxu0 %v382
  %1675 = vmatmul.mubr.bf16.gmra.mrb[0].mxu0 %v381
  %v1676 = vpop.f32.mrb[0].mxu0
  %v1677 = vadd.f32 %v1516, %v1676
  %v1678 = vpop.f32.mrb[0].mxu0
  %v1679 = vadd.f32 %v1518, %v1678
  %v1680 = vpop.f32.mrb[0].mxu0
  %v1681 = vadd.f32 %v1520, %v1680
  %v1682 = vpop.f32.mrb[0].mxu0
  %v1683 = vadd.f32 %v1522, %v1682
  %1684 = vmatprep.mubr.bf16.mxu0 %v386
  %1685 = vmatmul.mubr.bf16.gmra.mrb[0].mxu0 %v385
  %v1686 = vpop.f32.mrb[0].mxu0
  %v1687 = vadd.f32 %v1526, %v1686
  %v1688 = vpop.f32.mrb[0].mxu0
  %v1689 = vadd.f32 %v1528, %v1688
  %v1690 = vpop.f32.mrb[0].mxu0
  %v1691 = vadd.f32 %v1530, %v1690
  %v1692 = vpop.f32.mrb[0].mxu0
  %v1693 = vadd.f32 %v1532, %v1692
  %1694 = vmatprep.mubr.bf16.mxu0 %v390
  %1695 = vmatmul.mubr.bf16.gmra.mrb[0].mxu0 %v389
  %v1696 = vpop.f32.mrb[0].mxu0
  %v1697 = vadd.f32 %v1536, %v1696
  %v1698 = vpop.f32.mrb[0].mxu0
  %v1699 = vadd.f32 %v1538, %v1698
  %v1700 = vpop.f32.mrb[0].mxu0
  %v1701 = vadd.f32 %v1540, %v1700
  %v1702 = vpop.f32.mrb[0].mxu0
  %v1703 = vadd.f32 %v1542, %v1702
  %1704 = vmatprep.mubr.bf16.mxu0 %v394
  %1705 = vmatmul.mubr.bf16.gmra.mrb[0].mxu0 %v393
  %v1706 = vpop.f32.mrb[0].mxu0
  %v1707 = vadd.f32 %v1546, %v1706
  %v1708 = vpop.f32.mrb[0].mxu0
  %v1709 = vadd.f32 %v1548, %v1708
  %v1710 = vpop.f32.mrb[0].mxu0
  %v1711 = vadd.f32 %v1550, %v1710
  %v1712 = vpop.f32.mrb[0].mxu0
  %v1713 = vadd.f32 %v1552, %v1712
  %1714 = vmatprep.mubr.bf16.mxu0 %v398
  %1715 = vmatmul.mubr.bf16.gmra.mrb[0].mxu0 %v397
  %v1716 = vpop.f32.mrb[0].mxu0
  %v1717 = vadd.f32 %v1556, %v1716
  %v1718 = vpop.f32.mrb[0].mxu0
  %v1719 = vadd.f32 %v1558, %v1718
  %v1720 = vpop.f32.mrb[0].mxu0
  %v1721 = vadd.f32 %v1560, %v1720
  %v1722 = vpop.f32.mrb[0].mxu0
  %v1723 = vadd.f32 %v1562, %v1722
  %1724 = vmatprep.mubr.bf16.mxu0 %v402
  %1725 = vmatmul.mubr.bf16.gmra.mrb[0].mxu0 %v401
  %v1726 = vpop.f32.mrb[0].mxu0
  %v1727 = vadd.f32 %v1566, %v1726
  %v1728 = vpop.f32.mrb[0].mxu0
  %v1729 = vadd.f32 %v1568, %v1728
  %v1730 = vpop.f32.mrb[0].mxu0
  %v1731 = vadd.f32 %v1570, %v1730
  %v1732 = vpop.f32.mrb[0].mxu0
  %v1733 = vadd.f32 %v1572, %v1732
  %1734 = vmatprep.mubr.bf16.mxu0 %v406
  %1735 = vmatmul.mubr.bf16.gmra.mrb[0].mxu0 %v405
  %v1736 = vpop.f32.mrb[0].mxu0
  %v1737 = vadd.f32 %v1576, %v1736
  %v1738 = vpop.f32.mrb[0].mxu0
  %v1739 = vadd.f32 %v1578, %v1738
  %v1740 = vpop.f32.mrb[0].mxu0
  %v1741 = vpop.f32.mrb[0].mxu0
  %1742 = vdwg.mxu0
  %v1743 = vmax.f32 %v1295, %v1297
  %v1744 = vmax.f32 %v1299, %v1301
  %v1745 = vmax.f32 %v1305, %v1307
  %v1746 = vmax.f32 %v1309, %v1311
  %v1747 = vmax.f32 %v1315, %v1317
  %v1748 = vmax.f32 %v1319, %v1321
  %v1749 = vmax.f32 %v1325, %v1327
  %v1750 = vmax.f32 %v1329, %v1331
  %v1751 = vmax.f32 %v1335, %v1337
  %v1752 = vmax.f32 %v1339, %v1341
  %v1753 = vmax.f32 %v1345, %v1347
  %v1754 = vmax.f32 %v1349, %v1351
  %v1755 = vmax.f32 %v1355, %v1357
  %v1756 = vmax.f32 %v1359, %v1361
  %v1757 = vmax.f32 %v1365, %v1367
  %v1758 = vmax.f32 %v1369, %v1371
  %v1759 = vmax.f32 %v1375, %v1377
  %v1760 = vmax.f32 %v1379, %v1381
  %v1761 = vmax.f32 %v1385, %v1387
  %v1762 = vmax.f32 %v1389, %v1391
  %v1763 = vmax.f32 %v1395, %v1397
  %v1764 = vmax.f32 %v1399, %v1401
  %v1765 = vmax.f32 %v1405, %v1407
  %v1766 = vmax.f32 %v1409, %v1411
  %v1767 = vmax.f32 %v1415, %v1417
  %v1768 = vmax.f32 %v1617, %v1619
  %v1769 = vmax.f32 %v1621, %v1623
  %v1770 = vmax.f32 %v1627, %v1629
  %v1771 = vmax.f32 %v1631, %v1633
  %v1772 = vmax.f32 %v1637, %v1639
  %v1773 = vmax.f32 %v1641, %v1643
  %v1774 = vmax.f32 %v1647, %v1649
  %v1775 = vmax.f32 %v1651, %v1653
  %v1776 = vmax.f32 %v1657, %v1659
  %v1777 = vmax.f32 %v1661, %v1663
  %v1778 = vmax.f32 %v1667, %v1669
  %v1779 = vmax.f32 %v1671, %v1673
  %v1780 = vmax.f32 %v1677, %v1679
  %v1781 = vmax.f32 %v1681, %v1683
  %v1782 = vmax.f32 %v1687, %v1689
  %v1783 = vmax.f32 %v1691, %v1693
  %v1784 = vmax.f32 %v1697, %v1699
  %v1785 = vmax.f32 %v1701, %v1703
  %v1786 = vmax.f32 %v1707, %v1709
  %v1787 = vmax.f32 %v1711, %v1713
  %v1788 = vmax.f32 %v1717, %v1719
  %v1789 = vmax.f32 %v1721, %v1723
  %v1790 = vmax.f32 %v1727, %v1729
  %v1791 = vmax.f32 %v1731, %v1733
  %v1792 = vmax.f32 %v1737, %v1739
  %v1793 = vmax.f32 %v1743, %v1768
  %v1794 = vmax.f32 %v1744, %v1769
  %v1795 = vmax.f32 %v1745, %v1770
  %v1796 = vmax.f32 %v1746, %v1771
  %v1797 = vmax.f32 %v1747, %v1772
  %v1798 = vmax.f32 %v1748, %v1773
  %v1799 = vmax.f32 %v1749, %v1774
  %v1800 = vmax.f32 %v1750, %v1775
  %v1801 = vmax.f32 %v1751, %v1776
  %v1802 = vmax.f32 %v1752, %v1777
  %v1803 = vmax.f32 %v1753, %v1778
  %v1804 = vmax.f32 %v1754, %v1779
  %v1805 = vmax.f32 %v1755, %v1780
  %v1806 = vmax.f32 %v1756, %v1781
  %v1807 = vmax.f32 %v1757, %v1782
  %v1808 = vmax.f32 %v1758, %v1783
  %v1809 = vmax.f32 %v1759, %v1784
  %v1810 = vmax.f32 %v1760, %v1785
  %v1811 = vmax.f32 %v1761, %v1786
  %v1812 = vmax.f32 %v1762, %v1787
  %v1813 = vmax.f32 %v1763, %v1788
  %v1814 = vmax.f32 %v1764, %v1789
  %v1815 = vmax.f32 %v1765, %v1790
  %v1816 = vmax.f32 %v1766, %v1791
  %v1817 = vmax.f32 %v1767, %v1792
  %v1818 = vld [vmem:[%s2] sm:$0x1]
  %v1820 = vlaneseq
  %v1821 = vshrl.u32 %v1820, 7
  %v1822 = vsub.s32 0, %v1821
  %v1823 = vrot.slane %v1818, %v1822
  %v1825 = vadd.f32 %v1793, %v1823
  %v1826 = vadd.f32 %v1794, %v1823
  %v1827 = vadd.f32 %v1795, %v1823
  %v1828 = vadd.f32 %v1796, %v1823
  %v1829 = vadd.f32 %v1797, %v1823
  %v1830 = vadd.f32 %v1798, %v1823
  %v1831 = vadd.f32 %v1799, %v1823
  %v1832 = vadd.f32 %v1800, %v1823
  %v1833 = vadd.f32 %v1801, %v1823
  %v1834 = vadd.f32 %v1802, %v1823
  %v1835 = vadd.f32 %v1803, %v1823
  %v1836 = vadd.f32 %v1804, %v1823
  %v1837 = vadd.f32 %v1805, %v1823
  %v1838 = vadd.f32 %v1806, %v1823
  %v1839 = vadd.f32 %v1807, %v1823
  %v1840 = vadd.f32 %v1808, %v1823
  %v1841 = vadd.f32 %v1809, %v1823
  %v1842 = vadd.f32 %v1810, %v1823
  %v1843 = vadd.f32 %v1811, %v1823
  %v1844 = vadd.f32 %v1812, %v1823
  %v1845 = vadd.f32 %v1813, %v1823
  %v1846 = vadd.f32 %v1814, %v1823
  %v1847 = vadd.f32 %v1815, %v1823
  %v1848 = vadd.f32 %v1816, %v1823
  %v1849 = vadd.f32 %v1817, %v1823
  %v1850 = vmax.f32 %v1825, 0.0
  %v1851 = vmax.f32 %v1826, 0.0
  %v1852 = vmax.f32 %v1827, 0.0
  %v1853 = vmax.f32 %v1828, 0.0
  %v1854 = vmax.f32 %v1829, 0.0
  %v1855 = vmax.f32 %v1830, 0.0
  %v1856 = vmax.f32 %v1831, 0.0
  %v1857 = vmax.f32 %v1832, 0.0
  %v1858 = vmax.f32 %v1833, 0.0
  %v1859 = vmax.f32 %v1834, 0.0
  %v1860 = vmax.f32 %v1835, 0.0
  %v1861 = vmax.f32 %v1836, 0.0
  %v1862 = vmax.f32 %v1837, 0.0
  %v1863 = vmax.f32 %v1838, 0.0
  %v1864 = vmax.f32 %v1839, 0.0
  %v1865 = vmax.f32 %v1840, 0.0
  %v1866 = vmax.f32 %v1841, 0.0
  %v1867 = vmax.f32 %v1842, 0.0
  %v1868 = vmax.f32 %v1843, 0.0
  %v1869 = vmax.f32 %v1844, 0.0
  %v1870 = vmax.f32 %v1845, 0.0
  %v1871 = vmax.f32 %v1846, 0.0
  %v1872 = vmax.f32 %v1847, 0.0
  %v1873 = vmax.f32 %v1848, 0.0
  %v1874 = vmax.f32 %v1849, 0.0
  %v1875 = vpack.c.bf16 %v1851, %v1850
  %v1876 = vpack.c.bf16 %v1853, %v1852
  %v1877 = vpack.c.bf16 %v1855, %v1854
  %v1878 = vpack.c.bf16 %v1857, %v1856
  %v1879 = vpack.c.bf16 %v1859, %v1858
  %v1880 = vpack.c.bf16 %v1861, %v1860
  %v1881 = vpack.c.bf16 %v1863, %v1862
  %v1882 = vpack.c.bf16 %v1865, %v1864
  %v1883 = vpack.c.bf16 %v1867, %v1866
  %v1884 = vpack.c.bf16 %v1869, %v1868
  %v1885 = vpack.c.bf16 %v1871, %v1870
  %v1886 = vpack.c.bf16 %v1873, %v1872
  %v1887 = vpack.c.bf16 %v1874, %v1874
  %v1888 = vld [vmem:[%s3] sm:$0xf]
  %v1889 = vld [vmem:[%s3 + $0x4] sm:$0xf]
  %v1890 = vld [vmem:[%s3 + $0x8] sm:$0xf]
  %v1891 = vld [vmem:[%s3 + $0xc] sm:$0xf]
  %v1892 = vld [vmem:[%s3 + $0x10] sm:$0xf]
  %v1893 = vld [vmem:[%s3 + $0x14] sm:$0xf]
  %v1894 = vld [vmem:[%s3 + $0x18] sm:$0xf]
  %v1895 = vld [vmem:[%s3 + $0x1c] sm:$0xf]
  %v1896 = vld [vmem:[%s3 + $0x20] sm:$0xf]
  %v1897 = vld [vmem:[%s3 + $0x24] sm:$0xf]
  %v1898 = vld [vmem:[%s3 + $0x28] sm:$0xf]
  %v1899 = vld [vmem:[%s3 + $0x2c] sm:$0xf]
  %v1900 = vld [vmem:[%s3 + $0x30] sm:$0xf]
  %v1901 = vld [vmem:[%s3 + $0x34] sm:$0xf]
  %v1902 = vld [vmem:[%s3 + $0x38] sm:$0xf]
  %v1903 = vld [vmem:[%s3 + $0x3c] sm:$0xf]
  %s1904 = scalar_lea.vmem %s3, 64
  %v1905 = vld [vmem:[%s1904] sm:$0xf]
  %v1906 = vld [vmem:[%s1904 + $0x4] sm:$0xf]
  %v1907 = vld [vmem:[%s1904 + $0x8] sm:$0xf]
  %v1908 = vld [vmem:[%s1904 + $0xc] sm:$0xf]
  %v1909 = vld [vmem:[%s1904 + $0x10] sm:$0xf]
  %v1910 = vld [vmem:[%s1904 + $0x14] sm:$0xf]
  %v1911 = vld [vmem:[%s1904 + $0x18] sm:$0xf]
  %v1912 = vld [vmem:[%s1904 + $0x1c] sm:$0xf]
  %v1913 = vld [vmem:[%s1904 + $0x20] sm:$0xf]
  %v1914 = vld [vmem:[%s1904 + $0x24] sm:$0xf]
  %v1915 = vld [vmem:[%s1904 + $0x28] sm:$0xf]
  %v1916 = vld [vmem:[%s1904 + $0x2c] sm:$0xf]
  %v1917 = vld [vmem:[%s1904 + $0x30] sm:$0xf]
  %v1918 = vld [vmem:[%s1904 + $0x34] sm:$0xf]
  %v1919 = vld [vmem:[%s1904 + $0x38] sm:$0xf]
  %v1920 = vld [vmem:[%s1904 + $0x3c] sm:$0xf]
  %v1922 = vrot.slane %v1875, 4
  %v1940 = vunpack.c.l.b16 %v1905
  %v1941 = vunpack.c.l.b16 %v1906
  %v1942 = vunpack.c.l.b16 %v1907
  %v1943 = vunpack.c.l.b16 %v1908
  %v1944 = vunpack.c.l.b16 %v1909
  %v1945 = vunpack.c.l.b16 %v1910
  %v1946 = vunpack.c.l.b16 %v1911
  %v1947 = vunpack.c.l.b16 %v1912
  %v1948 = vunpack.c.l.b16 %v1913
  %v1949 = vunpack.c.l.b16 %v1914
  %v1950 = vunpack.c.l.b16 %v1915
  %v1951 = vunpack.c.l.b16 %v1916
  %v1952 = vunpack.c.l.b16 %v1917
  %v1953 = vunpack.c.l.b16 %v1918
  %v1954 = vunpack.c.l.b16 %v1919
  %v1955 = vunpack.c.l.b16 %v1920
  %v1956 = vpack.c.b16 %v1941, %v1940
  %v1957 = vpack.c.b16 %v1943, %v1942
  %v1958 = vpack.c.b16 %v1945, %v1944
  %v1959 = vpack.c.b16 %v1947, %v1946
  %v1960 = vpack.c.b16 %v1949, %v1948
  %v1961 = vpack.c.b16 %v1951, %v1950
  %v1962 = vpack.c.b16 %v1953, %v1952
  %v1963 = vpack.c.b16 %v1955, %v1954
  %1972 = vmatprep.subr.bf16.mxu0 0
  %1973 = vmatpush1.bf16.msra.mxu0 %v1956
  %1974 = vmatprep.subr.bf16.mxu0 0
  %1975 = vmatpush1.bf16.msra.mxu0 %v1957
  %1976 = vmatprep.subr.bf16.mxu0 0
  %1977 = vmatpush1.bf16.msra.mxu0 %v1958
  %1978 = vmatprep.subr.bf16.mxu0 0
  %1979 = vmatpush1.bf16.msra.mxu0 %v1959
  %1980 = vmatprep.subr.bf16.mxu0 0
  %1981 = vmatpush1.bf16.msra.mxu0 %v1960
  %1982 = vmatprep.subr.bf16.mxu0 0
  %1983 = vmatpush1.bf16.msra.mxu0 %v1961
  %1984 = vmatprep.subr.bf16.mxu0 0
  %1985 = vmatpush1.bf16.msra.mxu0 %v1962
  %1986 = vmatprep.subr.bf16.mxu0 0
  %1987 = vmatpush1.bf16.msra.mxu0 %v1963
  %1988 = vmatprep.subr.bf16.mxu0 0
  %1989 = vmatpush1.bf16.msra.mxu0 0
  %1990 = vmatprep.subr.bf16.mxu0 0
  %1991 = vmatpush1.bf16.msra.mxu0 0
  %1992 = vmatprep.subr.bf16.mxu0 0
  %1993 = vmatpush1.bf16.msra.mxu0 0
  %1994 = vmatprep.subr.bf16.mxu0 0
  %1995 = vmatpush1.bf16.msra.mxu0 0
  %1996 = vmatprep.subr.bf16.mxu0 0
  %1997 = vmatpush1.bf16.msra.mxu0 0
  %1998 = vmatprep.subr.bf16.mxu0 0
  %1999 = vmatpush1.bf16.msra.mxu0 0
  %2000 = vmatprep.subr.bf16.mxu0 0
  %2001 = vmatpush1.bf16.msra.mxu0 0
  %2002 = vmatprep.subr.bf16.mxu0 0
  %2003 = vmatpush1.bf16.msra.mxu0 0
  %2004 = vmatprep.mubr.bf16.mxu0 0
  %2005 = vmatmul.mubr.bf16.gmra.mrb[0].mxu0 %v1922
  %v2006 = vpop.f32.mrb[0].mxu0
  %v2007 = vadd.f32 0.0, %v2006
  %v2008 = vpop.f32.mrb[0].mxu0
  %v2009 = vpop.f32.mrb[0].mxu0
  %v2010 = vpop.f32.mrb[0].mxu0
  %2011 = vdwg.mxu0
  %v2028 = vunpack.c.l.b16 %v1888
  %v2029 = vunpack.c.l.b16 %v1889
  %v2030 = vunpack.c.l.b16 %v1890
  %v2031 = vunpack.c.l.b16 %v1891
  %v2032 = vunpack.c.l.b16 %v1892
  %v2033 = vunpack.c.l.b16 %v1893
  %v2034 = vunpack.c.l.b16 %v1894
  %v2035 = vunpack.c.l.b16 %v1895
  %v2036 = vunpack.c.l.b16 %v1896
  %v2037 = vunpack.c.l.b16 %v1897
  %v2038 = vunpack.c.l.b16 %v1898
  %v2039 = vunpack.c.l.b16 %v1899
  %v2040 = vunpack.c.l.b16 %v1900
  %v2041 = vunpack.c.l.b16 %v1901
  %v2042 = vunpack.c.l.b16 %v1902
  %v2043 = vunpack.c.l.b16 %v1903
  %v2044 = vpack.c.b16 %v2029, %v2028
  %v2045 = vpack.c.b16 %v2031, %v2030
  %v2046 = vpack.c.b16 %v2033, %v2032
  %v2047 = vpack.c.b16 %v2035, %v2034
  %v2048 = vpack.c.b16 %v2037, %v2036
  %v2049 = vpack.c.b16 %v2039, %v2038
  %v2050 = vpack.c.b16 %v2041, %v2040
  %v2051 = vpack.c.b16 %v2043, %v2042
  %2060 = vmatprep.subr.bf16.mxu0 0
  %2061 = vmatpush1.bf16.msra.mxu0 %v2044
  %2062 = vmatprep.subr.bf16.mxu0 0
  %2063 = vmatpush1.bf16.msra.mxu0 %v2045
  %2064 = vmatprep.subr.bf16.mxu0 0
  %2065 = vmatpush1.bf16.msra.mxu0 %v2046
  %2066 = vmatprep.subr.bf16.mxu0 0
  %2067 = vmatpush1.bf16.msra.mxu0 %v2047
  %2068 = vmatprep.subr.bf16.mxu0 0
  %2069 = vmatpush1.bf16.msra.mxu0 %v2048
  %2070 = vmatprep.subr.bf16.mxu0 0
  %2071 = vmatpush1.bf16.msra.mxu0 %v2049
  %2072 = vmatprep.subr.bf16.mxu0 0
  %2073 = vmatpush1.bf16.msra.mxu0 %v2050
  %2074 = vmatprep.subr.bf16.mxu0 0
  %2075 = vmatpush1.bf16.msra.mxu0 %v2051
  %2076 = vmatprep.subr.bf16.mxu0 0
  %2077 = vmatpush1.bf16.msra.mxu0 0
  %2078 = vmatprep.subr.bf16.mxu0 0
  %2079 = vmatpush1.bf16.msra.mxu0 0
  %2080 = vmatprep.subr.bf16.mxu0 0
  %2081 = vmatpush1.bf16.msra.mxu0 0
  %2082 = vmatprep.subr.bf16.mxu0 0
  %2083 = vmatpush1.bf16.msra.mxu0 0
  %2084 = vmatprep.subr.bf16.mxu0 0
  %2085 = vmatpush1.bf16.msra.mxu0 0
  %2086 = vmatprep.subr.bf16.mxu0 0
  %2087 = vmatpush1.bf16.msra.mxu0 0
  %2088 = vmatprep.subr.bf16.mxu0 0
  %2089 = vmatpush1.bf16.msra.mxu0 0
  %2090 = vmatprep.subr.bf16.mxu0 0
  %2091 = vmatpush1.bf16.msra.mxu0 0
  %2092 = vmatprep.mubr.bf16.mxu0 0
  %2093 = vmatmul.mubr.bf16.gmra.mrb[0].mxu0 %v1875
  %v2094 = vpop.f32.mrb[0].mxu0
  %v2095 = vadd.f32 %v2007, %v2094
  %v2096 = vpop.f32.mrb[0].mxu0
  %v2097 = vpop.f32.mrb[0].mxu0
  %v2098 = vpop.f32.mrb[0].mxu0
  %2099 = vdwg.mxu0
  %s2100 = scalar_lea.vmem %s3, 128
  %v2101 = vld [vmem:[%s2100] sm:$0xf]
  %v2102 = vld [vmem:[%s2100 + $0x4] sm:$0xf]
  %v2103 = vld [vmem:[%s2100 + $0x8] sm:$0xf]
  %v2104 = vld [vmem:[%s2100 + $0xc] sm:$0xf]
  %v2105 = vld [vmem:[%s2100 + $0x10] sm:$0xf]
  %v2106 = vld [vmem:[%s2100 + $0x14] sm:$0xf]
  %v2107 = vld [vmem:[%s2100 + $0x18] sm:$0xf]
  %v2108 = vld [vmem:[%s2100 + $0x1c] sm:$0xf]
  %v2109 = vld [vmem:[%s2100 + $0x20] sm:$0xf]
  %v2110 = vld [vmem:[%s2100 + $0x24] sm:$0xf]
  %v2111 = vld [vmem:[%s2100 + $0x28] sm:$0xf]
  %v2112 = vld [vmem:[%s2100 + $0x2c] sm:$0xf]
  %v2113 = vld [vmem:[%s2100 + $0x30] sm:$0xf]
  %v2114 = vld [vmem:[%s2100 + $0x34] sm:$0xf]
  %v2115 = vld [vmem:[%s2100 + $0x38] sm:$0xf]
  %v2116 = vld [vmem:[%s2100 + $0x3c] sm:$0xf]
  %v2133 = vunpack.c.l.b16 %v2101
  %v2134 = vunpack.c.l.b16 %v2102
  %v2135 = vunpack.c.l.b16 %v2103
  %v2136 = vunpack.c.l.b16 %v2104
  %v2137 = vunpack.c.l.b16 %v2105
  %v2138 = vunpack.c.l.b16 %v2106
  %v2139 = vunpack.c.l.b16 %v2107
  %v2140 = vunpack.c.l.b16 %v2108
  %v2141 = vunpack.c.l.b16 %v2109
  %v2142 = vunpack.c.l.b16 %v2110
  %v2143 = vunpack.c.l.b16 %v2111
  %v2144 = vunpack.c.l.b16 %v2112
  %v2145 = vunpack.c.l.b16 %v2113
  %v2146 = vunpack.c.l.b16 %v2114
  %v2147 = vunpack.c.l.b16 %v2115
  %v2148 = vunpack.c.l.b16 %v2116
  %v2149 = vpack.c.b16 %v2134, %v2133
  %v2150 = vpack.c.b16 %v2136, %v2135
  %v2151 = vpack.c.b16 %v2138, %v2137
  %v2152 = vpack.c.b16 %v2140, %v2139
  %v2153 = vpack.c.b16 %v2142, %v2141
  %v2154 = vpack.c.b16 %v2144, %v2143
  %v2155 = vpack.c.b16 %v2146, %v2145
  %v2156 = vpack.c.b16 %v2148, %v2147
  %2165 = vmatprep.subr.bf16.mxu0 0
  %2166 = vmatpush1.bf16.msra.mxu0 %v2149
  %2167 = vmatprep.subr.bf16.mxu0 0
  %2168 = vmatpush1.bf16.msra.mxu0 %v2150
  %2169 = vmatprep.subr.bf16.mxu0 0
  %2170 = vmatpush1.bf16.msra.mxu0 %v2151
  %2171 = vmatprep.subr.bf16.mxu0 0
  %2172 = vmatpush1.bf16.msra.mxu0 %v2152
  %2173 = vmatprep.subr.bf16.mxu0 0
  %2174 = vmatpush1.bf16.msra.mxu0 %v2153
  %2175 = vmatprep.subr.bf16.mxu0 0
  %2176 = vmatpush1.bf16.msra.mxu0 %v2154
  %2177 = vmatprep.subr.bf16.mxu0 0
  %2178 = vmatpush1.bf16.msra.mxu0 %v2155
  %2179 = vmatprep.subr.bf16.mxu0 0
  %2180 = vmatpush1.bf16.msra.mxu0 %v2156
  %2181 = vmatprep.subr.bf16.mxu0 0
  %2182 = vmatpush1.bf16.msra.mxu0 0
  %2183 = vmatprep.subr.bf16.mxu0 0
  %2184 = vmatpush1.bf16.msra.mxu0 0
  %2185 = vmatprep.subr.bf16.mxu0 0
  %2186 = vmatpush1.bf16.msra.mxu0 0
  %2187 = vmatprep.subr.bf16.mxu0 0
  %2188 = vmatpush1.bf16.msra.mxu0 0
  %2189 = vmatprep.subr.bf16.mxu0 0
  %2190 = vmatpush1.bf16.msra.mxu0 0
  %2191 = vmatprep.subr.bf16.mxu0 0
  %2192 = vmatpush1.bf16.msra.mxu0 0
  %2193 = vmatprep.subr.bf16.mxu0 0
  %2194 = vmatpush1.bf16.msra.mxu0 0
  %2195 = vmatprep.subr.bf16.mxu0 0
  %2196 = vmatpush1.bf16.msra.mxu0 0
  %2197 = vmatprep.mubr.bf16.mxu0 0
  %2198 = vmatmul.mubr.bf16.gmra.mrb[0].mxu0 %v1876
  %v2199 = vpop.f32.mrb[0].mxu0
  %v2200 = vadd.f32 0.0, %v2199
  %v2201 = vpop.f32.mrb[0].mxu0
  %v2202 = vpop.f32.mrb[0].mxu0
  %v2203 = vpop.f32.mrb[0].mxu0
  %2204 = vdwg.mxu0
  %v2205 = vadd.f32 %v2095, %v2200
  %s2206 = scalar_lea.vmem %s3, 192
  %v2207 = vld [vmem:[%s2206] sm:$0xf]
  %v2208 = vld [vmem:[%s2206 + $0x4] sm:$0xf]
  %v2209 = vld [vmem:[%s2206 + $0x8] sm:$0xf]
  %v2210 = vld [vmem:[%s2206 + $0xc] sm:$0xf]
  %v2211 = vld [vmem:[%s2206 + $0x10] sm:$0xf]
  %v2212 = vld [vmem:[%s2206 + $0x14] sm:$0xf]
  %v2213 = vld [vmem:[%s2206 + $0x18] sm:$0xf]
  %v2214 = vld [vmem:[%s2206 + $0x1c] sm:$0xf]
  %v2215 = vld [vmem:[%s2206 + $0x20] sm:$0xf]
  %v2216 = vld [vmem:[%s2206 + $0x24] sm:$0xf]
  %v2217 = vld [vmem:[%s2206 + $0x28] sm:$0xf]
  %v2218 = vld [vmem:[%s2206 + $0x2c] sm:$0xf]
  %v2219 = vld [vmem:[%s2206 + $0x30] sm:$0xf]
  %v2220 = vld [vmem:[%s2206 + $0x34] sm:$0xf]
  %v2221 = vld [vmem:[%s2206 + $0x38] sm:$0xf]
  %v2222 = vld [vmem:[%s2206 + $0x3c] sm:$0xf]
  %v2224 = vrot.slane %v1876, 4
  %v2242 = vunpack.c.l.b16 %v2207
  %v2243 = vunpack.c.l.b16 %v2208
  %v2244 = vunpack.c.l.b16 %v2209
  %v2245 = vunpack.c.l.b16 %v2210
  %v2246 = vunpack.c.l.b16 %v2211
  %v2247 = vunpack.c.l.b16 %v2212
  %v2248 = vunpack.c.l.b16 %v2213
  %v2249 = vunpack.c.l.b16 %v2214
  %v2250 = vunpack.c.l.b16 %v2215
  %v2251 = vunpack.c.l.b16 %v2216
  %v2252 = vunpack.c.l.b16 %v2217
  %v2253 = vunpack.c.l.b16 %v2218
  %v2254 = vunpack.c.l.b16 %v2219
  %v2255 = vunpack.c.l.b16 %v2220
  %v2256 = vunpack.c.l.b16 %v2221
  %v2257 = vunpack.c.l.b16 %v2222
  %v2258 = vpack.c.b16 %v2243, %v2242
  %v2259 = vpack.c.b16 %v2245, %v2244
  %v2260 = vpack.c.b16 %v2247, %v2246
  %v2261 = vpack.c.b16 %v2249, %v2248
  %v2262 = vpack.c.b16 %v2251, %v2250
  %v2263 = vpack.c.b16 %v2253, %v2252
  %v2264 = vpack.c.b16 %v2255, %v2254
  %v2265 = vpack.c.b16 %v2257, %v2256
  %2274 = vmatprep.subr.bf16.mxu0 0
  %2275 = vmatpush1.bf16.msra.mxu0 %v2258
  %2276 = vmatprep.subr.bf16.mxu0 0
  %2277 = vmatpush1.bf16.msra.mxu0 %v2259
  %2278 = vmatprep.subr.bf16.mxu0 0
  %2279 = vmatpush1.bf16.msra.mxu0 %v2260
  %2280 = vmatprep.subr.bf16.mxu0 0
  %2281 = vmatpush1.bf16.msra.mxu0 %v2261
  %2282 = vmatprep.subr.bf16.mxu0 0
  %2283 = vmatpush1.bf16.msra.mxu0 %v2262
  %2284 = vmatprep.subr.bf16.mxu0 0
  %2285 = vmatpush1.bf16.msra.mxu0 %v2263
  %2286 = vmatprep.subr.bf16.mxu0 0
  %2287 = vmatpush1.bf16.msra.mxu0 %v2264
  %2288 = vmatprep.subr.bf16.mxu0 0
  %2289 = vmatpush1.bf16.msra.mxu0 %v2265
  %2290 = vmatprep.subr.bf16.mxu0 0
  %2291 = vmatpush1.bf16.msra.mxu0 0
  %2292 = vmatprep.subr.bf16.mxu0 0
  %2293 = vmatpush1.bf16.msra.mxu0 0
  %2294 = vmatprep.subr.bf16.mxu0 0
  %2295 = vmatpush1.bf16.msra.mxu0 0
  %2296 = vmatprep.subr.bf16.mxu0 0
  %2297 = vmatpush1.bf16.msra.mxu0 0
  %2298 = vmatprep.subr.bf16.mxu0 0
  %2299 = vmatpush1.bf16.msra.mxu0 0
  %2300 = vmatprep.subr.bf16.mxu0 0
  %2301 = vmatpush1.bf16.msra.mxu0 0
  %2302 = vmatprep.subr.bf16.mxu0 0
  %2303 = vmatpush1.bf16.msra.mxu0 0
  %2304 = vmatprep.subr.bf16.mxu0 0
  %2305 = vmatpush1.bf16.msra.mxu0 0
  %2306 = vmatprep.mubr.bf16.mxu0 0
  %2307 = vmatmul.mubr.bf16.gmra.mrb[0].mxu0 %v2224
  %v2308 = vpop.f32.mrb[0].mxu0
  %v2309 = vadd.f32 0.0, %v2308
  %v2310 = vpop.f32.mrb[0].mxu0
  %v2311 = vpop.f32.mrb[0].mxu0
  %v2312 = vpop.f32.mrb[0].mxu0
  %2313 = vdwg.mxu0
  %v2314 = vadd.f32 %v2205, %v2309
  %s2315 = scalar_lea.vmem %s3, 256
  %v2316 = vld [vmem:[%s2315] sm:$0xf]
  %v2317 = vld [vmem:[%s2315 + $0x4] sm:$0xf]
  %v2318 = vld [vmem:[%s2315 + $0x8] sm:$0xf]
  %v2319 = vld [vmem:[%s2315 + $0xc] sm:$0xf]
  %v2320 = vld [vmem:[%s2315 + $0x10] sm:$0xf]
  %v2321 = vld [vmem:[%s2315 + $0x14] sm:$0xf]
  %v2322 = vld [vmem:[%s2315 + $0x18] sm:$0xf]
  %v2323 = vld [vmem:[%s2315 + $0x1c] sm:$0xf]
  %v2324 = vld [vmem:[%s2315 + $0x20] sm:$0xf]
  %v2325 = vld [vmem:[%s2315 + $0x24] sm:$0xf]
  %v2326 = vld [vmem:[%s2315 + $0x28] sm:$0xf]
  %v2327 = vld [vmem:[%s2315 + $0x2c] sm:$0xf]
  %v2328 = vld [vmem:[%s2315 + $0x30] sm:$0xf]
  %v2329 = vld [vmem:[%s2315 + $0x34] sm:$0xf]
  %v2330 = vld [vmem:[%s2315 + $0x38] sm:$0xf]
  %v2331 = vld [vmem:[%s2315 + $0x3c] sm:$0xf]
  %v2348 = vunpack.c.l.b16 %v2316
  %v2349 = vunpack.c.l.b16 %v2317
  %v2350 = vunpack.c.l.b16 %v2318
  %v2351 = vunpack.c.l.b16 %v2319
  %v2352 = vunpack.c.l.b16 %v2320
  %v2353 = vunpack.c.l.b16 %v2321
  %v2354 = vunpack.c.l.b16 %v2322
  %v2355 = vunpack.c.l.b16 %v2323
  %v2356 = vunpack.c.l.b16 %v2324
  %v2357 = vunpack.c.l.b16 %v2325
  %v2358 = vunpack.c.l.b16 %v2326
  %v2359 = vunpack.c.l.b16 %v2327
  %v2360 = vunpack.c.l.b16 %v2328
  %v2361 = vunpack.c.l.b16 %v2329
  %v2362 = vunpack.c.l.b16 %v2330
  %v2363 = vunpack.c.l.b16 %v2331
  %v2364 = vpack.c.b16 %v2349, %v2348
  %v2365 = vpack.c.b16 %v2351, %v2350
  %v2366 = vpack.c.b16 %v2353, %v2352
  %v2367 = vpack.c.b16 %v2355, %v2354
  %v2368 = vpack.c.b16 %v2357, %v2356
  %v2369 = vpack.c.b16 %v2359, %v2358
  %v2370 = vpack.c.b16 %v2361, %v2360
  %v2371 = vpack.c.b16 %v2363, %v2362
  %2380 = vmatprep.subr.bf16.mxu0 0
  %2381 = vmatpush1.bf16.msra.mxu0 %v2364
  %2382 = vmatprep.subr.bf16.mxu0 0
  %2383 = vmatpush1.bf16.msra.mxu0 %v2365
  %2384 = vmatprep.subr.bf16.mxu0 0
  %2385 = vmatpush1.bf16.msra.mxu0 %v2366
  %2386 = vmatprep.subr.bf16.mxu0 0
  %2387 = vmatpush1.bf16.msra.mxu0 %v2367
  %2388 = vmatprep.subr.bf16.mxu0 0
  %2389 = vmatpush1.bf16.msra.mxu0 %v2368
  %2390 = vmatprep.subr.bf16.mxu0 0
  %2391 = vmatpush1.bf16.msra.mxu0 %v2369
  %2392 = vmatprep.subr.bf16.mxu0 0
  %2393 = vmatpush1.bf16.msra.mxu0 %v2370
  %2394 = vmatprep.subr.bf16.mxu0 0
  %2395 = vmatpush1.bf16.msra.mxu0 %v2371
  %2396 = vmatprep.subr.bf16.mxu0 0
  %2397 = vmatpush1.bf16.msra.mxu0 0
  %2398 = vmatprep.subr.bf16.mxu0 0
  %2399 = vmatpush1.bf16.msra.mxu0 0
  %2400 = vmatprep.subr.bf16.mxu0 0
  %2401 = vmatpush1.bf16.msra.mxu0 0
  %2402 = vmatprep.subr.bf16.mxu0 0
  %2403 = vmatpush1.bf16.msra.mxu0 0
  %2404 = vmatprep.subr.bf16.mxu0 0
  %2405 = vmatpush1.bf16.msra.mxu0 0
  %2406 = vmatprep.subr.bf16.mxu0 0
  %2407 = vmatpush1.bf16.msra.mxu0 0
  %2408 = vmatprep.subr.bf16.mxu0 0
  %2409 = vmatpush1.bf16.msra.mxu0 0
  %2410 = vmatprep.subr.bf16.mxu0 0
  %2411 = vmatpush1.bf16.msra.mxu0 0
  %2412 = vmatprep.mubr.bf16.mxu0 0
  %2413 = vmatmul.mubr.bf16.gmra.mrb[0].mxu0 %v1877
  %v2414 = vpop.f32.mrb[0].mxu0
  %v2415 = vadd.f32 0.0, %v2414
  %v2416 = vpop.f32.mrb[0].mxu0
  %v2417 = vpop.f32.mrb[0].mxu0
  %v2418 = vpop.f32.mrb[0].mxu0
  %2419 = vdwg.mxu0
  %v2420 = vadd.f32 %v2314, %v2415
  %s2421 = scalar_lea.vmem %s3, 320
  %v2422 = vld [vmem:[%s2421] sm:$0xf]
  %v2423 = vld [vmem:[%s2421 + $0x4] sm:$0xf]
  %v2424 = vld [vmem:[%s2421 + $0x8] sm:$0xf]
  %v2425 = vld [vmem:[%s2421 + $0xc] sm:$0xf]
  %v2426 = vld [vmem:[%s2421 + $0x10] sm:$0xf]
  %v2427 = vld [vmem:[%s2421 + $0x14] sm:$0xf]
  %v2428 = vld [vmem:[%s2421 + $0x18] sm:$0xf]
  %v2429 = vld [vmem:[%s2421 + $0x1c] sm:$0xf]
  %v2430 = vld [vmem:[%s2421 + $0x20] sm:$0xf]
  %v2431 = vld [vmem:[%s2421 + $0x24] sm:$0xf]
  %v2432 = vld [vmem:[%s2421 + $0x28] sm:$0xf]
  %v2433 = vld [vmem:[%s2421 + $0x2c] sm:$0xf]
  %v2434 = vld [vmem:[%s2421 + $0x30] sm:$0xf]
  %v2435 = vld [vmem:[%s2421 + $0x34] sm:$0xf]
  %v2436 = vld [vmem:[%s2421 + $0x38] sm:$0xf]
  %v2437 = vld [vmem:[%s2421 + $0x3c] sm:$0xf]
  %v2439 = vrot.slane %v1877, 4
  %v2457 = vunpack.c.l.b16 %v2422
  %v2458 = vunpack.c.l.b16 %v2423
  %v2459 = vunpack.c.l.b16 %v2424
  %v2460 = vunpack.c.l.b16 %v2425
  %v2461 = vunpack.c.l.b16 %v2426
  %v2462 = vunpack.c.l.b16 %v2427
  %v2463 = vunpack.c.l.b16 %v2428
  %v2464 = vunpack.c.l.b16 %v2429
  %v2465 = vunpack.c.l.b16 %v2430
  %v2466 = vunpack.c.l.b16 %v2431
  %v2467 = vunpack.c.l.b16 %v2432
  %v2468 = vunpack.c.l.b16 %v2433
  %v2469 = vunpack.c.l.b16 %v2434
  %v2470 = vunpack.c.l.b16 %v2435
  %v2471 = vunpack.c.l.b16 %v2436
  %v2472 = vunpack.c.l.b16 %v2437
  %v2473 = vpack.c.b16 %v2458, %v2457
  %v2474 = vpack.c.b16 %v2460, %v2459
  %v2475 = vpack.c.b16 %v2462, %v2461
  %v2476 = vpack.c.b16 %v2464, %v2463
  %v2477 = vpack.c.b16 %v2466, %v2465
  %v2478 = vpack.c.b16 %v2468, %v2467
  %v2479 = vpack.c.b16 %v2470, %v2469
  %v2480 = vpack.c.b16 %v2472, %v2471
  %2489 = vmatprep.subr.bf16.mxu0 0
  %2490 = vmatpush1.bf16.msra.mxu0 %v2473
  %2491 = vmatprep.subr.bf16.mxu0 0
  %2492 = vmatpush1.bf16.msra.mxu0 %v2474
  %2493 = vmatprep.subr.bf16.mxu0 0
  %2494 = vmatpush1.bf16.msra.mxu0 %v2475
  %2495 = vmatprep.subr.bf16.mxu0 0
  %2496 = vmatpush1.bf16.msra.mxu0 %v2476
  %2497 = vmatprep.subr.bf16.mxu0 0
  %2498 = vmatpush1.bf16.msra.mxu0 %v2477
  %2499 = vmatprep.subr.bf16.mxu0 0
  %2500 = vmatpush1.bf16.msra.mxu0 %v2478
  %2501 = vmatprep.subr.bf16.mxu0 0
  %2502 = vmatpush1.bf16.msra.mxu0 %v2479
  %2503 = vmatprep.subr.bf16.mxu0 0
  %2504 = vmatpush1.bf16.msra.mxu0 %v2480
  %2505 = vmatprep.subr.bf16.mxu0 0
  %2506 = vmatpush1.bf16.msra.mxu0 0
  %2507 = vmatprep.subr.bf16.mxu0 0
  %2508 = vmatpush1.bf16.msra.mxu0 0
  %2509 = vmatprep.subr.bf16.mxu0 0
  %2510 = vmatpush1.bf16.msra.mxu0 0
  %2511 = vmatprep.subr.bf16.mxu0 0
  %2512 = vmatpush1.bf16.msra.mxu0 0
  %2513 = vmatprep.subr.bf16.mxu0 0
  %2514 = vmatpush1.bf16.msra.mxu0 0
  %2515 = vmatprep.subr.bf16.mxu0 0
  %2516 = vmatpush1.bf16.msra.mxu0 0
  %2517 = vmatprep.subr.bf16.mxu0 0
  %2518 = vmatpush1.bf16.msra.mxu0 0
  %2519 = vmatprep.subr.bf16.mxu0 0
  %2520 = vmatpush1.bf16.msra.mxu0 0
  %2521 = vmatprep.mubr.bf16.mxu0 0
  %2522 = vmatmul.mubr.bf16.gmra.mrb[0].mxu0 %v2439
  %v2523 = vpop.f32.mrb[0].mxu0
  %v2524 = vadd.f32 0.0, %v2523
  %v2525 = vpop.f32.mrb[0].mxu0
  %v2526 = vpop.f32.mrb[0].mxu0
  %v2527 = vpop.f32.mrb[0].mxu0
  %2528 = vdwg.mxu0
  %v2529 = vadd.f32 %v2420, %v2524
  %s2530 = scalar_lea.vmem %s3, 384
  %v2531 = vld [vmem:[%s2530] sm:$0xf]
  %v2532 = vld [vmem:[%s2530 + $0x4] sm:$0xf]
  %v2533 = vld [vmem:[%s2530 + $0x8] sm:$0xf]
  %v2534 = vld [vmem:[%s2530 + $0xc] sm:$0xf]
  %v2535 = vld [vmem:[%s2530 + $0x10] sm:$0xf]
  %v2536 = vld [vmem:[%s2530 + $0x14] sm:$0xf]
  %v2537 = vld [vmem:[%s2530 + $0x18] sm:$0xf]
  %v2538 = vld [vmem:[%s2530 + $0x1c] sm:$0xf]
  %v2539 = vld [vmem:[%s2530 + $0x20] sm:$0xf]
  %v2540 = vld [vmem:[%s2530 + $0x24] sm:$0xf]
  %v2541 = vld [vmem:[%s2530 + $0x28] sm:$0xf]
  %v2542 = vld [vmem:[%s2530 + $0x2c] sm:$0xf]
  %v2543 = vld [vmem:[%s2530 + $0x30] sm:$0xf]
  %v2544 = vld [vmem:[%s2530 + $0x34] sm:$0xf]
  %v2545 = vld [vmem:[%s2530 + $0x38] sm:$0xf]
  %v2546 = vld [vmem:[%s2530 + $0x3c] sm:$0xf]
  %v2563 = vunpack.c.l.b16 %v2531
  %v2564 = vunpack.c.l.b16 %v2532
  %v2565 = vunpack.c.l.b16 %v2533
  %v2566 = vunpack.c.l.b16 %v2534
  %v2567 = vunpack.c.l.b16 %v2535
  %v2568 = vunpack.c.l.b16 %v2536
  %v2569 = vunpack.c.l.b16 %v2537
  %v2570 = vunpack.c.l.b16 %v2538
  %v2571 = vunpack.c.l.b16 %v2539
  %v2572 = vunpack.c.l.b16 %v2540
  %v2573 = vunpack.c.l.b16 %v2541
  %v2574 = vunpack.c.l.b16 %v2542
  %v2575 = vunpack.c.l.b16 %v2543
  %v2576 = vunpack.c.l.b16 %v2544
  %v2577 = vunpack.c.l.b16 %v2545
  %v2578 = vunpack.c.l.b16 %v2546
  %v2579 = vpack.c.b16 %v2564, %v2563
  %v2580 = vpack.c.b16 %v2566, %v2565
  %v2581 = vpack.c.b16 %v2568, %v2567
  %v2582 = vpack.c.b16 %v2570, %v2569
  %v2583 = vpack.c.b16 %v2572, %v2571
  %v2584 = vpack.c.b16 %v2574, %v2573
  %v2585 = vpack.c.b16 %v2576, %v2575
  %v2586 = vpack.c.b16 %v2578, %v2577
  %2595 = vmatprep.subr.bf16.mxu0 0
  %2596 = vmatpush1.bf16.msra.mxu0 %v2579
  %2597 = vmatprep.subr.bf16.mxu0 0
  %2598 = vmatpush1.bf16.msra.mxu0 %v2580
  %2599 = vmatprep.subr.bf16.mxu0 0
  %2600 = vmatpush1.bf16.msra.mxu0 %v2581
  %2601 = vmatprep.subr.bf16.mxu0 0
  %2602 = vmatpush1.bf16.msra.mxu0 %v2582
  %2603 = vmatprep.subr.bf16.mxu0 0
  %2604 = vmatpush1.bf16.msra.mxu0 %v2583
  %2605 = vmatprep.subr.bf16.mxu0 0
  %2606 = vmatpush1.bf16.msra.mxu0 %v2584
  %2607 = vmatprep.subr.bf16.mxu0 0
  %2608 = vmatpush1.bf16.msra.mxu0 %v2585
  %2609 = vmatprep.subr.bf16.mxu0 0
  %2610 = vmatpush1.bf16.msra.mxu0 %v2586
  %2611 = vmatprep.subr.bf16.mxu0 0
  %2612 = vmatpush1.bf16.msra.mxu0 0
  %2613 = vmatprep.subr.bf16.mxu0 0
  %2614 = vmatpush1.bf16.msra.mxu0 0
  %2615 = vmatprep.subr.bf16.mxu0 0
  %2616 = vmatpush1.bf16.msra.mxu0 0
  %2617 = vmatprep.subr.bf16.mxu0 0
  %2618 = vmatpush1.bf16.msra.mxu0 0
  %2619 = vmatprep.subr.bf16.mxu0 0
  %2620 = vmatpush1.bf16.msra.mxu0 0
  %2621 = vmatprep.subr.bf16.mxu0 0
  %2622 = vmatpush1.bf16.msra.mxu0 0
  %2623 = vmatprep.subr.bf16.mxu0 0
  %2624 = vmatpush1.bf16.msra.mxu0 0
  %2625 = vmatprep.subr.bf16.mxu0 0
  %2626 = vmatpush1.bf16.msra.mxu0 0
  %2627 = vmatprep.mubr.bf16.mxu0 0
  %2628 = vmatmul.mubr.bf16.gmra.mrb[0].mxu0 %v1878
  %v2629 = vpop.f32.mrb[0].mxu0
  %v2630 = vadd.f32 0.0, %v2629
  %v2631 = vpop.f32.mrb[0].mxu0
  %v2632 = vpop.f32.mrb[0].mxu0
  %v2633 = vpop.f32.mrb[0].mxu0
  %2634 = vdwg.mxu0
  %v2635 = vadd.f32 %v2529, %v2630
  %s2636 = scalar_lea.vmem %s3, 448
  %v2637 = vld [vmem:[%s2636] sm:$0xf]
  %v2638 = vld [vmem:[%s2636 + $0x4] sm:$0xf]
  %v2639 = vld [vmem:[%s2636 + $0x8] sm:$0xf]
  %v2640 = vld [vmem:[%s2636 + $0xc] sm:$0xf]
  %v2641 = vld [vmem:[%s2636 + $0x10] sm:$0xf]
  %v2642 = vld [vmem:[%s2636 + $0x14] sm:$0xf]
  %v2643 = vld [vmem:[%s2636 + $0x18] sm:$0xf]
  %v2644 = vld [vmem:[%s2636 + $0x1c] sm:$0xf]
  %v2645 = vld [vmem:[%s2636 + $0x20] sm:$0xf]
  %v2646 = vld [vmem:[%s2636 + $0x24] sm:$0xf]
  %v2647 = vld [vmem:[%s2636 + $0x28] sm:$0xf]
  %v2648 = vld [vmem:[%s2636 + $0x2c] sm:$0xf]
  %v2649 = vld [vmem:[%s2636 + $0x30] sm:$0xf]
  %v2650 = vld [vmem:[%s2636 + $0x34] sm:$0xf]
  %v2651 = vld [vmem:[%s2636 + $0x38] sm:$0xf]
  %v2652 = vld [vmem:[%s2636 + $0x3c] sm:$0xf]
  %v2654 = vrot.slane %v1878, 4
  %v2672 = vunpack.c.l.b16 %v2637
  %v2673 = vunpack.c.l.b16 %v2638
  %v2674 = vunpack.c.l.b16 %v2639
  %v2675 = vunpack.c.l.b16 %v2640
  %v2676 = vunpack.c.l.b16 %v2641
  %v2677 = vunpack.c.l.b16 %v2642
  %v2678 = vunpack.c.l.b16 %v2643
  %v2679 = vunpack.c.l.b16 %v2644
  %v2680 = vunpack.c.l.b16 %v2645
  %v2681 = vunpack.c.l.b16 %v2646
  %v2682 = vunpack.c.l.b16 %v2647
  %v2683 = vunpack.c.l.b16 %v2648
  %v2684 = vunpack.c.l.b16 %v2649
  %v2685 = vunpack.c.l.b16 %v2650
  %v2686 = vunpack.c.l.b16 %v2651
  %v2687 = vunpack.c.l.b16 %v2652
  %v2688 = vpack.c.b16 %v2673, %v2672
  %v2689 = vpack.c.b16 %v2675, %v2674
  %v2690 = vpack.c.b16 %v2677, %v2676
  %v2691 = vpack.c.b16 %v2679, %v2678
  %v2692 = vpack.c.b16 %v2681, %v2680
  %v2693 = vpack.c.b16 %v2683, %v2682
  %v2694 = vpack.c.b16 %v2685, %v2684
  %v2695 = vpack.c.b16 %v2687, %v2686
  %2704 = vmatprep.subr.bf16.mxu0 0
  %2705 = vmatpush1.bf16.msra.mxu0 %v2688
  %2706 = vmatprep.subr.bf16.mxu0 0
  %2707 = vmatpush1.bf16.msra.mxu0 %v2689
  %2708 = vmatprep.subr.bf16.mxu0 0
  %2709 = vmatpush1.bf16.msra.mxu0 %v2690
  %2710 = vmatprep.subr.bf16.mxu0 0
  %2711 = vmatpush1.bf16.msra.mxu0 %v2691
  %2712 = vmatprep.subr.bf16.mxu0 0
  %2713 = vmatpush1.bf16.msra.mxu0 %v2692
  %2714 = vmatprep.subr.bf16.mxu0 0
  %2715 = vmatpush1.bf16.msra.mxu0 %v2693
  %2716 = vmatprep.subr.bf16.mxu0 0
  %2717 = vmatpush1.bf16.msra.mxu0 %v2694
  %2718 = vmatprep.subr.bf16.mxu0 0
  %2719 = vmatpush1.bf16.msra.mxu0 %v2695
  %2720 = vmatprep.subr.bf16.mxu0 0
  %2721 = vmatpush1.bf16.msra.mxu0 0
  %2722 = vmatprep.subr.bf16.mxu0 0
  %2723 = vmatpush1.bf16.msra.mxu0 0
  %2724 = vmatprep.subr.bf16.mxu0 0
  %2725 = vmatpush1.bf16.msra.mxu0 0
  %2726 = vmatprep.subr.bf16.mxu0 0
  %2727 = vmatpush1.bf16.msra.mxu0 0
  %2728 = vmatprep.subr.bf16.mxu0 0
  %2729 = vmatpush1.bf16.msra.mxu0 0
  %2730 = vmatprep.subr.bf16.mxu0 0
  %2731 = vmatpush1.bf16.msra.mxu0 0
  %2732 = vmatprep.subr.bf16.mxu0 0
  %2733 = vmatpush1.bf16.msra.mxu0 0
  %2734 = vmatprep.subr.bf16.mxu0 0
  %2735 = vmatpush1.bf16.msra.mxu0 0
  %2736 = vmatprep.mubr.bf16.mxu0 0
  %2737 = vmatmul.mubr.bf16.gmra.mrb[0].mxu0 %v2654
  %v2738 = vpop.f32.mrb[0].mxu0
  %v2739 = vadd.f32 0.0, %v2738
  %v2740 = vpop.f32.mrb[0].mxu0
  %v2741 = vpop.f32.mrb[0].mxu0
  %v2742 = vpop.f32.mrb[0].mxu0
  %2743 = vdwg.mxu0
  %v2744 = vadd.f32 %v2635, %v2739
  %s2745 = scalar_lea.vmem %s3, 512
  %v2746 = vld [vmem:[%s2745] sm:$0xf]
  %v2747 = vld [vmem:[%s2745 + $0x4] sm:$0xf]
  %v2748 = vld [vmem:[%s2745 + $0x8] sm:$0xf]
  %v2749 = vld [vmem:[%s2745 + $0xc] sm:$0xf]
  %v2750 = vld [vmem:[%s2745 + $0x10] sm:$0xf]
  %v2751 = vld [vmem:[%s2745 + $0x14] sm:$0xf]
  %v2752 = vld [vmem:[%s2745 + $0x18] sm:$0xf]
  %v2753 = vld [vmem:[%s2745 + $0x1c] sm:$0xf]
  %v2754 = vld [vmem:[%s2745 + $0x20] sm:$0xf]
  %v2755 = vld [vmem:[%s2745 + $0x24] sm:$0xf]
  %v2756 = vld [vmem:[%s2745 + $0x28] sm:$0xf]
  %v2757 = vld [vmem:[%s2745 + $0x2c] sm:$0xf]
  %v2758 = vld [vmem:[%s2745 + $0x30] sm:$0xf]
  %v2759 = vld [vmem:[%s2745 + $0x34] sm:$0xf]
  %v2760 = vld [vmem:[%s2745 + $0x38] sm:$0xf]
  %v2761 = vld [vmem:[%s2745 + $0x3c] sm:$0xf]
  %v2778 = vunpack.c.l.b16 %v2746
  %v2779 = vunpack.c.l.b16 %v2747
  %v2780 = vunpack.c.l.b16 %v2748
  %v2781 = vunpack.c.l.b16 %v2749
  %v2782 = vunpack.c.l.b16 %v2750
  %v2783 = vunpack.c.l.b16 %v2751
  %v2784 = vunpack.c.l.b16 %v2752
  %v2785 = vunpack.c.l.b16 %v2753
  %v2786 = vunpack.c.l.b16 %v2754
  %v2787 = vunpack.c.l.b16 %v2755
  %v2788 = vunpack.c.l.b16 %v2756
  %v2789 = vunpack.c.l.b16 %v2757
  %v2790 = vunpack.c.l.b16 %v2758
  %v2791 = vunpack.c.l.b16 %v2759
  %v2792 = vunpack.c.l.b16 %v2760
  %v2793 = vunpack.c.l.b16 %v2761
  %v2794 = vpack.c.b16 %v2779, %v2778
  %v2795 = vpack.c.b16 %v2781, %v2780
  %v2796 = vpack.c.b16 %v2783, %v2782
  %v2797 = vpack.c.b16 %v2785, %v2784
  %v2798 = vpack.c.b16 %v2787, %v2786
  %v2799 = vpack.c.b16 %v2789, %v2788
  %v2800 = vpack.c.b16 %v2791, %v2790
  %v2801 = vpack.c.b16 %v2793, %v2792
  %2810 = vmatprep.subr.bf16.mxu0 0
  %2811 = vmatpush1.bf16.msra.mxu0 %v2794
  %2812 = vmatprep.subr.bf16.mxu0 0
  %2813 = vmatpush1.bf16.msra.mxu0 %v2795
  %2814 = vmatprep.subr.bf16.mxu0 0
  %2815 = vmatpush1.bf16.msra.mxu0 %v2796
  %2816 = vmatprep.subr.bf16.mxu0 0
  %2817 = vmatpush1.bf16.msra.mxu0 %v2797
  %2818 = vmatprep.subr.bf16.mxu0 0
  %2819 = vmatpush1.bf16.msra.mxu0 %v2798
  %2820 = vmatprep.subr.bf16.mxu0 0
  %2821 = vmatpush1.bf16.msra.mxu0 %v2799
  %2822 = vmatprep.subr.bf16.mxu0 0
  %2823 = vmatpush1.bf16.msra.mxu0 %v2800
  %2824 = vmatprep.subr.bf16.mxu0 0
  %2825 = vmatpush1.bf16.msra.mxu0 %v2801
  %2826 = vmatprep.subr.bf16.mxu0 0
  %2827 = vmatpush1.bf16.msra.mxu0 0
  %2828 = vmatprep.subr.bf16.mxu0 0
  %2829 = vmatpush1.bf16.msra.mxu0 0
  %2830 = vmatprep.subr.bf16.mxu0 0
  %2831 = vmatpush1.bf16.msra.mxu0 0
  %2832 = vmatprep.subr.bf16.mxu0 0
  %2833 = vmatpush1.bf16.msra.mxu0 0
  %2834 = vmatprep.subr.bf16.mxu0 0
  %2835 = vmatpush1.bf16.msra.mxu0 0
  %2836 = vmatprep.subr.bf16.mxu0 0
  %2837 = vmatpush1.bf16.msra.mxu0 0
  %2838 = vmatprep.subr.bf16.mxu0 0
  %2839 = vmatpush1.bf16.msra.mxu0 0
  %2840 = vmatprep.subr.bf16.mxu0 0
  %2841 = vmatpush1.bf16.msra.mxu0 0
  %2842 = vmatprep.mubr.bf16.mxu0 0
  %2843 = vmatmul.mubr.bf16.gmra.mrb[0].mxu0 %v1879
  %v2844 = vpop.f32.mrb[0].mxu0
  %v2845 = vadd.f32 0.0, %v2844
  %v2846 = vpop.f32.mrb[0].mxu0
  %v2847 = vpop.f32.mrb[0].mxu0
  %v2848 = vpop.f32.mrb[0].mxu0
  %2849 = vdwg.mxu0
  %v2850 = vadd.f32 %v2744, %v2845
  %s2851 = scalar_lea.vmem %s3, 576
  %v2852 = vld [vmem:[%s2851] sm:$0xf]
  %v2853 = vld [vmem:[%s2851 + $0x4] sm:$0xf]
  %v2854 = vld [vmem:[%s2851 + $0x8] sm:$0xf]
  %v2855 = vld [vmem:[%s2851 + $0xc] sm:$0xf]
  %v2856 = vld [vmem:[%s2851 + $0x10] sm:$0xf]
  %v2857 = vld [vmem:[%s2851 + $0x14] sm:$0xf]
  %v2858 = vld [vmem:[%s2851 + $0x18] sm:$0xf]
  %v2859 = vld [vmem:[%s2851 + $0x1c] sm:$0xf]
  %v2860 = vld [vmem:[%s2851 + $0x20] sm:$0xf]
  %v2861 = vld [vmem:[%s2851 + $0x24] sm:$0xf]
  %v2862 = vld [vmem:[%s2851 + $0x28] sm:$0xf]
  %v2863 = vld [vmem:[%s2851 + $0x2c] sm:$0xf]
  %v2864 = vld [vmem:[%s2851 + $0x30] sm:$0xf]
  %v2865 = vld [vmem:[%s2851 + $0x34] sm:$0xf]
  %v2866 = vld [vmem:[%s2851 + $0x38] sm:$0xf]
  %v2867 = vld [vmem:[%s2851 + $0x3c] sm:$0xf]
  %v2869 = vrot.slane %v1879, 4
  %v2887 = vunpack.c.l.b16 %v2852
  %v2888 = vunpack.c.l.b16 %v2853
  %v2889 = vunpack.c.l.b16 %v2854
  %v2890 = vunpack.c.l.b16 %v2855
  %v2891 = vunpack.c.l.b16 %v2856
  %v2892 = vunpack.c.l.b16 %v2857
  %v2893 = vunpack.c.l.b16 %v2858
  %v2894 = vunpack.c.l.b16 %v2859
  %v2895 = vunpack.c.l.b16 %v2860
  %v2896 = vunpack.c.l.b16 %v2861
  %v2897 = vunpack.c.l.b16 %v2862
  %v2898 = vunpack.c.l.b16 %v2863
  %v2899 = vunpack.c.l.b16 %v2864
  %v2900 = vunpack.c.l.b16 %v2865
  %v2901 = vunpack.c.l.b16 %v2866
  %v2902 = vunpack.c.l.b16 %v2867
  %v2903 = vpack.c.b16 %v2888, %v2887
  %v2904 = vpack.c.b16 %v2890, %v2889
  %v2905 = vpack.c.b16 %v2892, %v2891
  %v2906 = vpack.c.b16 %v2894, %v2893
  %v2907 = vpack.c.b16 %v2896, %v2895
  %v2908 = vpack.c.b16 %v2898, %v2897
  %v2909 = vpack.c.b16 %v2900, %v2899
  %v2910 = vpack.c.b16 %v2902, %v2901
  %2919 = vmatprep.subr.bf16.mxu0 0
  %2920 = vmatpush1.bf16.msra.mxu0 %v2903
  %2921 = vmatprep.subr.bf16.mxu0 0
  %2922 = vmatpush1.bf16.msra.mxu0 %v2904
  %2923 = vmatprep.subr.bf16.mxu0 0
  %2924 = vmatpush1.bf16.msra.mxu0 %v2905
  %2925 = vmatprep.subr.bf16.mxu0 0
  %2926 = vmatpush1.bf16.msra.mxu0 %v2906
  %2927 = vmatprep.subr.bf16.mxu0 0
  %2928 = vmatpush1.bf16.msra.mxu0 %v2907
  %2929 = vmatprep.subr.bf16.mxu0 0
  %2930 = vmatpush1.bf16.msra.mxu0 %v2908
  %2931 = vmatprep.subr.bf16.mxu0 0
  %2932 = vmatpush1.bf16.msra.mxu0 %v2909
  %2933 = vmatprep.subr.bf16.mxu0 0
  %2934 = vmatpush1.bf16.msra.mxu0 %v2910
  %2935 = vmatprep.subr.bf16.mxu0 0
  %2936 = vmatpush1.bf16.msra.mxu0 0
  %2937 = vmatprep.subr.bf16.mxu0 0
  %2938 = vmatpush1.bf16.msra.mxu0 0
  %2939 = vmatprep.subr.bf16.mxu0 0
  %2940 = vmatpush1.bf16.msra.mxu0 0
  %2941 = vmatprep.subr.bf16.mxu0 0
  %2942 = vmatpush1.bf16.msra.mxu0 0
  %2943 = vmatprep.subr.bf16.mxu0 0
  %2944 = vmatpush1.bf16.msra.mxu0 0
  %2945 = vmatprep.subr.bf16.mxu0 0
  %2946 = vmatpush1.bf16.msra.mxu0 0
  %2947 = vmatprep.subr.bf16.mxu0 0
  %2948 = vmatpush1.bf16.msra.mxu0 0
  %2949 = vmatprep.subr.bf16.mxu0 0
  %2950 = vmatpush1.bf16.msra.mxu0 0
  %2951 = vmatprep.mubr.bf16.mxu0 0
  %2952 = vmatmul.mubr.bf16.gmra.mrb[0].mxu0 %v2869
  %v2953 = vpop.f32.mrb[0].mxu0
  %v2954 = vadd.f32 0.0, %v2953
  %v2955 = vpop.f32.mrb[0].mxu0
  %v2956 = vpop.f32.mrb[0].mxu0
  %v2957 = vpop.f32.mrb[0].mxu0
  %2958 = vdwg.mxu0
  %v2959 = vadd.f32 %v2850, %v2954
  %s2960 = scalar_lea.vmem %s3, 640
  %v2961 = vld [vmem:[%s2960] sm:$0xf]
  %v2962 = vld [vmem:[%s2960 + $0x4] sm:$0xf]
  %v2963 = vld [vmem:[%s2960 + $0x8] sm:$0xf]
  %v2964 = vld [vmem:[%s2960 + $0xc] sm:$0xf]
  %v2965 = vld [vmem:[%s2960 + $0x10] sm:$0xf]
  %v2966 = vld [vmem:[%s2960 + $0x14] sm:$0xf]
  %v2967 = vld [vmem:[%s2960 + $0x18] sm:$0xf]
  %v2968 = vld [vmem:[%s2960 + $0x1c] sm:$0xf]
  %v2969 = vld [vmem:[%s2960 + $0x20] sm:$0xf]
  %v2970 = vld [vmem:[%s2960 + $0x24] sm:$0xf]
  %v2971 = vld [vmem:[%s2960 + $0x28] sm:$0xf]
  %v2972 = vld [vmem:[%s2960 + $0x2c] sm:$0xf]
  %v2973 = vld [vmem:[%s2960 + $0x30] sm:$0xf]
  %v2974 = vld [vmem:[%s2960 + $0x34] sm:$0xf]
  %v2975 = vld [vmem:[%s2960 + $0x38] sm:$0xf]
  %v2976 = vld [vmem:[%s2960 + $0x3c] sm:$0xf]
  %v2993 = vunpack.c.l.b16 %v2961
  %v2994 = vunpack.c.l.b16 %v2962
  %v2995 = vunpack.c.l.b16 %v2963
  %v2996 = vunpack.c.l.b16 %v2964
  %v2997 = vunpack.c.l.b16 %v2965
  %v2998 = vunpack.c.l.b16 %v2966
  %v2999 = vunpack.c.l.b16 %v2967
  %v3000 = vunpack.c.l.b16 %v2968
  %v3001 = vunpack.c.l.b16 %v2969
  %v3002 = vunpack.c.l.b16 %v2970
  %v3003 = vunpack.c.l.b16 %v2971
  %v3004 = vunpack.c.l.b16 %v2972
  %v3005 = vunpack.c.l.b16 %v2973
  %v3006 = vunpack.c.l.b16 %v2974
  %v3007 = vunpack.c.l.b16 %v2975
  %v3008 = vunpack.c.l.b16 %v2976
  %v3009 = vpack.c.b16 %v2994, %v2993
  %v3010 = vpack.c.b16 %v2996, %v2995
  %v3011 = vpack.c.b16 %v2998, %v2997
  %v3012 = vpack.c.b16 %v3000, %v2999
  %v3013 = vpack.c.b16 %v3002, %v3001
  %v3014 = vpack.c.b16 %v3004, %v3003
  %v3015 = vpack.c.b16 %v3006, %v3005
  %v3016 = vpack.c.b16 %v3008, %v3007
  %3025 = vmatprep.subr.bf16.mxu0 0
  %3026 = vmatpush1.bf16.msra.mxu0 %v3009
  %3027 = vmatprep.subr.bf16.mxu0 0
  %3028 = vmatpush1.bf16.msra.mxu0 %v3010
  %3029 = vmatprep.subr.bf16.mxu0 0
  %3030 = vmatpush1.bf16.msra.mxu0 %v3011
  %3031 = vmatprep.subr.bf16.mxu0 0
  %3032 = vmatpush1.bf16.msra.mxu0 %v3012
  %3033 = vmatprep.subr.bf16.mxu0 0
  %3034 = vmatpush1.bf16.msra.mxu0 %v3013
  %3035 = vmatprep.subr.bf16.mxu0 0
  %3036 = vmatpush1.bf16.msra.mxu0 %v3014
  %3037 = vmatprep.subr.bf16.mxu0 0
  %3038 = vmatpush1.bf16.msra.mxu0 %v3015
  %3039 = vmatprep.subr.bf16.mxu0 0
  %3040 = vmatpush1.bf16.msra.mxu0 %v3016
  %3041 = vmatprep.subr.bf16.mxu0 0
  %3042 = vmatpush1.bf16.msra.mxu0 0
  %3043 = vmatprep.subr.bf16.mxu0 0
  %3044 = vmatpush1.bf16.msra.mxu0 0
  %3045 = vmatprep.subr.bf16.mxu0 0
  %3046 = vmatpush1.bf16.msra.mxu0 0
  %3047 = vmatprep.subr.bf16.mxu0 0
  %3048 = vmatpush1.bf16.msra.mxu0 0
  %3049 = vmatprep.subr.bf16.mxu0 0
  %3050 = vmatpush1.bf16.msra.mxu0 0
  %3051 = vmatprep.subr.bf16.mxu0 0
  %3052 = vmatpush1.bf16.msra.mxu0 0
  %3053 = vmatprep.subr.bf16.mxu0 0
  %3054 = vmatpush1.bf16.msra.mxu0 0
  %3055 = vmatprep.subr.bf16.mxu0 0
  %3056 = vmatpush1.bf16.msra.mxu0 0
  %3057 = vmatprep.mubr.bf16.mxu0 0
  %3058 = vmatmul.mubr.bf16.gmra.mrb[0].mxu0 %v1880
  %v3059 = vpop.f32.mrb[0].mxu0
  %v3060 = vadd.f32 0.0, %v3059
  %v3061 = vpop.f32.mrb[0].mxu0
  %v3062 = vpop.f32.mrb[0].mxu0
  %v3063 = vpop.f32.mrb[0].mxu0
  %3064 = vdwg.mxu0
  %v3065 = vadd.f32 %v2959, %v3060
  %s3066 = scalar_lea.vmem %s3, 704
  %v3067 = vld [vmem:[%s3066] sm:$0xf]
  %v3068 = vld [vmem:[%s3066 + $0x4] sm:$0xf]
  %v3069 = vld [vmem:[%s3066 + $0x8] sm:$0xf]
  %v3070 = vld [vmem:[%s3066 + $0xc] sm:$0xf]
  %v3071 = vld [vmem:[%s3066 + $0x10] sm:$0xf]
  %v3072 = vld [vmem:[%s3066 + $0x14] sm:$0xf]
  %v3073 = vld [vmem:[%s3066 + $0x18] sm:$0xf]
  %v3074 = vld [vmem:[%s3066 + $0x1c] sm:$0xf]
  %v3075 = vld [vmem:[%s3066 + $0x20] sm:$0xf]
  %v3076 = vld [vmem:[%s3066 + $0x24] sm:$0xf]
  %v3077 = vld [vmem:[%s3066 + $0x28] sm:$0xf]
  %v3078 = vld [vmem:[%s3066 + $0x2c] sm:$0xf]
  %v3079 = vld [vmem:[%s3066 + $0x30] sm:$0xf]
  %v3080 = vld [vmem:[%s3066 + $0x34] sm:$0xf]
  %v3081 = vld [vmem:[%s3066 + $0x38] sm:$0xf]
  %v3082 = vld [vmem:[%s3066 + $0x3c] sm:$0xf]
  %v3084 = vrot.slane %v1880, 4
  %v3102 = vunpack.c.l.b16 %v3067
  %v3103 = vunpack.c.l.b16 %v3068
  %v3104 = vunpack.c.l.b16 %v3069
  %v3105 = vunpack.c.l.b16 %v3070
  %v3106 = vunpack.c.l.b16 %v3071
  %v3107 = vunpack.c.l.b16 %v3072
  %v3108 = vunpack.c.l.b16 %v3073
  %v3109 = vunpack.c.l.b16 %v3074
  %v3110 = vunpack.c.l.b16 %v3075
  %v3111 = vunpack.c.l.b16 %v3076
  %v3112 = vunpack.c.l.b16 %v3077
  %v3113 = vunpack.c.l.b16 %v3078
  %v3114 = vunpack.c.l.b16 %v3079
  %v3115 = vunpack.c.l.b16 %v3080
  %v3116 = vunpack.c.l.b16 %v3081
  %v3117 = vunpack.c.l.b16 %v3082
  %v3118 = vpack.c.b16 %v3103, %v3102
  %v3119 = vpack.c.b16 %v3105, %v3104
  %v3120 = vpack.c.b16 %v3107, %v3106
  %v3121 = vpack.c.b16 %v3109, %v3108
  %v3122 = vpack.c.b16 %v3111, %v3110
  %v3123 = vpack.c.b16 %v3113, %v3112
  %v3124 = vpack.c.b16 %v3115, %v3114
  %v3125 = vpack.c.b16 %v3117, %v3116
  %3134 = vmatprep.subr.bf16.mxu0 0
  %3135 = vmatpush1.bf16.msra.mxu0 %v3118
  %3136 = vmatprep.subr.bf16.mxu0 0
  %3137 = vmatpush1.bf16.msra.mxu0 %v3119
  %3138 = vmatprep.subr.bf16.mxu0 0
  %3139 = vmatpush1.bf16.msra.mxu0 %v3120
  %3140 = vmatprep.subr.bf16.mxu0 0
  %3141 = vmatpush1.bf16.msra.mxu0 %v3121
  %3142 = vmatprep.subr.bf16.mxu0 0
  %3143 = vmatpush1.bf16.msra.mxu0 %v3122
  %3144 = vmatprep.subr.bf16.mxu0 0
  %3145 = vmatpush1.bf16.msra.mxu0 %v3123
  %3146 = vmatprep.subr.bf16.mxu0 0
  %3147 = vmatpush1.bf16.msra.mxu0 %v3124
  %3148 = vmatprep.subr.bf16.mxu0 0
  %3149 = vmatpush1.bf16.msra.mxu0 %v3125
  %3150 = vmatprep.subr.bf16.mxu0 0
  %3151 = vmatpush1.bf16.msra.mxu0 0
  %3152 = vmatprep.subr.bf16.mxu0 0
  %3153 = vmatpush1.bf16.msra.mxu0 0
  %3154 = vmatprep.subr.bf16.mxu0 0
  %3155 = vmatpush1.bf16.msra.mxu0 0
  %3156 = vmatprep.subr.bf16.mxu0 0
  %3157 = vmatpush1.bf16.msra.mxu0 0
  %3158 = vmatprep.subr.bf16.mxu0 0
  %3159 = vmatpush1.bf16.msra.mxu0 0
  %3160 = vmatprep.subr.bf16.mxu0 0
  %3161 = vmatpush1.bf16.msra.mxu0 0
  %3162 = vmatprep.subr.bf16.mxu0 0
  %3163 = vmatpush1.bf16.msra.mxu0 0
  %3164 = vmatprep.subr.bf16.mxu0 0
  %3165 = vmatpush1.bf16.msra.mxu0 0
  %3166 = vmatprep.mubr.bf16.mxu0 0
  %3167 = vmatmul.mubr.bf16.gmra.mrb[0].mxu0 %v3084
  %v3168 = vpop.f32.mrb[0].mxu0
  %v3169 = vadd.f32 0.0, %v3168
  %v3170 = vpop.f32.mrb[0].mxu0
  %v3171 = vpop.f32.mrb[0].mxu0
  %v3172 = vpop.f32.mrb[0].mxu0
  %3173 = vdwg.mxu0
  %v3174 = vadd.f32 %v3065, %v3169
  %s3175 = scalar_lea.vmem %s3, 768
  %v3176 = vld [vmem:[%s3175] sm:$0xf]
  %v3177 = vld [vmem:[%s3175 + $0x4] sm:$0xf]
  %v3178 = vld [vmem:[%s3175 + $0x8] sm:$0xf]
  %v3179 = vld [vmem:[%s3175 + $0xc] sm:$0xf]
  %v3180 = vld [vmem:[%s3175 + $0x10] sm:$0xf]
  %v3181 = vld [vmem:[%s3175 + $0x14] sm:$0xf]
  %v3182 = vld [vmem:[%s3175 + $0x18] sm:$0xf]
  %v3183 = vld [vmem:[%s3175 + $0x1c] sm:$0xf]
  %v3184 = vld [vmem:[%s3175 + $0x20] sm:$0xf]
  %v3185 = vld [vmem:[%s3175 + $0x24] sm:$0xf]
  %v3186 = vld [vmem:[%s3175 + $0x28] sm:$0xf]
  %v3187 = vld [vmem:[%s3175 + $0x2c] sm:$0xf]
  %v3188 = vld [vmem:[%s3175 + $0x30] sm:$0xf]
  %v3189 = vld [vmem:[%s3175 + $0x34] sm:$0xf]
  %v3190 = vld [vmem:[%s3175 + $0x38] sm:$0xf]
  %v3191 = vld [vmem:[%s3175 + $0x3c] sm:$0xf]
  %v3208 = vunpack.c.l.b16 %v3176
  %v3209 = vunpack.c.l.b16 %v3177
  %v3210 = vunpack.c.l.b16 %v3178
  %v3211 = vunpack.c.l.b16 %v3179
  %v3212 = vunpack.c.l.b16 %v3180
  %v3213 = vunpack.c.l.b16 %v3181
  %v3214 = vunpack.c.l.b16 %v3182
  %v3215 = vunpack.c.l.b16 %v3183
  %v3216 = vunpack.c.l.b16 %v3184
  %v3217 = vunpack.c.l.b16 %v3185
  %v3218 = vunpack.c.l.b16 %v3186
  %v3219 = vunpack.c.l.b16 %v3187
  %v3220 = vunpack.c.l.b16 %v3188
  %v3221 = vunpack.c.l.b16 %v3189
  %v3222 = vunpack.c.l.b16 %v3190
  %v3223 = vunpack.c.l.b16 %v3191
  %v3224 = vpack.c.b16 %v3209, %v3208
  %v3225 = vpack.c.b16 %v3211, %v3210
  %v3226 = vpack.c.b16 %v3213, %v3212
  %v3227 = vpack.c.b16 %v3215, %v3214
  %v3228 = vpack.c.b16 %v3217, %v3216
  %v3229 = vpack.c.b16 %v3219, %v3218
  %v3230 = vpack.c.b16 %v3221, %v3220
  %v3231 = vpack.c.b16 %v3223, %v3222
  %3240 = vmatprep.subr.bf16.mxu0 0
  %3241 = vmatpush1.bf16.msra.mxu0 %v3224
  %3242 = vmatprep.subr.bf16.mxu0 0
  %3243 = vmatpush1.bf16.msra.mxu0 %v3225
  %3244 = vmatprep.subr.bf16.mxu0 0
  %3245 = vmatpush1.bf16.msra.mxu0 %v3226
  %3246 = vmatprep.subr.bf16.mxu0 0
  %3247 = vmatpush1.bf16.msra.mxu0 %v3227
  %3248 = vmatprep.subr.bf16.mxu0 0
  %3249 = vmatpush1.bf16.msra.mxu0 %v3228
  %3250 = vmatprep.subr.bf16.mxu0 0
  %3251 = vmatpush1.bf16.msra.mxu0 %v3229
  %3252 = vmatprep.subr.bf16.mxu0 0
  %3253 = vmatpush1.bf16.msra.mxu0 %v3230
  %3254 = vmatprep.subr.bf16.mxu0 0
  %3255 = vmatpush1.bf16.msra.mxu0 %v3231
  %3256 = vmatprep.subr.bf16.mxu0 0
  %3257 = vmatpush1.bf16.msra.mxu0 0
  %3258 = vmatprep.subr.bf16.mxu0 0
  %3259 = vmatpush1.bf16.msra.mxu0 0
  %3260 = vmatprep.subr.bf16.mxu0 0
  %3261 = vmatpush1.bf16.msra.mxu0 0
  %3262 = vmatprep.subr.bf16.mxu0 0
  %3263 = vmatpush1.bf16.msra.mxu0 0
  %3264 = vmatprep.subr.bf16.mxu0 0
  %3265 = vmatpush1.bf16.msra.mxu0 0
  %3266 = vmatprep.subr.bf16.mxu0 0
  %3267 = vmatpush1.bf16.msra.mxu0 0
  %3268 = vmatprep.subr.bf16.mxu0 0
  %3269 = vmatpush1.bf16.msra.mxu0 0
  %3270 = vmatprep.subr.bf16.mxu0 0
  %3271 = vmatpush1.bf16.msra.mxu0 0
  %3272 = vmatprep.mubr.bf16.mxu0 0
  %3273 = vmatmul.mubr.bf16.gmra.mrb[0].mxu0 %v1881
  %v3274 = vpop.f32.mrb[0].mxu0
  %v3275 = vadd.f32 0.0, %v3274
  %v3276 = vpop.f32.mrb[0].mxu0
  %v3277 = vpop.f32.mrb[0].mxu0
  %v3278 = vpop.f32.mrb[0].mxu0
  %3279 = vdwg.mxu0
  %v3280 = vadd.f32 %v3174, %v3275
  %s3281 = scalar_lea.vmem %s3, 832
  %v3282 = vld [vmem:[%s3281] sm:$0xf]
  %v3283 = vld [vmem:[%s3281 + $0x4] sm:$0xf]
  %v3284 = vld [vmem:[%s3281 + $0x8] sm:$0xf]
  %v3285 = vld [vmem:[%s3281 + $0xc] sm:$0xf]
  %v3286 = vld [vmem:[%s3281 + $0x10] sm:$0xf]
  %v3287 = vld [vmem:[%s3281 + $0x14] sm:$0xf]
  %v3288 = vld [vmem:[%s3281 + $0x18] sm:$0xf]
  %v3289 = vld [vmem:[%s3281 + $0x1c] sm:$0xf]
  %v3290 = vld [vmem:[%s3281 + $0x20] sm:$0xf]
  %v3291 = vld [vmem:[%s3281 + $0x24] sm:$0xf]
  %v3292 = vld [vmem:[%s3281 + $0x28] sm:$0xf]
  %v3293 = vld [vmem:[%s3281 + $0x2c] sm:$0xf]
  %v3294 = vld [vmem:[%s3281 + $0x30] sm:$0xf]
  %v3295 = vld [vmem:[%s3281 + $0x34] sm:$0xf]
  %v3296 = vld [vmem:[%s3281 + $0x38] sm:$0xf]
  %v3297 = vld [vmem:[%s3281 + $0x3c] sm:$0xf]
  %v3299 = vrot.slane %v1881, 4
  %v3317 = vunpack.c.l.b16 %v3282
  %v3318 = vunpack.c.l.b16 %v3283
  %v3319 = vunpack.c.l.b16 %v3284
  %v3320 = vunpack.c.l.b16 %v3285
  %v3321 = vunpack.c.l.b16 %v3286
  %v3322 = vunpack.c.l.b16 %v3287
  %v3323 = vunpack.c.l.b16 %v3288
  %v3324 = vunpack.c.l.b16 %v3289
  %v3325 = vunpack.c.l.b16 %v3290
  %v3326 = vunpack.c.l.b16 %v3291
  %v3327 = vunpack.c.l.b16 %v3292
  %v3328 = vunpack.c.l.b16 %v3293
  %v3329 = vunpack.c.l.b16 %v3294
  %v3330 = vunpack.c.l.b16 %v3295
  %v3331 = vunpack.c.l.b16 %v3296
  %v3332 = vunpack.c.l.b16 %v3297
  %v3333 = vpack.c.b16 %v3318, %v3317
  %v3334 = vpack.c.b16 %v3320, %v3319
  %v3335 = vpack.c.b16 %v3322, %v3321
  %v3336 = vpack.c.b16 %v3324, %v3323
  %v3337 = vpack.c.b16 %v3326, %v3325
  %v3338 = vpack.c.b16 %v3328, %v3327
  %v3339 = vpack.c.b16 %v3330, %v3329
  %v3340 = vpack.c.b16 %v3332, %v3331
  %3349 = vmatprep.subr.bf16.mxu0 0
  %3350 = vmatpush1.bf16.msra.mxu0 %v3333
  %3351 = vmatprep.subr.bf16.mxu0 0
  %3352 = vmatpush1.bf16.msra.mxu0 %v3334
  %3353 = vmatprep.subr.bf16.mxu0 0
  %3354 = vmatpush1.bf16.msra.mxu0 %v3335
  %3355 = vmatprep.subr.bf16.mxu0 0
  %3356 = vmatpush1.bf16.msra.mxu0 %v3336
  %3357 = vmatprep.subr.bf16.mxu0 0
  %3358 = vmatpush1.bf16.msra.mxu0 %v3337
  %3359 = vmatprep.subr.bf16.mxu0 0
  %3360 = vmatpush1.bf16.msra.mxu0 %v3338
  %3361 = vmatprep.subr.bf16.mxu0 0
  %3362 = vmatpush1.bf16.msra.mxu0 %v3339
  %3363 = vmatprep.subr.bf16.mxu0 0
  %3364 = vmatpush1.bf16.msra.mxu0 %v3340
  %3365 = vmatprep.subr.bf16.mxu0 0
  %3366 = vmatpush1.bf16.msra.mxu0 0
  %3367 = vmatprep.subr.bf16.mxu0 0
  %3368 = vmatpush1.bf16.msra.mxu0 0
  %3369 = vmatprep.subr.bf16.mxu0 0
  %3370 = vmatpush1.bf16.msra.mxu0 0
  %3371 = vmatprep.subr.bf16.mxu0 0
  %3372 = vmatpush1.bf16.msra.mxu0 0
  %3373 = vmatprep.subr.bf16.mxu0 0
  %3374 = vmatpush1.bf16.msra.mxu0 0
  %3375 = vmatprep.subr.bf16.mxu0 0
  %3376 = vmatpush1.bf16.msra.mxu0 0
  %3377 = vmatprep.subr.bf16.mxu0 0
  %3378 = vmatpush1.bf16.msra.mxu0 0
  %3379 = vmatprep.subr.bf16.mxu0 0
  %3380 = vmatpush1.bf16.msra.mxu0 0
  %3381 = vmatprep.mubr.bf16.mxu0 0
  %3382 = vmatmul.mubr.bf16.gmra.mrb[0].mxu0 %v3299
  %v3383 = vpop.f32.mrb[0].mxu0
  %v3384 = vadd.f32 0.0, %v3383
  %v3385 = vpop.f32.mrb[0].mxu0
  %v3386 = vpop.f32.mrb[0].mxu0
  %v3387 = vpop.f32.mrb[0].mxu0
  %3388 = vdwg.mxu0
  %v3389 = vadd.f32 %v3280, %v3384
  %s3390 = scalar_lea.vmem %s3, 896
  %v3391 = vld [vmem:[%s3390] sm:$0xf]
  %v3392 = vld [vmem:[%s3390 + $0x4] sm:$0xf]
  %v3393 = vld [vmem:[%s3390 + $0x8] sm:$0xf]
  %v3394 = vld [vmem:[%s3390 + $0xc] sm:$0xf]
  %v3395 = vld [vmem:[%s3390 + $0x10] sm:$0xf]
  %v3396 = vld [vmem:[%s3390 + $0x14] sm:$0xf]
  %v3397 = vld [vmem:[%s3390 + $0x18] sm:$0xf]
  %v3398 = vld [vmem:[%s3390 + $0x1c] sm:$0xf]
  %v3399 = vld [vmem:[%s3390 + $0x20] sm:$0xf]
  %v3400 = vld [vmem:[%s3390 + $0x24] sm:$0xf]
  %v3401 = vld [vmem:[%s3390 + $0x28] sm:$0xf]
  %v3402 = vld [vmem:[%s3390 + $0x2c] sm:$0xf]
  %v3403 = vld [vmem:[%s3390 + $0x30] sm:$0xf]
  %v3404 = vld [vmem:[%s3390 + $0x34] sm:$0xf]
  %v3405 = vld [vmem:[%s3390 + $0x38] sm:$0xf]
  %v3406 = vld [vmem:[%s3390 + $0x3c] sm:$0xf]
  %v3423 = vunpack.c.l.b16 %v3391
  %v3424 = vunpack.c.l.b16 %v3392
  %v3425 = vunpack.c.l.b16 %v3393
  %v3426 = vunpack.c.l.b16 %v3394
  %v3427 = vunpack.c.l.b16 %v3395
  %v3428 = vunpack.c.l.b16 %v3396
  %v3429 = vunpack.c.l.b16 %v3397
  %v3430 = vunpack.c.l.b16 %v3398
  %v3431 = vunpack.c.l.b16 %v3399
  %v3432 = vunpack.c.l.b16 %v3400
  %v3433 = vunpack.c.l.b16 %v3401
  %v3434 = vunpack.c.l.b16 %v3402
  %v3435 = vunpack.c.l.b16 %v3403
  %v3436 = vunpack.c.l.b16 %v3404
  %v3437 = vunpack.c.l.b16 %v3405
  %v3438 = vunpack.c.l.b16 %v3406
  %v3439 = vpack.c.b16 %v3424, %v3423
  %v3440 = vpack.c.b16 %v3426, %v3425
  %v3441 = vpack.c.b16 %v3428, %v3427
  %v3442 = vpack.c.b16 %v3430, %v3429
  %v3443 = vpack.c.b16 %v3432, %v3431
  %v3444 = vpack.c.b16 %v3434, %v3433
  %v3445 = vpack.c.b16 %v3436, %v3435
  %v3446 = vpack.c.b16 %v3438, %v3437
  %3455 = vmatprep.subr.bf16.mxu0 0
  %3456 = vmatpush1.bf16.msra.mxu0 %v3439
  %3457 = vmatprep.subr.bf16.mxu0 0
  %3458 = vmatpush1.bf16.msra.mxu0 %v3440
  %3459 = vmatprep.subr.bf16.mxu0 0
  %3460 = vmatpush1.bf16.msra.mxu0 %v3441
  %3461 = vmatprep.subr.bf16.mxu0 0
  %3462 = vmatpush1.bf16.msra.mxu0 %v3442
  %3463 = vmatprep.subr.bf16.mxu0 0
  %3464 = vmatpush1.bf16.msra.mxu0 %v3443
  %3465 = vmatprep.subr.bf16.mxu0 0
  %3466 = vmatpush1.bf16.msra.mxu0 %v3444
  %3467 = vmatprep.subr.bf16.mxu0 0
  %3468 = vmatpush1.bf16.msra.mxu0 %v3445
  %3469 = vmatprep.subr.bf16.mxu0 0
  %3470 = vmatpush1.bf16.msra.mxu0 %v3446
  %3471 = vmatprep.subr.bf16.mxu0 0
  %3472 = vmatpush1.bf16.msra.mxu0 0
  %3473 = vmatprep.subr.bf16.mxu0 0
  %3474 = vmatpush1.bf16.msra.mxu0 0
  %3475 = vmatprep.subr.bf16.mxu0 0
  %3476 = vmatpush1.bf16.msra.mxu0 0
  %3477 = vmatprep.subr.bf16.mxu0 0
  %3478 = vmatpush1.bf16.msra.mxu0 0
  %3479 = vmatprep.subr.bf16.mxu0 0
  %3480 = vmatpush1.bf16.msra.mxu0 0
  %3481 = vmatprep.subr.bf16.mxu0 0
  %3482 = vmatpush1.bf16.msra.mxu0 0
  %3483 = vmatprep.subr.bf16.mxu0 0
  %3484 = vmatpush1.bf16.msra.mxu0 0
  %3485 = vmatprep.subr.bf16.mxu0 0
  %3486 = vmatpush1.bf16.msra.mxu0 0
  %3487 = vmatprep.mubr.bf16.mxu0 0
  %3488 = vmatmul.mubr.bf16.gmra.mrb[0].mxu0 %v1882
  %v3489 = vpop.f32.mrb[0].mxu0
  %v3490 = vadd.f32 0.0, %v3489
  %v3491 = vpop.f32.mrb[0].mxu0
  %v3492 = vpop.f32.mrb[0].mxu0
  %v3493 = vpop.f32.mrb[0].mxu0
  %3494 = vdwg.mxu0
  %v3495 = vadd.f32 %v3389, %v3490
  %s3496 = scalar_lea.vmem %s3, 960
  %v3497 = vld [vmem:[%s3496] sm:$0xf]
  %v3498 = vld [vmem:[%s3496 + $0x4] sm:$0xf]
  %v3499 = vld [vmem:[%s3496 + $0x8] sm:$0xf]
  %v3500 = vld [vmem:[%s3496 + $0xc] sm:$0xf]
  %v3501 = vld [vmem:[%s3496 + $0x10] sm:$0xf]
  %v3502 = vld [vmem:[%s3496 + $0x14] sm:$0xf]
  %v3503 = vld [vmem:[%s3496 + $0x18] sm:$0xf]
  %v3504 = vld [vmem:[%s3496 + $0x1c] sm:$0xf]
  %v3505 = vld [vmem:[%s3496 + $0x20] sm:$0xf]
  %v3506 = vld [vmem:[%s3496 + $0x24] sm:$0xf]
  %v3507 = vld [vmem:[%s3496 + $0x28] sm:$0xf]
  %v3508 = vld [vmem:[%s3496 + $0x2c] sm:$0xf]
  %v3509 = vld [vmem:[%s3496 + $0x30] sm:$0xf]
  %v3510 = vld [vmem:[%s3496 + $0x34] sm:$0xf]
  %v3511 = vld [vmem:[%s3496 + $0x38] sm:$0xf]
  %v3512 = vld [vmem:[%s3496 + $0x3c] sm:$0xf]
  %v3514 = vrot.slane %v1882, 4
  %v3532 = vunpack.c.l.b16 %v3497
  %v3533 = vunpack.c.l.b16 %v3498
  %v3534 = vunpack.c.l.b16 %v3499
  %v3535 = vunpack.c.l.b16 %v3500
  %v3536 = vunpack.c.l.b16 %v3501
  %v3537 = vunpack.c.l.b16 %v3502
  %v3538 = vunpack.c.l.b16 %v3503
  %v3539 = vunpack.c.l.b16 %v3504
  %v3540 = vunpack.c.l.b16 %v3505
  %v3541 = vunpack.c.l.b16 %v3506
  %v3542 = vunpack.c.l.b16 %v3507
  %v3543 = vunpack.c.l.b16 %v3508
  %v3544 = vunpack.c.l.b16 %v3509
  %v3545 = vunpack.c.l.b16 %v3510
  %v3546 = vunpack.c.l.b16 %v3511
  %v3547 = vunpack.c.l.b16 %v3512
  %v3548 = vpack.c.b16 %v3533, %v3532
  %v3549 = vpack.c.b16 %v3535, %v3534
  %v3550 = vpack.c.b16 %v3537, %v3536
  %v3551 = vpack.c.b16 %v3539, %v3538
  %v3552 = vpack.c.b16 %v3541, %v3540
  %v3553 = vpack.c.b16 %v3543, %v3542
  %v3554 = vpack.c.b16 %v3545, %v3544
  %v3555 = vpack.c.b16 %v3547, %v3546
  %3564 = vmatprep.subr.bf16.mxu0 0
  %3565 = vmatpush1.bf16.msra.mxu0 %v3548
  %3566 = vmatprep.subr.bf16.mxu0 0
  %3567 = vmatpush1.bf16.msra.mxu0 %v3549
  %3568 = vmatprep.subr.bf16.mxu0 0
  %3569 = vmatpush1.bf16.msra.mxu0 %v3550
  %3570 = vmatprep.subr.bf16.mxu0 0
  %3571 = vmatpush1.bf16.msra.mxu0 %v3551
  %3572 = vmatprep.subr.bf16.mxu0 0
  %3573 = vmatpush1.bf16.msra.mxu0 %v3552
  %3574 = vmatprep.subr.bf16.mxu0 0
  %3575 = vmatpush1.bf16.msra.mxu0 %v3553
  %3576 = vmatprep.subr.bf16.mxu0 0
  %3577 = vmatpush1.bf16.msra.mxu0 %v3554
  %3578 = vmatprep.subr.bf16.mxu0 0
  %3579 = vmatpush1.bf16.msra.mxu0 %v3555
  %3580 = vmatprep.subr.bf16.mxu0 0
  %3581 = vmatpush1.bf16.msra.mxu0 0
  %3582 = vmatprep.subr.bf16.mxu0 0
  %3583 = vmatpush1.bf16.msra.mxu0 0
  %3584 = vmatprep.subr.bf16.mxu0 0
  %3585 = vmatpush1.bf16.msra.mxu0 0
  %3586 = vmatprep.subr.bf16.mxu0 0
  %3587 = vmatpush1.bf16.msra.mxu0 0
  %3588 = vmatprep.subr.bf16.mxu0 0
  %3589 = vmatpush1.bf16.msra.mxu0 0
  %3590 = vmatprep.subr.bf16.mxu0 0
  %3591 = vmatpush1.bf16.msra.mxu0 0
  %3592 = vmatprep.subr.bf16.mxu0 0
  %3593 = vmatpush1.bf16.msra.mxu0 0
  %3594 = vmatprep.subr.bf16.mxu0 0
  %3595 = vmatpush1.bf16.msra.mxu0 0
  %3596 = vmatprep.mubr.bf16.mxu0 0
  %3597 = vmatmul.mubr.bf16.gmra.mrb[0].mxu0 %v3514
  %v3598 = vpop.f32.mrb[0].mxu0
  %v3599 = vadd.f32 0.0, %v3598
  %v3600 = vpop.f32.mrb[0].mxu0
  %v3601 = vpop.f32.mrb[0].mxu0
  %v3602 = vpop.f32.mrb[0].mxu0
  %3603 = vdwg.mxu0
  %v3604 = vadd.f32 %v3495, %v3599
  %s3605 = scalar_lea.vmem %s3, 1024
  %v3606 = vld [vmem:[%s3605] sm:$0xf]
  %v3607 = vld [vmem:[%s3605 + $0x4] sm:$0xf]
  %v3608 = vld [vmem:[%s3605 + $0x8] sm:$0xf]
  %v3609 = vld [vmem:[%s3605 + $0xc] sm:$0xf]
  %v3610 = vld [vmem:[%s3605 + $0x10] sm:$0xf]
  %v3611 = vld [vmem:[%s3605 + $0x14] sm:$0xf]
  %v3612 = vld [vmem:[%s3605 + $0x18] sm:$0xf]
  %v3613 = vld [vmem:[%s3605 + $0x1c] sm:$0xf]
  %v3614 = vld [vmem:[%s3605 + $0x20] sm:$0xf]
  %v3615 = vld [vmem:[%s3605 + $0x24] sm:$0xf]
  %v3616 = vld [vmem:[%s3605 + $0x28] sm:$0xf]
  %v3617 = vld [vmem:[%s3605 + $0x2c] sm:$0xf]
  %v3618 = vld [vmem:[%s3605 + $0x30] sm:$0xf]
  %v3619 = vld [vmem:[%s3605 + $0x34] sm:$0xf]
  %v3620 = vld [vmem:[%s3605 + $0x38] sm:$0xf]
  %v3621 = vld [vmem:[%s3605 + $0x3c] sm:$0xf]
  %v3638 = vunpack.c.l.b16 %v3606
  %v3639 = vunpack.c.l.b16 %v3607
  %v3640 = vunpack.c.l.b16 %v3608
  %v3641 = vunpack.c.l.b16 %v3609
  %v3642 = vunpack.c.l.b16 %v3610
  %v3643 = vunpack.c.l.b16 %v3611
  %v3644 = vunpack.c.l.b16 %v3612
  %v3645 = vunpack.c.l.b16 %v3613
  %v3646 = vunpack.c.l.b16 %v3614
  %v3647 = vunpack.c.l.b16 %v3615
  %v3648 = vunpack.c.l.b16 %v3616
  %v3649 = vunpack.c.l.b16 %v3617
  %v3650 = vunpack.c.l.b16 %v3618
  %v3651 = vunpack.c.l.b16 %v3619
  %v3652 = vunpack.c.l.b16 %v3620
  %v3653 = vunpack.c.l.b16 %v3621
  %v3654 = vpack.c.b16 %v3639, %v3638
  %v3655 = vpack.c.b16 %v3641, %v3640
  %v3656 = vpack.c.b16 %v3643, %v3642
  %v3657 = vpack.c.b16 %v3645, %v3644
  %v3658 = vpack.c.b16 %v3647, %v3646
  %v3659 = vpack.c.b16 %v3649, %v3648
  %v3660 = vpack.c.b16 %v3651, %v3650
  %v3661 = vpack.c.b16 %v3653, %v3652
  %3670 = vmatprep.subr.bf16.mxu0 0
  %3671 = vmatpush1.bf16.msra.mxu0 %v3654
  %3672 = vmatprep.subr.bf16.mxu0 0
  %3673 = vmatpush1.bf16.msra.mxu0 %v3655
  %3674 = vmatprep.subr.bf16.mxu0 0
  %3675 = vmatpush1.bf16.msra.mxu0 %v3656
  %3676 = vmatprep.subr.bf16.mxu0 0
  %3677 = vmatpush1.bf16.msra.mxu0 %v3657
  %3678 = vmatprep.subr.bf16.mxu0 0
  %3679 = vmatpush1.bf16.msra.mxu0 %v3658
  %3680 = vmatprep.subr.bf16.mxu0 0
  %3681 = vmatpush1.bf16.msra.mxu0 %v3659
  %3682 = vmatprep.subr.bf16.mxu0 0
  %3683 = vmatpush1.bf16.msra.mxu0 %v3660
  %3684 = vmatprep.subr.bf16.mxu0 0
  %3685 = vmatpush1.bf16.msra.mxu0 %v3661
  %3686 = vmatprep.subr.bf16.mxu0 0
  %3687 = vmatpush1.bf16.msra.mxu0 0
  %3688 = vmatprep.subr.bf16.mxu0 0
  %3689 = vmatpush1.bf16.msra.mxu0 0
  %3690 = vmatprep.subr.bf16.mxu0 0
  %3691 = vmatpush1.bf16.msra.mxu0 0
  %3692 = vmatprep.subr.bf16.mxu0 0
  %3693 = vmatpush1.bf16.msra.mxu0 0
  %3694 = vmatprep.subr.bf16.mxu0 0
  %3695 = vmatpush1.bf16.msra.mxu0 0
  %3696 = vmatprep.subr.bf16.mxu0 0
  %3697 = vmatpush1.bf16.msra.mxu0 0
  %3698 = vmatprep.subr.bf16.mxu0 0
  %3699 = vmatpush1.bf16.msra.mxu0 0
  %3700 = vmatprep.subr.bf16.mxu0 0
  %3701 = vmatpush1.bf16.msra.mxu0 0
  %3702 = vmatprep.mubr.bf16.mxu0 0
  %3703 = vmatmul.mubr.bf16.gmra.mrb[0].mxu0 %v1883
  %v3704 = vpop.f32.mrb[0].mxu0
  %v3705 = vadd.f32 0.0, %v3704
  %v3706 = vpop.f32.mrb[0].mxu0
  %v3707 = vpop.f32.mrb[0].mxu0
  %v3708 = vpop.f32.mrb[0].mxu0
  %3709 = vdwg.mxu0
  %v3710 = vadd.f32 %v3604, %v3705
  %s3711 = scalar_lea.vmem %s3, 1088
  %v3712 = vld [vmem:[%s3711] sm:$0xf]
  %v3713 = vld [vmem:[%s3711 + $0x4] sm:$0xf]
  %v3714 = vld [vmem:[%s3711 + $0x8] sm:$0xf]
  %v3715 = vld [vmem:[%s3711 + $0xc] sm:$0xf]
  %v3716 = vld [vmem:[%s3711 + $0x10] sm:$0xf]
  %v3717 = vld [vmem:[%s3711 + $0x14] sm:$0xf]
  %v3718 = vld [vmem:[%s3711 + $0x18] sm:$0xf]
  %v3719 = vld [vmem:[%s3711 + $0x1c] sm:$0xf]
  %v3720 = vld [vmem:[%s3711 + $0x20] sm:$0xf]
  %v3721 = vld [vmem:[%s3711 + $0x24] sm:$0xf]
  %v3722 = vld [vmem:[%s3711 + $0x28] sm:$0xf]
  %v3723 = vld [vmem:[%s3711 + $0x2c] sm:$0xf]
  %v3724 = vld [vmem:[%s3711 + $0x30] sm:$0xf]
  %v3725 = vld [vmem:[%s3711 + $0x34] sm:$0xf]
  %v3726 = vld [vmem:[%s3711 + $0x38] sm:$0xf]
  %v3727 = vld [vmem:[%s3711 + $0x3c] sm:$0xf]
  %v3729 = vrot.slane %v1883, 4
  %v3747 = vunpack.c.l.b16 %v3712
  %v3748 = vunpack.c.l.b16 %v3713
  %v3749 = vunpack.c.l.b16 %v3714
  %v3750 = vunpack.c.l.b16 %v3715
  %v3751 = vunpack.c.l.b16 %v3716
  %v3752 = vunpack.c.l.b16 %v3717
  %v3753 = vunpack.c.l.b16 %v3718
  %v3754 = vunpack.c.l.b16 %v3719
  %v3755 = vunpack.c.l.b16 %v3720
  %v3756 = vunpack.c.l.b16 %v3721
  %v3757 = vunpack.c.l.b16 %v3722
  %v3758 = vunpack.c.l.b16 %v3723
  %v3759 = vunpack.c.l.b16 %v3724
  %v3760 = vunpack.c.l.b16 %v3725
  %v3761 = vunpack.c.l.b16 %v3726
  %v3762 = vunpack.c.l.b16 %v3727
  %v3763 = vpack.c.b16 %v3748, %v3747
  %v3764 = vpack.c.b16 %v3750, %v3749
  %v3765 = vpack.c.b16 %v3752, %v3751
  %v3766 = vpack.c.b16 %v3754, %v3753
  %v3767 = vpack.c.b16 %v3756, %v3755
  %v3768 = vpack.c.b16 %v3758, %v3757
  %v3769 = vpack.c.b16 %v3760, %v3759
  %v3770 = vpack.c.b16 %v3762, %v3761
  %3779 = vmatprep.subr.bf16.mxu0 0
  %3780 = vmatpush1.bf16.msra.mxu0 %v3763
  %3781 = vmatprep.subr.bf16.mxu0 0
  %3782 = vmatpush1.bf16.msra.mxu0 %v3764
  %3783 = vmatprep.subr.bf16.mxu0 0
  %3784 = vmatpush1.bf16.msra.mxu0 %v3765
  %3785 = vmatprep.subr.bf16.mxu0 0
  %3786 = vmatpush1.bf16.msra.mxu0 %v3766
  %3787 = vmatprep.subr.bf16.mxu0 0
  %3788 = vmatpush1.bf16.msra.mxu0 %v3767
  %3789 = vmatprep.subr.bf16.mxu0 0
  %3790 = vmatpush1.bf16.msra.mxu0 %v3768
  %3791 = vmatprep.subr.bf16.mxu0 0
  %3792 = vmatpush1.bf16.msra.mxu0 %v3769
  %3793 = vmatprep.subr.bf16.mxu0 0
  %3794 = vmatpush1.bf16.msra.mxu0 %v3770
  %3795 = vmatprep.subr.bf16.mxu0 0
  %3796 = vmatpush1.bf16.msra.mxu0 0
  %3797 = vmatprep.subr.bf16.mxu0 0
  %3798 = vmatpush1.bf16.msra.mxu0 0
  %3799 = vmatprep.subr.bf16.mxu0 0
  %3800 = vmatpush1.bf16.msra.mxu0 0
  %3801 = vmatprep.subr.bf16.mxu0 0
  %3802 = vmatpush1.bf16.msra.mxu0 0
  %3803 = vmatprep.subr.bf16.mxu0 0
  %3804 = vmatpush1.bf16.msra.mxu0 0
  %3805 = vmatprep.subr.bf16.mxu0 0
  %3806 = vmatpush1.bf16.msra.mxu0 0
  %3807 = vmatprep.subr.bf16.mxu0 0
  %3808 = vmatpush1.bf16.msra.mxu0 0
  %3809 = vmatprep.subr.bf16.mxu0 0
  %3810 = vmatpush1.bf16.msra.mxu0 0
  %3811 = vmatprep.mubr.bf16.mxu0 0
  %3812 = vmatmul.mubr.bf16.gmra.mrb[0].mxu0 %v3729
  %v3813 = vpop.f32.mrb[0].mxu0
  %v3814 = vadd.f32 0.0, %v3813
  %v3815 = vpop.f32.mrb[0].mxu0
  %v3816 = vpop.f32.mrb[0].mxu0
  %v3817 = vpop.f32.mrb[0].mxu0
  %3818 = vdwg.mxu0
  %v3819 = vadd.f32 %v3710, %v3814
  %s3820 = scalar_lea.vmem %s3, 1152
  %v3821 = vld [vmem:[%s3820] sm:$0xf]
  %v3822 = vld [vmem:[%s3820 + $0x4] sm:$0xf]
  %v3823 = vld [vmem:[%s3820 + $0x8] sm:$0xf]
  %v3824 = vld [vmem:[%s3820 + $0xc] sm:$0xf]
  %v3825 = vld [vmem:[%s3820 + $0x10] sm:$0xf]
  %v3826 = vld [vmem:[%s3820 + $0x14] sm:$0xf]
  %v3827 = vld [vmem:[%s3820 + $0x18] sm:$0xf]
  %v3828 = vld [vmem:[%s3820 + $0x1c] sm:$0xf]
  %v3829 = vld [vmem:[%s3820 + $0x20] sm:$0xf]
  %v3830 = vld [vmem:[%s3820 + $0x24] sm:$0xf]
  %v3831 = vld [vmem:[%s3820 + $0x28] sm:$0xf]
  %v3832 = vld [vmem:[%s3820 + $0x2c] sm:$0xf]
  %v3833 = vld [vmem:[%s3820 + $0x30] sm:$0xf]
  %v3834 = vld [vmem:[%s3820 + $0x34] sm:$0xf]
  %v3835 = vld [vmem:[%s3820 + $0x38] sm:$0xf]
  %v3836 = vld [vmem:[%s3820 + $0x3c] sm:$0xf]
  %v3853 = vunpack.c.l.b16 %v3821
  %v3854 = vunpack.c.l.b16 %v3822
  %v3855 = vunpack.c.l.b16 %v3823
  %v3856 = vunpack.c.l.b16 %v3824
  %v3857 = vunpack.c.l.b16 %v3825
  %v3858 = vunpack.c.l.b16 %v3826
  %v3859 = vunpack.c.l.b16 %v3827
  %v3860 = vunpack.c.l.b16 %v3828
  %v3861 = vunpack.c.l.b16 %v3829
  %v3862 = vunpack.c.l.b16 %v3830
  %v3863 = vunpack.c.l.b16 %v3831
  %v3864 = vunpack.c.l.b16 %v3832
  %v3865 = vunpack.c.l.b16 %v3833
  %v3866 = vunpack.c.l.b16 %v3834
  %v3867 = vunpack.c.l.b16 %v3835
  %v3868 = vunpack.c.l.b16 %v3836
  %v3869 = vpack.c.b16 %v3854, %v3853
  %v3870 = vpack.c.b16 %v3856, %v3855
  %v3871 = vpack.c.b16 %v3858, %v3857
  %v3872 = vpack.c.b16 %v3860, %v3859
  %v3873 = vpack.c.b16 %v3862, %v3861
  %v3874 = vpack.c.b16 %v3864, %v3863
  %v3875 = vpack.c.b16 %v3866, %v3865
  %v3876 = vpack.c.b16 %v3868, %v3867
  %3885 = vmatprep.subr.bf16.mxu0 0
  %3886 = vmatpush1.bf16.msra.mxu0 %v3869
  %3887 = vmatprep.subr.bf16.mxu0 0
  %3888 = vmatpush1.bf16.msra.mxu0 %v3870
  %3889 = vmatprep.subr.bf16.mxu0 0
  %3890 = vmatpush1.bf16.msra.mxu0 %v3871
  %3891 = vmatprep.subr.bf16.mxu0 0
  %3892 = vmatpush1.bf16.msra.mxu0 %v3872
  %3893 = vmatprep.subr.bf16.mxu0 0
  %3894 = vmatpush1.bf16.msra.mxu0 %v3873
  %3895 = vmatprep.subr.bf16.mxu0 0
  %3896 = vmatpush1.bf16.msra.mxu0 %v3874
  %3897 = vmatprep.subr.bf16.mxu0 0
  %3898 = vmatpush1.bf16.msra.mxu0 %v3875
  %3899 = vmatprep.subr.bf16.mxu0 0
  %3900 = vmatpush1.bf16.msra.mxu0 %v3876
  %3901 = vmatprep.subr.bf16.mxu0 0
  %3902 = vmatpush1.bf16.msra.mxu0 0
  %3903 = vmatprep.subr.bf16.mxu0 0
  %3904 = vmatpush1.bf16.msra.mxu0 0
  %3905 = vmatprep.subr.bf16.mxu0 0
  %3906 = vmatpush1.bf16.msra.mxu0 0
  %3907 = vmatprep.subr.bf16.mxu0 0
  %3908 = vmatpush1.bf16.msra.mxu0 0
  %3909 = vmatprep.subr.bf16.mxu0 0
  %3910 = vmatpush1.bf16.msra.mxu0 0
  %3911 = vmatprep.subr.bf16.mxu0 0
  %3912 = vmatpush1.bf16.msra.mxu0 0
  %3913 = vmatprep.subr.bf16.mxu0 0
  %3914 = vmatpush1.bf16.msra.mxu0 0
  %3915 = vmatprep.subr.bf16.mxu0 0
  %3916 = vmatpush1.bf16.msra.mxu0 0
  %3917 = vmatprep.mubr.bf16.mxu0 0
  %3918 = vmatmul.mubr.bf16.gmra.mrb[0].mxu0 %v1884
  %v3919 = vpop.f32.mrb[0].mxu0
  %v3920 = vadd.f32 0.0, %v3919
  %v3921 = vpop.f32.mrb[0].mxu0
  %v3922 = vpop.f32.mrb[0].mxu0
  %v3923 = vpop.f32.mrb[0].mxu0
  %3924 = vdwg.mxu0
  %v3925 = vadd.f32 %v3819, %v3920
  %s3926 = scalar_lea.vmem %s3, 1216
  %v3927 = vld [vmem:[%s3926] sm:$0xf]
  %v3928 = vld [vmem:[%s3926 + $0x4] sm:$0xf]
  %v3929 = vld [vmem:[%s3926 + $0x8] sm:$0xf]
  %v3930 = vld [vmem:[%s3926 + $0xc] sm:$0xf]
  %v3931 = vld [vmem:[%s3926 + $0x10] sm:$0xf]
  %v3932 = vld [vmem:[%s3926 + $0x14] sm:$0xf]
  %v3933 = vld [vmem:[%s3926 + $0x18] sm:$0xf]
  %v3934 = vld [vmem:[%s3926 + $0x1c] sm:$0xf]
  %v3935 = vld [vmem:[%s3926 + $0x20] sm:$0xf]
  %v3936 = vld [vmem:[%s3926 + $0x24] sm:$0xf]
  %v3937 = vld [vmem:[%s3926 + $0x28] sm:$0xf]
  %v3938 = vld [vmem:[%s3926 + $0x2c] sm:$0xf]
  %v3939 = vld [vmem:[%s3926 + $0x30] sm:$0xf]
  %v3940 = vld [vmem:[%s3926 + $0x34] sm:$0xf]
  %v3941 = vld [vmem:[%s3926 + $0x38] sm:$0xf]
  %v3942 = vld [vmem:[%s3926 + $0x3c] sm:$0xf]
  %v3944 = vrot.slane %v1884, 4
  %v3962 = vunpack.c.l.b16 %v3927
  %v3963 = vunpack.c.l.b16 %v3928
  %v3964 = vunpack.c.l.b16 %v3929
  %v3965 = vunpack.c.l.b16 %v3930
  %v3966 = vunpack.c.l.b16 %v3931
  %v3967 = vunpack.c.l.b16 %v3932
  %v3968 = vunpack.c.l.b16 %v3933
  %v3969 = vunpack.c.l.b16 %v3934
  %v3970 = vunpack.c.l.b16 %v3935
  %v3971 = vunpack.c.l.b16 %v3936
  %v3972 = vunpack.c.l.b16 %v3937
  %v3973 = vunpack.c.l.b16 %v3938
  %v3974 = vunpack.c.l.b16 %v3939
  %v3975 = vunpack.c.l.b16 %v3940
  %v3976 = vunpack.c.l.b16 %v3941
  %v3977 = vunpack.c.l.b16 %v3942
  %v3978 = vpack.c.b16 %v3963, %v3962
  %v3979 = vpack.c.b16 %v3965, %v3964
  %v3980 = vpack.c.b16 %v3967, %v3966
  %v3981 = vpack.c.b16 %v3969, %v3968
  %v3982 = vpack.c.b16 %v3971, %v3970
  %v3983 = vpack.c.b16 %v3973, %v3972
  %v3984 = vpack.c.b16 %v3975, %v3974
  %v3985 = vpack.c.b16 %v3977, %v3976
  %3994 = vmatprep.subr.bf16.mxu0 0
  %3995 = vmatpush1.bf16.msra.mxu0 %v3978
  %3996 = vmatprep.subr.bf16.mxu0 0
  %3997 = vmatpush1.bf16.msra.mxu0 %v3979
  %3998 = vmatprep.subr.bf16.mxu0 0
  %3999 = vmatpush1.bf16.msra.mxu0 %v3980
  %4000 = vmatprep.subr.bf16.mxu0 0
  %4001 = vmatpush1.bf16.msra.mxu0 %v3981
  %4002 = vmatprep.subr.bf16.mxu0 0
  %4003 = vmatpush1.bf16.msra.mxu0 %v3982
  %4004 = vmatprep.subr.bf16.mxu0 0
  %4005 = vmatpush1.bf16.msra.mxu0 %v3983
  %4006 = vmatprep.subr.bf16.mxu0 0
  %4007 = vmatpush1.bf16.msra.mxu0 %v3984
  %4008 = vmatprep.subr.bf16.mxu0 0
  %4009 = vmatpush1.bf16.msra.mxu0 %v3985
  %4010 = vmatprep.subr.bf16.mxu0 0
  %4011 = vmatpush1.bf16.msra.mxu0 0
  %4012 = vmatprep.subr.bf16.mxu0 0
  %4013 = vmatpush1.bf16.msra.mxu0 0
  %4014 = vmatprep.subr.bf16.mxu0 0
  %4015 = vmatpush1.bf16.msra.mxu0 0
  %4016 = vmatprep.subr.bf16.mxu0 0
  %4017 = vmatpush1.bf16.msra.mxu0 0
  %4018 = vmatprep.subr.bf16.mxu0 0
  %4019 = vmatpush1.bf16.msra.mxu0 0
  %4020 = vmatprep.subr.bf16.mxu0 0
  %4021 = vmatpush1.bf16.msra.mxu0 0
  %4022 = vmatprep.subr.bf16.mxu0 0
  %4023 = vmatpush1.bf16.msra.mxu0 0
  %4024 = vmatprep.subr.bf16.mxu0 0
  %4025 = vmatpush1.bf16.msra.mxu0 0
  %4026 = vmatprep.mubr.bf16.mxu0 0
  %4027 = vmatmul.mubr.bf16.gmra.mrb[0].mxu0 %v3944
  %v4028 = vpop.f32.mrb[0].mxu0
  %v4029 = vadd.f32 0.0, %v4028
  %v4030 = vpop.f32.mrb[0].mxu0
  %v4031 = vpop.f32.mrb[0].mxu0
  %v4032 = vpop.f32.mrb[0].mxu0
  %4033 = vdwg.mxu0
  %v4034 = vadd.f32 %v3925, %v4029
  %s4035 = scalar_lea.vmem %s3, 1280
  %v4036 = vld [vmem:[%s4035] sm:$0xf]
  %v4037 = vld [vmem:[%s4035 + $0x4] sm:$0xf]
  %v4038 = vld [vmem:[%s4035 + $0x8] sm:$0xf]
  %v4039 = vld [vmem:[%s4035 + $0xc] sm:$0xf]
  %v4040 = vld [vmem:[%s4035 + $0x10] sm:$0xf]
  %v4041 = vld [vmem:[%s4035 + $0x14] sm:$0xf]
  %v4042 = vld [vmem:[%s4035 + $0x18] sm:$0xf]
  %v4043 = vld [vmem:[%s4035 + $0x1c] sm:$0xf]
  %v4044 = vld [vmem:[%s4035 + $0x20] sm:$0xf]
  %v4045 = vld [vmem:[%s4035 + $0x24] sm:$0xf]
  %v4046 = vld [vmem:[%s4035 + $0x28] sm:$0xf]
  %v4047 = vld [vmem:[%s4035 + $0x2c] sm:$0xf]
  %v4048 = vld [vmem:[%s4035 + $0x30] sm:$0xf]
  %v4049 = vld [vmem:[%s4035 + $0x34] sm:$0xf]
  %v4050 = vld [vmem:[%s4035 + $0x38] sm:$0xf]
  %v4051 = vld [vmem:[%s4035 + $0x3c] sm:$0xf]
  %v4068 = vunpack.c.l.b16 %v4036
  %v4069 = vunpack.c.l.b16 %v4037
  %v4070 = vunpack.c.l.b16 %v4038
  %v4071 = vunpack.c.l.b16 %v4039
  %v4072 = vunpack.c.l.b16 %v4040
  %v4073 = vunpack.c.l.b16 %v4041
  %v4074 = vunpack.c.l.b16 %v4042
  %v4075 = vunpack.c.l.b16 %v4043
  %v4076 = vunpack.c.l.b16 %v4044
  %v4077 = vunpack.c.l.b16 %v4045
  %v4078 = vunpack.c.l.b16 %v4046
  %v4079 = vunpack.c.l.b16 %v4047
  %v4080 = vunpack.c.l.b16 %v4048
  %v4081 = vunpack.c.l.b16 %v4049
  %v4082 = vunpack.c.l.b16 %v4050
  %v4083 = vunpack.c.l.b16 %v4051
  %v4084 = vpack.c.b16 %v4069, %v4068
  %v4085 = vpack.c.b16 %v4071, %v4070
  %v4086 = vpack.c.b16 %v4073, %v4072
  %v4087 = vpack.c.b16 %v4075, %v4074
  %v4088 = vpack.c.b16 %v4077, %v4076
  %v4089 = vpack.c.b16 %v4079, %v4078
  %v4090 = vpack.c.b16 %v4081, %v4080
  %v4091 = vpack.c.b16 %v4083, %v4082
  %4100 = vmatprep.subr.bf16.mxu0 0
  %4101 = vmatpush1.bf16.msra.mxu0 %v4084
  %4102 = vmatprep.subr.bf16.mxu0 0
  %4103 = vmatpush1.bf16.msra.mxu0 %v4085
  %4104 = vmatprep.subr.bf16.mxu0 0
  %4105 = vmatpush1.bf16.msra.mxu0 %v4086
  %4106 = vmatprep.subr.bf16.mxu0 0
  %4107 = vmatpush1.bf16.msra.mxu0 %v4087
  %4108 = vmatprep.subr.bf16.mxu0 0
  %4109 = vmatpush1.bf16.msra.mxu0 %v4088
  %4110 = vmatprep.subr.bf16.mxu0 0
  %4111 = vmatpush1.bf16.msra.mxu0 %v4089
  %4112 = vmatprep.subr.bf16.mxu0 0
  %4113 = vmatpush1.bf16.msra.mxu0 %v4090
  %4114 = vmatprep.subr.bf16.mxu0 0
  %4115 = vmatpush1.bf16.msra.mxu0 %v4091
  %4116 = vmatprep.subr.bf16.mxu0 0
  %4117 = vmatpush1.bf16.msra.mxu0 0
  %4118 = vmatprep.subr.bf16.mxu0 0
  %4119 = vmatpush1.bf16.msra.mxu0 0
  %4120 = vmatprep.subr.bf16.mxu0 0
  %4121 = vmatpush1.bf16.msra.mxu0 0
  %4122 = vmatprep.subr.bf16.mxu0 0
  %4123 = vmatpush1.bf16.msra.mxu0 0
  %4124 = vmatprep.subr.bf16.mxu0 0
  %4125 = vmatpush1.bf16.msra.mxu0 0
  %4126 = vmatprep.subr.bf16.mxu0 0
  %4127 = vmatpush1.bf16.msra.mxu0 0
  %4128 = vmatprep.subr.bf16.mxu0 0
  %4129 = vmatpush1.bf16.msra.mxu0 0
  %4130 = vmatprep.subr.bf16.mxu0 0
  %4131 = vmatpush1.bf16.msra.mxu0 0
  %4132 = vmatprep.mubr.bf16.mxu0 0
  %4133 = vmatmul.mubr.bf16.gmra.mrb[0].mxu0 %v1885
  %v4134 = vpop.f32.mrb[0].mxu0
  %v4135 = vadd.f32 0.0, %v4134
  %v4136 = vpop.f32.mrb[0].mxu0
  %v4137 = vpop.f32.mrb[0].mxu0
  %v4138 = vpop.f32.mrb[0].mxu0
  %4139 = vdwg.mxu0
  %v4140 = vadd.f32 %v4034, %v4135
  %s4141 = scalar_lea.vmem %s3, 1344
  %v4142 = vld [vmem:[%s4141] sm:$0xf]
  %v4143 = vld [vmem:[%s4141 + $0x4] sm:$0xf]
  %v4144 = vld [vmem:[%s4141 + $0x8] sm:$0xf]
  %v4145 = vld [vmem:[%s4141 + $0xc] sm:$0xf]
  %v4146 = vld [vmem:[%s4141 + $0x10] sm:$0xf]
  %v4147 = vld [vmem:[%s4141 + $0x14] sm:$0xf]
  %v4148 = vld [vmem:[%s4141 + $0x18] sm:$0xf]
  %v4149 = vld [vmem:[%s4141 + $0x1c] sm:$0xf]
  %v4150 = vld [vmem:[%s4141 + $0x20] sm:$0xf]
  %v4151 = vld [vmem:[%s4141 + $0x24] sm:$0xf]
  %v4152 = vld [vmem:[%s4141 + $0x28] sm:$0xf]
  %v4153 = vld [vmem:[%s4141 + $0x2c] sm:$0xf]
  %v4154 = vld [vmem:[%s4141 + $0x30] sm:$0xf]
  %v4155 = vld [vmem:[%s4141 + $0x34] sm:$0xf]
  %v4156 = vld [vmem:[%s4141 + $0x38] sm:$0xf]
  %v4157 = vld [vmem:[%s4141 + $0x3c] sm:$0xf]
  %v4159 = vrot.slane %v1885, 4
  %v4177 = vunpack.c.l.b16 %v4142
  %v4178 = vunpack.c.l.b16 %v4143
  %v4179 = vunpack.c.l.b16 %v4144
  %v4180 = vunpack.c.l.b16 %v4145
  %v4181 = vunpack.c.l.b16 %v4146
  %v4182 = vunpack.c.l.b16 %v4147
  %v4183 = vunpack.c.l.b16 %v4148
  %v4184 = vunpack.c.l.b16 %v4149
  %v4185 = vunpack.c.l.b16 %v4150
  %v4186 = vunpack.c.l.b16 %v4151
  %v4187 = vunpack.c.l.b16 %v4152
  %v4188 = vunpack.c.l.b16 %v4153
  %v4189 = vunpack.c.l.b16 %v4154
  %v4190 = vunpack.c.l.b16 %v4155
  %v4191 = vunpack.c.l.b16 %v4156
  %v4192 = vunpack.c.l.b16 %v4157
  %v4193 = vpack.c.b16 %v4178, %v4177
  %v4194 = vpack.c.b16 %v4180, %v4179
  %v4195 = vpack.c.b16 %v4182, %v4181
  %v4196 = vpack.c.b16 %v4184, %v4183
  %v4197 = vpack.c.b16 %v4186, %v4185
  %v4198 = vpack.c.b16 %v4188, %v4187
  %v4199 = vpack.c.b16 %v4190, %v4189
  %v4200 = vpack.c.b16 %v4192, %v4191
  %4209 = vmatprep.subr.bf16.mxu0 0
  %4210 = vmatpush1.bf16.msra.mxu0 %v4193
  %4211 = vmatprep.subr.bf16.mxu0 0
  %4212 = vmatpush1.bf16.msra.mxu0 %v4194
  %4213 = vmatprep.subr.bf16.mxu0 0
  %4214 = vmatpush1.bf16.msra.mxu0 %v4195
  %4215 = vmatprep.subr.bf16.mxu0 0
  %4216 = vmatpush1.bf16.msra.mxu0 %v4196
  %4217 = vmatprep.subr.bf16.mxu0 0
  %4218 = vmatpush1.bf16.msra.mxu0 %v4197
  %4219 = vmatprep.subr.bf16.mxu0 0
  %4220 = vmatpush1.bf16.msra.mxu0 %v4198
  %4221 = vmatprep.subr.bf16.mxu0 0
  %4222 = vmatpush1.bf16.msra.mxu0 %v4199
  %4223 = vmatprep.subr.bf16.mxu0 0
  %4224 = vmatpush1.bf16.msra.mxu0 %v4200
  %4225 = vmatprep.subr.bf16.mxu0 0
  %4226 = vmatpush1.bf16.msra.mxu0 0
  %4227 = vmatprep.subr.bf16.mxu0 0
  %4228 = vmatpush1.bf16.msra.mxu0 0
  %4229 = vmatprep.subr.bf16.mxu0 0
  %4230 = vmatpush1.bf16.msra.mxu0 0
  %4231 = vmatprep.subr.bf16.mxu0 0
  %4232 = vmatpush1.bf16.msra.mxu0 0
  %4233 = vmatprep.subr.bf16.mxu0 0
  %4234 = vmatpush1.bf16.msra.mxu0 0
  %4235 = vmatprep.subr.bf16.mxu0 0
  %4236 = vmatpush1.bf16.msra.mxu0 0
  %4237 = vmatprep.subr.bf16.mxu0 0
  %4238 = vmatpush1.bf16.msra.mxu0 0
  %4239 = vmatprep.subr.bf16.mxu0 0
  %4240 = vmatpush1.bf16.msra.mxu0 0
  %4241 = vmatprep.mubr.bf16.mxu0 0
  %4242 = vmatmul.mubr.bf16.gmra.mrb[0].mxu0 %v4159
  %v4243 = vpop.f32.mrb[0].mxu0
  %v4244 = vadd.f32 0.0, %v4243
  %v4245 = vpop.f32.mrb[0].mxu0
  %v4246 = vpop.f32.mrb[0].mxu0
  %v4247 = vpop.f32.mrb[0].mxu0
  %4248 = vdwg.mxu0
  %v4249 = vadd.f32 %v4140, %v4244
  %s4250 = scalar_lea.vmem %s3, 1408
  %v4251 = vld [vmem:[%s4250] sm:$0xf]
  %v4252 = vld [vmem:[%s4250 + $0x4] sm:$0xf]
  %v4253 = vld [vmem:[%s4250 + $0x8] sm:$0xf]
  %v4254 = vld [vmem:[%s4250 + $0xc] sm:$0xf]
  %v4255 = vld [vmem:[%s4250 + $0x10] sm:$0xf]
  %v4256 = vld [vmem:[%s4250 + $0x14] sm:$0xf]
  %v4257 = vld [vmem:[%s4250 + $0x18] sm:$0xf]
  %v4258 = vld [vmem:[%s4250 + $0x1c] sm:$0xf]
  %v4259 = vld [vmem:[%s4250 + $0x20] sm:$0xf]
  %v4260 = vld [vmem:[%s4250 + $0x24] sm:$0xf]
  %v4261 = vld [vmem:[%s4250 + $0x28] sm:$0xf]
  %v4262 = vld [vmem:[%s4250 + $0x2c] sm:$0xf]
  %v4263 = vld [vmem:[%s4250 + $0x30] sm:$0xf]
  %v4264 = vld [vmem:[%s4250 + $0x34] sm:$0xf]
  %v4265 = vld [vmem:[%s4250 + $0x38] sm:$0xf]
  %v4266 = vld [vmem:[%s4250 + $0x3c] sm:$0xf]
  %v4283 = vunpack.c.l.b16 %v4251
  %v4284 = vunpack.c.l.b16 %v4252
  %v4285 = vunpack.c.l.b16 %v4253
  %v4286 = vunpack.c.l.b16 %v4254
  %v4287 = vunpack.c.l.b16 %v4255
  %v4288 = vunpack.c.l.b16 %v4256
  %v4289 = vunpack.c.l.b16 %v4257
  %v4290 = vunpack.c.l.b16 %v4258
  %v4291 = vunpack.c.l.b16 %v4259
  %v4292 = vunpack.c.l.b16 %v4260
  %v4293 = vunpack.c.l.b16 %v4261
  %v4294 = vunpack.c.l.b16 %v4262
  %v4295 = vunpack.c.l.b16 %v4263
  %v4296 = vunpack.c.l.b16 %v4264
  %v4297 = vunpack.c.l.b16 %v4265
  %v4298 = vunpack.c.l.b16 %v4266
  %v4299 = vpack.c.b16 %v4284, %v4283
  %v4300 = vpack.c.b16 %v4286, %v4285
  %v4301 = vpack.c.b16 %v4288, %v4287
  %v4302 = vpack.c.b16 %v4290, %v4289
  %v4303 = vpack.c.b16 %v4292, %v4291
  %v4304 = vpack.c.b16 %v4294, %v4293
  %v4305 = vpack.c.b16 %v4296, %v4295
  %v4306 = vpack.c.b16 %v4298, %v4297
  %4315 = vmatprep.subr.bf16.mxu0 0
  %4316 = vmatpush1.bf16.msra.mxu0 %v4299
  %4317 = vmatprep.subr.bf16.mxu0 0
  %4318 = vmatpush1.bf16.msra.mxu0 %v4300
  %4319 = vmatprep.subr.bf16.mxu0 0
  %4320 = vmatpush1.bf16.msra.mxu0 %v4301
  %4321 = vmatprep.subr.bf16.mxu0 0
  %4322 = vmatpush1.bf16.msra.mxu0 %v4302
  %4323 = vmatprep.subr.bf16.mxu0 0
  %4324 = vmatpush1.bf16.msra.mxu0 %v4303
  %4325 = vmatprep.subr.bf16.mxu0 0
  %4326 = vmatpush1.bf16.msra.mxu0 %v4304
  %4327 = vmatprep.subr.bf16.mxu0 0
  %4328 = vmatpush1.bf16.msra.mxu0 %v4305
  %4329 = vmatprep.subr.bf16.mxu0 0
  %4330 = vmatpush1.bf16.msra.mxu0 %v4306
  %4331 = vmatprep.subr.bf16.mxu0 0
  %4332 = vmatpush1.bf16.msra.mxu0 0
  %4333 = vmatprep.subr.bf16.mxu0 0
  %4334 = vmatpush1.bf16.msra.mxu0 0
  %4335 = vmatprep.subr.bf16.mxu0 0
  %4336 = vmatpush1.bf16.msra.mxu0 0
  %4337 = vmatprep.subr.bf16.mxu0 0
  %4338 = vmatpush1.bf16.msra.mxu0 0
  %4339 = vmatprep.subr.bf16.mxu0 0
  %4340 = vmatpush1.bf16.msra.mxu0 0
  %4341 = vmatprep.subr.bf16.mxu0 0
  %4342 = vmatpush1.bf16.msra.mxu0 0
  %4343 = vmatprep.subr.bf16.mxu0 0
  %4344 = vmatpush1.bf16.msra.mxu0 0
  %4345 = vmatprep.subr.bf16.mxu0 0
  %4346 = vmatpush1.bf16.msra.mxu0 0
  %4347 = vmatprep.mubr.bf16.mxu0 0
  %4348 = vmatmul.mubr.bf16.gmra.mrb[0].mxu0 %v1886
  %v4349 = vpop.f32.mrb[0].mxu0
  %v4350 = vadd.f32 0.0, %v4349
  %v4351 = vpop.f32.mrb[0].mxu0
  %v4352 = vpop.f32.mrb[0].mxu0
  %v4353 = vpop.f32.mrb[0].mxu0
  %4354 = vdwg.mxu0
  %v4355 = vadd.f32 %v4249, %v4350
  %s4356 = scalar_lea.vmem %s3, 1472
  %v4357 = vld [vmem:[%s4356] sm:$0xf]
  %v4358 = vld [vmem:[%s4356 + $0x4] sm:$0xf]
  %v4359 = vld [vmem:[%s4356 + $0x8] sm:$0xf]
  %v4360 = vld [vmem:[%s4356 + $0xc] sm:$0xf]
  %v4361 = vld [vmem:[%s4356 + $0x10] sm:$0xf]
  %v4362 = vld [vmem:[%s4356 + $0x14] sm:$0xf]
  %v4363 = vld [vmem:[%s4356 + $0x18] sm:$0xf]
  %v4364 = vld [vmem:[%s4356 + $0x1c] sm:$0xf]
  %v4365 = vld [vmem:[%s4356 + $0x20] sm:$0xf]
  %v4366 = vld [vmem:[%s4356 + $0x24] sm:$0xf]
  %v4367 = vld [vmem:[%s4356 + $0x28] sm:$0xf]
  %v4368 = vld [vmem:[%s4356 + $0x2c] sm:$0xf]
  %v4369 = vld [vmem:[%s4356 + $0x30] sm:$0xf]
  %v4370 = vld [vmem:[%s4356 + $0x34] sm:$0xf]
  %v4371 = vld [vmem:[%s4356 + $0x38] sm:$0xf]
  %v4372 = vld [vmem:[%s4356 + $0x3c] sm:$0xf]
  %v4374 = vrot.slane %v1886, 4
  %v4392 = vunpack.c.l.b16 %v4357
  %v4393 = vunpack.c.l.b16 %v4358
  %v4394 = vunpack.c.l.b16 %v4359
  %v4395 = vunpack.c.l.b16 %v4360
  %v4396 = vunpack.c.l.b16 %v4361
  %v4397 = vunpack.c.l.b16 %v4362
  %v4398 = vunpack.c.l.b16 %v4363
  %v4399 = vunpack.c.l.b16 %v4364
  %v4400 = vunpack.c.l.b16 %v4365
  %v4401 = vunpack.c.l.b16 %v4366
  %v4402 = vunpack.c.l.b16 %v4367
  %v4403 = vunpack.c.l.b16 %v4368
  %v4404 = vunpack.c.l.b16 %v4369
  %v4405 = vunpack.c.l.b16 %v4370
  %v4406 = vunpack.c.l.b16 %v4371
  %v4407 = vunpack.c.l.b16 %v4372
  %v4408 = vpack.c.b16 %v4393, %v4392
  %v4409 = vpack.c.b16 %v4395, %v4394
  %v4410 = vpack.c.b16 %v4397, %v4396
  %v4411 = vpack.c.b16 %v4399, %v4398
  %v4412 = vpack.c.b16 %v4401, %v4400
  %v4413 = vpack.c.b16 %v4403, %v4402
  %v4414 = vpack.c.b16 %v4405, %v4404
  %v4415 = vpack.c.b16 %v4407, %v4406
  %4424 = vmatprep.subr.bf16.mxu0 0
  %4425 = vmatpush1.bf16.msra.mxu0 %v4408
  %4426 = vmatprep.subr.bf16.mxu0 0
  %4427 = vmatpush1.bf16.msra.mxu0 %v4409
  %4428 = vmatprep.subr.bf16.mxu0 0
  %4429 = vmatpush1.bf16.msra.mxu0 %v4410
  %4430 = vmatprep.subr.bf16.mxu0 0
  %4431 = vmatpush1.bf16.msra.mxu0 %v4411
  %4432 = vmatprep.subr.bf16.mxu0 0
  %4433 = vmatpush1.bf16.msra.mxu0 %v4412
  %4434 = vmatprep.subr.bf16.mxu0 0
  %4435 = vmatpush1.bf16.msra.mxu0 %v4413
  %4436 = vmatprep.subr.bf16.mxu0 0
  %4437 = vmatpush1.bf16.msra.mxu0 %v4414
  %4438 = vmatprep.subr.bf16.mxu0 0
  %4439 = vmatpush1.bf16.msra.mxu0 %v4415
  %4440 = vmatprep.subr.bf16.mxu0 0
  %4441 = vmatpush1.bf16.msra.mxu0 0
  %4442 = vmatprep.subr.bf16.mxu0 0
  %4443 = vmatpush1.bf16.msra.mxu0 0
  %4444 = vmatprep.subr.bf16.mxu0 0
  %4445 = vmatpush1.bf16.msra.mxu0 0
  %4446 = vmatprep.subr.bf16.mxu0 0
  %4447 = vmatpush1.bf16.msra.mxu0 0
  %4448 = vmatprep.subr.bf16.mxu0 0
  %4449 = vmatpush1.bf16.msra.mxu0 0
  %4450 = vmatprep.subr.bf16.mxu0 0
  %4451 = vmatpush1.bf16.msra.mxu0 0
  %4452 = vmatprep.subr.bf16.mxu0 0
  %4453 = vmatpush1.bf16.msra.mxu0 0
  %4454 = vmatprep.subr.bf16.mxu0 0
  %4455 = vmatpush1.bf16.msra.mxu0 0
  %4456 = vmatprep.mubr.bf16.mxu0 0
  %4457 = vmatmul.mubr.bf16.gmra.mrb[0].mxu0 %v4374
  %v4458 = vpop.f32.mrb[0].mxu0
  %v4459 = vadd.f32 0.0, %v4458
  %v4460 = vpop.f32.mrb[0].mxu0
  %v4461 = vpop.f32.mrb[0].mxu0
  %v4462 = vpop.f32.mrb[0].mxu0
  %4463 = vdwg.mxu0
  %v4464 = vadd.f32 %v4355, %v4459
  %s4465 = scalar_lea.vmem %s3, 1536
  %v4466 = vld [vmem:[%s4465] sm:$0xf]
  %v4467 = vld [vmem:[%s4465 + $0x4] sm:$0xf]
  %v4468 = vld [vmem:[%s4465 + $0x8] sm:$0xf]
  %v4469 = vld [vmem:[%s4465 + $0xc] sm:$0xf]
  %v4470 = vld [vmem:[%s4465 + $0x10] sm:$0xf]
  %v4471 = vld [vmem:[%s4465 + $0x14] sm:$0xf]
  %v4472 = vld [vmem:[%s4465 + $0x18] sm:$0xf]
  %v4473 = vld [vmem:[%s4465 + $0x1c] sm:$0xf]
  %v4474 = vld [vmem:[%s4465 + $0x20] sm:$0xf]
  %v4475 = vld [vmem:[%s4465 + $0x24] sm:$0xf]
  %v4476 = vld [vmem:[%s4465 + $0x28] sm:$0xf]
  %v4477 = vld [vmem:[%s4465 + $0x2c] sm:$0xf]
  %v4478 = vld [vmem:[%s4465 + $0x30] sm:$0xf]
  %v4479 = vld [vmem:[%s4465 + $0x34] sm:$0xf]
  %v4480 = vld [vmem:[%s4465 + $0x38] sm:$0xf]
  %v4481 = vld [vmem:[%s4465 + $0x3c] sm:$0xf]
  %v4498 = vunpack.c.l.b16 %v4466
  %v4499 = vunpack.c.l.b16 %v4467
  %v4500 = vunpack.c.l.b16 %v4468
  %v4501 = vunpack.c.l.b16 %v4469
  %v4502 = vunpack.c.l.b16 %v4470
  %v4503 = vunpack.c.l.b16 %v4471
  %v4504 = vunpack.c.l.b16 %v4472
  %v4505 = vunpack.c.l.b16 %v4473
  %v4506 = vunpack.c.l.b16 %v4474
  %v4507 = vunpack.c.l.b16 %v4475
  %v4508 = vunpack.c.l.b16 %v4476
  %v4509 = vunpack.c.l.b16 %v4477
  %v4510 = vunpack.c.l.b16 %v4478
  %v4511 = vunpack.c.l.b16 %v4479
  %v4512 = vunpack.c.l.b16 %v4480
  %v4513 = vunpack.c.l.b16 %v4481
  %v4514 = vpack.c.b16 %v4499, %v4498
  %v4515 = vpack.c.b16 %v4501, %v4500
  %v4516 = vpack.c.b16 %v4503, %v4502
  %v4517 = vpack.c.b16 %v4505, %v4504
  %v4518 = vpack.c.b16 %v4507, %v4506
  %v4519 = vpack.c.b16 %v4509, %v4508
  %v4520 = vpack.c.b16 %v4511, %v4510
  %v4521 = vpack.c.b16 %v4513, %v4512
  %4530 = vmatprep.subr.bf16.mxu0 0
  %4531 = vmatpush1.bf16.msra.mxu0 %v4514
  %4532 = vmatprep.subr.bf16.mxu0 0
  %4533 = vmatpush1.bf16.msra.mxu0 %v4515
  %4534 = vmatprep.subr.bf16.mxu0 0
  %4535 = vmatpush1.bf16.msra.mxu0 %v4516
  %4536 = vmatprep.subr.bf16.mxu0 0
  %4537 = vmatpush1.bf16.msra.mxu0 %v4517
  %4538 = vmatprep.subr.bf16.mxu0 0
  %4539 = vmatpush1.bf16.msra.mxu0 %v4518
  %4540 = vmatprep.subr.bf16.mxu0 0
  %4541 = vmatpush1.bf16.msra.mxu0 %v4519
  %4542 = vmatprep.subr.bf16.mxu0 0
  %4543 = vmatpush1.bf16.msra.mxu0 %v4520
  %4544 = vmatprep.subr.bf16.mxu0 0
  %4545 = vmatpush1.bf16.msra.mxu0 %v4521
  %4546 = vmatprep.subr.bf16.mxu0 0
  %4547 = vmatpush1.bf16.msra.mxu0 0
  %4548 = vmatprep.subr.bf16.mxu0 0
  %4549 = vmatpush1.bf16.msra.mxu0 0
  %4550 = vmatprep.subr.bf16.mxu0 0
  %4551 = vmatpush1.bf16.msra.mxu0 0
  %4552 = vmatprep.subr.bf16.mxu0 0
  %4553 = vmatpush1.bf16.msra.mxu0 0
  %4554 = vmatprep.subr.bf16.mxu0 0
  %4555 = vmatpush1.bf16.msra.mxu0 0
  %4556 = vmatprep.subr.bf16.mxu0 0
  %4557 = vmatpush1.bf16.msra.mxu0 0
  %4558 = vmatprep.subr.bf16.mxu0 0
  %4559 = vmatpush1.bf16.msra.mxu0 0
  %4560 = vmatprep.subr.bf16.mxu0 0
  %4561 = vmatpush1.bf16.msra.mxu0 0
  %4562 = vmatprep.mubr.bf16.mxu0 0
  %4563 = vmatmul.mubr.bf16.gmra.mrb[0].mxu0 %v1887
  %v4564 = vpop.f32.mrb[0].mxu0
  %v4565 = vadd.f32 0.0, %v4564
  %v4566 = vpop.f32.mrb[0].mxu0
  %v4567 = vpop.f32.mrb[0].mxu0
  %v4568 = vpop.f32.mrb[0].mxu0
  %4569 = vdwg.mxu0
  %v4570 = vadd.f32 %v4464, %v4565
  %v4571 = vld [vmem:[%s4] sm:$0x1]
  %v4573 = vlaneseq
  %v4574 = vshrl.u32 %v4573, 7
  %v4575 = vsub.s32 0, %v4574
  %v4576 = vrot.slane %v4571, %v4575
  %v4578 = vadd.f32 %v4570, %v4576
  %v4579 = vmax.f32 %v4578, 0.0
  %v4580 = vpack.c.bf16 %v4579, %v4579
  %v4581 = vld [vmem:[%s5] sm:$0xf]
  %v4582 = vld [vmem:[%s5 + $0x4] sm:$0xf]
  %v4583 = vld [vmem:[%s5 + $0x8] sm:$0xf]
  %v4584 = vld [vmem:[%s5 + $0xc] sm:$0xf]
  %v4585 = vld [vmem:[%s5 + $0x10] sm:$0xf]
  %v4586 = vld [vmem:[%s5 + $0x14] sm:$0xf]
  %v4587 = vld [vmem:[%s5 + $0x18] sm:$0xf]
  %v4588 = vld [vmem:[%s5 + $0x1c] sm:$0xf]
  %v4589 = vld [vmem:[%s5 + $0x20] sm:$0xf]
  %v4590 = vld [vmem:[%s5 + $0x24] sm:$0xf]
  %v4591 = vld [vmem:[%s5 + $0x28] sm:$0xf]
  %v4592 = vld [vmem:[%s5 + $0x2c] sm:$0xf]
  %v4593 = vld [vmem:[%s5 + $0x30] sm:$0xf]
  %v4594 = vld [vmem:[%s5 + $0x34] sm:$0xf]
  %v4595 = vld [vmem:[%s5 + $0x38] sm:$0xf]
  %v4596 = vld [vmem:[%s5 + $0x3c] sm:$0xf]
  %v4597 = vld [vmem:[%s6] sm:$0x1]
  %v4599 = vlaneseq
  %v4600 = vshrl.u32 %v4599, 7
  %v4601 = vsub.s32 0, %v4600
  %v4602 = vrot.slane %v4597, %v4601
  %v4620 = vunpack.c.l.b16 %v4581
  %v4621 = vunpack.c.l.b16 %v4582
  %v4622 = vunpack.c.l.b16 %v4583
  %v4623 = vunpack.c.l.b16 %v4584
  %v4624 = vunpack.c.l.b16 %v4585
  %v4625 = vunpack.c.l.b16 %v4586
  %v4626 = vunpack.c.l.b16 %v4587
  %v4627 = vunpack.c.l.b16 %v4588
  %v4628 = vunpack.c.l.b16 %v4589
  %v4629 = vunpack.c.l.b16 %v4590
  %v4630 = vunpack.c.l.b16 %v4591
  %v4631 = vunpack.c.l.b16 %v4592
  %v4632 = vunpack.c.l.b16 %v4593
  %v4633 = vunpack.c.l.b16 %v4594
  %v4634 = vunpack.c.l.b16 %v4595
  %v4635 = vunpack.c.l.b16 %v4596
  %v4636 = vpack.c.b16 %v4621, %v4620
  %v4637 = vpack.c.b16 %v4623, %v4622
  %v4638 = vpack.c.b16 %v4625, %v4624
  %v4639 = vpack.c.b16 %v4627, %v4626
  %v4640 = vpack.c.b16 %v4629, %v4628
  %v4641 = vpack.c.b16 %v4631, %v4630
  %v4642 = vpack.c.b16 %v4633, %v4632
  %v4643 = vpack.c.b16 %v4635, %v4634
  %4652 = vmatprep.subr.bf16.mxu0 0
  %4653 = vmatpush1.bf16.msra.mxu0 %v4636
  %4654 = vmatprep.subr.bf16.mxu0 0
  %4655 = vmatpush1.bf16.msra.mxu0 %v4637
  %4656 = vmatprep.subr.bf16.mxu0 0
  %4657 = vmatpush1.bf16.msra.mxu0 %v4638
  %4658 = vmatprep.subr.bf16.mxu0 0
  %4659 = vmatpush1.bf16.msra.mxu0 %v4639
  %4660 = vmatprep.subr.bf16.mxu0 0
  %4661 = vmatpush1.bf16.msra.mxu0 %v4640
  %4662 = vmatprep.subr.bf16.mxu0 0
  %4663 = vmatpush1.bf16.msra.mxu0 %v4641
  %4664 = vmatprep.subr.bf16.mxu0 0
  %4665 = vmatpush1.bf16.msra.mxu0 %v4642
  %4666 = vmatprep.subr.bf16.mxu0 0
  %4667 = vmatpush1.bf16.msra.mxu0 %v4643
  %4668 = vmatprep.subr.bf16.mxu0 0
  %4669 = vmatpush1.bf16.msra.mxu0 0
  %4670 = vmatprep.subr.bf16.mxu0 0
  %4671 = vmatpush1.bf16.msra.mxu0 0
  %4672 = vmatprep.subr.bf16.mxu0 0
  %4673 = vmatpush1.bf16.msra.mxu0 0
  %4674 = vmatprep.subr.bf16.mxu0 0
  %4675 = vmatpush1.bf16.msra.mxu0 0
  %4676 = vmatprep.subr.bf16.mxu0 0
  %4677 = vmatpush1.bf16.msra.mxu0 0
  %4678 = vmatprep.subr.bf16.mxu0 0
  %4679 = vmatpush1.bf16.msra.mxu0 0
  %4680 = vmatprep.subr.bf16.mxu0 0
  %4681 = vmatpush1.bf16.msra.mxu0 0
  %4682 = vmatprep.subr.bf16.mxu0 0
  %4683 = vmatpush1.bf16.msra.mxu0 0
  %4684 = vmatprep.mubr.bf16.mxu0 0
  %4685 = vmatmul.mubr.bf16.gmra.mrb[0].mxu0 %v4580
  %v4686 = vpop.f32.mrb[0].mxu0
  %v4687 = vadd.f32 %v4602, %v4686
  %v4688 = vpop.f32.mrb[0].mxu0
  %v4689 = vpop.f32.mrb[0].mxu0
  %v4690 = vpop.f32.mrb[0].mxu0
  %4691 = vdwg.mxu0
  %vm4692 = vcmask 80896
  %v4693 = vsel %vm4692, %v4687, -inf
  %4694 = vmax.xlane.f32.xlu0 %v4693
  %v4695 = vpop.xlane.xlu0 %4694
  %v4696 = vsub.f32 %v4687, %v4695
  %v4697 = vmul.f32 %v4696, 1.442695
  %v4698 = vpow.pop %v4697
  %v4699 = vsel %vm4692, %v4698, 0.0
  %4700 = vadd.xlane.f32.xlu0 %v4699
  %v4701 = vpop.xlane.xlu0 %4700
  %v4702 = vlog2.pop %v4701
  %v4703 = vmul.f32 %v4702, 0.6931472
  %v4704 = vsub.f32 %v4696, %v4703
  %4705 = vst.msk [vmem:[%s7] sm:$0xff] %vm4692, %v4704
  // Predicated region
  $region30: #{network_forward.3} parent=0 // pred_check
    _
  $region31: #{network_forward.3} parent=0 // pred_check_branch
    %4707 = sbr.rel (0) target = $region33
  $region32: #{network_forward.3} parent=0 // pred_region
    _
  $region33: #{network_forward.3} parent=0 // pred_fallthru
    _
  // Predicated region
  $region34: #{network_forward.3} parent=0 // pred_check
    _
  $region35: #{network_forward.3} parent=0 // pred_check_branch
    %4709 = sbr.rel (0) target = $region37
  $region36: #{network_forward.3} parent=0 // pred_region
    _
  $region37: #{network_forward.3} parent=0 // pred_fallthru
    _

</llo_original>
